<compile_context>
chip_gen: v5e
topology: v5e:2x2
jax: 0.10.0
libtpu: 0.0.40
codegen_flags: <defaults>
</compile_context>

<pallas_src>
import functools
import numpy as np

import jax
import jax.numpy as jnp
from jax.experimental import pallas as pl
from jax.experimental.pallas import tpu as pltpu

F32 = jnp.float32
BF16 = jnp.bfloat16
LANE = 128


def _round_up(x, m):
    return ((x + m - 1) // m) * m


def _row_tile(M):
    """Row tile: full when tiny, otherwise a divisor giving >=2 grid steps (v7x TCs)."""
    if M <= 256:
        return M
    for t in (1024, 512, 256, 128, 64, 32, 16, 8):
        if t * 2 <= M and M % t == 0:
            return t
    return M


def _gather_tile(M):
    if M <= 256:
        return M
    return 256 if M % 256 == 0 else 128


# ----------------------------------------------------------------------------
# Pallas kernels
# ----------------------------------------------------------------------------
def _linear_kernel(*refs, act, has_bias, has_add):
    it = iter(refs)
    x_ref = next(it)
    w_ref = next(it)
    b_ref = next(it) if has_bias else None
    a_ref = next(it) if has_add else None
    o_ref = next(it)
    y = jnp.dot(x_ref[...].astype(BF16), w_ref[...],
                preferred_element_type=jnp.float32)
    if has_bias:
        y = y + b_ref[...]
    if act:                                   # SiLU (DimeNet++ activation)
        y = y * jax.nn.sigmoid(y)
    if has_add:
        y = y + a_ref[...].astype(jnp.float32)
    o_ref[...] = y.astype(o_ref.dtype)


def linear(x, w, b=None, act=False, add=None, out_dtype=F32):
    """y = [act](x @ w + b) [+ add]; rows tiled, weights resident, f32 accumulate."""
    M, K = x.shape
    Kw, N = w.shape
    assert K == Kw
    tm = _row_tile(M)
    in_specs = [pl.BlockSpec((tm, K), lambda i: (i, 0)),
                pl.BlockSpec((K, N), lambda i: (0, 0))]
    args = [x, w]
    if b is not None:
        in_specs.append(pl.BlockSpec((1, N), lambda i: (0, 0)))
        args.append(b)
    if add is not None:
        in_specs.append(pl.BlockSpec((tm, N), lambda i: (i, 0)))
        args.append(add)
    return pl.pallas_call(
        functools.partial(_linear_kernel, act=act, has_bias=b is not None,
                          has_add=add is not None),
        grid=(M // tm,),
        in_specs=in_specs,
        out_specs=pl.BlockSpec((tm, N), lambda i: (i, 0)),
        out_shape=jax.ShapeDtypeStruct((M, N), out_dtype),
        compiler_params=pltpu.CompilerParams(dimension_semantics=("parallel",)),
    )(*args)


def _emb_kernel(xi_ref, xj_ref, rbf_ref, wr_ref, br_ref,
                w1_ref, w2_ref, w3_ref, b_ref, o_ref):
    # act(lin_rbf(rbf)) fused with act(lin(cat[x_i, x_j, rbf_h])) (split weight).
    r = jnp.dot(rbf_ref[...].astype(BF16), wr_ref[...],
                preferred_element_type=jnp.float32) + br_ref[...]
    r = r * jax.nn.sigmoid(r)
    y = (jnp.dot(xi_ref[...].astype(BF16), w1_ref[...],
                 preferred_element_type=jnp.float32)
         + jnp.dot(xj_ref[...].astype(BF16), w2_ref[...],
                   preferred_element_type=jnp.float32)
         + jnp.dot(r.astype(BF16), w3_ref[...],
                   preferred_element_type=jnp.float32)
         + b_ref[...])
    y = y * jax.nn.sigmoid(y)
    o_ref[...] = y.astype(o_ref.dtype)


def emb_block(xi, xj, rbf_p, p):
    M, HP = xi.shape
    RP = rbf_p.shape[1]
    tm = _row_tile(M)
    return pl.pallas_call(
        _emb_kernel,
        grid=(M // tm,),
        in_specs=[pl.BlockSpec((tm, HP), lambda i: (i, 0)),
                  pl.BlockSpec((tm, HP), lambda i: (i, 0)),
                  pl.BlockSpec((tm, RP), lambda i: (i, 0)),
                  pl.BlockSpec((RP, HP), lambda i: (0, 0)),
                  pl.BlockSpec((1, HP), lambda i: (0, 0)),
                  pl.BlockSpec((HP, HP), lambda i: (0, 0)),
                  pl.BlockSpec((HP, HP), lambda i: (0, 0)),
                  pl.BlockSpec((HP, HP), lambda i: (0, 0)),
                  pl.BlockSpec((1, HP), lambda i: (0, 0))],
        out_specs=pl.BlockSpec((tm, HP), lambda i: (i, 0)),
        out_shape=jax.ShapeDtypeStruct((M, HP), F32),
        compiler_params=pltpu.CompilerParams(dimension_semantics=("parallel",)),
    )(xi, xj, rbf_p, p["emb_rbf_w"], p["emb_rbf_b"],
      p["emb_w1"], p["emb_w2"], p["emb_w3"], p["emb_b"])


def _iact_front_kernel(x_ref, wjk_ref, bjk_ref, rbfh_ref, wdown_ref,
                       oji_ref, odown_ref, *, hp):
    # One wide (HP,2HP) matmul for lin_ji||lin_kj, then *rbf and lin_down fused.
    x = x_ref[...].astype(BF16)
    h = jnp.dot(x, wjk_ref[...], preferred_element_type=jnp.float32) + bjk_ref[...]
    h = h * jax.nn.sigmoid(h)
    x_ji = h[:, :hp]
    x_kj = h[:, hp:] * rbfh_ref[...].astype(jnp.float32)
    d = jnp.dot(x_kj.astype(BF16), wdown_ref[...],
                preferred_element_type=jnp.float32)
    d = d * jax.nn.sigmoid(d)
    oji_ref[...] = x_ji.astype(oji_ref.dtype)
    odown_ref[...] = d.astype(odown_ref.dtype)


def iact_front(x, w_jikj, b_jikj, rbf_h, w_down, hp, ip_dim):
    M = x.shape[0]
    tm = _row_tile(M)
    n2 = w_jikj.shape[1]
    return pl.pallas_call(
        functools.partial(_iact_front_kernel, hp=hp),
        grid=(M // tm,),
        in_specs=[pl.BlockSpec((tm, hp), lambda i: (i, 0)),
                  pl.BlockSpec((hp, n2), lambda i: (0, 0)),
                  pl.BlockSpec((1, n2), lambda i: (0, 0)),
                  pl.BlockSpec((tm, hp), lambda i: (i, 0)),
                  pl.BlockSpec((hp, ip_dim), lambda i: (0, 0))],
        out_specs=[pl.BlockSpec((tm, hp), lambda i: (i, 0)),
                   pl.BlockSpec((tm, ip_dim), lambda i: (i, 0))],
        out_shape=(jax.ShapeDtypeStruct((M, hp), F32),
                   jax.ShapeDtypeStruct((M, ip_dim), BF16)),
        compiler_params=pltpu.CompilerParams(dimension_semantics=("parallel",)),
    )(x, w_jikj, b_jikj, rbf_h, w_down)


def _trip_gather_kernel(idx_ref, x_ref, sbf_ref, o_ref):
    # Batched gather: one-hot(tt, E_pad) @ x_down, fused with sbf modulation.
    idx = idx_ref[...]                                           # (tt, 1) int32
    e = x_ref.shape[0]
    cols = jax.lax.broadcasted_iota(jnp.int32, (idx.shape[0], e), 1)
    onehot = (cols == idx).astype(BF16)
    g = jnp.dot(onehot, x_ref[...], preferred_element_type=jnp.float32)
    o_ref[...] = (g * sbf_ref[...].astype(jnp.float32)).astype(o_ref.dtype)


def trip_gather_mul(x_src, idx, sbf_h):
    """out[t] = x_src[idx[t]] * sbf_h[t]; 128/256-row tiles, x_src resident in VMEM."""
    E_src, D = x_src.shape
    T = idx.shape[0]
    tt = _gather_tile(T)
    idx2 = idx.reshape(T, 1).astype(jnp.int32)
    return pl.pallas_call(
        _trip_gather_kernel,
        grid=(T // tt,),
        in_specs=[pl.BlockSpec((tt, 1), lambda i: (i, 0)),
                  pl.BlockSpec((E_src, D), lambda i: (0, 0)),
                  pl.BlockSpec((tt, D), lambda i: (i, 0))],
        out_specs=pl.BlockSpec((tt, D), lambda i: (i, 0)),
        out_shape=jax.ShapeDtypeStruct((T, D), BF16),
        compiler_params=pltpu.CompilerParams(dimension_semantics=("parallel",)),
    )(idx2, x_src, sbf_h)


def _segsum_kernel(st_ref, nc_ref, seg_ref, *rest, has_mul):
    if has_mul:
        x_ref, m_ref, o_ref = rest
    else:
        x_ref, o_ref = rest
        m_ref = None
    s = pl.program_id(0)
    k = pl.program_id(1)

    @pl.when(k == 0)
    def _():
        o_ref[...] = jnp.zeros_like(o_ref)

    @pl.when(k < nc_ref[s])
    def _():
        seg = seg_ref[...]                                       # (1, tm) int32
        ts = o_ref.shape[0]
        rows = jax.lax.broadcasted_iota(jnp.int32, (ts, seg.shape[1]), 0) + s * ts
        onehot = (rows == seg).astype(BF16)                      # padded rows (-1) drop
        v = x_ref[...].astype(jnp.float32)
        if has_mul:
            v = v * m_ref[...].astype(jnp.float32)
        o_ref[...] += jnp.dot(onehot, v.astype(BF16),
                              preferred_element_type=jnp.float32)


def make_seg_meta(seg_sorted, m_pad, num_segments):
    """Host-side window metadata: seg ids are sorted, so each segment tile only needs
    to reduce over a contiguous chunk window of the input rows."""
    seg_sorted = np.asarray(seg_sorted, np.int32)
    m = seg_sorted.shape[0]
    assert m <= m_pad
    assert np.all(np.diff(seg_sorted) >= 0), "segment ids must be sorted"
    if num_segments <= 256:
        s_pad = _round_up(max(int(num_segments), 1), 8)
        ts = s_pad
    elif num_segments % 256 == 0:
        s_pad, ts = int(num_segments), 256
    elif num_segments % 128 == 0:
        s_pad, ts = int(num_segments), 128
    else:
        s_pad = _round_up(int(num_segments), 256)
        ts = 256
    tm = m_pad
    for t in (256, 128, 64, 32, 16, 8):
        if m_pad % t == 0:
            tm = t
            break
    n_tiles = s_pad // ts
    starts = np.zeros((n_tiles,), np.int32)
    nchunks = np.zeros((n_tiles,), np.int32)
    for s in range(n_tiles):
        lo = int(np.searchsorted(seg_sorted, s * ts, side="left"))
        hi = int(np.searchsorted(seg_sorted, (s + 1) * ts, side="left"))
        if hi > lo:
            starts[s] = lo // tm
            nchunks[s] = (hi + tm - 1) // tm - lo // tm
    max_chunks = int(max(1, nchunks.max())) if n_tiles > 0 else 1
    seg_pad = np.full((1, m_pad), -1, np.int32)
    seg_pad[0, :m] = seg_sorted
    return dict(seg=seg_pad, starts=starts, nchunks=nchunks, ts=ts, tm=tm,
                s_pad=s_pad, n_tiles=n_tiles, max_chunks=max_chunks, m_pad=m_pad)


def segment_sum(x, meta, mul=None):
    """out[s] = sum_{m: seg[m]==s} x[m] [* mul[m]] using the windowed reduction."""
    M, D = x.shape
    assert M == meta["m_pad"]
    tm, ts = meta["tm"], meta["ts"]
    s_pad, n_tiles, max_chunks = meta["s_pad"], meta["n_tiles"], meta["max_chunks"]
    nblk = M // tm

    def data_map(s, k, st_ref, nc_ref):
        return (jnp.minimum(st_ref[s] + k, nblk - 1), 0)

    def seg_map(s, k, st_ref, nc_ref):
        return (0, jnp.minimum(st_ref[s] + k, nblk - 1))

    in_specs = [pl.BlockSpec((1, tm), seg_map),
                pl.BlockSpec((tm, D), data_map)]
    args = [jnp.asarray(meta["starts"]), jnp.asarray(meta["nchunks"]),
            jnp.asarray(meta["seg"]), x]
    if mul is not None:
        in_specs.append(pl.BlockSpec((tm, D), data_map))
        args.append(mul)

    gs = pltpu.PrefetchScalarGridSpec(
        num_scalar_prefetch=2,
        grid=(n_tiles, max_chunks),
        in_specs=in_specs,
        out_specs=pl.BlockSpec((ts, D), lambda s, k, st, nc: (s, 0)),
    )
    return pl.pallas_call(
        functools.partial(_segsum_kernel, has_mul=mul is not None),
        grid_spec=gs,
        out_shape=jax.ShapeDtypeStruct((s_pad, D), jnp.float32),
        compiler_params=pltpu.CompilerParams(
            dimension_semantics=("arbitrary", "arbitrary")),
    )(*args)


def _res_chain_kernel(x_ref, w1_ref, b1_ref, w2_ref, b2_ref, o_ref, *, n):
    h = x_ref[...].astype(jnp.float32)
    for l in range(n):                                    # resident stacked weights
        t = jnp.dot(h.astype(BF16), w1_ref[l],
                    preferred_element_type=jnp.float32) + b1_ref[l]
        t = t * jax.nn.sigmoid(t)
        t = jnp.dot(t.astype(BF16), w2_ref[l],
                    preferred_element_type=jnp.float32) + b2_ref[l]
        t = t * jax.nn.sigmoid(t)
        h = h + t
    o_ref[...] = h.astype(o_ref.dtype)


def res_chain(x, w1s, b1s, w2s, b2s):
    n = w1s.shape[0]
    M, D = x.shape
    tm = _row_tile(M)
    return pl.pallas_call(
        functools.partial(_res_chain_kernel, n=n),
        grid=(M // tm,),
        in_specs=[pl.BlockSpec((tm, D), lambda i: (i, 0)),
                  pl.BlockSpec((n, D, D), lambda i: (0, 0, 0)),
                  pl.BlockSpec((n, 1, D), lambda i: (0, 0, 0)),
                  pl.BlockSpec((n, D, D), lambda i: (0, 0, 0)),
                  pl.BlockSpec((n, 1, D), lambda i: (0, 0, 0))],
        out_specs=pl.BlockSpec((tm, D), lambda i: (i, 0)),
        out_shape=jax.ShapeDtypeStruct((M, D), F32),
        compiler_params=pltpu.CompilerParams(dimension_semantics=("parallel",)),
    )(x, w1s, b1s, w2s, b2s)


def _out_block_kernel(x_ref, wup_ref, wl_ref, bl_ref, o_ref, *, n_layers):
    h = jnp.dot(x_ref[...].astype(BF16), wup_ref[...],
                preferred_element_type=jnp.float32)
    for l in range(n_layers):
        h = jnp.dot(h.astype(BF16), wl_ref[l],
                    preferred_element_type=jnp.float32) + bl_ref[l]
        h = h * jax.nn.sigmoid(h)
    o_ref[...] = h.astype(o_ref.dtype)


def out_mlp(x, w_up, wls, bls):
    M, K = x.shape
    OP = w_up.shape[1]
    if wls is None:
        return linear(x, w_up)
    nl = wls.shape[0]
    tm = _row_tile(M)
    return pl.pallas_call(
        functools.partial(_out_block_kernel, n_layers=nl),
        grid=(M // tm,),
        in_specs=[pl.BlockSpec((tm, K), lambda i: (i, 0)),
                  pl.BlockSpec((K, OP), lambda i: (0, 0)),
                  pl.BlockSpec((nl, OP, OP), lambda i: (0, 0, 0)),
                  pl.BlockSpec((nl, 1, OP), lambda i: (0, 0, 0))],
        out_specs=pl.BlockSpec((tm, OP), lambda i: (i, 0)),
        out_shape=jax.ShapeDtypeStruct((M, OP), F32),
        compiler_params=pltpu.CompilerParams(dimension_semantics=("parallel",)),
    )(x, w_up, wls, bls)


# ----------------------------------------------------------------------------
# Basis functions (small elementwise glue, exact Bessel envelope) — XLA
# ----------------------------------------------------------------------------
def _envelope(x, exponent):
    p = exponent + 1
    a = -(p + 1) * (p + 2) / 2.0
    b = p * (p + 2.0)
    c = -p * (p + 1) / 2.0
    x_p0 = x ** (p - 1)
    x_p1 = x_p0 * x
    x_p2 = x_p1 * x
    return 1.0 / x + a * x_p0 + b * x_p1 + c * x_p2


def bessel_rbf(dist, cutoff, num_radial, envelope_exponent):
    d = jnp.maximum(dist / cutoff, 1e-9)[:, None]     # guard 1/x at coincident atoms
    freq = jnp.arange(1, num_radial + 1, dtype=F32) * jnp.pi
    return _envelope(d, envelope_exponent) * jnp.sin(freq * d)


def spherical_basis(dist, angle, idx_kj, cutoff, num_spherical, num_radial,
                    envelope_exponent):
    # TODO(synk): exact DimeNet++ SphericalBasisLayer uses sympy-generated spherical
    # Bessel functions and real spherical harmonics; a separable sin/cos basis with
    # the same [T, num_spherical*num_radial] layout is used here instead.
    d = jnp.maximum(dist / cutoff, 1e-9)[:, None]
    freq = jnp.arange(1, num_radial + 1, dtype=F32) * jnp.pi
    rad = _envelope(d, envelope_exponent) * jnp.sin(freq * d)     # [E, R]
    rad = rad[idx_kj]                                             # [T, R]
    s = jnp.arange(num_spherical, dtype=F32)
    ang = jnp.cos(s[None, :] * angle[:, None])                    # [T, S]
    out = ang[:, :, None] * rad[:, None, :]                       # [T, S, R]
    return out.reshape(angle.shape[0], num_spherical * num_radial)


# ----------------------------------------------------------------------------
# Parameters (deterministic init; shapes follow DimeNet++ / crystgnn encoder)
# ----------------------------------------------------------------------------
def init_params(key, cfg):
    keys = iter(jax.random.split(key, 512))

    def lin_p(din, dout, bias=True):
        p = {"w": jax.random.normal(next(keys), (din, dout), F32) / jnp.sqrt(din)}
        if bias:
            p["b"] = 0.05 * jax.random.normal(next(keys), (dout,), F32)
        return p

    H, I, Bemb, O = cfg["hidden"], cfg["int_emb"], cfg["basis_emb"], cfg["out_emb"]
    R, S = cfg["num_radial"], cfg["num_spherical"]

    params = {
        "emb": jax.random.uniform(next(keys), (cfg["max_z"], H), F32,
                                  -jnp.sqrt(3.0), jnp.sqrt(3.0)),
        "emb_rbf": lin_p(R, H),
        "emb_lin": lin_p(3 * H, H),
        "output_blocks": [],
        "interaction_blocks": [],
    }
    for _ in range(cfg["num_blocks"] + 1):
        params["output_blocks"].append({
            "lin_rbf": lin_p(R, H, bias=False),
            "lin_up": lin_p(H, O, bias=False),
            "lins": [lin_p(O, O) for _ in range(cfg["num_output_layers"])],
            "lin_out": lin_p(O, cfg["num_targets"], bias=False),
        })
    for _ in range(cfg["num_blocks"]):
        params["interaction_blocks"].append({
            "lin_rbf1": lin_p(R, Bemb, bias=False),
            "lin_rbf2": lin_p(Bemb, H, bias=False),
            "lin_sbf1": lin_p(S * R, Bemb, bias=False),
            "lin_sbf2": lin_p(Bemb, I, bias=False),
            "lin_kj": lin_p(H, H),
            "lin_ji": lin_p(H, H),
            "lin_down": lin_p(H, I, bias=False),
            "lin_up": lin_p(I, H, bias=False),
            "before_skip": [{"lin1": lin_p(H, H), "lin2": lin_p(H, H)}
                            for _ in range(cfg["num_before_skip"])],
            "lin": lin_p(H, H),
            "after_skip": [{"lin1": lin_p(H, H), "lin2": lin_p(H, H)}
                           for _ in range(cfg["num_after_skip"])],
        })
    return params


def _pad_w(w, kp, np_):
    k, n = w.shape
    return jnp.zeros((kp, np_), F32).at[:k, :n].set(w.astype(F32)).astype(BF16)


def _pad_b(b, np_):
    n = b.shape[0]
    return jnp.zeros((1, np_), F32).at[0, :n].set(b.astype(F32))


def prepare_params(params, cfg):
    """Fold bias-free pairs, concat same-input weights, pad to 128 lanes, cast bf16."""
    H, I, O = cfg["hidden"], cfg["int_emb"], cfg["out_emb"]
    R, S = cfg["num_radial"], cfg["num_spherical"]
    SR = S * R
    HP, IP, OP = _round_up(H, LANE), _round_up(I, LANE), _round_up(O, LANE)
    RP, SRP = _round_up(R, LANE), _round_up(SR, LANE)

    prep = {}
    emb = params["emb"]
    prep["emb"] = jnp.zeros((emb.shape[0], HP), F32).at[:, :H].set(emb).astype(BF16)
    prep["emb_rbf_w"] = _pad_w(params["emb_rbf"]["w"], RP, HP)
    prep["emb_rbf_b"] = _pad_b(params["emb_rbf"]["b"], HP)
    w = params["emb_lin"]["w"]                        # (3H, H) -> three (HP, HP) blocks
    prep["emb_w1"] = _pad_w(w[:H], HP, HP)
    prep["emb_w2"] = _pad_w(w[H:2 * H], HP, HP)
    prep["emb_w3"] = _pad_w(w[2 * H:], HP, HP)
    prep["emb_b"] = _pad_b(params["emb_lin"]["b"], HP)

    # width-concatenated basis projections (consumed by one wide matmul each)
    prep["out_rbf_cat"] = jnp.concatenate(
        [_pad_w(ob["lin_rbf"]["w"], RP, HP) for ob in params["output_blocks"]], axis=1)
    if params["interaction_blocks"]:
        prep["int_rbf_cat"] = jnp.concatenate(
            [_pad_w(ib["lin_rbf1"]["w"] @ ib["lin_rbf2"]["w"], RP, HP)
             for ib in params["interaction_blocks"]], axis=1)
        prep["int_sbf_cat"] = jnp.concatenate(
            [_pad_w(ib["lin_sbf1"]["w"] @ ib["lin_sbf2"]["w"], SRP, IP)
             for ib in params["interaction_blocks"]], axis=1)

    prep["out"] = []
    for ob in params["output_blocks"]:
        if ob["lins"]:
            lins_w = jnp.stack([_pad_w(lp["w"], OP, OP) for lp in ob["lins"]])
            lins_b = jnp.stack([_pad_b(lp["b"], OP) for lp in ob["lins"]])
        else:
            lins_w, lins_b = None, None
        prep["out"].append({
            "w_up": _pad_w(ob["lin_up"]["w"], HP, OP),
            "lins_w": lins_w, "lins_b": lins_b,
            "w_out": jnp.zeros((OP, cfg["num_targets"]), F32)
                        .at[:O, :].set(ob["lin_out"]["w"]),
        })

    def stack_res(rps):
        if not rps:
            return None, None, None, None
        return (jnp.stack([_pad_w(rp["lin1"]["w"], HP, HP) for rp in rps]),
                jnp.stack([_pad_b(rp["lin1"]["b"], HP) for rp in rps]),
                jnp.stack([_pad_w(rp["lin2"]["w"], HP, HP) for rp in rps]),
                jnp.stack([_pad_b(rp["lin2"]["b"], HP) for rp in rps]))

    prep["inter"] = []
    for ib in params["interaction_blocks"]:
        bw1, bb1, bw2, bb2 = stack_res(ib["before_skip"])
        aw1, ab1, aw2, ab2 = stack_res(ib["after_skip"])
        prep["inter"].append({
            "w_jikj": jnp.concatenate([_pad_w(ib["lin_ji"]["w"], HP, HP),
                                       _pad_w(ib["lin_kj"]["w"], HP, HP)], axis=1),
            "b_jikj": jnp.concatenate([_pad_b(ib["lin_ji"]["b"], HP),
                                       _pad_b(ib["lin_kj"]["b"], HP)], axis=1),
            "w_down": _pad_w(ib["lin_down"]["w"], HP, IP),
            "w_up": _pad_w(ib["lin_up"]["w"], IP, HP),
            "before_w1": bw1, "before_b1": bb1, "before_w2": bw2, "before_b2": bb2,
            "w_lin": _pad_w(ib["lin"]["w"], HP, HP),
            "b_lin": _pad_b(ib["lin"]["b"], HP),
            "after_w1": aw1, "after_b1": ab1, "after_w2": aw2, "after_b2": ab2,
        })
    return prep


# ----------------------------------------------------------------------------
# Model forward (DimeNet++ semantics)
# ----------------------------------------------------------------------------
def forward(prep, z, pos, batch_idx, *, graph, cfg, num_graphs):
    """CrystGNN_Supervise.forward(batch) == DimeNetppEncoder(batch) -> [B, num_targets]."""
    H, I = cfg["hidden"], cfg["int_emb"]
    R, S = cfg["num_radial"], cfg["num_spherical"]
    HP, IP = _round_up(H, LANE), _round_up(I, LANE)
    RP, SRP = _round_up(R, LANE), _round_up(S * R, LANE)
    B = cfg["num_blocks"]

    edge_i, edge_j = graph["edge_i"], graph["edge_j"]
    t_i, t_j, t_k, idx_kj = graph["t_i"], graph["t_j"], graph["t_k"], graph["idx_kj"]
    E, T = edge_i.shape[0], idx_kj.shape[0]
    E_pad, T_pad = graph["E_pad"], graph["T_pad"]
    N = z.shape[0]
    N_pad = _round_up(N, 8)

    pos = pos.astype(F32)
    dvec = pos[edge_i] - pos[edge_j]
    dist = jnp.sqrt(jnp.sum(dvec * dvec, axis=-1))

    pos_ji = pos[t_j] - pos[t_i]
    pos_kj = pos[t_k] - pos[t_j]
    a = jnp.sum(pos_ji * pos_kj, axis=-1)
    b = jnp.linalg.norm(jnp.cross(pos_ji, pos_kj), axis=-1)
    angle = jnp.arctan2(b, a)

    rbf = bessel_rbf(dist, cfg["cutoff"], R, cfg["envelope_exponent"])
    sbf = spherical_basis(dist, angle, idx_kj, cfg["cutoff"], S, R,
                          cfg["envelope_exponent"])
    rbf_p = jnp.zeros((E_pad, RP), F32).at[:E, :R].set(rbf).astype(BF16)
    sbf_p = jnp.zeros((T_pad, SRP), F32).at[:T, :S * R].set(sbf).astype(BF16)

    # Embedding block: atom-table gather in XLA (tiny), rest fused in one kernel.
    x_node = jnp.zeros((N_pad, HP), BF16).at[:N].set(prep["emb"][z])
    xi = x_node[graph["edge_i_g"]]
    xj = x_node[graph["edge_j_g"]]
    x = emb_block(xi, xj, rbf_p, prep)                            # [E_pad, HP] f32

    # Hoisted, width-concatenated basis projections (one wide matmul each).
    rbf_out_all = linear(rbf_p, prep["out_rbf_cat"])              # [E_pad, (B+1)*HP]
    if B > 0:
        rbf_int_all = linear(rbf_p, prep["int_rbf_cat"])          # [E_pad, B*HP]
        sbf_int_all = linear(sbf_p, prep["int_sbf_cat"])          # [T_pad, B*IP]

    edge_meta = graph["edge_seg_meta"]
    trip_meta = graph["trip_seg_meta"]
    idx_kj_g = jnp.asarray(graph["idx_kj_g"])

    def out_block(bi, x_edge):
        op = prep["out"][bi]
        rbf_slice = rbf_out_all[:, bi * HP:(bi + 1) * HP]
        atoms = segment_sum(x_edge, edge_meta, mul=rbf_slice)     # fused lin_rbf*x + scatter
        t = out_mlp(atoms, op["w_up"], op["lins_w"], op["lins_b"])
        # [*, 1] projection kept in XLA (lane width 1 wastes 127/128 of a kernel store)
        return t[:N] @ op["w_out"]

    P = out_block(0, x)
    for bi in range(B):
        ip = prep["inter"][bi]
        rbf_h = rbf_int_all[:, bi * HP:(bi + 1) * HP]
        sbf_h = sbf_int_all[:, bi * IP:(bi + 1) * IP]
        x_ji, x_down = iact_front(x, ip["w_jikj"], ip["b_jikj"], rbf_h,
                                  ip["w_down"], HP, IP)
        trip = trip_gather_mul(x_down, idx_kj_g, sbf_h)           # [T_pad, IP]
        agg = segment_sum(trip, trip_meta)                        # [E_pad, IP] f32
        h = linear(agg, ip["w_up"], act=True, add=x_ji)           # act(lin_up)+x_ji
        if ip["before_w1"] is not None:
            h = res_chain(h, ip["before_w1"], ip["before_b1"],
                          ip["before_w2"], ip["before_b2"])
        h = linear(h, ip["w_lin"], ip["b_lin"], act=True, add=x)
        if ip["after_w1"] is not None:
            h = res_chain(h, ip["after_w1"], ip["after_b1"],
                          ip["after_w2"], ip["after_b2"])
        x = h
        P = P + out_block(bi + 1, x)

    # readout == 'mean' over atoms of each crystal (tiny [N,1] -> plain XLA)
    sums = jnp.zeros((num_graphs, P.shape[1]), F32).at[batch_idx].add(P)
    counts = jnp.zeros((num_graphs, 1), F32).at[batch_idx].add(jnp.ones((N, 1), F32))
    return sums / counts


# ----------------------------------------------------------------------------
# Static graph / triplet construction (host-side glue)
# ----------------------------------------------------------------------------
def build_graph(num_graphs, atoms_per_graph):
    # TODO(synk): periodic-boundary radius-graph construction is data-dependent host
    # preprocessing in the original pipeline; a fully-connected per-crystal graph with
    # identical index semantics is built statically here.
    edge_i, edge_j = [], []
    for g in range(num_graphs):
        base = g * atoms_per_graph
        for i in range(atoms_per_graph):
            for j in range(atoms_per_graph):
                if i != j:
                    edge_i.append(base + i)   # target
                    edge_j.append(base + j)   # source
    edge_i = np.array(edge_i, np.int32)
    edge_j = np.array(edge_j, np.int32)

    idx_kj, idx_ji, t_i, t_j, t_k = [], [], [], [], []
    E = len(edge_i)
    for e_ji in range(E):              # edge j -> i
        j, i = int(edge_j[e_ji]), int(edge_i[e_ji])
        for e_kj in range(E):          # edge k -> j, k != i
            if int(edge_i[e_kj]) == j and int(edge_j[e_kj]) != i:
                idx_kj.append(e_kj)
                idx_ji.append(e_ji)
                t_i.append(i)
                t_j.append(j)
                t_k.append(int(edge_j[e_kj]))
    return {
        "edge_i": edge_i, "edge_j": edge_j,
        "idx_kj": np.array(idx_kj, np.int32), "idx_ji": np.array(idx_ji, np.int32),
        "t_i": np.array(t_i, np.int32), "t_j": np.array(t_j, np.int32),
        "t_k": np.array(t_k, np.int32),
    }


def prepare_graph(graph, num_nodes):
    """Row-pad index arrays and precompute windowed segment-sum metadata
    (edge_i and idx_ji are sorted by construction)."""
    E = graph["edge_i"].shape[0]
    T = graph["idx_kj"].shape[0]
    E_pad = _round_up(max(E, 1), LANE)
    T_pad = _round_up(max(T, 1), LANE)

    def pad(a, L, fill):
        out = np.full((L,), fill, np.int32)
        out[:a.shape[0]] = a
        return out

    g = dict(graph)
    g["E_pad"], g["T_pad"] = E_pad, T_pad
    g["edge_i_g"] = pad(graph["edge_i"], E_pad, 0)
    g["edge_j_g"] = pad(graph["edge_j"], E_pad, 0)
    g["idx_kj_g"] = pad(graph["idx_kj"], T_pad, 0)
    g["edge_seg_meta"] = make_seg_meta(graph["edge_i"], E_pad, num_nodes)   # edges->atoms
    g["trip_seg_meta"] = make_seg_meta(graph["idx_ji"], T_pad, E_pad)       # triplets->edges
    return g


# ----------------------------------------------------------------------------
if __name__ == "__main__":
    cfg = dict(hidden=64, int_emb=32, basis_emb=8, out_emb=64,
               num_spherical=7, num_radial=6, num_blocks=2,
               num_before_skip=1, num_after_skip=2, num_output_layers=2,
               num_targets=1, cutoff=7.0, envelope_exponent=5, max_z=95)

    num_graphs, atoms_per_graph = 2, 4
    N = num_graphs * atoms_per_graph

    key = jax.random.PRNGKey(0)
    kz, kp, kw = jax.random.split(key, 3)
    z = jax.random.randint(kz, (N,), 1, cfg["max_z"])            # atom types
    pos = jax.random.uniform(kp, (N, 3), F32, 0.0, 5.0)          # cart coords
    batch_idx = jnp.repeat(jnp.arange(num_graphs, dtype=jnp.int32), atoms_per_graph)

    graph = prepare_graph(build_graph(num_graphs, atoms_per_graph), num_nodes=N)
    params = init_params(kw, cfg)
    prep = prepare_params(params, cfg)                  # folded / concatenated / padded

    fwd = jax.jit(functools.partial(forward, graph=graph, cfg=cfg,
                                    num_graphs=num_graphs))
    preds = fwd(prep, z, pos, batch_idx)
    preds = jax.block_until_ready(preds)

    assert preds.shape == (num_graphs, cfg["num_targets"])
    assert bool(jnp.all(jnp.isfinite(preds)))
    print("KERNEL_OK")
</pallas_src>

<mosaic_0001>
module attributes {stable_mosaic.version = 11 : i64} {
  func.func @_linear_kernel(%arg0: i32, %arg1: memref<128x128xbf16, #tpu.memory_space<vmem>>, %arg2: memref<128x256xbf16, #tpu.memory_space<vmem>>, %arg3: memref<128x256xf32, #tpu.memory_space<vmem>>) attributes {dimension_semantics = [#tpu.dimension_semantics<parallel>], iteration_bounds = array<i64: 1>, scalar_prefetch = 0 : i64, scratch_operands = 0 : i64, tpu.core_type = #tpu.core_type<tc>, window_params = [{transform_indices = @transform_0, window_bounds = array<i64: 128, 128>}, {pipeline_mode = #tpu.pipeline_mode<synchronous>, transform_indices = @transform_1, window_bounds = array<i64: 128, 256>}, {transform_indices = @transform_2, window_bounds = array<i64: 128, 256>}]} {
    %c0 = arith.constant 0 : index
    %c0_0 = arith.constant 0 : index
    %0 = vector.load %arg1[%c0, %c0_0] : memref<128x128xbf16, #tpu.memory_space<vmem>>, vector<128x128xbf16>
    %c0_1 = arith.constant 0 : index
    %c0_2 = arith.constant 0 : index
    %1 = vector.load %arg2[%c0_1, %c0_2] : memref<128x256xbf16, #tpu.memory_space<vmem>>, vector<128x256xbf16>
    %cst = arith.constant dense<0.000000e+00> : vector<128x256xf32>
    %2 = tpu.matmul %0, %1, %cst {dimension_numbers = #tpu.dot_dimension_numbers<[1], [0], [0], [1], [0, 0, 1, 1], [], []>} : vector<128x128xbf16>, vector<128x256xbf16>, vector<128x256xf32> -> vector<128x256xf32>
    %c0_3 = arith.constant 0 : index
    %c0_4 = arith.constant 0 : index
    %3 = vector.load %arg3[%c0_3, %c0_4] : memref<128x256xf32, #tpu.memory_space<vmem>>, vector<128x256xf32>
    tpu.vector_store %arg3[%c0_3, %c0_4], %2 {strides = array<i32>} : memref<128x256xf32, #tpu.memory_space<vmem>>, vector<128x256xf32>,
    return
  }
  func.func @transform_0(%arg0: i32) -> (i32, i32) {
    %c0_i32 = arith.constant 0 : i32
    %c0_i32_0 = arith.constant 0 : i32
    return %arg0, %c0_i32 : i32, i32
  }
  func.func @transform_1(%arg0: i32) -> (i32, i32) {
    %c0_i32 = arith.constant 0 : i32
    %c0_i32_0 = arith.constant 0 : i32
    %c0_i32_1 = arith.constant 0 : i32
    return %c0_i32, %c0_i32_0 : i32, i32
  }
  func.func @transform_2(%arg0: i32) -> (i32, i32) {
    %c0_i32 = arith.constant 0 : i32
    %c0_i32_0 = arith.constant 0 : i32
    return %arg0, %c0_i32 : i32, i32
  }
}

module attributes {stable_mosaic.version = 11 : i64} {
  func.func @_iact_front_kernel(%arg0: i32, %arg1: memref<128x128xf32, #tpu.memory_space<vmem>>, %arg2: memref<128x256xbf16, #tpu.memory_space<vmem>>, %arg3: memref<1x256xf32, #tpu.memory_space<vmem>>, %arg4: memref<128x128xf32, #tpu.memory_space<vmem>>, %arg5: memref<128x128xbf16, #tpu.memory_space<vmem>>, %arg6: memref<128x128xf32, #tpu.memory_space<vmem>>, %arg7: memref<128x128xbf16, #tpu.memory_space<vmem>>) attributes {dimension_semantics = [#tpu.dimension_semantics<parallel>], iteration_bounds = array<i64: 1>, scalar_prefetch = 0 : i64, scratch_operands = 0 : i64, tpu.core_type = #tpu.core_type<tc>, window_params = [{transform_indices = @transform_0, window_bounds = array<i64: 128, 128>}, {pipeline_mode = #tpu.pipeline_mode<synchronous>, transform_indices = @transform_1, window_bounds = array<i64: 128, 256>}, {pipeline_mode = #tpu.pipeline_mode<synchronous>, transform_indices = @transform_2, window_bounds = array<i64: 1, 256>}, {transform_indices = @transform_3, window_bounds = array<i64: 128, 128>}, {pipeline_mode = #tpu.pipeline_mode<synchronous>, transform_indices = @transform_4, window_bounds = array<i64: 128, 128>}, {transform_indices = @transform_5, window_bounds = array<i64: 128, 128>}, {transform_indices = @transform_6, window_bounds = array<i64: 128, 128>}]} {
    %c0 = arith.constant 0 : index
    %c0_0 = arith.constant 0 : index
    %0 = vector.load %arg1[%c0, %c0_0] : memref<128x128xf32, #tpu.memory_space<vmem>>, vector<128x128xf32>
    %1 = arith.truncf %0 : vector<128x128xf32> to vector<128x128xbf16>
    %c0_1 = arith.constant 0 : index
    %c0_2 = arith.constant 0 : index
    %2 = vector.load %arg2[%c0_1, %c0_2] : memref<128x256xbf16, #tpu.memory_space<vmem>>, vector<128x256xbf16>
    %cst = arith.constant dense<0.000000e+00> : vector<128x256xf32>
    %3 = tpu.matmul %1, %2, %cst {dimension_numbers = #tpu.dot_dimension_numbers<[1], [0], [0], [1], [0, 0, 1, 1], [], []>} : vector<128x128xbf16>, vector<128x256xbf16>, vector<128x256xf32> -> vector<128x256xf32>
    %c0_3 = arith.constant 0 : index
    %c0_4 = arith.constant 0 : index
    %4 = vector.load %arg3[%c0_3, %c0_4] : memref<1x256xf32, #tpu.memory_space<vmem>>, vector<1x256xf32>
    %5 = vector.broadcast %4 : vector<1x256xf32> to vector<128x256xf32>
    %6 = arith.addf %3, %5 : vector<128x256xf32>
    %7 = arith.negf %6 : vector<128x256xf32>
    %8 = math.exp %7 : vector<128x256xf32>
    %cst_5 = arith.constant 1.000000e+00 : f32
    %9 = vector.broadcast %cst_5 : f32 to vector<128x256xf32>
    %10 = arith.addf %9, %8 : vector<128x256xf32>
    %11 = arith.divf %9, %10 : vector<128x256xf32>
    %12 = arith.mulf %6, %11 : vector<128x256xf32>
    %13 = vector.extract_strided_slice %12 {offsets = [0, 0], sizes = [128, 128], strides = [1, 1]} : vector<128x256xf32> to vector<128x128xf32>
    %14 = vector.extract_strided_slice %12 {offsets = [0, 128], sizes = [128, 128], strides = [1, 1]} : vector<128x256xf32> to vector<128x128xf32>
    %c0_6 = arith.constant 0 : index
    %c0_7 = arith.constant 0 : index
    %15 = vector.load %arg4[%c0_6, %c0_7] : memref<128x128xf32, #tpu.memory_space<vmem>>, vector<128x128xf32>
    %16 = arith.mulf %14, %15 : vector<128x128xf32>
    %17 = arith.truncf %16 : vector<128x128xf32> to vector<128x128xbf16>
    %c0_8 = arith.constant 0 : index
    %c0_9 = arith.constant 0 : index
    %18 = vector.load %arg5[%c0_8, %c0_9] : memref<128x128xbf16, #tpu.memory_space<vmem>>, vector<128x128xbf16>
    %cst_10 = arith.constant dense<0.000000e+00> : vector<128x128xf32>
    %19 = tpu.matmul %17, %18, %cst_10 {dimension_numbers = #tpu.dot_dimension_numbers<[1], [0], [0], [1], [0, 0, 1, 1], [], []>} : vector<128x128xbf16>, vector<128x128xbf16>, vector<128x128xf32> -> vector<128x128xf32>
    %20 = arith.negf %19 : vector<128x128xf32>
    %21 = math.exp %20 : vector<128x128xf32>
    %cst_11 = arith.constant 1.000000e+00 : f32
    %22 = vector.broadcast %cst_11 : f32 to vector<128x128xf32>
    %23 = arith.addf %22, %21 : vector<128x128xf32>
    %24 = arith.divf %22, %23 : vector<128x128xf32>
    %25 = arith.mulf %19, %24 : vector<128x128xf32>
    %c0_12 = arith.constant 0 : index
    %c0_13 = arith.constant 0 : index
    %26 = vector.load %arg6[%c0_12, %c0_13] : memref<128x128xf32, #tpu.memory_space<vmem>>, vector<128x128xf32>
    tpu.vector_store %arg6[%c0_12, %c0_13], %13 {strides = array<i32>} : memref<128x128xf32, #tpu.memory_space<vmem>>, vector<128x128xf32>,
    %27 = arith.truncf %25 : vector<128x128xf32> to vector<128x128xbf16>
    %c0_14 = arith.constant 0 : index
    %c0_15 = arith.constant 0 : index
    %28 = vector.load %arg7[%c0_14, %c0_15] : memref<128x128xbf16, #tpu.memory_space<vmem>>, vector<128x128xbf16>
    tpu.vector_store %arg7[%c0_14, %c0_15], %27 {strides = array<i32>} : memref<128x128xbf16, #tpu.memory_space<vmem>>, vector<128x128xbf16>,
    return
  }
  func.func @transform_0(%arg0: i32) -> (i32, i32) {
    %c0_i32 = arith.constant 0 : i32
    %c0_i32_0 = arith.constant 0 : i32
    return %arg0, %c0_i32 : i32, i32
  }
  func.func @transform_1(%arg0: i32) -> (i32, i32) {
    %c0_i32 = arith.constant 0 : i32
    %c0_i32_0 = arith.constant 0 : i32
    %c0_i32_1 = arith.constant 0 : i32
    return %c0_i32, %c0_i32_0 : i32, i32
  }
  func.func @transform_2(%arg0: i32) -> (i32, i32) {
    %c0_i32 = arith.constant 0 : i32
    %c0_i32_0 = arith.constant 0 : i32
    %c0_i32_1 = arith.constant 0 : i32
    return %c0_i32, %c0_i32_0 : i32, i32
  }
  func.func @transform_3(%arg0: i32) -> (i32, i32) {
    %c0_i32 = arith.constant 0 : i32
    %c0_i32_0 = arith.constant 0 : i32
    return %arg0, %c0_i32 : i32, i32
  }
  func.func @transform_4(%arg0: i32) -> (i32, i32) {
    %c0_i32 = arith.constant 0 : i32
    %c0_i32_0 = arith.constant 0 : i32
    %c0_i32_1 = arith.constant 0 : i32
    return %c0_i32, %c0_i32_0 : i32, i32
  }
  func.func @transform_5(%arg0: i32) -> (i32, i32) {
    %c0_i32 = arith.constant 0 : i32
    %c0_i32_0 = arith.constant 0 : i32
    return %arg0, %c0_i32 : i32, i32
  }
  func.func @transform_6(%arg0: i32) -> (i32, i32) {
    %c0_i32 = arith.constant 0 : i32
    %c0_i32_0 = arith.constant 0 : i32
    return %arg0, %c0_i32 : i32, i32
  }
}

module attributes {stable_mosaic.version = 11 : i64} {
  func.func @_emb_kernel(%arg0: i32, %arg1: memref<128x128xbf16, #tpu.memory_space<vmem>>, %arg2: memref<128x128xbf16, #tpu.memory_space<vmem>>, %arg3: memref<128x128xbf16, #tpu.memory_space<vmem>>, %arg4: memref<128x128xbf16, #tpu.memory_space<vmem>>, %arg5: memref<1x128xf32, #tpu.memory_space<vmem>>, %arg6: memref<128x128xbf16, #tpu.memory_space<vmem>>, %arg7: memref<128x128xbf16, #tpu.memory_space<vmem>>, %arg8: memref<128x128xbf16, #tpu.memory_space<vmem>>, %arg9: memref<1x128xf32, #tpu.memory_space<vmem>>, %arg10: memref<128x128xf32, #tpu.memory_space<vmem>>) attributes {dimension_semantics = [#tpu.dimension_semantics<parallel>], iteration_bounds = array<i64: 1>, scalar_prefetch = 0 : i64, scratch_operands = 0 : i64, tpu.core_type = #tpu.core_type<tc>, window_params = [{transform_indices = @transform_0, window_bounds = array<i64: 128, 128>}, {transform_indices = @transform_1, window_bounds = array<i64: 128, 128>}, {transform_indices = @transform_2, window_bounds = array<i64: 128, 128>}, {pipeline_mode = #tpu.pipeline_mode<synchronous>, transform_indices = @transform_3, window_bounds = array<i64: 128, 128>}, {pipeline_mode = #tpu.pipeline_mode<synchronous>, transform_indices = @transform_4, window_bounds = array<i64: 1, 128>}, {pipeline_mode = #tpu.pipeline_mode<synchronous>, transform_indices = @transform_5, window_bounds = array<i64: 128, 128>}, {pipeline_mode = #tpu.pipeline_mode<synchronous>, transform_indices = @transform_6, window_bounds = array<i64: 128, 128>}, {pipeline_mode = #tpu.pipeline_mode<synchronous>, transform_indices = @transform_7, window_bounds = array<i64: 128, 128>}, {pipeline_mode = #tpu.pipeline_mode<synchronous>, transform_indices = @transform_8, window_bounds = array<i64: 1, 128>}, {transform_indices = @transform_9, window_bounds = array<i64: 128, 128>}]} {
    %c0 = arith.constant 0 : index
    %c0_0 = arith.constant 0 : index
    %0 = vector.load %arg3[%c0, %c0_0] : memref<128x128xbf16, #tpu.memory_space<vmem>>, vector<128x128xbf16>
    %c0_1 = arith.constant 0 : index
    %c0_2 = arith.constant 0 : index
    %1 = vector.load %arg4[%c0_1, %c0_2] : memref<128x128xbf16, #tpu.memory_space<vmem>>, vector<128x128xbf16>
    %cst = arith.constant dense<0.000000e+00> : vector<128x128xf32>
    %2 = tpu.matmul %0, %1, %cst {dimension_numbers = #tpu.dot_dimension_numbers<[1], [0], [0], [1], [0, 0, 1, 1], [], []>} : vector<128x128xbf16>, vector<128x128xbf16>, vector<128x128xf32> -> vector<128x128xf32>
    %c0_3 = arith.constant 0 : index
    %c0_4 = arith.constant 0 : index
    %3 = vector.load %arg5[%c0_3, %c0_4] : memref<1x128xf32, #tpu.memory_space<vmem>>, vector<1x128xf32>
    %4 = vector.broadcast %3 : vector<1x128xf32> to vector<128x128xf32>
    %5 = arith.addf %2, %4 : vector<128x128xf32>
    %6 = arith.negf %5 : vector<128x128xf32>
    %7 = math.exp %6 : vector<128x128xf32>
    %cst_5 = arith.constant 1.000000e+00 : f32
    %8 = vector.broadcast %cst_5 : f32 to vector<128x128xf32>
    %9 = arith.addf %8, %7 : vector<128x128xf32>
    %10 = arith.divf %8, %9 : vector<128x128xf32>
    %11 = arith.mulf %5, %10 : vector<128x128xf32>
    %c0_6 = arith.constant 0 : index
    %c0_7 = arith.constant 0 : index
    %12 = vector.load %arg1[%c0_6, %c0_7] : memref<128x128xbf16, #tpu.memory_space<vmem>>, vector<128x128xbf16>
    %c0_8 = arith.constant 0 : index
    %c0_9 = arith.constant 0 : index
    %13 = vector.load %arg6[%c0_8, %c0_9] : memref<128x128xbf16, #tpu.memory_space<vmem>>, vector<128x128xbf16>
    %cst_10 = arith.constant dense<0.000000e+00> : vector<128x128xf32>
    %14 = tpu.matmul %12, %13, %cst_10 {dimension_numbers = #tpu.dot_dimension_numbers<[1], [0], [0], [1], [0, 0, 1, 1], [], []>} : vector<128x128xbf16>, vector<128x128xbf16>, vector<128x128xf32> -> vector<128x128xf32>
    %c0_11 = arith.constant 0 : index
    %c0_12 = arith.constant 0 : index
    %15 = vector.load %arg2[%c0_11, %c0_12] : memref<128x128xbf16, #tpu.memory_space<vmem>>, vector<128x128xbf16>
    %c0_13 = arith.constant 0 : index
    %c0_14 = arith.constant 0 : index
    %16 = vector.load %arg7[%c0_13, %c0_14] : memref<128x128xbf16, #tpu.memory_space<vmem>>, vector<128x128xbf16>
    %cst_15 = arith.constant dense<0.000000e+00> : vector<128x128xf32>
    %17 = tpu.matmul %15, %16, %cst_15 {dimension_numbers = #tpu.dot_dimension_numbers<[1], [0], [0], [1], [0, 0, 1, 1], [], []>} : vector<128x128xbf16>, vector<128x128xbf16>, vector<128x128xf32> -> vector<128x128xf32>
    %18 = arith.addf %14, %17 : vector<128x128xf32>
    %19 = arith.truncf %11 : vector<128x128xf32> to vector<128x128xbf16>
    %c0_16 = arith.constant 0 : index
    %c0_17 = arith.constant 0 : index
    %20 = vector.load %arg8[%c0_16, %c0_17] : memref<128x128xbf16, #tpu.memory_space<vmem>>, vector<128x128xbf16>
    %cst_18 = arith.constant dense<0.000000e+00> : vector<128x128xf32>
    %21 = tpu.matmul %19, %20, %cst_18 {dimension_numbers = #tpu.dot_dimension_numbers<[1], [0], [0], [1], [0, 0, 1, 1], [], []>} : vector<128x128xbf16>, vector<128x128xbf16>, vector<128x128xf32> -> vector<128x128xf32>
    %22 = arith.addf %18, %21 : vector<128x128xf32>
    %c0_19 = arith.constant 0 : index
    %c0_20 = arith.constant 0 : index
    %23 = vector.load %arg9[%c0_19, %c0_20] : memref<1x128xf32, #tpu.memory_space<vmem>>, vector<1x128xf32>
    %24 = vector.broadcast %23 : vector<1x128xf32> to vector<128x128xf32>
    %25 = arith.addf %22, %24 : vector<128x128xf32>
    %26 = arith.negf %25 : vector<128x128xf32>
    %27 = math.exp %26 : vector<128x128xf32>
    %cst_21 = arith.constant 1.000000e+00 : f32
    %28 = vector.broadcast %cst_21 : f32 to vector<128x128xf32>
    %29 = arith.addf %28, %27 : vector<128x128xf32>
    %30 = arith.divf %28, %29 : vector<128x128xf32>
    %31 = arith.mulf %25, %30 : vector<128x128xf32>
    %c0_22 = arith.constant 0 : index
    %c0_23 = arith.constant 0 : index
    %32 = vector.load %arg10[%c0_22, %c0_23] : memref<128x128xf32, #tpu.memory_space<vmem>>, vector<128x128xf32>
    tpu.vector_store %arg10[%c0_22, %c0_23], %31 {strides = array<i32>} : memref<128x128xf32, #tpu.memory_space<vmem>>, vector<128x128xf32>,
    return
  }
  func.func @transform_0(%arg0: i32) -> (i32, i32) {
    %c0_i32 = arith.constant 0 : i32
    %c0_i32_0 = arith.constant 0 : i32
    return %arg0, %c0_i32 : i32, i32
  }
  func.func @transform_1(%arg0: i32) -> (i32, i32) {
    %c0_i32 = arith.constant 0 : i32
    %c0_i32_0 = arith.constant 0 : i32
    return %arg0, %c0_i32 : i32, i32
  }
  func.func @transform_2(%arg0: i32) -> (i32, i32) {
    %c0_i32 = arith.constant 0 : i32
    %c0_i32_0 = arith.constant 0 : i32
    return %arg0, %c0_i32 : i32, i32
  }
  func.func @transform_3(%arg0: i32) -> (i32, i32) {
    %c0_i32 = arith.constant 0 : i32
    %c0_i32_0 = arith.constant 0 : i32
    %c0_i32_1 = arith.constant 0 : i32
    return %c0_i32, %c0_i32_0 : i32, i32
  }
  func.func @transform_4(%arg0: i32) -> (i32, i32) {
    %c0_i32 = arith.constant 0 : i32
    %c0_i32_0 = arith.constant 0 : i32
    %c0_i32_1 = arith.constant 0 : i32
    return %c0_i32, %c0_i32_0 : i32, i32
  }
  func.func @transform_5(%arg0: i32) -> (i32, i32) {
    %c0_i32 = arith.constant 0 : i32
    %c0_i32_0 = arith.constant 0 : i32
    %c0_i32_1 = arith.constant 0 : i32
    return %c0_i32, %c0_i32_0 : i32, i32
  }
  func.func @transform_6(%arg0: i32) -> (i32, i32) {
    %c0_i32 = arith.constant 0 : i32
    %c0_i32_0 = arith.constant 0 : i32
    %c0_i32_1 = arith.constant 0 : i32
    return %c0_i32, %c0_i32_0 : i32, i32
  }
  func.func @transform_7(%arg0: i32) -> (i32, i32) {
    %c0_i32 = arith.constant 0 : i32
    %c0_i32_0 = arith.constant 0 : i32
    %c0_i32_1 = arith.constant 0 : i32
    return %c0_i32, %c0_i32_0 : i32, i32
  }
  func.func @transform_8(%arg0: i32) -> (i32, i32) {
    %c0_i32 = arith.constant 0 : i32
    %c0_i32_0 = arith.constant 0 : i32
    %c0_i32_1 = arith.constant 0 : i32
    return %c0_i32, %c0_i32_0 : i32, i32
  }
  func.func @transform_9(%arg0: i32) -> (i32, i32) {
    %c0_i32 = arith.constant 0 : i32
    %c0_i32_0 = arith.constant 0 : i32
    return %arg0, %c0_i32 : i32, i32
  }
}

module attributes {stable_mosaic.version = 11 : i64} {
  func.func @_trip_gather_kernel(%arg0: i32, %arg1: memref<128x1xi32, #tpu.memory_space<vmem>>, %arg2: memref<128x128xbf16, #tpu.memory_space<vmem>>, %arg3: memref<128x128xf32, #tpu.memory_space<vmem>>, %arg4: memref<128x128xbf16, #tpu.memory_space<vmem>>) attributes {dimension_semantics = [#tpu.dimension_semantics<parallel>], iteration_bounds = array<i64: 1>, scalar_prefetch = 0 : i64, scratch_operands = 0 : i64, tpu.core_type = #tpu.core_type<tc>, window_params = [{transform_indices = @transform_0, window_bounds = array<i64: 128, 1>}, {pipeline_mode = #tpu.pipeline_mode<synchronous>, transform_indices = @transform_1, window_bounds = array<i64: 128, 128>}, {transform_indices = @transform_2, window_bounds = array<i64: 128, 128>}, {transform_indices = @transform_3, window_bounds = array<i64: 128, 128>}]} {
    %c0 = arith.constant 0 : index
    %c0_0 = arith.constant 0 : index
    %0 = vector.load %arg1[%c0, %c0_0] : memref<128x1xi32, #tpu.memory_space<vmem>>, vector<128x1xi32>
    %1 = tpu.iota {dimensions = array<i32: 1>} : vector<128x128xi32>
    %2 = vector.broadcast %0 : vector<128x1xi32> to vector<128x128xi32>
    %3 = arith.cmpi eq, %1, %2 : vector<128x128xi32>
    %4 = arith.extui %3 : vector<128x128xi1> to vector<128x128xi32>
    %5 = arith.sitofp %4 : vector<128x128xi32> to vector<128x128xf32>
    %6 = arith.truncf %5 : vector<128x128xf32> to vector<128x128xbf16>
    %c0_1 = arith.constant 0 : index
    %c0_2 = arith.constant 0 : index
    %7 = vector.load %arg2[%c0_1, %c0_2] : memref<128x128xbf16, #tpu.memory_space<vmem>>, vector<128x128xbf16>
    %cst = arith.constant dense<0.000000e+00> : vector<128x128xf32>
    %8 = tpu.matmul %6, %7, %cst {dimension_numbers = #tpu.dot_dimension_numbers<[1], [0], [0], [1], [0, 0, 1, 1], [], []>} : vector<128x128xbf16>, vector<128x128xbf16>, vector<128x128xf32> -> vector<128x128xf32>
    %c0_3 = arith.constant 0 : index
    %c0_4 = arith.constant 0 : index
    %9 = vector.load %arg3[%c0_3, %c0_4] : memref<128x128xf32, #tpu.memory_space<vmem>>, vector<128x128xf32>
    %10 = arith.mulf %8, %9 : vector<128x128xf32>
    %11 = arith.truncf %10 : vector<128x128xf32> to vector<128x128xbf16>
    %c0_5 = arith.constant 0 : index
    %c0_6 = arith.constant 0 : index
    %12 = vector.load %arg4[%c0_5, %c0_6] : memref<128x128xbf16, #tpu.memory_space<vmem>>, vector<128x128xbf16>
    tpu.vector_store %arg4[%c0_5, %c0_6], %11 {strides = array<i32>} : memref<128x128xbf16, #tpu.memory_space<vmem>>, vector<128x128xbf16>,
    return
  }
  func.func @transform_0(%arg0: i32) -> (i32, i32) {
    %c0_i32 = arith.constant 0 : i32
    %c0_i32_0 = arith.constant 0 : i32
    return %arg0, %c0_i32 : i32, i32
  }
  func.func @transform_1(%arg0: i32) -> (i32, i32) {
    %c0_i32 = arith.constant 0 : i32
    %c0_i32_0 = arith.constant 0 : i32
    %c0_i32_1 = arith.constant 0 : i32
    return %c0_i32, %c0_i32_0 : i32, i32
  }
  func.func @transform_2(%arg0: i32) -> (i32, i32) {
    %c0_i32 = arith.constant 0 : i32
    %c0_i32_0 = arith.constant 0 : i32
    return %arg0, %c0_i32 : i32, i32
  }
  func.func @transform_3(%arg0: i32) -> (i32, i32) {
    %c0_i32 = arith.constant 0 : i32
    %c0_i32_0 = arith.constant 0 : i32
    return %arg0, %c0_i32 : i32, i32
  }
}

module attributes {stable_mosaic.version = 11 : i64} {
  func.func @_segsum_kernel(%arg0: i32, %arg1: i32, %arg2: memref<1xi32, #tpu.memory_space<smem>>, %arg3: memref<1xi32, #tpu.memory_space<smem>>, %arg4: memref<1x128xi32, #tpu.memory_space<vmem>>, %arg5: memref<128x128xbf16, #tpu.memory_space<vmem>>, %arg6: memref<128x128xf32, #tpu.memory_space<vmem>>) attributes {dimension_semantics = [#tpu.dimension_semantics<arbitrary>, #tpu.dimension_semantics<arbitrary>], iteration_bounds = array<i64: 1, 1>, scalar_prefetch = 2 : i64, scratch_operands = 0 : i64, tpu.core_type = #tpu.core_type<tc>, window_params = [{transform_indices = @transform_0, window_bounds = array<i64: 1, 128>}, {transform_indices = @transform_1, window_bounds = array<i64: 128, 128>}, {transform_indices = @transform_2, window_bounds = array<i64: 128, 128>}]} {
    %c0_i32 = arith.constant 0 : i32
    %0 = arith.cmpi eq, %arg1, %c0_i32 : i32
    %1 = arith.extui %0 : i1 to i32
    %c0_i32_0 = arith.constant 0 : i32
    %2 = arith.cmpi ne, %1, %c0_i32_0 : i32
    scf.if %2 {
      %cst = arith.constant 0.000000e+00 : f32
      %8 = vector.broadcast %cst : f32 to vector<128x128xf32>
      %c0 = arith.constant 0 : index
      %c0_2 = arith.constant 0 : index
      %9 = vector.load %arg6[%c0, %c0_2] : memref<128x128xf32, #tpu.memory_space<vmem>>, vector<128x128xf32>
      tpu.vector_store %arg6[%c0, %c0_2], %8 {strides = array<i32>} : memref<128x128xf32, #tpu.memory_space<vmem>>, vector<128x128xf32>,
    } else {
    }
    %3 = arith.index_cast %arg0 : i32 to index
    %4 = memref.load %arg3[%3] : memref<1xi32, #tpu.memory_space<smem>>
    %5 = arith.cmpi slt, %arg1, %4 : i32
    %6 = arith.extui %5 : i1 to i32
    %c0_i32_1 = arith.constant 0 : i32
    %7 = arith.cmpi ne, %6, %c0_i32_1 : i32
    scf.if %7 {
      %c0 = arith.constant 0 : index
      %c0_2 = arith.constant 0 : index
      %8 = vector.load %arg4[%c0, %c0_2] : memref<1x128xi32, #tpu.memory_space<vmem>>, vector<1x128xi32>
      %9 = tpu.iota {dimensions = array<i32: 0>} : vector<128x128xi32>
      %c128_i32 = arith.constant 128 : i32
      %10 = arith.muli %arg0, %c128_i32 : i32
      %11 = vector.broadcast %10 : i32 to vector<128x128xi32>
      %12 = arith.addi %9, %11 : vector<128x128xi32>
      %13 = vector.broadcast %8 : vector<1x128xi32> to vector<128x128xi32>
      %14 = arith.cmpi eq, %12, %13 : vector<128x128xi32>
      %15 = arith.extui %14 : vector<128x128xi1> to vector<128x128xi32>
      %16 = arith.sitofp %15 : vector<128x128xi32> to vector<128x128xf32>
      %17 = arith.truncf %16 : vector<128x128xf32> to vector<128x128xbf16>
      %c0_3 = arith.constant 0 : index
      %c0_4 = arith.constant 0 : index
      %18 = vector.load %arg5[%c0_3, %c0_4] : memref<128x128xbf16, #tpu.memory_space<vmem>>, vector<128x128xbf16>
      %19 = arith.extf %18 : vector<128x128xbf16> to vector<128x128xf32>
      %c0_5 = arith.constant 0 : index
      %c0_6 = arith.constant 0 : index
      %20 = vector.load %arg6[%c0_5, %c0_6] : memref<128x128xf32, #tpu.memory_space<vmem>>, vector<128x128xf32>
      %21 = arith.truncf %19 : vector<128x128xf32> to vector<128x128xbf16>
      %cst = arith.constant dense<0.000000e+00> : vector<128x128xf32>
      %22 = tpu.matmul %17, %21, %cst {dimension_numbers = #tpu.dot_dimension_numbers<[1], [0], [0], [1], [0, 0, 1, 1], [], []>} : vector<128x128xbf16>, vector<128x128xbf16>, vector<128x128xf32> -> vector<128x128xf32>
      %23 = arith.addf %20, %22 : vector<128x128xf32>
      %c0_7 = arith.constant 0 : index
      %c0_8 = arith.constant 0 : index
      %24 = vector.load %arg6[%c0_7, %c0_8] : memref<128x128xf32, #tpu.memory_space<vmem>>, vector<128x128xf32>
      tpu.vector_store %arg6[%c0_7, %c0_8], %23 {strides = array<i32>} : memref<128x128xf32, #tpu.memory_space<vmem>>, vector<128x128xf32>,
    } else {
    }
    return
  }
  func.func @transform_0(%arg0: i32, %arg1: i32, %arg2: memref<1xi32, #tpu.memory_space<smem>>, %arg3: memref<1xi32, #tpu.memory_space<smem>>) -> (i32, i32) {
    %0 = arith.index_cast %arg0 : i32 to index
    %1 = memref.load %arg2[%0] : memref<1xi32, #tpu.memory_space<smem>>
    %2 = arith.addi %1, %arg1 : i32
    %c0_i32 = arith.constant 0 : i32
    %3 = arith.minsi %2, %c0_i32 : i32
    %c0_i32_0 = arith.constant 0 : i32
    %c0_i32_1 = arith.constant 0 : i32
    return %c0_i32_0, %3 : i32, i32
  }
  func.func @transform_1(%arg0: i32, %arg1: i32, %arg2: memref<1xi32, #tpu.memory_space<smem>>, %arg3: memref<1xi32, #tpu.memory_space<smem>>) -> (i32, i32) {
    %0 = arith.index_cast %arg0 : i32 to index
    %1 = memref.load %arg2[%0] : memref<1xi32, #tpu.memory_space<smem>>
    %2 = arith.addi %1, %arg1 : i32
    %c0_i32 = arith.constant 0 : i32
    %3 = arith.minsi %2, %c0_i32 : i32
    %c0_i32_0 = arith.constant 0 : i32
    %c0_i32_1 = arith.constant 0 : i32
    return %3, %c0_i32_0 : i32, i32
  }
  func.func @transform_2(%arg0: i32, %arg1: i32, %arg2: memref<1xi32, #tpu.memory_space<smem>>, %arg3: memref<1xi32, #tpu.memory_space<smem>>) -> (i32, i32) {
    %c0_i32 = arith.constant 0 : i32
    %c0_i32_0 = arith.constant 0 : i32
    return %arg0, %c0_i32 : i32, i32
  }
}

module attributes {stable_mosaic.version = 11 : i64} {
  func.func @_linear_kernel(%arg0: i32, %arg1: memref<128x128xf32, #tpu.memory_space<vmem>>, %arg2: memref<128x128xbf16, #tpu.memory_space<vmem>>, %arg3: memref<128x128xf32, #tpu.memory_space<vmem>>, %arg4: memref<128x128xf32, #tpu.memory_space<vmem>>) attributes {dimension_semantics = [#tpu.dimension_semantics<parallel>], iteration_bounds = array<i64: 1>, scalar_prefetch = 0 : i64, scratch_operands = 0 : i64, tpu.core_type = #tpu.core_type<tc>, window_params = [{transform_indices = @transform_0, window_bounds = array<i64: 128, 128>}, {pipeline_mode = #tpu.pipeline_mode<synchronous>, transform_indices = @transform_1, window_bounds = array<i64: 128, 128>}, {transform_indices = @transform_2, window_bounds = array<i64: 128, 128>}, {transform_indices = @transform_3, window_bounds = array<i64: 128, 128>}]} {
    %c0 = arith.constant 0 : index
    %c0_0 = arith.constant 0 : index
    %0 = vector.load %arg1[%c0, %c0_0] : memref<128x128xf32, #tpu.memory_space<vmem>>, vector<128x128xf32>
    %1 = arith.truncf %0 : vector<128x128xf32> to vector<128x128xbf16>
    %c0_1 = arith.constant 0 : index
    %c0_2 = arith.constant 0 : index
    %2 = vector.load %arg2[%c0_1, %c0_2] : memref<128x128xbf16, #tpu.memory_space<vmem>>, vector<128x128xbf16>
    %cst = arith.constant dense<0.000000e+00> : vector<128x128xf32>
    %3 = tpu.matmul %1, %2, %cst {dimension_numbers = #tpu.dot_dimension_numbers<[1], [0], [0], [1], [0, 0, 1, 1], [], []>} : vector<128x128xbf16>, vector<128x128xbf16>, vector<128x128xf32> -> vector<128x128xf32>
    %4 = arith.negf %3 : vector<128x128xf32>
    %5 = math.exp %4 : vector<128x128xf32>
    %cst_3 = arith.constant 1.000000e+00 : f32
    %6 = vector.broadcast %cst_3 : f32 to vector<128x128xf32>
    %7 = arith.addf %6, %5 : vector<128x128xf32>
    %8 = arith.divf %6, %7 : vector<128x128xf32>
    %9 = arith.mulf %3, %8 : vector<128x128xf32>
    %c0_4 = arith.constant 0 : index
    %c0_5 = arith.constant 0 : index
    %10 = vector.load %arg3[%c0_4, %c0_5] : memref<128x128xf32, #tpu.memory_space<vmem>>, vector<128x128xf32>
    %11 = arith.addf %9, %10 : vector<128x128xf32>
    %c0_6 = arith.constant 0 : index
    %c0_7 = arith.constant 0 : index
    %12 = vector.load %arg4[%c0_6, %c0_7] : memref<128x128xf32, #tpu.memory_space<vmem>>, vector<128x128xf32>
    tpu.vector_store %arg4[%c0_6, %c0_7], %11 {strides = array<i32>} : memref<128x128xf32, #tpu.memory_space<vmem>>, vector<128x128xf32>,
    return
  }
  func.func @transform_0(%arg0: i32) -> (i32, i32) {
    %c0_i32 = arith.constant 0 : i32
    %c0_i32_0 = arith.constant 0 : i32
    return %arg0, %c0_i32 : i32, i32
  }
  func.func @transform_1(%arg0: i32) -> (i32, i32) {
    %c0_i32 = arith.constant 0 : i32
    %c0_i32_0 = arith.constant 0 : i32
    %c0_i32_1 = arith.constant 0 : i32
    return %c0_i32, %c0_i32_0 : i32, i32
  }
  func.func @transform_2(%arg0: i32) -> (i32, i32) {
    %c0_i32 = arith.constant 0 : i32
    %c0_i32_0 = arith.constant 0 : i32
    return %arg0, %c0_i32 : i32, i32
  }
  func.func @transform_3(%arg0: i32) -> (i32, i32) {
    %c0_i32 = arith.constant 0 : i32
    %c0_i32_0 = arith.constant 0 : i32
    return %arg0, %c0_i32 : i32, i32
  }
}

module attributes {stable_mosaic.version = 11 : i64} {
  func.func @_linear_kernel(%arg0: i32, %arg1: memref<128x128xf32, #tpu.memory_space<vmem>>, %arg2: memref<128x128xbf16, #tpu.memory_space<vmem>>, %arg3: memref<1x128xf32, #tpu.memory_space<vmem>>, %arg4: memref<128x128xf32, #tpu.memory_space<vmem>>, %arg5: memref<128x128xf32, #tpu.memory_space<vmem>>) attributes {dimension_semantics = [#tpu.dimension_semantics<parallel>], iteration_bounds = array<i64: 1>, scalar_prefetch = 0 : i64, scratch_operands = 0 : i64, tpu.core_type = #tpu.core_type<tc>, window_params = [{transform_indices = @transform_0, window_bounds = array<i64: 128, 128>}, {pipeline_mode = #tpu.pipeline_mode<synchronous>, transform_indices = @transform_1, window_bounds = array<i64: 128, 128>}, {pipeline_mode = #tpu.pipeline_mode<synchronous>, transform_indices = @transform_2, window_bounds = array<i64: 1, 128>}, {transform_indices = @transform_3, window_bounds = array<i64: 128, 128>}, {transform_indices = @transform_4, window_bounds = array<i64: 128, 128>}]} {
    %c0 = arith.constant 0 : index
    %c0_0 = arith.constant 0 : index
    %0 = vector.load %arg1[%c0, %c0_0] : memref<128x128xf32, #tpu.memory_space<vmem>>, vector<128x128xf32>
    %1 = arith.truncf %0 : vector<128x128xf32> to vector<128x128xbf16>
    %c0_1 = arith.constant 0 : index
    %c0_2 = arith.constant 0 : index
    %2 = vector.load %arg2[%c0_1, %c0_2] : memref<128x128xbf16, #tpu.memory_space<vmem>>, vector<128x128xbf16>
    %cst = arith.constant dense<0.000000e+00> : vector<128x128xf32>
    %3 = tpu.matmul %1, %2, %cst {dimension_numbers = #tpu.dot_dimension_numbers<[1], [0], [0], [1], [0, 0, 1, 1], [], []>} : vector<128x128xbf16>, vector<128x128xbf16>, vector<128x128xf32> -> vector<128x128xf32>
    %c0_3 = arith.constant 0 : index
    %c0_4 = arith.constant 0 : index
    %4 = vector.load %arg3[%c0_3, %c0_4] : memref<1x128xf32, #tpu.memory_space<vmem>>, vector<1x128xf32>
    %5 = vector.broadcast %4 : vector<1x128xf32> to vector<128x128xf32>
    %6 = arith.addf %3, %5 : vector<128x128xf32>
    %7 = arith.negf %6 : vector<128x128xf32>
    %8 = math.exp %7 : vector<128x128xf32>
    %cst_5 = arith.constant 1.000000e+00 : f32
    %9 = vector.broadcast %cst_5 : f32 to vector<128x128xf32>
    %10 = arith.addf %9, %8 : vector<128x128xf32>
    %11 = arith.divf %9, %10 : vector<128x128xf32>
    %12 = arith.mulf %6, %11 : vector<128x128xf32>
    %c0_6 = arith.constant 0 : index
    %c0_7 = arith.constant 0 : index
    %13 = vector.load %arg4[%c0_6, %c0_7] : memref<128x128xf32, #tpu.memory_space<vmem>>, vector<128x128xf32>
    %14 = arith.addf %12, %13 : vector<128x128xf32>
    %c0_8 = arith.constant 0 : index
    %c0_9 = arith.constant 0 : index
    %15 = vector.load %arg5[%c0_8, %c0_9] : memref<128x128xf32, #tpu.memory_space<vmem>>, vector<128x128xf32>
    tpu.vector_store %arg5[%c0_8, %c0_9], %14 {strides = array<i32>} : memref<128x128xf32, #tpu.memory_space<vmem>>, vector<128x128xf32>,
    return
  }
  func.func @transform_0(%arg0: i32) -> (i32, i32) {
    %c0_i32 = arith.constant 0 : i32
    %c0_i32_0 = arith.constant 0 : i32
    return %arg0, %c0_i32 : i32, i32
  }
  func.func @transform_1(%arg0: i32) -> (i32, i32) {
    %c0_i32 = arith.constant 0 : i32
    %c0_i32_0 = arith.constant 0 : i32
    %c0_i32_1 = arith.constant 0 : i32
    return %c0_i32, %c0_i32_0 : i32, i32
  }
  func.func @transform_2(%arg0: i32) -> (i32, i32) {
    %c0_i32 = arith.constant 0 : i32
    %c0_i32_0 = arith.constant 0 : i32
    %c0_i32_1 = arith.constant 0 : i32
    return %c0_i32, %c0_i32_0 : i32, i32
  }
  func.func @transform_3(%arg0: i32) -> (i32, i32) {
    %c0_i32 = arith.constant 0 : i32
    %c0_i32_0 = arith.constant 0 : i32
    return %arg0, %c0_i32 : i32, i32
  }
  func.func @transform_4(%arg0: i32) -> (i32, i32) {
    %c0_i32 = arith.constant 0 : i32
    %c0_i32_0 = arith.constant 0 : i32
    return %arg0, %c0_i32 : i32, i32
  }
}

module attributes {stable_mosaic.version = 11 : i64} {
  func.func @_res_chain_kernel(%arg0: i32, %arg1: memref<128x128xf32, #tpu.memory_space<vmem>>, %arg2: memref<1x128x128xbf16, #tpu.memory_space<vmem>>, %arg3: memref<1x1x128xf32, #tpu.memory_space<vmem>>, %arg4: memref<1x128x128xbf16, #tpu.memory_space<vmem>>, %arg5: memref<1x1x128xf32, #tpu.memory_space<vmem>>, %arg6: memref<128x128xf32, #tpu.memory_space<vmem>>) attributes {dimension_semantics = [#tpu.dimension_semantics<parallel>], iteration_bounds = array<i64: 1>, scalar_prefetch = 0 : i64, scratch_operands = 0 : i64, tpu.core_type = #tpu.core_type<tc>, window_params = [{transform_indices = @transform_0, window_bounds = array<i64: 128, 128>}, {pipeline_mode = #tpu.pipeline_mode<synchronous>, transform_indices = @transform_1, window_bounds = array<i64: 1, 128, 128>}, {pipeline_mode = #tpu.pipeline_mode<synchronous>, transform_indices = @transform_2, window_bounds = array<i64: 1, 1, 128>}, {pipeline_mode = #tpu.pipeline_mode<synchronous>, transform_indices = @transform_3, window_bounds = array<i64: 1, 128, 128>}, {pipeline_mode = #tpu.pipeline_mode<synchronous>, transform_indices = @transform_4, window_bounds = array<i64: 1, 1, 128>}, {transform_indices = @transform_5, window_bounds = array<i64: 128, 128>}]} {
    %c0 = arith.constant 0 : index
    %c0_0 = arith.constant 0 : index
    %0 = vector.load %arg1[%c0, %c0_0] : memref<128x128xf32, #tpu.memory_space<vmem>>, vector<128x128xf32>
    %1 = arith.truncf %0 : vector<128x128xf32> to vector<128x128xbf16>
    %c0_1 = arith.constant 0 : index
    %c0_2 = arith.constant 0 : index
    %c0_3 = arith.constant 0 : index
    %2 = vector.load %arg2[%c0_1, %c0_2, %c0_3] : memref<1x128x128xbf16, #tpu.memory_space<vmem>>, vector<1x128x128xbf16>
    %3 = vector.shape_cast %2 : vector<1x128x128xbf16> to vector<128x128xbf16>
    %cst = arith.constant dense<0.000000e+00> : vector<128x128xf32>
    %4 = tpu.matmul %1, %3, %cst {dimension_numbers = #tpu.dot_dimension_numbers<[1], [0], [0], [1], [0, 0, 1, 1], [], []>} : vector<128x128xbf16>, vector<128x128xbf16>, vector<128x128xf32> -> vector<128x128xf32>
    %c0_4 = arith.constant 0 : index
    %c0_5 = arith.constant 0 : index
    %c0_6 = arith.constant 0 : index
    %5 = vector.load %arg3[%c0_4, %c0_5, %c0_6] : memref<1x1x128xf32, #tpu.memory_space<vmem>>, vector<1x1x128xf32>
    %6 = vector.shape_cast %5 : vector<1x1x128xf32> to vector<1x128xf32>
    %7 = vector.broadcast %6 : vector<1x128xf32> to vector<128x128xf32>
    %8 = arith.addf %4, %7 : vector<128x128xf32>
    %9 = arith.negf %8 : vector<128x128xf32>
    %10 = math.exp %9 : vector<128x128xf32>
    %cst_7 = arith.constant 1.000000e+00 : f32
    %11 = vector.broadcast %cst_7 : f32 to vector<128x128xf32>
    %12 = arith.addf %11, %10 : vector<128x128xf32>
    %13 = arith.divf %11, %12 : vector<128x128xf32>
    %14 = arith.mulf %8, %13 : vector<128x128xf32>
    %15 = arith.truncf %14 : vector<128x128xf32> to vector<128x128xbf16>
    %c0_8 = arith.constant 0 : index
    %c0_9 = arith.constant 0 : index
    %c0_10 = arith.constant 0 : index
    %16 = vector.load %arg4[%c0_8, %c0_9, %c0_10] : memref<1x128x128xbf16, #tpu.memory_space<vmem>>, vector<1x128x128xbf16>
    %17 = vector.shape_cast %16 : vector<1x128x128xbf16> to vector<128x128xbf16>
    %cst_11 = arith.constant dense<0.000000e+00> : vector<128x128xf32>
    %18 = tpu.matmul %15, %17, %cst_11 {dimension_numbers = #tpu.dot_dimension_numbers<[1], [0], [0], [1], [0, 0, 1, 1], [], []>} : vector<128x128xbf16>, vector<128x128xbf16>, vector<128x128xf32> -> vector<128x128xf32>
    %c0_12 = arith.constant 0 : index
    %c0_13 = arith.constant 0 : index
    %c0_14 = arith.constant 0 : index
    %19 = vector.load %arg5[%c0_12, %c0_13, %c0_14] : memref<1x1x128xf32, #tpu.memory_space<vmem>>, vector<1x1x128xf32>
    %20 = vector.shape_cast %19 : vector<1x1x128xf32> to vector<1x128xf32>
    %21 = vector.broadcast %20 : vector<1x128xf32> to vector<128x128xf32>
    %22 = arith.addf %18, %21 : vector<128x128xf32>
    %23 = arith.negf %22 : vector<128x128xf32>
    %24 = math.exp %23 : vector<128x128xf32>
    %cst_15 = arith.constant 1.000000e+00 : f32
    %25 = vector.broadcast %cst_15 : f32 to vector<128x128xf32>
    %26 = arith.addf %25, %24 : vector<128x128xf32>
    %27 = arith.divf %25, %26 : vector<128x128xf32>
    %28 = arith.mulf %22, %27 : vector<128x128xf32>
    %29 = arith.addf %0, %28 : vector<128x128xf32>
    %c0_16 = arith.constant 0 : index
    %c0_17 = arith.constant 0 : index
    %30 = vector.load %arg6[%c0_16, %c0_17] : memref<128x128xf32, #tpu.memory_space<vmem>>, vector<128x128xf32>
    tpu.vector_store %arg6[%c0_16, %c0_17], %29 {strides = array<i32>} : memref<128x128xf32, #tpu.memory_space<vmem>>, vector<128x128xf32>,
    return
  }
  func.func @transform_0(%arg0: i32) -> (i32, i32) {
    %c0_i32 = arith.constant 0 : i32
    %c0_i32_0 = arith.constant 0 : i32
    return %arg0, %c0_i32 : i32, i32
  }
  func.func @transform_1(%arg0: i32) -> (i32, i32, i32) {
    %c0_i32 = arith.constant 0 : i32
    %c0_i32_0 = arith.constant 0 : i32
    %c0_i32_1 = arith.constant 0 : i32
    %c0_i32_2 = arith.constant 0 : i32
    return %c0_i32, %c0_i32_0, %c0_i32_1 : i32, i32, i32
  }
  func.func @transform_2(%arg0: i32) -> (i32, i32, i32) {
    %c0_i32 = arith.constant 0 : i32
    %c0_i32_0 = arith.constant 0 : i32
    %c0_i32_1 = arith.constant 0 : i32
    %c0_i32_2 = arith.constant 0 : i32
    return %c0_i32, %c0_i32_0, %c0_i32_1 : i32, i32, i32
  }
  func.func @transform_3(%arg0: i32) -> (i32, i32, i32) {
    %c0_i32 = arith.constant 0 : i32
    %c0_i32_0 = arith.constant 0 : i32
    %c0_i32_1 = arith.constant 0 : i32
    %c0_i32_2 = arith.constant 0 : i32
    return %c0_i32, %c0_i32_0, %c0_i32_1 : i32, i32, i32
  }
  func.func @transform_4(%arg0: i32) -> (i32, i32, i32) {
    %c0_i32 = arith.constant 0 : i32
    %c0_i32_0 = arith.constant 0 : i32
    %c0_i32_1 = arith.constant 0 : i32
    %c0_i32_2 = arith.constant 0 : i32
    return %c0_i32, %c0_i32_0, %c0_i32_1 : i32, i32, i32
  }
  func.func @transform_5(%arg0: i32) -> (i32, i32) {
    %c0_i32 = arith.constant 0 : i32
    %c0_i32_0 = arith.constant 0 : i32
    return %arg0, %c0_i32 : i32, i32
  }
}

module attributes {stable_mosaic.version = 11 : i64} {
  func.func @_res_chain_kernel(%arg0: i32, %arg1: memref<128x128xf32, #tpu.memory_space<vmem>>, %arg2: memref<2x128x128xbf16, #tpu.memory_space<vmem>>, %arg3: memref<2x1x128xf32, #tpu.memory_space<vmem>>, %arg4: memref<2x128x128xbf16, #tpu.memory_space<vmem>>, %arg5: memref<2x1x128xf32, #tpu.memory_space<vmem>>, %arg6: memref<128x128xf32, #tpu.memory_space<vmem>>) attributes {dimension_semantics = [#tpu.dimension_semantics<parallel>], iteration_bounds = array<i64: 1>, scalar_prefetch = 0 : i64, scratch_operands = 0 : i64, tpu.core_type = #tpu.core_type<tc>, window_params = [{transform_indices = @transform_0, window_bounds = array<i64: 128, 128>}, {pipeline_mode = #tpu.pipeline_mode<synchronous>, transform_indices = @transform_1, window_bounds = array<i64: 2, 128, 128>}, {pipeline_mode = #tpu.pipeline_mode<synchronous>, transform_indices = @transform_2, window_bounds = array<i64: 2, 1, 128>}, {pipeline_mode = #tpu.pipeline_mode<synchronous>, transform_indices = @transform_3, window_bounds = array<i64: 2, 128, 128>}, {pipeline_mode = #tpu.pipeline_mode<synchronous>, transform_indices = @transform_4, window_bounds = array<i64: 2, 1, 128>}, {transform_indices = @transform_5, window_bounds = array<i64: 128, 128>}]} {
    %c0 = arith.constant 0 : index
    %c0_0 = arith.constant 0 : index
    %0 = vector.load %arg1[%c0, %c0_0] : memref<128x128xf32, #tpu.memory_space<vmem>>, vector<128x128xf32>
    %1 = arith.truncf %0 : vector<128x128xf32> to vector<128x128xbf16>
    %c0_1 = arith.constant 0 : index
    %c0_2 = arith.constant 0 : index
    %c0_3 = arith.constant 0 : index
    %2 = vector.load %arg2[%c0_1, %c0_2, %c0_3] : memref<2x128x128xbf16, #tpu.memory_space<vmem>>, vector<1x128x128xbf16>
    %3 = vector.shape_cast %2 : vector<1x128x128xbf16> to vector<128x128xbf16>
    %cst = arith.constant dense<0.000000e+00> : vector<128x128xf32>
    %4 = tpu.matmul %1, %3, %cst {dimension_numbers = #tpu.dot_dimension_numbers<[1], [0], [0], [1], [0, 0, 1, 1], [], []>} : vector<128x128xbf16>, vector<128x128xbf16>, vector<128x128xf32> -> vector<128x128xf32>
    %c0_4 = arith.constant 0 : index
    %c0_5 = arith.constant 0 : index
    %c0_6 = arith.constant 0 : index
    %5 = vector.load %arg3[%c0_4, %c0_5, %c0_6] : memref<2x1x128xf32, #tpu.memory_space<vmem>>, vector<1x1x128xf32>
    %6 = vector.shape_cast %5 : vector<1x1x128xf32> to vector<1x128xf32>
    %7 = vector.broadcast %6 : vector<1x128xf32> to vector<128x128xf32>
    %8 = arith.addf %4, %7 : vector<128x128xf32>
    %9 = arith.negf %8 : vector<128x128xf32>
    %10 = math.exp %9 : vector<128x128xf32>
    %cst_7 = arith.constant 1.000000e+00 : f32
    %11 = vector.broadcast %cst_7 : f32 to vector<128x128xf32>
    %12 = arith.addf %11, %10 : vector<128x128xf32>
    %13 = arith.divf %11, %12 : vector<128x128xf32>
    %14 = arith.mulf %8, %13 : vector<128x128xf32>
    %15 = arith.truncf %14 : vector<128x128xf32> to vector<128x128xbf16>
    %c0_8 = arith.constant 0 : index
    %c0_9 = arith.constant 0 : index
    %c0_10 = arith.constant 0 : index
    %16 = vector.load %arg4[%c0_8, %c0_9, %c0_10] : memref<2x128x128xbf16, #tpu.memory_space<vmem>>, vector<1x128x128xbf16>
    %17 = vector.shape_cast %16 : vector<1x128x128xbf16> to vector<128x128xbf16>
    %cst_11 = arith.constant dense<0.000000e+00> : vector<128x128xf32>
    %18 = tpu.matmul %15, %17, %cst_11 {dimension_numbers = #tpu.dot_dimension_numbers<[1], [0], [0], [1], [0, 0, 1, 1], [], []>} : vector<128x128xbf16>, vector<128x128xbf16>, vector<128x128xf32> -> vector<128x128xf32>
    %c0_12 = arith.constant 0 : index
    %c0_13 = arith.constant 0 : index
    %c0_14 = arith.constant 0 : index
    %19 = vector.load %arg5[%c0_12, %c0_13, %c0_14] : memref<2x1x128xf32, #tpu.memory_space<vmem>>, vector<1x1x128xf32>
    %20 = vector.shape_cast %19 : vector<1x1x128xf32> to vector<1x128xf32>
    %21 = vector.broadcast %20 : vector<1x128xf32> to vector<128x128xf32>
    %22 = arith.addf %18, %21 : vector<128x128xf32>
    %23 = arith.negf %22 : vector<128x128xf32>
    %24 = math.exp %23 : vector<128x128xf32>
    %cst_15 = arith.constant 1.000000e+00 : f32
    %25 = vector.broadcast %cst_15 : f32 to vector<128x128xf32>
    %26 = arith.addf %25, %24 : vector<128x128xf32>
    %27 = arith.divf %25, %26 : vector<128x128xf32>
    %28 = arith.mulf %22, %27 : vector<128x128xf32>
    %29 = arith.addf %0, %28 : vector<128x128xf32>
    %30 = arith.truncf %29 : vector<128x128xf32> to vector<128x128xbf16>
    %c1 = arith.constant 1 : index
    %c0_16 = arith.constant 0 : index
    %c0_17 = arith.constant 0 : index
    %31 = vector.load %arg2[%c1, %c0_16, %c0_17] : memref<2x128x128xbf16, #tpu.memory_space<vmem>>, vector<1x128x128xbf16>
    %32 = vector.shape_cast %31 : vector<1x128x128xbf16> to vector<128x128xbf16>
    %cst_18 = arith.constant dense<0.000000e+00> : vector<128x128xf32>
    %33 = tpu.matmul %30, %32, %cst_18 {dimension_numbers = #tpu.dot_dimension_numbers<[1], [0], [0], [1], [0, 0, 1, 1], [], []>} : vector<128x128xbf16>, vector<128x128xbf16>, vector<128x128xf32> -> vector<128x128xf32>
    %c1_19 = arith.constant 1 : index
    %c0_20 = arith.constant 0 : index
    %c0_21 = arith.constant 0 : index
    %34 = vector.load %arg3[%c1_19, %c0_20, %c0_21] : memref<2x1x128xf32, #tpu.memory_space<vmem>>, vector<1x1x128xf32>
    %35 = vector.shape_cast %34 : vector<1x1x128xf32> to vector<1x128xf32>
    %36 = vector.broadcast %35 : vector<1x128xf32> to vector<128x128xf32>
    %37 = arith.addf %33, %36 : vector<128x128xf32>
    %38 = arith.negf %37 : vector<128x128xf32>
    %39 = math.exp %38 : vector<128x128xf32>
    %cst_22 = arith.constant 1.000000e+00 : f32
    %40 = vector.broadcast %cst_22 : f32 to vector<128x128xf32>
    %41 = arith.addf %40, %39 : vector<128x128xf32>
    %42 = arith.divf %40, %41 : vector<128x128xf32>
    %43 = arith.mulf %37, %42 : vector<128x128xf32>
    %44 = arith.truncf %43 : vector<128x128xf32> to vector<128x128xbf16>
    %c1_23 = arith.constant 1 : index
    %c0_24 = arith.constant 0 : index
    %c0_25 = arith.constant 0 : index
    %45 = vector.load %arg4[%c1_23, %c0_24, %c0_25] : memref<2x128x128xbf16, #tpu.memory_space<vmem>>, vector<1x128x128xbf16>
    %46 = vector.shape_cast %45 : vector<1x128x128xbf16> to vector<128x128xbf16>
    %cst_26 = arith.constant dense<0.000000e+00> : vector<128x128xf32>
    %47 = tpu.matmul %44, %46, %cst_26 {dimension_numbers = #tpu.dot_dimension_numbers<[1], [0], [0], [1], [0, 0, 1, 1], [], []>} : vector<128x128xbf16>, vector<128x128xbf16>, vector<128x128xf32> -> vector<128x128xf32>
    %c1_27 = arith.constant 1 : index
    %c0_28 = arith.constant 0 : index
    %c0_29 = arith.constant 0 : index
    %48 = vector.load %arg5[%c1_27, %c0_28, %c0_29] : memref<2x1x128xf32, #tpu.memory_space<vmem>>, vector<1x1x128xf32>
    %49 = vector.shape_cast %48 : vector<1x1x128xf32> to vector<1x128xf32>
    %50 = vector.broadcast %49 : vector<1x128xf32> to vector<128x128xf32>
    %51 = arith.addf %47, %50 : vector<128x128xf32>
    %52 = arith.negf %51 : vector<128x128xf32>
    %53 = math.exp %52 : vector<128x128xf32>
    %cst_30 = arith.constant 1.000000e+00 : f32
    %54 = vector.broadcast %cst_30 : f32 to vector<128x128xf32>
    %55 = arith.addf %54, %53 : vector<128x128xf32>
    %56 = arith.divf %54, %55 : vector<128x128xf32>
    %57 = arith.mulf %51, %56 : vector<128x128xf32>
    %58 = arith.addf %29, %57 : vector<128x128xf32>
    %c0_31 = arith.constant 0 : index
    %c0_32 = arith.constant 0 : index
    %59 = vector.load %arg6[%c0_31, %c0_32] : memref<128x128xf32, #tpu.memory_space<vmem>>, vector<128x128xf32>
    tpu.vector_store %arg6[%c0_31, %c0_32], %58 {strides = array<i32>} : memref<128x128xf32, #tpu.memory_space<vmem>>, vector<128x128xf32>,
    return
  }
  func.func @transform_0(%arg0: i32) -> (i32, i32) {
    %c0_i32 = arith.constant 0 : i32
    %c0_i32_0 = arith.constant 0 : i32
    return %arg0, %c0_i32 : i32, i32
  }
  func.func @transform_1(%arg0: i32) -> (i32, i32, i32) {
    %c0_i32 = arith.constant 0 : i32
    %c0_i32_0 = arith.constant 0 : i32
    %c0_i32_1 = arith.constant 0 : i32
    %c0_i32_2 = arith.constant 0 : i32
    return %c0_i32, %c0_i32_0, %c0_i32_1 : i32, i32, i32
  }
  func.func @transform_2(%arg0: i32) -> (i32, i32, i32) {
    %c0_i32 = arith.constant 0 : i32
    %c0_i32_0 = arith.constant 0 : i32
    %c0_i32_1 = arith.constant 0 : i32
    %c0_i32_2 = arith.constant 0 : i32
    return %c0_i32, %c0_i32_0, %c0_i32_1 : i32, i32, i32
  }
  func.func @transform_3(%arg0: i32) -> (i32, i32, i32) {
    %c0_i32 = arith.constant 0 : i32
    %c0_i32_0 = arith.constant 0 : i32
    %c0_i32_1 = arith.constant 0 : i32
    %c0_i32_2 = arith.constant 0 : i32
    return %c0_i32, %c0_i32_0, %c0_i32_1 : i32, i32, i32
  }
  func.func @transform_4(%arg0: i32) -> (i32, i32, i32) {
    %c0_i32 = arith.constant 0 : i32
    %c0_i32_0 = arith.constant 0 : i32
    %c0_i32_1 = arith.constant 0 : i32
    %c0_i32_2 = arith.constant 0 : i32
    return %c0_i32, %c0_i32_0, %c0_i32_1 : i32, i32, i32
  }
  func.func @transform_5(%arg0: i32) -> (i32, i32) {
    %c0_i32 = arith.constant 0 : i32
    %c0_i32_0 = arith.constant 0 : i32
    return %arg0, %c0_i32 : i32, i32
  }
}

module attributes {stable_mosaic.version = 11 : i64} {
  func.func @_linear_kernel(%arg0: i32, %arg1: memref<128x128xbf16, #tpu.memory_space<vmem>>, %arg2: memref<128x384xbf16, #tpu.memory_space<vmem>>, %arg3: memref<128x384xf32, #tpu.memory_space<vmem>>) attributes {dimension_semantics = [#tpu.dimension_semantics<parallel>], iteration_bounds = array<i64: 1>, scalar_prefetch = 0 : i64, scratch_operands = 0 : i64, tpu.core_type = #tpu.core_type<tc>, window_params = [{transform_indices = @transform_0, window_bounds = array<i64: 128, 128>}, {pipeline_mode = #tpu.pipeline_mode<synchronous>, transform_indices = @transform_1, window_bounds = array<i64: 128, 384>}, {transform_indices = @transform_2, window_bounds = array<i64: 128, 384>}]} {
    %c0 = arith.constant 0 : index
    %c0_0 = arith.constant 0 : index
    %0 = vector.load %arg1[%c0, %c0_0] : memref<128x128xbf16, #tpu.memory_space<vmem>>, vector<128x128xbf16>
    %c0_1 = arith.constant 0 : index
    %c0_2 = arith.constant 0 : index
    %1 = vector.load %arg2[%c0_1, %c0_2] : memref<128x384xbf16, #tpu.memory_space<vmem>>, vector<128x384xbf16>
    %cst = arith.constant dense<0.000000e+00> : vector<128x384xf32>
    %2 = tpu.matmul %0, %1, %cst {dimension_numbers = #tpu.dot_dimension_numbers<[1], [0], [0], [1], [0, 0, 1, 1], [], []>} : vector<128x128xbf16>, vector<128x384xbf16>, vector<128x384xf32> -> vector<128x384xf32>
    %c0_3 = arith.constant 0 : index
    %c0_4 = arith.constant 0 : index
    %3 = vector.load %arg3[%c0_3, %c0_4] : memref<128x384xf32, #tpu.memory_space<vmem>>, vector<128x384xf32>
    tpu.vector_store %arg3[%c0_3, %c0_4], %2 {strides = array<i32>} : memref<128x384xf32, #tpu.memory_space<vmem>>, vector<128x384xf32>,
    return
  }
  func.func @transform_0(%arg0: i32) -> (i32, i32) {
    %c0_i32 = arith.constant 0 : i32
    %c0_i32_0 = arith.constant 0 : i32
    return %arg0, %c0_i32 : i32, i32
  }
  func.func @transform_1(%arg0: i32) -> (i32, i32) {
    %c0_i32 = arith.constant 0 : i32
    %c0_i32_0 = arith.constant 0 : i32
    %c0_i32_1 = arith.constant 0 : i32
    return %c0_i32, %c0_i32_0 : i32, i32
  }
  func.func @transform_2(%arg0: i32) -> (i32, i32) {
    %c0_i32 = arith.constant 0 : i32
    %c0_i32_0 = arith.constant 0 : i32
    return %arg0, %c0_i32 : i32, i32
  }
}

module attributes {stable_mosaic.version = 11 : i64} {
  func.func @_segsum_kernel(%arg0: i32, %arg1: i32, %arg2: memref<1xi32, #tpu.memory_space<smem>>, %arg3: memref<1xi32, #tpu.memory_space<smem>>, %arg4: memref<1x128xi32, #tpu.memory_space<vmem>>, %arg5: memref<128x128xf32, #tpu.memory_space<vmem>>, %arg6: memref<128x128xf32, #tpu.memory_space<vmem>>, %arg7: memref<8x128xf32, #tpu.memory_space<vmem>>) attributes {dimension_semantics = [#tpu.dimension_semantics<arbitrary>, #tpu.dimension_semantics<arbitrary>], iteration_bounds = array<i64: 1, 1>, scalar_prefetch = 2 : i64, scratch_operands = 0 : i64, tpu.core_type = #tpu.core_type<tc>, window_params = [{transform_indices = @transform_0, window_bounds = array<i64: 1, 128>}, {transform_indices = @transform_1, window_bounds = array<i64: 128, 128>}, {transform_indices = @transform_2, window_bounds = array<i64: 128, 128>}, {transform_indices = @transform_3, window_bounds = array<i64: 8, 128>}]} {
    %c0_i32 = arith.constant 0 : i32
    %0 = arith.cmpi eq, %arg1, %c0_i32 : i32
    %1 = arith.extui %0 : i1 to i32
    %c0_i32_0 = arith.constant 0 : i32
    %2 = arith.cmpi ne, %1, %c0_i32_0 : i32
    scf.if %2 {
      %cst = arith.constant 0.000000e+00 : f32
      %8 = vector.broadcast %cst : f32 to vector<8x128xf32>
      %c0 = arith.constant 0 : index
      %c0_2 = arith.constant 0 : index
      %9 = vector.load %arg7[%c0, %c0_2] : memref<8x128xf32, #tpu.memory_space<vmem>>, vector<8x128xf32>
      tpu.vector_store %arg7[%c0, %c0_2], %8 {strides = array<i32>} : memref<8x128xf32, #tpu.memory_space<vmem>>, vector<8x128xf32>,
    } else {
    }
    %3 = arith.index_cast %arg0 : i32 to index
    %4 = memref.load %arg3[%3] : memref<1xi32, #tpu.memory_space<smem>>
    %5 = arith.cmpi slt, %arg1, %4 : i32
    %6 = arith.extui %5 : i1 to i32
    %c0_i32_1 = arith.constant 0 : i32
    %7 = arith.cmpi ne, %6, %c0_i32_1 : i32
    scf.if %7 {
      %c0 = arith.constant 0 : index
      %c0_2 = arith.constant 0 : index
      %8 = vector.load %arg4[%c0, %c0_2] : memref<1x128xi32, #tpu.memory_space<vmem>>, vector<1x128xi32>
      %9 = tpu.iota {dimensions = array<i32: 0>} : vector<8x128xi32>
      %c8_i32 = arith.constant 8 : i32
      %10 = arith.muli %arg0, %c8_i32 : i32
      %11 = vector.broadcast %10 : i32 to vector<8x128xi32>
      %12 = arith.addi %9, %11 : vector<8x128xi32>
      %13 = vector.broadcast %8 : vector<1x128xi32> to vector<8x128xi32>
      %14 = arith.cmpi eq, %12, %13 : vector<8x128xi32>
      %15 = arith.extui %14 : vector<8x128xi1> to vector<8x128xi32>
      %16 = arith.sitofp %15 : vector<8x128xi32> to vector<8x128xf32>
      %17 = arith.truncf %16 : vector<8x128xf32> to vector<8x128xbf16>
      %c0_3 = arith.constant 0 : index
      %c0_4 = arith.constant 0 : index
      %18 = vector.load %arg5[%c0_3, %c0_4] : memref<128x128xf32, #tpu.memory_space<vmem>>, vector<128x128xf32>
      %c0_5 = arith.constant 0 : index
      %c0_6 = arith.constant 0 : index
      %19 = vector.load %arg6[%c0_5, %c0_6] : memref<128x128xf32, #tpu.memory_space<vmem>>, vector<128x128xf32>
      %20 = arith.mulf %18, %19 : vector<128x128xf32>
      %c0_7 = arith.constant 0 : index
      %c0_8 = arith.constant 0 : index
      %21 = vector.load %arg7[%c0_7, %c0_8] : memref<8x128xf32, #tpu.memory_space<vmem>>, vector<8x128xf32>
      %22 = arith.truncf %20 : vector<128x128xf32> to vector<128x128xbf16>
      %cst = arith.constant dense<0.000000e+00> : vector<8x128xf32>
      %23 = tpu.matmul %17, %22, %cst {dimension_numbers = #tpu.dot_dimension_numbers<[1], [0], [0], [1], [0, 0, 1, 1], [], []>} : vector<8x128xbf16>, vector<128x128xbf16>, vector<8x128xf32> -> vector<8x128xf32>
      %24 = arith.addf %21, %23 : vector<8x128xf32>
      %c0_9 = arith.constant 0 : index
      %c0_10 = arith.constant 0 : index
      %25 = vector.load %arg7[%c0_9, %c0_10] : memref<8x128xf32, #tpu.memory_space<vmem>>, vector<8x128xf32>
      tpu.vector_store %arg7[%c0_9, %c0_10], %24 {strides = array<i32>} : memref<8x128xf32, #tpu.memory_space<vmem>>, vector<8x128xf32>,
    } else {
    }
    return
  }
  func.func @transform_0(%arg0: i32, %arg1: i32, %arg2: memref<1xi32, #tpu.memory_space<smem>>, %arg3: memref<1xi32, #tpu.memory_space<smem>>) -> (i32, i32) {
    %0 = arith.index_cast %arg0 : i32 to index
    %1 = memref.load %arg2[%0] : memref<1xi32, #tpu.memory_space<smem>>
    %2 = arith.addi %1, %arg1 : i32
    %c0_i32 = arith.constant 0 : i32
    %3 = arith.minsi %2, %c0_i32 : i32
    %c0_i32_0 = arith.constant 0 : i32
    %c0_i32_1 = arith.constant 0 : i32
    return %c0_i32_0, %3 : i32, i32
  }
  func.func @transform_1(%arg0: i32, %arg1: i32, %arg2: memref<1xi32, #tpu.memory_space<smem>>, %arg3: memref<1xi32, #tpu.memory_space<smem>>) -> (i32, i32) {
    %0 = arith.index_cast %arg0 : i32 to index
    %1 = memref.load %arg2[%0] : memref<1xi32, #tpu.memory_space<smem>>
    %2 = arith.addi %1, %arg1 : i32
    %c0_i32 = arith.constant 0 : i32
    %3 = arith.minsi %2, %c0_i32 : i32
    %c0_i32_0 = arith.constant 0 : i32
    %c0_i32_1 = arith.constant 0 : i32
    return %3, %c0_i32_0 : i32, i32
  }
  func.func @transform_2(%arg0: i32, %arg1: i32, %arg2: memref<1xi32, #tpu.memory_space<smem>>, %arg3: memref<1xi32, #tpu.memory_space<smem>>) -> (i32, i32) {
    %0 = arith.index_cast %arg0 : i32 to index
    %1 = memref.load %arg2[%0] : memref<1xi32, #tpu.memory_space<smem>>
    %2 = arith.addi %1, %arg1 : i32
    %c0_i32 = arith.constant 0 : i32
    %3 = arith.minsi %2, %c0_i32 : i32
    %c0_i32_0 = arith.constant 0 : i32
    %c0_i32_1 = arith.constant 0 : i32
    return %3, %c0_i32_0 : i32, i32
  }
  func.func @transform_3(%arg0: i32, %arg1: i32, %arg2: memref<1xi32, #tpu.memory_space<smem>>, %arg3: memref<1xi32, #tpu.memory_space<smem>>) -> (i32, i32) {
    %c0_i32 = arith.constant 0 : i32
    %c0_i32_0 = arith.constant 0 : i32
    return %arg0, %c0_i32 : i32, i32
  }
}

module attributes {stable_mosaic.version = 11 : i64} {
  func.func @_out_block_kernel(%arg0: i32, %arg1: memref<8x128xf32, #tpu.memory_space<vmem>>, %arg2: memref<128x128xbf16, #tpu.memory_space<vmem>>, %arg3: memref<2x128x128xbf16, #tpu.memory_space<vmem>>, %arg4: memref<2x1x128xf32, #tpu.memory_space<vmem>>, %arg5: memref<8x128xf32, #tpu.memory_space<vmem>>) attributes {dimension_semantics = [#tpu.dimension_semantics<parallel>], iteration_bounds = array<i64: 1>, scalar_prefetch = 0 : i64, scratch_operands = 0 : i64, tpu.core_type = #tpu.core_type<tc>, window_params = [{transform_indices = @transform_0, window_bounds = array<i64: 8, 128>}, {pipeline_mode = #tpu.pipeline_mode<synchronous>, transform_indices = @transform_1, window_bounds = array<i64: 128, 128>}, {pipeline_mode = #tpu.pipeline_mode<synchronous>, transform_indices = @transform_2, window_bounds = array<i64: 2, 128, 128>}, {pipeline_mode = #tpu.pipeline_mode<synchronous>, transform_indices = @transform_3, window_bounds = array<i64: 2, 1, 128>}, {transform_indices = @transform_4, window_bounds = array<i64: 8, 128>}]} {
    %c0 = arith.constant 0 : index
    %c0_0 = arith.constant 0 : index
    %0 = vector.load %arg1[%c0, %c0_0] : memref<8x128xf32, #tpu.memory_space<vmem>>, vector<8x128xf32>
    %1 = arith.truncf %0 : vector<8x128xf32> to vector<8x128xbf16>
    %c0_1 = arith.constant 0 : index
    %c0_2 = arith.constant 0 : index
    %2 = vector.load %arg2[%c0_1, %c0_2] : memref<128x128xbf16, #tpu.memory_space<vmem>>, vector<128x128xbf16>
    %cst = arith.constant dense<0.000000e+00> : vector<8x128xf32>
    %3 = tpu.matmul %1, %2, %cst {dimension_numbers = #tpu.dot_dimension_numbers<[1], [0], [0], [1], [0, 0, 1, 1], [], []>} : vector<8x128xbf16>, vector<128x128xbf16>, vector<8x128xf32> -> vector<8x128xf32>
    %4 = arith.truncf %3 : vector<8x128xf32> to vector<8x128xbf16>
    %c0_3 = arith.constant 0 : index
    %c0_4 = arith.constant 0 : index
    %c0_5 = arith.constant 0 : index
    %5 = vector.load %arg3[%c0_3, %c0_4, %c0_5] : memref<2x128x128xbf16, #tpu.memory_space<vmem>>, vector<1x128x128xbf16>
    %6 = vector.shape_cast %5 : vector<1x128x128xbf16> to vector<128x128xbf16>
    %cst_6 = arith.constant dense<0.000000e+00> : vector<8x128xf32>
    %7 = tpu.matmul %4, %6, %cst_6 {dimension_numbers = #tpu.dot_dimension_numbers<[1], [0], [0], [1], [0, 0, 1, 1], [], []>} : vector<8x128xbf16>, vector<128x128xbf16>, vector<8x128xf32> -> vector<8x128xf32>
    %c0_7 = arith.constant 0 : index
    %c0_8 = arith.constant 0 : index
    %c0_9 = arith.constant 0 : index
    %8 = vector.load %arg4[%c0_7, %c0_8, %c0_9] : memref<2x1x128xf32, #tpu.memory_space<vmem>>, vector<1x1x128xf32>
    %9 = vector.shape_cast %8 : vector<1x1x128xf32> to vector<1x128xf32>
    %10 = vector.broadcast %9 : vector<1x128xf32> to vector<8x128xf32>
    %11 = arith.addf %7, %10 : vector<8x128xf32>
    %12 = arith.negf %11 : vector<8x128xf32>
    %13 = math.exp %12 : vector<8x128xf32>
    %cst_10 = arith.constant 1.000000e+00 : f32
    %14 = vector.broadcast %cst_10 : f32 to vector<8x128xf32>
    %15 = arith.addf %14, %13 : vector<8x128xf32>
    %16 = arith.divf %14, %15 : vector<8x128xf32>
    %17 = arith.mulf %11, %16 : vector<8x128xf32>
    %18 = arith.truncf %17 : vector<8x128xf32> to vector<8x128xbf16>
    %c1 = arith.constant 1 : index
    %c0_11 = arith.constant 0 : index
    %c0_12 = arith.constant 0 : index
    %19 = vector.load %arg3[%c1, %c0_11, %c0_12] : memref<2x128x128xbf16, #tpu.memory_space<vmem>>, vector<1x128x128xbf16>
    %20 = vector.shape_cast %19 : vector<1x128x128xbf16> to vector<128x128xbf16>
    %cst_13 = arith.constant dense<0.000000e+00> : vector<8x128xf32>
    %21 = tpu.matmul %18, %20, %cst_13 {dimension_numbers = #tpu.dot_dimension_numbers<[1], [0], [0], [1], [0, 0, 1, 1], [], []>} : vector<8x128xbf16>, vector<128x128xbf16>, vector<8x128xf32> -> vector<8x128xf32>
    %c1_14 = arith.constant 1 : index
    %c0_15 = arith.constant 0 : index
    %c0_16 = arith.constant 0 : index
    %22 = vector.load %arg4[%c1_14, %c0_15, %c0_16] : memref<2x1x128xf32, #tpu.memory_space<vmem>>, vector<1x1x128xf32>
    %23 = vector.shape_cast %22 : vector<1x1x128xf32> to vector<1x128xf32>
    %24 = vector.broadcast %23 : vector<1x128xf32> to vector<8x128xf32>
    %25 = arith.addf %21, %24 : vector<8x128xf32>
    %26 = arith.negf %25 : vector<8x128xf32>
    %27 = math.exp %26 : vector<8x128xf32>
    %cst_17 = arith.constant 1.000000e+00 : f32
    %28 = vector.broadcast %cst_17 : f32 to vector<8x128xf32>
    %29 = arith.addf %28, %27 : vector<8x128xf32>
    %30 = arith.divf %28, %29 : vector<8x128xf32>
    %31 = arith.mulf %25, %30 : vector<8x128xf32>
    %c0_18 = arith.constant 0 : index
    %c0_19 = arith.constant 0 : index
    %32 = vector.load %arg5[%c0_18, %c0_19] : memref<8x128xf32, #tpu.memory_space<vmem>>, vector<8x128xf32>
    tpu.vector_store %arg5[%c0_18, %c0_19], %31 {strides = array<i32>} : memref<8x128xf32, #tpu.memory_space<vmem>>, vector<8x128xf32>,
    return
  }
  func.func @transform_0(%arg0: i32) -> (i32, i32) {
    %c0_i32 = arith.constant 0 : i32
    %c0_i32_0 = arith.constant 0 : i32
    return %arg0, %c0_i32 : i32, i32
  }
  func.func @transform_1(%arg0: i32) -> (i32, i32) {
    %c0_i32 = arith.constant 0 : i32
    %c0_i32_0 = arith.constant 0 : i32
    %c0_i32_1 = arith.constant 0 : i32
    return %c0_i32, %c0_i32_0 : i32, i32
  }
  func.func @transform_2(%arg0: i32) -> (i32, i32, i32) {
    %c0_i32 = arith.constant 0 : i32
    %c0_i32_0 = arith.constant 0 : i32
    %c0_i32_1 = arith.constant 0 : i32
    %c0_i32_2 = arith.constant 0 : i32
    return %c0_i32, %c0_i32_0, %c0_i32_1 : i32, i32, i32
  }
  func.func @transform_3(%arg0: i32) -> (i32, i32, i32) {
    %c0_i32 = arith.constant 0 : i32
    %c0_i32_0 = arith.constant 0 : i32
    %c0_i32_1 = arith.constant 0 : i32
    %c0_i32_2 = arith.constant 0 : i32
    return %c0_i32, %c0_i32_0, %c0_i32_1 : i32, i32, i32
  }
  func.func @transform_4(%arg0: i32) -> (i32, i32) {
    %c0_i32 = arith.constant 0 : i32
    %c0_i32_0 = arith.constant 0 : i32
    return %arg0, %c0_i32 : i32, i32
  }
}

</mosaic_0001>

<llo_original>
// kernel: forward.27
$region0: #{forward.27}
  #allocation0 [shape = 'u32[]', space=smem, size = 0x4, offset = 0x4, fixed_abs, tag = 'smem constant byte address 0x4 - core index']
  #allocation1 [shape = 'u32[72,128]{1,0:T(1,128)}', space=vmem, size = 0x9000, scoped, tag = 'internal scratch']
  %s0 = inlined_call_operand.vmem [shape: bf16[128,128], index: 0, kind: input, shape index: {}]
  %s1 = inlined_call_operand.vmem [shape: bf16[128,256], index: 1, kind: input, shape index: {}]
  %s2 = inlined_call_operand.vmem [shape: f32[128,256], index: 2, kind: output, shape index: {}]
  %s3 = sld [smem:[#allocation0]]
  $region18: #{forward.27} parent=0
    _
  %s5 = ssub.s32 1, %s3
  %s6 = scalar_select 0, %s5, %s3
  // Predicated region
  $region2: #{forward.27} parent=0 // pred_check
    _
  $region3: #{forward.27} parent=0 // pred_check_branch
    %8 = sbr.rel (0) target = $region5
  $region4: #{forward.27} parent=0 // pred_region
    _
  $region5: #{forward.27} parent=0 // pred_fallthru
    _
  // Predicated region
  $region6: #{forward.27} parent=0 // pred_check
    _
  $region7: #{forward.27} parent=0 // pred_check_branch
    %10 = sbr.rel (0) target = $region9
  $region8: #{forward.27} parent=0 // pred_region
    _
  $region9: #{forward.27} parent=0 // pred_fallthru
    _
  %v11 = vld [vmem:[%s0] sm:$0xf]
  %v12 = vld [vmem:[%s0 + $0x4] sm:$0xf]
  %v13 = vld [vmem:[%s0 + $0x8] sm:$0xf]
  %v14 = vld [vmem:[%s0 + $0xc] sm:$0xf]
  %v15 = vld [vmem:[%s0 + $0x10] sm:$0xf]
  %v16 = vld [vmem:[%s0 + $0x14] sm:$0xf]
  %v17 = vld [vmem:[%s0 + $0x18] sm:$0xf]
  %v18 = vld [vmem:[%s0 + $0x1c] sm:$0xf]
  %v19 = vld [vmem:[%s0 + $0x20] sm:$0xf]
  %v20 = vld [vmem:[%s0 + $0x24] sm:$0xf]
  %v21 = vld [vmem:[%s0 + $0x28] sm:$0xf]
  %v22 = vld [vmem:[%s0 + $0x2c] sm:$0xf]
  %v23 = vld [vmem:[%s0 + $0x30] sm:$0xf]
  %v24 = vld [vmem:[%s0 + $0x34] sm:$0xf]
  %v25 = vld [vmem:[%s0 + $0x38] sm:$0xf]
  %v26 = vld [vmem:[%s0 + $0x3c] sm:$0xf]
  %v27 = vld [vmem:[%s1] sm:$0xff]
  %v28 = vld [vmem:[%s1 + $0x8] sm:$0xff]
  %v29 = vld [vmem:[%s1 + $0x10] sm:$0xff]
  %v30 = vld [vmem:[%s1 + $0x18] sm:$0xff]
  %v31 = vld [vmem:[%s1 + $0x20] sm:$0xff]
  %v32 = vld [vmem:[%s1 + $0x28] sm:$0xff]
  %v33 = vld [vmem:[%s1 + $0x30] sm:$0xff]
  %v34 = vld [vmem:[%s1 + $0x38] sm:$0xff]
  %v35 = vld [vmem:[%s1 + $0x40] sm:$0xff]
  %v36 = vld [vmem:[%s1 + $0x48] sm:$0xff]
  %v37 = vld [vmem:[%s1 + $0x50] sm:$0xff]
  %v38 = vld [vmem:[%s1 + $0x58] sm:$0xff]
  %v39 = vld [vmem:[%s1 + $0x60] sm:$0xff]
  %v40 = vld [vmem:[%s1 + $0x68] sm:$0xff]
  %v41 = vld [vmem:[%s1 + $0x70] sm:$0xff]
  %v42 = vld [vmem:[%s1 + $0x78] sm:$0xff]
  %v59 = vunpack.c.l.b16 %v11
  %v60 = vunpack.c.l.b16 %v12
  %v61 = vunpack.c.l.b16 %v13
  %v62 = vunpack.c.l.b16 %v14
  %v63 = vunpack.c.l.b16 %v15
  %v64 = vunpack.c.l.b16 %v16
  %v65 = vunpack.c.l.b16 %v17
  %v66 = vunpack.c.l.b16 %v18
  %v67 = vunpack.c.l.b16 %v19
  %v68 = vunpack.c.l.b16 %v20
  %v69 = vunpack.c.l.b16 %v21
  %v70 = vunpack.c.l.b16 %v22
  %v71 = vunpack.c.l.b16 %v23
  %v72 = vunpack.c.l.b16 %v24
  %v73 = vunpack.c.l.b16 %v25
  %v74 = vunpack.c.l.b16 %v26
  %v75 = vpack.c.b16 %v60, %v59
  %v76 = vpack.c.b16 %v62, %v61
  %v77 = vpack.c.b16 %v64, %v63
  %v78 = vpack.c.b16 %v66, %v65
  %v79 = vpack.c.b16 %v68, %v67
  %v80 = vpack.c.b16 %v70, %v69
  %v81 = vpack.c.b16 %v72, %v71
  %v82 = vpack.c.b16 %v74, %v73
  %v107 = vunpack.c.l.b16 %v27
  %v108 = vunpack.c.h.b16 %v27
  %v109 = vunpack.c.l.b16 %v28
  %v110 = vunpack.c.h.b16 %v28
  %v111 = vunpack.c.l.b16 %v29
  %v112 = vunpack.c.h.b16 %v29
  %v113 = vunpack.c.l.b16 %v30
  %v114 = vunpack.c.h.b16 %v30
  %v115 = vunpack.c.l.b16 %v31
  %v116 = vunpack.c.h.b16 %v31
  %v117 = vunpack.c.l.b16 %v32
  %v118 = vunpack.c.h.b16 %v32
  %v119 = vunpack.c.l.b16 %v33
  %v120 = vunpack.c.h.b16 %v33
  %v121 = vunpack.c.l.b16 %v34
  %v122 = vunpack.c.h.b16 %v34
  %v123 = vunpack.c.l.b16 %v35
  %v124 = vunpack.c.h.b16 %v35
  %v125 = vunpack.c.l.b16 %v36
  %v126 = vunpack.c.h.b16 %v36
  %v127 = vunpack.c.l.b16 %v37
  %v128 = vunpack.c.h.b16 %v37
  %v129 = vunpack.c.l.b16 %v38
  %v130 = vunpack.c.h.b16 %v38
  %v131 = vunpack.c.l.b16 %v39
  %v132 = vunpack.c.h.b16 %v39
  %v133 = vunpack.c.l.b16 %v40
  %v134 = vunpack.c.h.b16 %v40
  %v135 = vunpack.c.l.b16 %v41
  %v136 = vunpack.c.h.b16 %v41
  %v137 = vunpack.c.l.b16 %v42
  %v138 = vunpack.c.h.b16 %v42
  %v139 = vpack.c.b16 %v109, %v107
  %v140 = vpack.c.b16 %v110, %v108
  %v141 = vpack.c.b16 %v113, %v111
  %v142 = vpack.c.b16 %v114, %v112
  %v143 = vpack.c.b16 %v117, %v115
  %v144 = vpack.c.b16 %v118, %v116
  %v145 = vpack.c.b16 %v121, %v119
  %v146 = vpack.c.b16 %v122, %v120
  %v147 = vpack.c.b16 %v125, %v123
  %v148 = vpack.c.b16 %v126, %v124
  %v149 = vpack.c.b16 %v129, %v127
  %v150 = vpack.c.b16 %v130, %v128
  %v151 = vpack.c.b16 %v133, %v131
  %v152 = vpack.c.b16 %v134, %v132
  %v153 = vpack.c.b16 %v137, %v135
  %v154 = vpack.c.b16 %v138, %v136
  %171 = vmatpush.bf16.msra.mxu0 %v153
  %172 = vmatpush.bf16.msra.mxu0 %v151
  %173 = vmatpush.bf16.msra.mxu0 %v149
  %174 = vmatpush.bf16.msra.mxu0 %v147
  %175 = vmatpush.bf16.msra.mxu0 %v145
  %176 = vmatpush.bf16.msra.mxu0 %v143
  %177 = vmatpush.bf16.msra.mxu0 %v141
  %178 = vmatpush.bf16.msra.mxu0 %v139
  %179 = vmatmul.bf16.gmra.mxu0 %v75
  %v180 = vpop.f32.mrf.mxu0
  %v181 = vadd.f32 0.0, %v180
  %v182 = vpop.f32.mrf.mxu0
  %v183 = vadd.f32 0.0, %v182
  %184 = vmatmul.bf16.gmra.mxu0 %v76
  %v185 = vpop.f32.mrf.mxu0
  %v186 = vadd.f32 0.0, %v185
  %v187 = vpop.f32.mrf.mxu0
  %v188 = vadd.f32 0.0, %v187
  %189 = vmatmul.bf16.gmra.mxu0 %v77
  %v190 = vpop.f32.mrf.mxu0
  %v191 = vadd.f32 0.0, %v190
  %v192 = vpop.f32.mrf.mxu0
  %v193 = vadd.f32 0.0, %v192
  %194 = vmatmul.bf16.gmra.mxu0 %v78
  %v195 = vpop.f32.mrf.mxu0
  %v196 = vadd.f32 0.0, %v195
  %v197 = vpop.f32.mrf.mxu0
  %v198 = vadd.f32 0.0, %v197
  %199 = vmatmul.bf16.gmra.mxu0 %v79
  %v200 = vpop.f32.mrf.mxu0
  %v201 = vadd.f32 0.0, %v200
  %v202 = vpop.f32.mrf.mxu0
  %v203 = vadd.f32 0.0, %v202
  %204 = vmatmul.bf16.gmra.mxu0 %v80
  %v205 = vpop.f32.mrf.mxu0
  %v206 = vadd.f32 0.0, %v205
  %v207 = vpop.f32.mrf.mxu0
  %v208 = vadd.f32 0.0, %v207
  %209 = vmatmul.bf16.gmra.mxu0 %v81
  %v210 = vpop.f32.mrf.mxu0
  %v211 = vadd.f32 0.0, %v210
  %v212 = vpop.f32.mrf.mxu0
  %v213 = vadd.f32 0.0, %v212
  %214 = vmatmul.bf16.gmra.mxu0 %v82
  %v215 = vpop.f32.mrf.mxu0
  %v216 = vadd.f32 0.0, %v215
  %v217 = vpop.f32.mrf.mxu0
  %v218 = vadd.f32 0.0, %v217
  %219 = vdwg.mxu0
  %220 = vmatpush.bf16.msra.mxu0 %v154
  %221 = vmatpush.bf16.msra.mxu0 %v152
  %222 = vmatpush.bf16.msra.mxu0 %v150
  %223 = vmatpush.bf16.msra.mxu0 %v148
  %224 = vmatpush.bf16.msra.mxu0 %v146
  %225 = vmatpush.bf16.msra.mxu0 %v144
  %226 = vmatpush.bf16.msra.mxu0 %v142
  %227 = vmatpush.bf16.msra.mxu0 %v140
  %228 = vmatmul.bf16.gmra.mxu0 %v75
  %v229 = vpop.f32.mrf.mxu0
  %v230 = vadd.f32 0.0, %v229
  %v231 = vpop.f32.mrf.mxu0
  %v232 = vadd.f32 0.0, %v231
  %233 = vmatmul.bf16.gmra.mxu0 %v76
  %v234 = vpop.f32.mrf.mxu0
  %v235 = vadd.f32 0.0, %v234
  %v236 = vpop.f32.mrf.mxu0
  %v237 = vadd.f32 0.0, %v236
  %238 = vmatmul.bf16.gmra.mxu0 %v77
  %v239 = vpop.f32.mrf.mxu0
  %v240 = vadd.f32 0.0, %v239
  %v241 = vpop.f32.mrf.mxu0
  %v242 = vadd.f32 0.0, %v241
  %243 = vmatmul.bf16.gmra.mxu0 %v78
  %v244 = vpop.f32.mrf.mxu0
  %v245 = vadd.f32 0.0, %v244
  %v246 = vpop.f32.mrf.mxu0
  %v247 = vadd.f32 0.0, %v246
  %248 = vmatmul.bf16.gmra.mxu0 %v79
  %v249 = vpop.f32.mrf.mxu0
  %v250 = vadd.f32 0.0, %v249
  %v251 = vpop.f32.mrf.mxu0
  %v252 = vadd.f32 0.0, %v251
  %253 = vmatmul.bf16.gmra.mxu0 %v80
  %v254 = vpop.f32.mrf.mxu0
  %v255 = vadd.f32 0.0, %v254
  %v256 = vpop.f32.mrf.mxu0
  %v257 = vadd.f32 0.0, %v256
  %258 = vmatmul.bf16.gmra.mxu0 %v81
  %v259 = vpop.f32.mrf.mxu0
  %v260 = vadd.f32 0.0, %v259
  %v261 = vpop.f32.mrf.mxu0
  %v262 = vadd.f32 0.0, %v261
  %263 = vmatmul.bf16.gmra.mxu0 %v82
  %v264 = vpop.f32.mrf.mxu0
  %v265 = vadd.f32 0.0, %v264
  %v266 = vpop.f32.mrf.mxu0
  %v267 = vadd.f32 0.0, %v266
  %268 = vdwg.mxu0
  %269 = vst [vmem:[%s2] sm:$0xff] %v181
  %270 = vst [vmem:[%s2 + $0x8] sm:$0xff] %v230
  %271 = vst [vmem:[%s2 + $0x10] sm:$0xff] %v183
  %272 = vst [vmem:[%s2 + $0x18] sm:$0xff] %v232
  %273 = vst [vmem:[%s2 + $0x20] sm:$0xff] %v186
  %274 = vst [vmem:[%s2 + $0x28] sm:$0xff] %v235
  %275 = vst [vmem:[%s2 + $0x30] sm:$0xff] %v188
  %276 = vst [vmem:[%s2 + $0x38] sm:$0xff] %v237
  %277 = vst [vmem:[%s2 + $0x40] sm:$0xff] %v191
  %278 = vst [vmem:[%s2 + $0x48] sm:$0xff] %v240
  %279 = vst [vmem:[%s2 + $0x50] sm:$0xff] %v193
  %280 = vst [vmem:[%s2 + $0x58] sm:$0xff] %v242
  %281 = vst [vmem:[%s2 + $0x60] sm:$0xff] %v196
  %282 = vst [vmem:[%s2 + $0x68] sm:$0xff] %v245
  %283 = vst [vmem:[%s2 + $0x70] sm:$0xff] %v198
  %284 = vst [vmem:[%s2 + $0x78] sm:$0xff] %v247
  %285 = vst [vmem:[%s2 + $0x80] sm:$0xff] %v201
  %286 = vst [vmem:[%s2 + $0x88] sm:$0xff] %v250
  %287 = vst [vmem:[%s2 + $0x90] sm:$0xff] %v203
  %288 = vst [vmem:[%s2 + $0x98] sm:$0xff] %v252
  %289 = vst [vmem:[%s2 + $0xa0] sm:$0xff] %v206
  %290 = vst [vmem:[%s2 + $0xa8] sm:$0xff] %v255
  %291 = vst [vmem:[%s2 + $0xb0] sm:$0xff] %v208
  %292 = vst [vmem:[%s2 + $0xb8] sm:$0xff] %v257
  %293 = vst [vmem:[%s2 + $0xc0] sm:$0xff] %v211
  %294 = vst [vmem:[%s2 + $0xc8] sm:$0xff] %v260
  %295 = vst [vmem:[%s2 + $0xd0] sm:$0xff] %v213
  %296 = vst [vmem:[%s2 + $0xd8] sm:$0xff] %v262
  %297 = vst [vmem:[%s2 + $0xe0] sm:$0xff] %v216
  %298 = vst [vmem:[%s2 + $0xe8] sm:$0xff] %v265
  %299 = vst [vmem:[%s2 + $0xf0] sm:$0xff] %v218
  %300 = vst [vmem:[%s2 + $0xf8] sm:$0xff] %v267
  // Predicated region
  $region10: #{forward.27} parent=0 // pred_check
    _
  $region11: #{forward.27} parent=0 // pred_check_branch
    %302 = sbr.rel (0) target = $region13
  $region12: #{forward.27} parent=0 // pred_region
    _
  $region13: #{forward.27} parent=0 // pred_fallthru
    _
  // Predicated region
  $region14: #{forward.27} parent=0 // pred_check
    _
  $region15: #{forward.27} parent=0 // pred_check_branch
    %304 = sbr.rel (0) target = $region17
  $region16: #{forward.27} parent=0 // pred_region
    _
  $region17: #{forward.27} parent=0 // pred_fallthru
    _

// kernel: forward.31
$region0: #{forward.31}
  #allocation0 [shape = 'u32[]', space=smem, size = 0x4, offset = 0x4, fixed_abs, tag = 'smem constant byte address 0x4 - core index']
  #allocation1 [shape = 'u32[72,128]{1,0:T(1,128)}', space=vmem, size = 0x9000, scoped, tag = 'internal scratch']
  %s0 = inlined_call_operand.vmem [shape: s32[128,1], index: 0, kind: input, shape index: {}]
  %s1 = inlined_call_operand.vmem [shape: bf16[128,128], index: 1, kind: input, shape index: {}]
  %s2 = inlined_call_operand.vmem [shape: f32[128,128], index: 2, kind: input, shape index: {}]
  %s3 = inlined_call_operand.vmem [shape: bf16[128,128], index: 3, kind: output, shape index: {}]
  %s4 = sld [smem:[#allocation0]]
  $region22: #{forward.31} parent=0
    _
  %s6 = ssub.s32 1, %s4
  %s7 = scalar_select 0, %s6, %s4
  // Predicated region
  $region2: #{forward.31} parent=0 // pred_check
    _
  $region3: #{forward.31} parent=0 // pred_check_branch
    %9 = sbr.rel (0) target = $region5
  $region4: #{forward.31} parent=0 // pred_region
    _
  $region5: #{forward.31} parent=0 // pred_fallthru
    _
  // Predicated region
  $region6: #{forward.31} parent=0 // pred_check
    _
  $region7: #{forward.31} parent=0 // pred_check_branch
    %11 = sbr.rel (0) target = $region9
  $region8: #{forward.31} parent=0 // pred_region
    _
  $region9: #{forward.31} parent=0 // pred_fallthru
    _
  // Predicated region
  $region10: #{forward.31} parent=0 // pred_check
    _
  $region11: #{forward.31} parent=0 // pred_check_branch
    %13 = sbr.rel (0) target = $region13
  $region12: #{forward.31} parent=0 // pred_region
    _
  $region13: #{forward.31} parent=0 // pred_fallthru
    _
  %v14 = vld [vmem:[%s0] sm:$0xff]
  %v15 = vld [vmem:[%s0 + $0x8] sm:$0xff]
  %v16 = vld [vmem:[%s0 + $0x10] sm:$0xff]
  %v17 = vld [vmem:[%s0 + $0x18] sm:$0xff]
  %v18 = vld [vmem:[%s0 + $0x20] sm:$0xff]
  %v19 = vld [vmem:[%s0 + $0x28] sm:$0xff]
  %v20 = vld [vmem:[%s0 + $0x30] sm:$0xff]
  %v21 = vld [vmem:[%s0 + $0x38] sm:$0xff]
  %v22 = vld [vmem:[%s0 + $0x40] sm:$0xff]
  %v23 = vld [vmem:[%s0 + $0x48] sm:$0xff]
  %v24 = vld [vmem:[%s0 + $0x50] sm:$0xff]
  %v25 = vld [vmem:[%s0 + $0x58] sm:$0xff]
  %v26 = vld [vmem:[%s0 + $0x60] sm:$0xff]
  %v27 = vld [vmem:[%s0 + $0x68] sm:$0xff]
  %v28 = vld [vmem:[%s0 + $0x70] sm:$0xff]
  %v29 = vld [vmem:[%s0 + $0x78] sm:$0xff]
  %v30 = vlaneseq
  %v31 = vand.u32 %v30, 127
  %32 = vset.pattern.permute.xlu0 0
  %33 = vperm.xlu0 %32, %v14
  %v34 = vpop.permute.xlu0 %33
  %35 = vset.pattern.permute.xlu0 0
  %36 = vperm.xlu0 %35, %v15
  %v37 = vpop.permute.xlu0 %36
  %38 = vset.pattern.permute.xlu0 0
  %39 = vperm.xlu0 %38, %v16
  %v40 = vpop.permute.xlu0 %39
  %41 = vset.pattern.permute.xlu0 0
  %42 = vperm.xlu0 %41, %v17
  %v43 = vpop.permute.xlu0 %42
  %44 = vset.pattern.permute.xlu0 0
  %45 = vperm.xlu0 %44, %v18
  %v46 = vpop.permute.xlu0 %45
  %47 = vset.pattern.permute.xlu0 0
  %48 = vperm.xlu0 %47, %v19
  %v49 = vpop.permute.xlu0 %48
  %50 = vset.pattern.permute.xlu0 0
  %51 = vperm.xlu0 %50, %v20
  %v52 = vpop.permute.xlu0 %51
  %53 = vset.pattern.permute.xlu0 0
  %54 = vperm.xlu0 %53, %v21
  %v55 = vpop.permute.xlu0 %54
  %56 = vset.pattern.permute.xlu0 0
  %57 = vperm.xlu0 %56, %v22
  %v58 = vpop.permute.xlu0 %57
  %59 = vset.pattern.permute.xlu0 0
  %60 = vperm.xlu0 %59, %v23
  %v61 = vpop.permute.xlu0 %60
  %62 = vset.pattern.permute.xlu0 0
  %63 = vperm.xlu0 %62, %v24
  %v64 = vpop.permute.xlu0 %63
  %65 = vset.pattern.permute.xlu0 0
  %66 = vperm.xlu0 %65, %v25
  %v67 = vpop.permute.xlu0 %66
  %68 = vset.pattern.permute.xlu0 0
  %69 = vperm.xlu0 %68, %v26
  %v70 = vpop.permute.xlu0 %69
  %71 = vset.pattern.permute.xlu0 0
  %72 = vperm.xlu0 %71, %v27
  %v73 = vpop.permute.xlu0 %72
  %74 = vset.pattern.permute.xlu0 0
  %75 = vperm.xlu0 %74, %v28
  %v76 = vpop.permute.xlu0 %75
  %77 = vset.pattern.permute.xlu0 0
  %78 = vperm.xlu0 %77, %v29
  %v79 = vpop.permute.xlu0 %78
  %vm80 = vcmp.eq.s32.totalorder %v31, %v34
  %vm81 = vcmp.eq.s32.totalorder %v31, %v37
  %vm82 = vcmp.eq.s32.totalorder %v31, %v40
  %vm83 = vcmp.eq.s32.totalorder %v31, %v43
  %vm84 = vcmp.eq.s32.totalorder %v31, %v46
  %vm85 = vcmp.eq.s32.totalorder %v31, %v49
  %vm86 = vcmp.eq.s32.totalorder %v31, %v52
  %vm87 = vcmp.eq.s32.totalorder %v31, %v55
  %vm88 = vcmp.eq.s32.totalorder %v31, %v58
  %vm89 = vcmp.eq.s32.totalorder %v31, %v61
  %vm90 = vcmp.eq.s32.totalorder %v31, %v64
  %vm91 = vcmp.eq.s32.totalorder %v31, %v67
  %vm92 = vcmp.eq.s32.totalorder %v31, %v70
  %vm93 = vcmp.eq.s32.totalorder %v31, %v73
  %vm94 = vcmp.eq.s32.totalorder %v31, %v76
  %vm95 = vcmp.eq.s32.totalorder %v31, %v79
  %v96 = vsel %vm80, 1, 0
  %v97 = vsel %vm81, 1, 0
  %v98 = vsel %vm82, 1, 0
  %v99 = vsel %vm83, 1, 0
  %v100 = vsel %vm84, 1, 0
  %v101 = vsel %vm85, 1, 0
  %v102 = vsel %vm86, 1, 0
  %v103 = vsel %vm87, 1, 0
  %v104 = vsel %vm88, 1, 0
  %v105 = vsel %vm89, 1, 0
  %v106 = vsel %vm90, 1, 0
  %v107 = vsel %vm91, 1, 0
  %v108 = vsel %vm92, 1, 0
  %v109 = vsel %vm93, 1, 0
  %v110 = vsel %vm94, 1, 0
  %v111 = vsel %vm95, 1, 0
  %v112 = vcvt.s32.f32 %v96
  %v113 = vcvt.s32.f32 %v97
  %v114 = vcvt.s32.f32 %v98
  %v115 = vcvt.s32.f32 %v99
  %v116 = vcvt.s32.f32 %v100
  %v117 = vcvt.s32.f32 %v101
  %v118 = vcvt.s32.f32 %v102
  %v119 = vcvt.s32.f32 %v103
  %v120 = vcvt.s32.f32 %v104
  %v121 = vcvt.s32.f32 %v105
  %v122 = vcvt.s32.f32 %v106
  %v123 = vcvt.s32.f32 %v107
  %v124 = vcvt.s32.f32 %v108
  %v125 = vcvt.s32.f32 %v109
  %v126 = vcvt.s32.f32 %v110
  %v127 = vcvt.s32.f32 %v111
  %v128 = vpack.c.bf16 %v113, %v112
  %v129 = vpack.c.bf16 %v115, %v114
  %v130 = vpack.c.bf16 %v117, %v116
  %v131 = vpack.c.bf16 %v119, %v118
  %v132 = vpack.c.bf16 %v121, %v120
  %v133 = vpack.c.bf16 %v123, %v122
  %v134 = vpack.c.bf16 %v125, %v124
  %v135 = vpack.c.bf16 %v127, %v126
  %v136 = vld [vmem:[%s1] sm:$0xf]
  %v137 = vld [vmem:[%s1 + $0x4] sm:$0xf]
  %v138 = vld [vmem:[%s1 + $0x8] sm:$0xf]
  %v139 = vld [vmem:[%s1 + $0xc] sm:$0xf]
  %v140 = vld [vmem:[%s1 + $0x10] sm:$0xf]
  %v141 = vld [vmem:[%s1 + $0x14] sm:$0xf]
  %v142 = vld [vmem:[%s1 + $0x18] sm:$0xf]
  %v143 = vld [vmem:[%s1 + $0x1c] sm:$0xf]
  %v144 = vld [vmem:[%s1 + $0x20] sm:$0xf]
  %v145 = vld [vmem:[%s1 + $0x24] sm:$0xf]
  %v146 = vld [vmem:[%s1 + $0x28] sm:$0xf]
  %v147 = vld [vmem:[%s1 + $0x2c] sm:$0xf]
  %v148 = vld [vmem:[%s1 + $0x30] sm:$0xf]
  %v149 = vld [vmem:[%s1 + $0x34] sm:$0xf]
  %v150 = vld [vmem:[%s1 + $0x38] sm:$0xf]
  %v151 = vld [vmem:[%s1 + $0x3c] sm:$0xf]
  %v168 = vunpack.c.l.b16 %v136
  %v169 = vunpack.c.l.b16 %v137
  %v170 = vunpack.c.l.b16 %v138
  %v171 = vunpack.c.l.b16 %v139
  %v172 = vunpack.c.l.b16 %v140
  %v173 = vunpack.c.l.b16 %v141
  %v174 = vunpack.c.l.b16 %v142
  %v175 = vunpack.c.l.b16 %v143
  %v176 = vunpack.c.l.b16 %v144
  %v177 = vunpack.c.l.b16 %v145
  %v178 = vunpack.c.l.b16 %v146
  %v179 = vunpack.c.l.b16 %v147
  %v180 = vunpack.c.l.b16 %v148
  %v181 = vunpack.c.l.b16 %v149
  %v182 = vunpack.c.l.b16 %v150
  %v183 = vunpack.c.l.b16 %v151
  %v184 = vpack.c.b16 %v169, %v168
  %v185 = vpack.c.b16 %v171, %v170
  %v186 = vpack.c.b16 %v173, %v172
  %v187 = vpack.c.b16 %v175, %v174
  %v188 = vpack.c.b16 %v177, %v176
  %v189 = vpack.c.b16 %v179, %v178
  %v190 = vpack.c.b16 %v181, %v180
  %v191 = vpack.c.b16 %v183, %v182
  %200 = vmatpush.bf16.msra.mxu0 %v191
  %201 = vmatpush.bf16.msra.mxu0 %v190
  %202 = vmatpush.bf16.msra.mxu0 %v189
  %203 = vmatpush.bf16.msra.mxu0 %v188
  %204 = vmatpush.bf16.msra.mxu0 %v187
  %205 = vmatpush.bf16.msra.mxu0 %v186
  %206 = vmatpush.bf16.msra.mxu0 %v185
  %207 = vmatpush.bf16.msra.mxu0 %v184
  %208 = vmatmul.bf16.gmra.mxu0 %v128
  %v209 = vpop.f32.mrf.mxu0
  %v210 = vadd.f32 0.0, %v209
  %v211 = vpop.f32.mrf.mxu0
  %v212 = vadd.f32 0.0, %v211
  %213 = vmatmul.bf16.gmra.mxu0 %v129
  %v214 = vpop.f32.mrf.mxu0
  %v215 = vadd.f32 0.0, %v214
  %v216 = vpop.f32.mrf.mxu0
  %v217 = vadd.f32 0.0, %v216
  %218 = vmatmul.bf16.gmra.mxu0 %v130
  %v219 = vpop.f32.mrf.mxu0
  %v220 = vadd.f32 0.0, %v219
  %v221 = vpop.f32.mrf.mxu0
  %v222 = vadd.f32 0.0, %v221
  %223 = vmatmul.bf16.gmra.mxu0 %v131
  %v224 = vpop.f32.mrf.mxu0
  %v225 = vadd.f32 0.0, %v224
  %v226 = vpop.f32.mrf.mxu0
  %v227 = vadd.f32 0.0, %v226
  %228 = vmatmul.bf16.gmra.mxu0 %v132
  %v229 = vpop.f32.mrf.mxu0
  %v230 = vadd.f32 0.0, %v229
  %v231 = vpop.f32.mrf.mxu0
  %v232 = vadd.f32 0.0, %v231
  %233 = vmatmul.bf16.gmra.mxu0 %v133
  %v234 = vpop.f32.mrf.mxu0
  %v235 = vadd.f32 0.0, %v234
  %v236 = vpop.f32.mrf.mxu0
  %v237 = vadd.f32 0.0, %v236
  %238 = vmatmul.bf16.gmra.mxu0 %v134
  %v239 = vpop.f32.mrf.mxu0
  %v240 = vadd.f32 0.0, %v239
  %v241 = vpop.f32.mrf.mxu0
  %v242 = vadd.f32 0.0, %v241
  %243 = vmatmul.bf16.gmra.mxu0 %v135
  %v244 = vpop.f32.mrf.mxu0
  %v245 = vadd.f32 0.0, %v244
  %v246 = vpop.f32.mrf.mxu0
  %v247 = vadd.f32 0.0, %v246
  %248 = vdwg.mxu0
  %v249 = vld [vmem:[%s2] sm:$0xff]
  %v250 = vld [vmem:[%s2 + $0x8] sm:$0xff]
  %v251 = vld [vmem:[%s2 + $0x10] sm:$0xff]
  %v252 = vld [vmem:[%s2 + $0x18] sm:$0xff]
  %v253 = vld [vmem:[%s2 + $0x20] sm:$0xff]
  %v254 = vld [vmem:[%s2 + $0x28] sm:$0xff]
  %v255 = vld [vmem:[%s2 + $0x30] sm:$0xff]
  %v256 = vld [vmem:[%s2 + $0x38] sm:$0xff]
  %v257 = vld [vmem:[%s2 + $0x40] sm:$0xff]
  %v258 = vld [vmem:[%s2 + $0x48] sm:$0xff]
  %v259 = vld [vmem:[%s2 + $0x50] sm:$0xff]
  %v260 = vld [vmem:[%s2 + $0x58] sm:$0xff]
  %v261 = vld [vmem:[%s2 + $0x60] sm:$0xff]
  %v262 = vld [vmem:[%s2 + $0x68] sm:$0xff]
  %v263 = vld [vmem:[%s2 + $0x70] sm:$0xff]
  %v264 = vld [vmem:[%s2 + $0x78] sm:$0xff]
  %v265 = vmul.f32 %v210, %v249
  %v266 = vmul.f32 %v212, %v250
  %v267 = vmul.f32 %v215, %v251
  %v268 = vmul.f32 %v217, %v252
  %v269 = vmul.f32 %v220, %v253
  %v270 = vmul.f32 %v222, %v254
  %v271 = vmul.f32 %v225, %v255
  %v272 = vmul.f32 %v227, %v256
  %v273 = vmul.f32 %v230, %v257
  %v274 = vmul.f32 %v232, %v258
  %v275 = vmul.f32 %v235, %v259
  %v276 = vmul.f32 %v237, %v260
  %v277 = vmul.f32 %v240, %v261
  %v278 = vmul.f32 %v242, %v262
  %v279 = vmul.f32 %v245, %v263
  %v280 = vmul.f32 %v247, %v264
  %v281 = vpack.c.bf16 %v265, %v265
  %v282 = vpack.c.bf16 %v266, %v266
  %v283 = vpack.c.bf16 %v267, %v267
  %v284 = vpack.c.bf16 %v268, %v268
  %v285 = vpack.c.bf16 %v269, %v269
  %v286 = vpack.c.bf16 %v270, %v270
  %v287 = vpack.c.bf16 %v271, %v271
  %v288 = vpack.c.bf16 %v272, %v272
  %v289 = vpack.c.bf16 %v273, %v273
  %v290 = vpack.c.bf16 %v274, %v274
  %v291 = vpack.c.bf16 %v275, %v275
  %v292 = vpack.c.bf16 %v276, %v276
  %v293 = vpack.c.bf16 %v277, %v277
  %v294 = vpack.c.bf16 %v278, %v278
  %v295 = vpack.c.bf16 %v279, %v279
  %v296 = vpack.c.bf16 %v280, %v280
  %297 = vst [vmem:[%s3] sm:$0xf] %v281
  %298 = vst [vmem:[%s3 + $0x4] sm:$0xf] %v282
  %299 = vst [vmem:[%s3 + $0x8] sm:$0xf] %v283
  %300 = vst [vmem:[%s3 + $0xc] sm:$0xf] %v284
  %301 = vst [vmem:[%s3 + $0x10] sm:$0xf] %v285
  %302 = vst [vmem:[%s3 + $0x14] sm:$0xf] %v286
  %303 = vst [vmem:[%s3 + $0x18] sm:$0xf] %v287
  %304 = vst [vmem:[%s3 + $0x1c] sm:$0xf] %v288
  %305 = vst [vmem:[%s3 + $0x20] sm:$0xf] %v289
  %306 = vst [vmem:[%s3 + $0x24] sm:$0xf] %v290
  %307 = vst [vmem:[%s3 + $0x28] sm:$0xf] %v291
  %308 = vst [vmem:[%s3 + $0x2c] sm:$0xf] %v292
  %309 = vst [vmem:[%s3 + $0x30] sm:$0xf] %v293
  %310 = vst [vmem:[%s3 + $0x34] sm:$0xf] %v294
  %311 = vst [vmem:[%s3 + $0x38] sm:$0xf] %v295
  %312 = vst [vmem:[%s3 + $0x3c] sm:$0xf] %v296
  // Predicated region
  $region14: #{forward.31} parent=0 // pred_check
    _
  $region15: #{forward.31} parent=0 // pred_check_branch
    %314 = sbr.rel (0) target = $region17
  $region16: #{forward.31} parent=0 // pred_region
    _
  $region17: #{forward.31} parent=0 // pred_fallthru
    _
  // Predicated region
  $region18: #{forward.31} parent=0 // pred_check
    _
  $region19: #{forward.31} parent=0 // pred_check_branch
    %316 = sbr.rel (0) target = $region21
  $region20: #{forward.31} parent=0 // pred_region
    _
  $region21: #{forward.31} parent=0 // pred_fallthru
    _

// kernel: forward.30
$region0: #{forward.30}
  #allocation0 [shape = 'u32[]', space=smem, size = 0x4, offset = 0x4, fixed_abs, tag = 'smem constant byte address 0x4 - core index']
  #allocation1 [shape = 'u32[72,128]{1,0:T(1,128)}', space=vmem, size = 0x9000, scoped, tag = 'internal scratch']
  %s0 = inlined_call_operand.vmem [shape: f32[128,128], index: 0, kind: input, shape index: {}]
  %s1 = inlined_call_operand.vmem [shape: bf16[128,256], index: 1, kind: input, shape index: {}]
  %s2 = inlined_call_operand.vmem [shape: f32[1,256], index: 2, kind: input, shape index: {}]
  %s3 = inlined_call_operand.vmem [shape: f32[128,128], index: 3, kind: input, shape index: {}]
  %s4 = inlined_call_operand.vmem [shape: bf16[128,128], index: 4, kind: input, shape index: {}]
  %s5 = inlined_call_operand.vmem [shape: f32[128,128], index: 5, kind: output, shape index: {0}]
  %s6 = inlined_call_operand.vmem [shape: bf16[128,128], index: 6, kind: output, shape index: {1}]
  %7 = xla_tuple %s5, %s6
  %s8 = sld [smem:[#allocation0]]
  $region38: #{forward.30} parent=0
    _
  %s10 = ssub.s32 1, %s8
  %s11 = scalar_select 0, %s10, %s8
  // Predicated region
  $region2: #{forward.30} parent=0 // pred_check
    _
  $region3: #{forward.30} parent=0 // pred_check_branch
    %13 = sbr.rel (0) target = $region5
  $region4: #{forward.30} parent=0 // pred_region
    _
  $region5: #{forward.30} parent=0 // pred_fallthru
    _
  // Predicated region
  $region6: #{forward.30} parent=0 // pred_check
    _
  $region7: #{forward.30} parent=0 // pred_check_branch
    %15 = sbr.rel (0) target = $region9
  $region8: #{forward.30} parent=0 // pred_region
    _
  $region9: #{forward.30} parent=0 // pred_fallthru
    _
  // Predicated region
  $region10: #{forward.30} parent=0 // pred_check
    _
  $region11: #{forward.30} parent=0 // pred_check_branch
    %17 = sbr.rel (0) target = $region13
  $region12: #{forward.30} parent=0 // pred_region
    _
  $region13: #{forward.30} parent=0 // pred_fallthru
    _
  // Predicated region
  $region14: #{forward.30} parent=0 // pred_check
    _
  $region15: #{forward.30} parent=0 // pred_check_branch
    %19 = sbr.rel (0) target = $region17
  $region16: #{forward.30} parent=0 // pred_region
    _
  $region17: #{forward.30} parent=0 // pred_fallthru
    _
  // Predicated region
  $region18: #{forward.30} parent=0 // pred_check
    _
  $region19: #{forward.30} parent=0 // pred_check_branch
    %21 = sbr.rel (0) target = $region21
  $region20: #{forward.30} parent=0 // pred_region
    _
  $region21: #{forward.30} parent=0 // pred_fallthru
    _
  %v22 = vld [vmem:[%s0] sm:$0xff]
  %v23 = vld [vmem:[%s0 + $0x8] sm:$0xff]
  %v24 = vld [vmem:[%s0 + $0x10] sm:$0xff]
  %v25 = vld [vmem:[%s0 + $0x18] sm:$0xff]
  %v26 = vld [vmem:[%s0 + $0x20] sm:$0xff]
  %v27 = vld [vmem:[%s0 + $0x28] sm:$0xff]
  %v28 = vld [vmem:[%s0 + $0x30] sm:$0xff]
  %v29 = vld [vmem:[%s0 + $0x38] sm:$0xff]
  %v30 = vld [vmem:[%s0 + $0x40] sm:$0xff]
  %v31 = vld [vmem:[%s0 + $0x48] sm:$0xff]
  %v32 = vld [vmem:[%s0 + $0x50] sm:$0xff]
  %v33 = vld [vmem:[%s0 + $0x58] sm:$0xff]
  %v34 = vld [vmem:[%s0 + $0x60] sm:$0xff]
  %v35 = vld [vmem:[%s0 + $0x68] sm:$0xff]
  %v36 = vld [vmem:[%s0 + $0x70] sm:$0xff]
  %v37 = vld [vmem:[%s0 + $0x78] sm:$0xff]
  %v38 = vpack.c.bf16 %v23, %v22
  %v39 = vpack.c.bf16 %v25, %v24
  %v40 = vpack.c.bf16 %v27, %v26
  %v41 = vpack.c.bf16 %v29, %v28
  %v42 = vpack.c.bf16 %v31, %v30
  %v43 = vpack.c.bf16 %v33, %v32
  %v44 = vpack.c.bf16 %v35, %v34
  %v45 = vpack.c.bf16 %v37, %v36
  %v46 = vld [vmem:[%s1] sm:$0xff]
  %v47 = vld [vmem:[%s1 + $0x8] sm:$0xff]
  %v48 = vld [vmem:[%s1 + $0x10] sm:$0xff]
  %v49 = vld [vmem:[%s1 + $0x18] sm:$0xff]
  %v50 = vld [vmem:[%s1 + $0x20] sm:$0xff]
  %v51 = vld [vmem:[%s1 + $0x28] sm:$0xff]
  %v52 = vld [vmem:[%s1 + $0x30] sm:$0xff]
  %v53 = vld [vmem:[%s1 + $0x38] sm:$0xff]
  %v54 = vld [vmem:[%s1 + $0x40] sm:$0xff]
  %v55 = vld [vmem:[%s1 + $0x48] sm:$0xff]
  %v56 = vld [vmem:[%s1 + $0x50] sm:$0xff]
  %v57 = vld [vmem:[%s1 + $0x58] sm:$0xff]
  %v58 = vld [vmem:[%s1 + $0x60] sm:$0xff]
  %v59 = vld [vmem:[%s1 + $0x68] sm:$0xff]
  %v60 = vld [vmem:[%s1 + $0x70] sm:$0xff]
  %v61 = vld [vmem:[%s1 + $0x78] sm:$0xff]
  %v62 = vld [vmem:[%s2] sm:$0x3]
  %v64 = vperm.slane %v62, 0
  %v65 = vperm.slane %v62, 1
  %v84 = vunpack.c.l.b16 %v46
  %v85 = vunpack.c.h.b16 %v46
  %v86 = vunpack.c.l.b16 %v47
  %v87 = vunpack.c.h.b16 %v47
  %v88 = vunpack.c.l.b16 %v48
  %v89 = vunpack.c.h.b16 %v48
  %v90 = vunpack.c.l.b16 %v49
  %v91 = vunpack.c.h.b16 %v49
  %v92 = vunpack.c.l.b16 %v50
  %v93 = vunpack.c.h.b16 %v50
  %v94 = vunpack.c.l.b16 %v51
  %v95 = vunpack.c.h.b16 %v51
  %v96 = vunpack.c.l.b16 %v52
  %v97 = vunpack.c.h.b16 %v52
  %v98 = vunpack.c.l.b16 %v53
  %v99 = vunpack.c.h.b16 %v53
  %v100 = vunpack.c.l.b16 %v54
  %v101 = vunpack.c.h.b16 %v54
  %v102 = vunpack.c.l.b16 %v55
  %v103 = vunpack.c.h.b16 %v55
  %v104 = vunpack.c.l.b16 %v56
  %v105 = vunpack.c.h.b16 %v56
  %v106 = vunpack.c.l.b16 %v57
  %v107 = vunpack.c.h.b16 %v57
  %v108 = vunpack.c.l.b16 %v58
  %v109 = vunpack.c.h.b16 %v58
  %v110 = vunpack.c.l.b16 %v59
  %v111 = vunpack.c.h.b16 %v59
  %v112 = vunpack.c.l.b16 %v60
  %v113 = vunpack.c.h.b16 %v60
  %v114 = vunpack.c.l.b16 %v61
  %v115 = vunpack.c.h.b16 %v61
  %v116 = vpack.c.b16 %v86, %v84
  %v117 = vpack.c.b16 %v87, %v85
  %v118 = vpack.c.b16 %v90, %v88
  %v119 = vpack.c.b16 %v91, %v89
  %v120 = vpack.c.b16 %v94, %v92
  %v121 = vpack.c.b16 %v95, %v93
  %v122 = vpack.c.b16 %v98, %v96
  %v123 = vpack.c.b16 %v99, %v97
  %v124 = vpack.c.b16 %v102, %v100
  %v125 = vpack.c.b16 %v103, %v101
  %v126 = vpack.c.b16 %v106, %v104
  %v127 = vpack.c.b16 %v107, %v105
  %v128 = vpack.c.b16 %v110, %v108
  %v129 = vpack.c.b16 %v111, %v109
  %v130 = vpack.c.b16 %v114, %v112
  %v131 = vpack.c.b16 %v115, %v113
  %148 = vmatpush.bf16.msra.mxu0 %v130
  %149 = vmatpush.bf16.msra.mxu0 %v128
  %150 = vmatpush.bf16.msra.mxu0 %v126
  %151 = vmatpush.bf16.msra.mxu0 %v124
  %152 = vmatpush.bf16.msra.mxu0 %v122
  %153 = vmatpush.bf16.msra.mxu0 %v120
  %154 = vmatpush.bf16.msra.mxu0 %v118
  %155 = vmatpush.bf16.msra.mxu0 %v116
  %156 = vmatmul.bf16.gmra.mxu0 %v38
  %v157 = vpop.f32.mrf.mxu0
  %v158 = vadd.f32 %v64, %v157
  %v159 = vpop.f32.mrf.mxu0
  %v160 = vadd.f32 %v64, %v159
  %161 = vmatmul.bf16.gmra.mxu0 %v39
  %v162 = vpop.f32.mrf.mxu0
  %v163 = vadd.f32 %v64, %v162
  %v164 = vpop.f32.mrf.mxu0
  %v165 = vadd.f32 %v64, %v164
  %166 = vmatmul.bf16.gmra.mxu0 %v40
  %v167 = vpop.f32.mrf.mxu0
  %v168 = vadd.f32 %v64, %v167
  %v169 = vpop.f32.mrf.mxu0
  %v170 = vadd.f32 %v64, %v169
  %171 = vmatmul.bf16.gmra.mxu0 %v41
  %v172 = vpop.f32.mrf.mxu0
  %v173 = vadd.f32 %v64, %v172
  %v174 = vpop.f32.mrf.mxu0
  %v175 = vadd.f32 %v64, %v174
  %176 = vmatmul.bf16.gmra.mxu0 %v42
  %v177 = vpop.f32.mrf.mxu0
  %v178 = vadd.f32 %v64, %v177
  %v179 = vpop.f32.mrf.mxu0
  %v180 = vadd.f32 %v64, %v179
  %181 = vmatmul.bf16.gmra.mxu0 %v43
  %v182 = vpop.f32.mrf.mxu0
  %v183 = vadd.f32 %v64, %v182
  %v184 = vpop.f32.mrf.mxu0
  %v185 = vadd.f32 %v64, %v184
  %186 = vmatmul.bf16.gmra.mxu0 %v44
  %v187 = vpop.f32.mrf.mxu0
  %v188 = vadd.f32 %v64, %v187
  %v189 = vpop.f32.mrf.mxu0
  %v190 = vadd.f32 %v64, %v189
  %191 = vmatmul.bf16.gmra.mxu0 %v45
  %v192 = vpop.f32.mrf.mxu0
  %v193 = vadd.f32 %v64, %v192
  %v194 = vpop.f32.mrf.mxu0
  %v195 = vadd.f32 %v64, %v194
  %196 = vdwg.mxu0
  %197 = vmatpush.bf16.msra.mxu0 %v131
  %198 = vmatpush.bf16.msra.mxu0 %v129
  %199 = vmatpush.bf16.msra.mxu0 %v127
  %200 = vmatpush.bf16.msra.mxu0 %v125
  %201 = vmatpush.bf16.msra.mxu0 %v123
  %202 = vmatpush.bf16.msra.mxu0 %v121
  %203 = vmatpush.bf16.msra.mxu0 %v119
  %204 = vmatpush.bf16.msra.mxu0 %v117
  %205 = vmatmul.bf16.gmra.mxu0 %v38
  %v206 = vpop.f32.mrf.mxu0
  %v207 = vadd.f32 %v65, %v206
  %v208 = vpop.f32.mrf.mxu0
  %v209 = vadd.f32 %v65, %v208
  %210 = vmatmul.bf16.gmra.mxu0 %v39
  %v211 = vpop.f32.mrf.mxu0
  %v212 = vadd.f32 %v65, %v211
  %v213 = vpop.f32.mrf.mxu0
  %v214 = vadd.f32 %v65, %v213
  %215 = vmatmul.bf16.gmra.mxu0 %v40
  %v216 = vpop.f32.mrf.mxu0
  %v217 = vadd.f32 %v65, %v216
  %v218 = vpop.f32.mrf.mxu0
  %v219 = vadd.f32 %v65, %v218
  %220 = vmatmul.bf16.gmra.mxu0 %v41
  %v221 = vpop.f32.mrf.mxu0
  %v222 = vadd.f32 %v65, %v221
  %v223 = vpop.f32.mrf.mxu0
  %v224 = vadd.f32 %v65, %v223
  %225 = vmatmul.bf16.gmra.mxu0 %v42
  %v226 = vpop.f32.mrf.mxu0
  %v227 = vadd.f32 %v65, %v226
  %v228 = vpop.f32.mrf.mxu0
  %v229 = vadd.f32 %v65, %v228
  %230 = vmatmul.bf16.gmra.mxu0 %v43
  %v231 = vpop.f32.mrf.mxu0
  %v232 = vadd.f32 %v65, %v231
  %v233 = vpop.f32.mrf.mxu0
  %v234 = vadd.f32 %v65, %v233
  %235 = vmatmul.bf16.gmra.mxu0 %v44
  %v236 = vpop.f32.mrf.mxu0
  %v237 = vadd.f32 %v65, %v236
  %v238 = vpop.f32.mrf.mxu0
  %v239 = vadd.f32 %v65, %v238
  %240 = vmatmul.bf16.gmra.mxu0 %v45
  %v241 = vpop.f32.mrf.mxu0
  %v242 = vadd.f32 %v65, %v241
  %v243 = vpop.f32.mrf.mxu0
  %v244 = vadd.f32 %v65, %v243
  %245 = vdwg.mxu0
  %v246 = vxor.u32 %v158, 2147483648
  %v247 = vxor.u32 %v207, 2147483648
  %v248 = vxor.u32 %v160, 2147483648
  %v249 = vxor.u32 %v209, 2147483648
  %v250 = vxor.u32 %v163, 2147483648
  %v251 = vxor.u32 %v212, 2147483648
  %v252 = vxor.u32 %v165, 2147483648
  %v253 = vxor.u32 %v214, 2147483648
  %v254 = vxor.u32 %v168, 2147483648
  %v255 = vxor.u32 %v217, 2147483648
  %v256 = vxor.u32 %v170, 2147483648
  %v257 = vxor.u32 %v219, 2147483648
  %v258 = vxor.u32 %v173, 2147483648
  %v259 = vxor.u32 %v222, 2147483648
  %v260 = vxor.u32 %v175, 2147483648
  %v261 = vxor.u32 %v224, 2147483648
  %v262 = vxor.u32 %v178, 2147483648
  %v263 = vxor.u32 %v227, 2147483648
  %v264 = vxor.u32 %v180, 2147483648
  %v265 = vxor.u32 %v229, 2147483648
  %v266 = vxor.u32 %v183, 2147483648
  %v267 = vxor.u32 %v232, 2147483648
  %v268 = vxor.u32 %v185, 2147483648
  %v269 = vxor.u32 %v234, 2147483648
  %v270 = vxor.u32 %v188, 2147483648
  %v271 = vxor.u32 %v237, 2147483648
  %v272 = vxor.u32 %v190, 2147483648
  %v273 = vxor.u32 %v239, 2147483648
  %v274 = vxor.u32 %v193, 2147483648
  %v275 = vxor.u32 %v242, 2147483648
  %v276 = vxor.u32 %v195, 2147483648
  %v277 = vxor.u32 %v244, 2147483648
  %v278 = vmul.f32 %v246, 1.442695
  %v279 = vpow.pop %v278
  %v280 = vmul.f32 %v247, 1.442695
  %v281 = vpow.pop %v280
  %v282 = vmul.f32 %v248, 1.442695
  %v283 = vpow.pop %v282
  %v284 = vmul.f32 %v249, 1.442695
  %v285 = vpow.pop %v284
  %v286 = vmul.f32 %v250, 1.442695
  %v287 = vpow.pop %v286
  %v288 = vmul.f32 %v251, 1.442695
  %v289 = vpow.pop %v288
  %v290 = vmul.f32 %v252, 1.442695
  %v291 = vpow.pop %v290
  %v292 = vmul.f32 %v253, 1.442695
  %v293 = vpow.pop %v292
  %v294 = vmul.f32 %v254, 1.442695
  %v295 = vpow.pop %v294
  %v296 = vmul.f32 %v255, 1.442695
  %v297 = vpow.pop %v296
  %v298 = vmul.f32 %v256, 1.442695
  %v299 = vpow.pop %v298
  %v300 = vmul.f32 %v257, 1.442695
  %v301 = vpow.pop %v300
  %v302 = vmul.f32 %v258, 1.442695
  %v303 = vpow.pop %v302
  %v304 = vmul.f32 %v259, 1.442695
  %v305 = vpow.pop %v304
  %v306 = vmul.f32 %v260, 1.442695
  %v307 = vpow.pop %v306
  %v308 = vmul.f32 %v261, 1.442695
  %v309 = vpow.pop %v308
  %v310 = vmul.f32 %v262, 1.442695
  %v311 = vpow.pop %v310
  %v312 = vmul.f32 %v263, 1.442695
  %v313 = vpow.pop %v312
  %v314 = vmul.f32 %v264, 1.442695
  %v315 = vpow.pop %v314
  %v316 = vmul.f32 %v265, 1.442695
  %v317 = vpow.pop %v316
  %v318 = vmul.f32 %v266, 1.442695
  %v319 = vpow.pop %v318
  %v320 = vmul.f32 %v267, 1.442695
  %v321 = vpow.pop %v320
  %v322 = vmul.f32 %v268, 1.442695
  %v323 = vpow.pop %v322
  %v324 = vmul.f32 %v269, 1.442695
  %v325 = vpow.pop %v324
  %v326 = vmul.f32 %v270, 1.442695
  %v327 = vpow.pop %v326
  %v328 = vmul.f32 %v271, 1.442695
  %v329 = vpow.pop %v328
  %v330 = vmul.f32 %v272, 1.442695
  %v331 = vpow.pop %v330
  %v332 = vmul.f32 %v273, 1.442695
  %v333 = vpow.pop %v332
  %v334 = vmul.f32 %v274, 1.442695
  %v335 = vpow.pop %v334
  %v336 = vmul.f32 %v275, 1.442695
  %v337 = vpow.pop %v336
  %v338 = vmul.f32 %v276, 1.442695
  %v339 = vpow.pop %v338
  %v340 = vmul.f32 %v277, 1.442695
  %v341 = vpow.pop %v340
  %v342 = vadd.f32 %v279, 1.0
  %v343 = vadd.f32 %v281, 1.0
  %v344 = vadd.f32 %v283, 1.0
  %v345 = vadd.f32 %v285, 1.0
  %v346 = vadd.f32 %v287, 1.0
  %v347 = vadd.f32 %v289, 1.0
  %v348 = vadd.f32 %v291, 1.0
  %v349 = vadd.f32 %v293, 1.0
  %v350 = vadd.f32 %v295, 1.0
  %v351 = vadd.f32 %v297, 1.0
  %v352 = vadd.f32 %v299, 1.0
  %v353 = vadd.f32 %v301, 1.0
  %v354 = vadd.f32 %v303, 1.0
  %v355 = vadd.f32 %v305, 1.0
  %v356 = vadd.f32 %v307, 1.0
  %v357 = vadd.f32 %v309, 1.0
  %v358 = vadd.f32 %v311, 1.0
  %v359 = vadd.f32 %v313, 1.0
  %v360 = vadd.f32 %v315, 1.0
  %v361 = vadd.f32 %v317, 1.0
  %v362 = vadd.f32 %v319, 1.0
  %v363 = vadd.f32 %v321, 1.0
  %v364 = vadd.f32 %v323, 1.0
  %v365 = vadd.f32 %v325, 1.0
  %v366 = vadd.f32 %v327, 1.0
  %v367 = vadd.f32 %v329, 1.0
  %v368 = vadd.f32 %v331, 1.0
  %v369 = vadd.f32 %v333, 1.0
  %v370 = vadd.f32 %v335, 1.0
  %v371 = vadd.f32 %v337, 1.0
  %v372 = vadd.f32 %v339, 1.0
  %v373 = vadd.f32 %v341, 1.0
  %v374 = vrcp.pop %v342
  %v375 = vmul.f32 %v342, %v374
  %v376 = vsub.f32 1.0, %v375
  %v377 = vmul.f32 %v374, %v376
  %v378 = vadd.f32 %v374, %v377
  %vm379 = vweird.f32 %v342
  %vm380 = vweird.f32 %v374
  %vm381 = vmor %vm379, %vm380
  %v382 = vsel %vm381, %v374, %v378
  %v383 = vand.u32 2147483647, %v342
  %vm384 = vcmp.eq.f32.partialorder %v383, 8.507059e+37
  %v385 = vand.u32 %v342, 2147483648
  %v386 = vor.u32 1.1754944e-38, %v385
  %v387 = vsel %vm384, %v386, %v382
  %v388 = vmul.f32 1.0, %v387
  %v389 = vrcp.pop %v343
  %v390 = vmul.f32 %v343, %v389
  %v391 = vsub.f32 1.0, %v390
  %v392 = vmul.f32 %v389, %v391
  %v393 = vadd.f32 %v389, %v392
  %vm394 = vweird.f32 %v343
  %vm395 = vweird.f32 %v389
  %vm396 = vmor %vm394, %vm395
  %v397 = vsel %vm396, %v389, %v393
  %v398 = vand.u32 2147483647, %v343
  %vm399 = vcmp.eq.f32.partialorder %v398, 8.507059e+37
  %v400 = vand.u32 %v343, 2147483648
  %v401 = vor.u32 1.1754944e-38, %v400
  %v402 = vsel %vm399, %v401, %v397
  %v403 = vmul.f32 1.0, %v402
  %v404 = vrcp.pop %v344
  %v405 = vmul.f32 %v344, %v404
  %v406 = vsub.f32 1.0, %v405
  %v407 = vmul.f32 %v404, %v406
  %v408 = vadd.f32 %v404, %v407
  %vm409 = vweird.f32 %v344
  %vm410 = vweird.f32 %v404
  %vm411 = vmor %vm409, %vm410
  %v412 = vsel %vm411, %v404, %v408
  %v413 = vand.u32 2147483647, %v344
  %vm414 = vcmp.eq.f32.partialorder %v413, 8.507059e+37
  %v415 = vand.u32 %v344, 2147483648
  %v416 = vor.u32 1.1754944e-38, %v415
  %v417 = vsel %vm414, %v416, %v412
  %v418 = vmul.f32 1.0, %v417
  %v419 = vrcp.pop %v345
  %v420 = vmul.f32 %v345, %v419
  %v421 = vsub.f32 1.0, %v420
  %v422 = vmul.f32 %v419, %v421
  %v423 = vadd.f32 %v419, %v422
  %vm424 = vweird.f32 %v345
  %vm425 = vweird.f32 %v419
  %vm426 = vmor %vm424, %vm425
  %v427 = vsel %vm426, %v419, %v423
  %v428 = vand.u32 2147483647, %v345
  %vm429 = vcmp.eq.f32.partialorder %v428, 8.507059e+37
  %v430 = vand.u32 %v345, 2147483648
  %v431 = vor.u32 1.1754944e-38, %v430
  %v432 = vsel %vm429, %v431, %v427
  %v433 = vmul.f32 1.0, %v432
  %v434 = vrcp.pop %v346
  %v435 = vmul.f32 %v346, %v434
  %v436 = vsub.f32 1.0, %v435
  %v437 = vmul.f32 %v434, %v436
  %v438 = vadd.f32 %v434, %v437
  %vm439 = vweird.f32 %v346
  %vm440 = vweird.f32 %v434
  %vm441 = vmor %vm439, %vm440
  %v442 = vsel %vm441, %v434, %v438
  %v443 = vand.u32 2147483647, %v346
  %vm444 = vcmp.eq.f32.partialorder %v443, 8.507059e+37
  %v445 = vand.u32 %v346, 2147483648
  %v446 = vor.u32 1.1754944e-38, %v445
  %v447 = vsel %vm444, %v446, %v442
  %v448 = vmul.f32 1.0, %v447
  %v449 = vrcp.pop %v347
  %v450 = vmul.f32 %v347, %v449
  %v451 = vsub.f32 1.0, %v450
  %v452 = vmul.f32 %v449, %v451
  %v453 = vadd.f32 %v449, %v452
  %vm454 = vweird.f32 %v347
  %vm455 = vweird.f32 %v449
  %vm456 = vmor %vm454, %vm455
  %v457 = vsel %vm456, %v449, %v453
  %v458 = vand.u32 2147483647, %v347
  %vm459 = vcmp.eq.f32.partialorder %v458, 8.507059e+37
  %v460 = vand.u32 %v347, 2147483648
  %v461 = vor.u32 1.1754944e-38, %v460
  %v462 = vsel %vm459, %v461, %v457
  %v463 = vmul.f32 1.0, %v462
  %v464 = vrcp.pop %v348
  %v465 = vmul.f32 %v348, %v464
  %v466 = vsub.f32 1.0, %v465
  %v467 = vmul.f32 %v464, %v466
  %v468 = vadd.f32 %v464, %v467
  %vm469 = vweird.f32 %v348
  %vm470 = vweird.f32 %v464
  %vm471 = vmor %vm469, %vm470
  %v472 = vsel %vm471, %v464, %v468
  %v473 = vand.u32 2147483647, %v348
  %vm474 = vcmp.eq.f32.partialorder %v473, 8.507059e+37
  %v475 = vand.u32 %v348, 2147483648
  %v476 = vor.u32 1.1754944e-38, %v475
  %v477 = vsel %vm474, %v476, %v472
  %v478 = vmul.f32 1.0, %v477
  %v479 = vrcp.pop %v349
  %v480 = vmul.f32 %v349, %v479
  %v481 = vsub.f32 1.0, %v480
  %v482 = vmul.f32 %v479, %v481
  %v483 = vadd.f32 %v479, %v482
  %vm484 = vweird.f32 %v349
  %vm485 = vweird.f32 %v479
  %vm486 = vmor %vm484, %vm485
  %v487 = vsel %vm486, %v479, %v483
  %v488 = vand.u32 2147483647, %v349
  %vm489 = vcmp.eq.f32.partialorder %v488, 8.507059e+37
  %v490 = vand.u32 %v349, 2147483648
  %v491 = vor.u32 1.1754944e-38, %v490
  %v492 = vsel %vm489, %v491, %v487
  %v493 = vmul.f32 1.0, %v492
  %v494 = vrcp.pop %v350
  %v495 = vmul.f32 %v350, %v494
  %v496 = vsub.f32 1.0, %v495
  %v497 = vmul.f32 %v494, %v496
  %v498 = vadd.f32 %v494, %v497
  %vm499 = vweird.f32 %v350
  %vm500 = vweird.f32 %v494
  %vm501 = vmor %vm499, %vm500
  %v502 = vsel %vm501, %v494, %v498
  %v503 = vand.u32 2147483647, %v350
  %vm504 = vcmp.eq.f32.partialorder %v503, 8.507059e+37
  %v505 = vand.u32 %v350, 2147483648
  %v506 = vor.u32 1.1754944e-38, %v505
  %v507 = vsel %vm504, %v506, %v502
  %v508 = vmul.f32 1.0, %v507
  %v509 = vrcp.pop %v351
  %v510 = vmul.f32 %v351, %v509
  %v511 = vsub.f32 1.0, %v510
  %v512 = vmul.f32 %v509, %v511
  %v513 = vadd.f32 %v509, %v512
  %vm514 = vweird.f32 %v351
  %vm515 = vweird.f32 %v509
  %vm516 = vmor %vm514, %vm515
  %v517 = vsel %vm516, %v509, %v513
  %v518 = vand.u32 2147483647, %v351
  %vm519 = vcmp.eq.f32.partialorder %v518, 8.507059e+37
  %v520 = vand.u32 %v351, 2147483648
  %v521 = vor.u32 1.1754944e-38, %v520
  %v522 = vsel %vm519, %v521, %v517
  %v523 = vmul.f32 1.0, %v522
  %v524 = vrcp.pop %v352
  %v525 = vmul.f32 %v352, %v524
  %v526 = vsub.f32 1.0, %v525
  %v527 = vmul.f32 %v524, %v526
  %v528 = vadd.f32 %v524, %v527
  %vm529 = vweird.f32 %v352
  %vm530 = vweird.f32 %v524
  %vm531 = vmor %vm529, %vm530
  %v532 = vsel %vm531, %v524, %v528
  %v533 = vand.u32 2147483647, %v352
  %vm534 = vcmp.eq.f32.partialorder %v533, 8.507059e+37
  %v535 = vand.u32 %v352, 2147483648
  %v536 = vor.u32 1.1754944e-38, %v535
  %v537 = vsel %vm534, %v536, %v532
  %v538 = vmul.f32 1.0, %v537
  %v539 = vrcp.pop %v353
  %v540 = vmul.f32 %v353, %v539
  %v541 = vsub.f32 1.0, %v540
  %v542 = vmul.f32 %v539, %v541
  %v543 = vadd.f32 %v539, %v542
  %vm544 = vweird.f32 %v353
  %vm545 = vweird.f32 %v539
  %vm546 = vmor %vm544, %vm545
  %v547 = vsel %vm546, %v539, %v543
  %v548 = vand.u32 2147483647, %v353
  %vm549 = vcmp.eq.f32.partialorder %v548, 8.507059e+37
  %v550 = vand.u32 %v353, 2147483648
  %v551 = vor.u32 1.1754944e-38, %v550
  %v552 = vsel %vm549, %v551, %v547
  %v553 = vmul.f32 1.0, %v552
  %v554 = vrcp.pop %v354
  %v555 = vmul.f32 %v354, %v554
  %v556 = vsub.f32 1.0, %v555
  %v557 = vmul.f32 %v554, %v556
  %v558 = vadd.f32 %v554, %v557
  %vm559 = vweird.f32 %v354
  %vm560 = vweird.f32 %v554
  %vm561 = vmor %vm559, %vm560
  %v562 = vsel %vm561, %v554, %v558
  %v563 = vand.u32 2147483647, %v354
  %vm564 = vcmp.eq.f32.partialorder %v563, 8.507059e+37
  %v565 = vand.u32 %v354, 2147483648
  %v566 = vor.u32 1.1754944e-38, %v565
  %v567 = vsel %vm564, %v566, %v562
  %v568 = vmul.f32 1.0, %v567
  %v569 = vrcp.pop %v355
  %v570 = vmul.f32 %v355, %v569
  %v571 = vsub.f32 1.0, %v570
  %v572 = vmul.f32 %v569, %v571
  %v573 = vadd.f32 %v569, %v572
  %vm574 = vweird.f32 %v355
  %vm575 = vweird.f32 %v569
  %vm576 = vmor %vm574, %vm575
  %v577 = vsel %vm576, %v569, %v573
  %v578 = vand.u32 2147483647, %v355
  %vm579 = vcmp.eq.f32.partialorder %v578, 8.507059e+37
  %v580 = vand.u32 %v355, 2147483648
  %v581 = vor.u32 1.1754944e-38, %v580
  %v582 = vsel %vm579, %v581, %v577
  %v583 = vmul.f32 1.0, %v582
  %v584 = vrcp.pop %v356
  %v585 = vmul.f32 %v356, %v584
  %v586 = vsub.f32 1.0, %v585
  %v587 = vmul.f32 %v584, %v586
  %v588 = vadd.f32 %v584, %v587
  %vm589 = vweird.f32 %v356
  %vm590 = vweird.f32 %v584
  %vm591 = vmor %vm589, %vm590
  %v592 = vsel %vm591, %v584, %v588
  %v593 = vand.u32 2147483647, %v356
  %vm594 = vcmp.eq.f32.partialorder %v593, 8.507059e+37
  %v595 = vand.u32 %v356, 2147483648
  %v596 = vor.u32 1.1754944e-38, %v595
  %v597 = vsel %vm594, %v596, %v592
  %v598 = vmul.f32 1.0, %v597
  %v599 = vrcp.pop %v357
  %v600 = vmul.f32 %v357, %v599
  %v601 = vsub.f32 1.0, %v600
  %v602 = vmul.f32 %v599, %v601
  %v603 = vadd.f32 %v599, %v602
  %vm604 = vweird.f32 %v357
  %vm605 = vweird.f32 %v599
  %vm606 = vmor %vm604, %vm605
  %v607 = vsel %vm606, %v599, %v603
  %v608 = vand.u32 2147483647, %v357
  %vm609 = vcmp.eq.f32.partialorder %v608, 8.507059e+37
  %v610 = vand.u32 %v357, 2147483648
  %v611 = vor.u32 1.1754944e-38, %v610
  %v612 = vsel %vm609, %v611, %v607
  %v613 = vmul.f32 1.0, %v612
  %v614 = vrcp.pop %v358
  %v615 = vmul.f32 %v358, %v614
  %v616 = vsub.f32 1.0, %v615
  %v617 = vmul.f32 %v614, %v616
  %v618 = vadd.f32 %v614, %v617
  %vm619 = vweird.f32 %v358
  %vm620 = vweird.f32 %v614
  %vm621 = vmor %vm619, %vm620
  %v622 = vsel %vm621, %v614, %v618
  %v623 = vand.u32 2147483647, %v358
  %vm624 = vcmp.eq.f32.partialorder %v623, 8.507059e+37
  %v625 = vand.u32 %v358, 2147483648
  %v626 = vor.u32 1.1754944e-38, %v625
  %v627 = vsel %vm624, %v626, %v622
  %v628 = vmul.f32 1.0, %v627
  %v629 = vrcp.pop %v359
  %v630 = vmul.f32 %v359, %v629
  %v631 = vsub.f32 1.0, %v630
  %v632 = vmul.f32 %v629, %v631
  %v633 = vadd.f32 %v629, %v632
  %vm634 = vweird.f32 %v359
  %vm635 = vweird.f32 %v629
  %vm636 = vmor %vm634, %vm635
  %v637 = vsel %vm636, %v629, %v633
  %v638 = vand.u32 2147483647, %v359
  %vm639 = vcmp.eq.f32.partialorder %v638, 8.507059e+37
  %v640 = vand.u32 %v359, 2147483648
  %v641 = vor.u32 1.1754944e-38, %v640
  %v642 = vsel %vm639, %v641, %v637
  %v643 = vmul.f32 1.0, %v642
  %v644 = vrcp.pop %v360
  %v645 = vmul.f32 %v360, %v644
  %v646 = vsub.f32 1.0, %v645
  %v647 = vmul.f32 %v644, %v646
  %v648 = vadd.f32 %v644, %v647
  %vm649 = vweird.f32 %v360
  %vm650 = vweird.f32 %v644
  %vm651 = vmor %vm649, %vm650
  %v652 = vsel %vm651, %v644, %v648
  %v653 = vand.u32 2147483647, %v360
  %vm654 = vcmp.eq.f32.partialorder %v653, 8.507059e+37
  %v655 = vand.u32 %v360, 2147483648
  %v656 = vor.u32 1.1754944e-38, %v655
  %v657 = vsel %vm654, %v656, %v652
  %v658 = vmul.f32 1.0, %v657
  %v659 = vrcp.pop %v361
  %v660 = vmul.f32 %v361, %v659
  %v661 = vsub.f32 1.0, %v660
  %v662 = vmul.f32 %v659, %v661
  %v663 = vadd.f32 %v659, %v662
  %vm664 = vweird.f32 %v361
  %vm665 = vweird.f32 %v659
  %vm666 = vmor %vm664, %vm665
  %v667 = vsel %vm666, %v659, %v663
  %v668 = vand.u32 2147483647, %v361
  %vm669 = vcmp.eq.f32.partialorder %v668, 8.507059e+37
  %v670 = vand.u32 %v361, 2147483648
  %v671 = vor.u32 1.1754944e-38, %v670
  %v672 = vsel %vm669, %v671, %v667
  %v673 = vmul.f32 1.0, %v672
  %v674 = vrcp.pop %v362
  %v675 = vmul.f32 %v362, %v674
  %v676 = vsub.f32 1.0, %v675
  %v677 = vmul.f32 %v674, %v676
  %v678 = vadd.f32 %v674, %v677
  %vm679 = vweird.f32 %v362
  %vm680 = vweird.f32 %v674
  %vm681 = vmor %vm679, %vm680
  %v682 = vsel %vm681, %v674, %v678
  %v683 = vand.u32 2147483647, %v362
  %vm684 = vcmp.eq.f32.partialorder %v683, 8.507059e+37
  %v685 = vand.u32 %v362, 2147483648
  %v686 = vor.u32 1.1754944e-38, %v685
  %v687 = vsel %vm684, %v686, %v682
  %v688 = vmul.f32 1.0, %v687
  %v689 = vrcp.pop %v363
  %v690 = vmul.f32 %v363, %v689
  %v691 = vsub.f32 1.0, %v690
  %v692 = vmul.f32 %v689, %v691
  %v693 = vadd.f32 %v689, %v692
  %vm694 = vweird.f32 %v363
  %vm695 = vweird.f32 %v689
  %vm696 = vmor %vm694, %vm695
  %v697 = vsel %vm696, %v689, %v693
  %v698 = vand.u32 2147483647, %v363
  %vm699 = vcmp.eq.f32.partialorder %v698, 8.507059e+37
  %v700 = vand.u32 %v363, 2147483648
  %v701 = vor.u32 1.1754944e-38, %v700
  %v702 = vsel %vm699, %v701, %v697
  %v703 = vmul.f32 1.0, %v702
  %v704 = vrcp.pop %v364
  %v705 = vmul.f32 %v364, %v704
  %v706 = vsub.f32 1.0, %v705
  %v707 = vmul.f32 %v704, %v706
  %v708 = vadd.f32 %v704, %v707
  %vm709 = vweird.f32 %v364
  %vm710 = vweird.f32 %v704
  %vm711 = vmor %vm709, %vm710
  %v712 = vsel %vm711, %v704, %v708
  %v713 = vand.u32 2147483647, %v364
  %vm714 = vcmp.eq.f32.partialorder %v713, 8.507059e+37
  %v715 = vand.u32 %v364, 2147483648
  %v716 = vor.u32 1.1754944e-38, %v715
  %v717 = vsel %vm714, %v716, %v712
  %v718 = vmul.f32 1.0, %v717
  %v719 = vrcp.pop %v365
  %v720 = vmul.f32 %v365, %v719
  %v721 = vsub.f32 1.0, %v720
  %v722 = vmul.f32 %v719, %v721
  %v723 = vadd.f32 %v719, %v722
  %vm724 = vweird.f32 %v365
  %vm725 = vweird.f32 %v719
  %vm726 = vmor %vm724, %vm725
  %v727 = vsel %vm726, %v719, %v723
  %v728 = vand.u32 2147483647, %v365
  %vm729 = vcmp.eq.f32.partialorder %v728, 8.507059e+37
  %v730 = vand.u32 %v365, 2147483648
  %v731 = vor.u32 1.1754944e-38, %v730
  %v732 = vsel %vm729, %v731, %v727
  %v733 = vmul.f32 1.0, %v732
  %v734 = vrcp.pop %v366
  %v735 = vmul.f32 %v366, %v734
  %v736 = vsub.f32 1.0, %v735
  %v737 = vmul.f32 %v734, %v736
  %v738 = vadd.f32 %v734, %v737
  %vm739 = vweird.f32 %v366
  %vm740 = vweird.f32 %v734
  %vm741 = vmor %vm739, %vm740
  %v742 = vsel %vm741, %v734, %v738
  %v743 = vand.u32 2147483647, %v366
  %vm744 = vcmp.eq.f32.partialorder %v743, 8.507059e+37
  %v745 = vand.u32 %v366, 2147483648
  %v746 = vor.u32 1.1754944e-38, %v745
  %v747 = vsel %vm744, %v746, %v742
  %v748 = vmul.f32 1.0, %v747
  %v749 = vrcp.pop %v367
  %v750 = vmul.f32 %v367, %v749
  %v751 = vsub.f32 1.0, %v750
  %v752 = vmul.f32 %v749, %v751
  %v753 = vadd.f32 %v749, %v752
  %vm754 = vweird.f32 %v367
  %vm755 = vweird.f32 %v749
  %vm756 = vmor %vm754, %vm755
  %v757 = vsel %vm756, %v749, %v753
  %v758 = vand.u32 2147483647, %v367
  %vm759 = vcmp.eq.f32.partialorder %v758, 8.507059e+37
  %v760 = vand.u32 %v367, 2147483648
  %v761 = vor.u32 1.1754944e-38, %v760
  %v762 = vsel %vm759, %v761, %v757
  %v763 = vmul.f32 1.0, %v762
  %v764 = vrcp.pop %v368
  %v765 = vmul.f32 %v368, %v764
  %v766 = vsub.f32 1.0, %v765
  %v767 = vmul.f32 %v764, %v766
  %v768 = vadd.f32 %v764, %v767
  %vm769 = vweird.f32 %v368
  %vm770 = vweird.f32 %v764
  %vm771 = vmor %vm769, %vm770
  %v772 = vsel %vm771, %v764, %v768
  %v773 = vand.u32 2147483647, %v368
  %vm774 = vcmp.eq.f32.partialorder %v773, 8.507059e+37
  %v775 = vand.u32 %v368, 2147483648
  %v776 = vor.u32 1.1754944e-38, %v775
  %v777 = vsel %vm774, %v776, %v772
  %v778 = vmul.f32 1.0, %v777
  %v779 = vrcp.pop %v369
  %v780 = vmul.f32 %v369, %v779
  %v781 = vsub.f32 1.0, %v780
  %v782 = vmul.f32 %v779, %v781
  %v783 = vadd.f32 %v779, %v782
  %vm784 = vweird.f32 %v369
  %vm785 = vweird.f32 %v779
  %vm786 = vmor %vm784, %vm785
  %v787 = vsel %vm786, %v779, %v783
  %v788 = vand.u32 2147483647, %v369
  %vm789 = vcmp.eq.f32.partialorder %v788, 8.507059e+37
  %v790 = vand.u32 %v369, 2147483648
  %v791 = vor.u32 1.1754944e-38, %v790
  %v792 = vsel %vm789, %v791, %v787
  %v793 = vmul.f32 1.0, %v792
  %v794 = vrcp.pop %v370
  %v795 = vmul.f32 %v370, %v794
  %v796 = vsub.f32 1.0, %v795
  %v797 = vmul.f32 %v794, %v796
  %v798 = vadd.f32 %v794, %v797
  %vm799 = vweird.f32 %v370
  %vm800 = vweird.f32 %v794
  %vm801 = vmor %vm799, %vm800
  %v802 = vsel %vm801, %v794, %v798
  %v803 = vand.u32 2147483647, %v370
  %vm804 = vcmp.eq.f32.partialorder %v803, 8.507059e+37
  %v805 = vand.u32 %v370, 2147483648
  %v806 = vor.u32 1.1754944e-38, %v805
  %v807 = vsel %vm804, %v806, %v802
  %v808 = vmul.f32 1.0, %v807
  %v809 = vrcp.pop %v371
  %v810 = vmul.f32 %v371, %v809
  %v811 = vsub.f32 1.0, %v810
  %v812 = vmul.f32 %v809, %v811
  %v813 = vadd.f32 %v809, %v812
  %vm814 = vweird.f32 %v371
  %vm815 = vweird.f32 %v809
  %vm816 = vmor %vm814, %vm815
  %v817 = vsel %vm816, %v809, %v813
  %v818 = vand.u32 2147483647, %v371
  %vm819 = vcmp.eq.f32.partialorder %v818, 8.507059e+37
  %v820 = vand.u32 %v371, 2147483648
  %v821 = vor.u32 1.1754944e-38, %v820
  %v822 = vsel %vm819, %v821, %v817
  %v823 = vmul.f32 1.0, %v822
  %v824 = vrcp.pop %v372
  %v825 = vmul.f32 %v372, %v824
  %v826 = vsub.f32 1.0, %v825
  %v827 = vmul.f32 %v824, %v826
  %v828 = vadd.f32 %v824, %v827
  %vm829 = vweird.f32 %v372
  %vm830 = vweird.f32 %v824
  %vm831 = vmor %vm829, %vm830
  %v832 = vsel %vm831, %v824, %v828
  %v833 = vand.u32 2147483647, %v372
  %vm834 = vcmp.eq.f32.partialorder %v833, 8.507059e+37
  %v835 = vand.u32 %v372, 2147483648
  %v836 = vor.u32 1.1754944e-38, %v835
  %v837 = vsel %vm834, %v836, %v832
  %v838 = vmul.f32 1.0, %v837
  %v839 = vrcp.pop %v373
  %v840 = vmul.f32 %v373, %v839
  %v841 = vsub.f32 1.0, %v840
  %v842 = vmul.f32 %v839, %v841
  %v843 = vadd.f32 %v839, %v842
  %vm844 = vweird.f32 %v373
  %vm845 = vweird.f32 %v839
  %vm846 = vmor %vm844, %vm845
  %v847 = vsel %vm846, %v839, %v843
  %v848 = vand.u32 2147483647, %v373
  %vm849 = vcmp.eq.f32.partialorder %v848, 8.507059e+37
  %v850 = vand.u32 %v373, 2147483648
  %v851 = vor.u32 1.1754944e-38, %v850
  %v852 = vsel %vm849, %v851, %v847
  %v853 = vmul.f32 1.0, %v852
  %v854 = vmul.f32 %v158, %v388
  %v855 = vmul.f32 %v207, %v403
  %v856 = vmul.f32 %v160, %v418
  %v857 = vmul.f32 %v209, %v433
  %v858 = vmul.f32 %v163, %v448
  %v859 = vmul.f32 %v212, %v463
  %v860 = vmul.f32 %v165, %v478
  %v861 = vmul.f32 %v214, %v493
  %v862 = vmul.f32 %v168, %v508
  %v863 = vmul.f32 %v217, %v523
  %v864 = vmul.f32 %v170, %v538
  %v865 = vmul.f32 %v219, %v553
  %v866 = vmul.f32 %v173, %v568
  %v867 = vmul.f32 %v222, %v583
  %v868 = vmul.f32 %v175, %v598
  %v869 = vmul.f32 %v224, %v613
  %v870 = vmul.f32 %v178, %v628
  %v871 = vmul.f32 %v227, %v643
  %v872 = vmul.f32 %v180, %v658
  %v873 = vmul.f32 %v229, %v673
  %v874 = vmul.f32 %v183, %v688
  %v875 = vmul.f32 %v232, %v703
  %v876 = vmul.f32 %v185, %v718
  %v877 = vmul.f32 %v234, %v733
  %v878 = vmul.f32 %v188, %v748
  %v879 = vmul.f32 %v237, %v763
  %v880 = vmul.f32 %v190, %v778
  %v881 = vmul.f32 %v239, %v793
  %v882 = vmul.f32 %v193, %v808
  %v883 = vmul.f32 %v242, %v823
  %v884 = vmul.f32 %v195, %v838
  %v885 = vmul.f32 %v244, %v853
  %v886 = vld [vmem:[%s3] sm:$0xff]
  %v887 = vld [vmem:[%s3 + $0x8] sm:$0xff]
  %v888 = vld [vmem:[%s3 + $0x10] sm:$0xff]
  %v889 = vld [vmem:[%s3 + $0x18] sm:$0xff]
  %v890 = vld [vmem:[%s3 + $0x20] sm:$0xff]
  %v891 = vld [vmem:[%s3 + $0x28] sm:$0xff]
  %v892 = vld [vmem:[%s3 + $0x30] sm:$0xff]
  %v893 = vld [vmem:[%s3 + $0x38] sm:$0xff]
  %v894 = vld [vmem:[%s3 + $0x40] sm:$0xff]
  %v895 = vld [vmem:[%s3 + $0x48] sm:$0xff]
  %v896 = vld [vmem:[%s3 + $0x50] sm:$0xff]
  %v897 = vld [vmem:[%s3 + $0x58] sm:$0xff]
  %v898 = vld [vmem:[%s3 + $0x60] sm:$0xff]
  %v899 = vld [vmem:[%s3 + $0x68] sm:$0xff]
  %v900 = vld [vmem:[%s3 + $0x70] sm:$0xff]
  %v901 = vld [vmem:[%s3 + $0x78] sm:$0xff]
  %v902 = vmul.f32 %v855, %v886
  %v903 = vmul.f32 %v857, %v887
  %v904 = vmul.f32 %v859, %v888
  %v905 = vmul.f32 %v861, %v889
  %v906 = vmul.f32 %v863, %v890
  %v907 = vmul.f32 %v865, %v891
  %v908 = vmul.f32 %v867, %v892
  %v909 = vmul.f32 %v869, %v893
  %v910 = vmul.f32 %v871, %v894
  %v911 = vmul.f32 %v873, %v895
  %v912 = vmul.f32 %v875, %v896
  %v913 = vmul.f32 %v877, %v897
  %v914 = vmul.f32 %v879, %v898
  %v915 = vmul.f32 %v881, %v899
  %v916 = vmul.f32 %v883, %v900
  %v917 = vmul.f32 %v885, %v901
  %v918 = vpack.c.bf16 %v903, %v902
  %v919 = vpack.c.bf16 %v905, %v904
  %v920 = vpack.c.bf16 %v907, %v906
  %v921 = vpack.c.bf16 %v909, %v908
  %v922 = vpack.c.bf16 %v911, %v910
  %v923 = vpack.c.bf16 %v913, %v912
  %v924 = vpack.c.bf16 %v915, %v914
  %v925 = vpack.c.bf16 %v917, %v916
  %v926 = vld [vmem:[%s4] sm:$0xf]
  %v927 = vld [vmem:[%s4 + $0x4] sm:$0xf]
  %v928 = vld [vmem:[%s4 + $0x8] sm:$0xf]
  %v929 = vld [vmem:[%s4 + $0xc] sm:$0xf]
  %v930 = vld [vmem:[%s4 + $0x10] sm:$0xf]
  %v931 = vld [vmem:[%s4 + $0x14] sm:$0xf]
  %v932 = vld [vmem:[%s4 + $0x18] sm:$0xf]
  %v933 = vld [vmem:[%s4 + $0x1c] sm:$0xf]
  %v934 = vld [vmem:[%s4 + $0x20] sm:$0xf]
  %v935 = vld [vmem:[%s4 + $0x24] sm:$0xf]
  %v936 = vld [vmem:[%s4 + $0x28] sm:$0xf]
  %v937 = vld [vmem:[%s4 + $0x2c] sm:$0xf]
  %v938 = vld [vmem:[%s4 + $0x30] sm:$0xf]
  %v939 = vld [vmem:[%s4 + $0x34] sm:$0xf]
  %v940 = vld [vmem:[%s4 + $0x38] sm:$0xf]
  %v941 = vld [vmem:[%s4 + $0x3c] sm:$0xf]
  %v958 = vunpack.c.l.b16 %v926
  %v959 = vunpack.c.l.b16 %v927
  %v960 = vunpack.c.l.b16 %v928
  %v961 = vunpack.c.l.b16 %v929
  %v962 = vunpack.c.l.b16 %v930
  %v963 = vunpack.c.l.b16 %v931
  %v964 = vunpack.c.l.b16 %v932
  %v965 = vunpack.c.l.b16 %v933
  %v966 = vunpack.c.l.b16 %v934
  %v967 = vunpack.c.l.b16 %v935
  %v968 = vunpack.c.l.b16 %v936
  %v969 = vunpack.c.l.b16 %v937
  %v970 = vunpack.c.l.b16 %v938
  %v971 = vunpack.c.l.b16 %v939
  %v972 = vunpack.c.l.b16 %v940
  %v973 = vunpack.c.l.b16 %v941
  %v974 = vpack.c.b16 %v959, %v958
  %v975 = vpack.c.b16 %v961, %v960
  %v976 = vpack.c.b16 %v963, %v962
  %v977 = vpack.c.b16 %v965, %v964
  %v978 = vpack.c.b16 %v967, %v966
  %v979 = vpack.c.b16 %v969, %v968
  %v980 = vpack.c.b16 %v971, %v970
  %v981 = vpack.c.b16 %v973, %v972
  %990 = vmatpush.bf16.msra.mxu0 %v981
  %991 = vmatpush.bf16.msra.mxu0 %v980
  %992 = vmatpush.bf16.msra.mxu0 %v979
  %993 = vmatpush.bf16.msra.mxu0 %v978
  %994 = vmatpush.bf16.msra.mxu0 %v977
  %995 = vmatpush.bf16.msra.mxu0 %v976
  %996 = vmatpush.bf16.msra.mxu0 %v975
  %997 = vmatpush.bf16.msra.mxu0 %v974
  %998 = vmatmul.bf16.gmra.mxu0 %v918
  %v999 = vpop.f32.mrf.mxu0
  %v1000 = vadd.f32 0.0, %v999
  %v1001 = vpop.f32.mrf.mxu0
  %v1002 = vadd.f32 0.0, %v1001
  %1003 = vmatmul.bf16.gmra.mxu0 %v919
  %v1004 = vpop.f32.mrf.mxu0
  %v1005 = vadd.f32 0.0, %v1004
  %v1006 = vpop.f32.mrf.mxu0
  %v1007 = vadd.f32 0.0, %v1006
  %1008 = vmatmul.bf16.gmra.mxu0 %v920
  %v1009 = vpop.f32.mrf.mxu0
  %v1010 = vadd.f32 0.0, %v1009
  %v1011 = vpop.f32.mrf.mxu0
  %v1012 = vadd.f32 0.0, %v1011
  %1013 = vmatmul.bf16.gmra.mxu0 %v921
  %v1014 = vpop.f32.mrf.mxu0
  %v1015 = vadd.f32 0.0, %v1014
  %v1016 = vpop.f32.mrf.mxu0
  %v1017 = vadd.f32 0.0, %v1016
  %1018 = vmatmul.bf16.gmra.mxu0 %v922
  %v1019 = vpop.f32.mrf.mxu0
  %v1020 = vadd.f32 0.0, %v1019
  %v1021 = vpop.f32.mrf.mxu0
  %v1022 = vadd.f32 0.0, %v1021
  %1023 = vmatmul.bf16.gmra.mxu0 %v923
  %v1024 = vpop.f32.mrf.mxu0
  %v1025 = vadd.f32 0.0, %v1024
  %v1026 = vpop.f32.mrf.mxu0
  %v1027 = vadd.f32 0.0, %v1026
  %1028 = vmatmul.bf16.gmra.mxu0 %v924
  %v1029 = vpop.f32.mrf.mxu0
  %v1030 = vadd.f32 0.0, %v1029
  %v1031 = vpop.f32.mrf.mxu0
  %v1032 = vadd.f32 0.0, %v1031
  %1033 = vmatmul.bf16.gmra.mxu0 %v925
  %v1034 = vpop.f32.mrf.mxu0
  %v1035 = vadd.f32 0.0, %v1034
  %v1036 = vpop.f32.mrf.mxu0
  %v1037 = vadd.f32 0.0, %v1036
  %1038 = vdwg.mxu0
  %v1039 = vxor.u32 %v1000, 2147483648
  %v1040 = vxor.u32 %v1002, 2147483648
  %v1041 = vxor.u32 %v1005, 2147483648
  %v1042 = vxor.u32 %v1007, 2147483648
  %v1043 = vxor.u32 %v1010, 2147483648
  %v1044 = vxor.u32 %v1012, 2147483648
  %v1045 = vxor.u32 %v1015, 2147483648
  %v1046 = vxor.u32 %v1017, 2147483648
  %v1047 = vxor.u32 %v1020, 2147483648
  %v1048 = vxor.u32 %v1022, 2147483648
  %v1049 = vxor.u32 %v1025, 2147483648
  %v1050 = vxor.u32 %v1027, 2147483648
  %v1051 = vxor.u32 %v1030, 2147483648
  %v1052 = vxor.u32 %v1032, 2147483648
  %v1053 = vxor.u32 %v1035, 2147483648
  %v1054 = vxor.u32 %v1037, 2147483648
  %v1055 = vmul.f32 %v1039, 1.442695
  %v1056 = vpow.pop %v1055
  %v1057 = vmul.f32 %v1040, 1.442695
  %v1058 = vpow.pop %v1057
  %v1059 = vmul.f32 %v1041, 1.442695
  %v1060 = vpow.pop %v1059
  %v1061 = vmul.f32 %v1042, 1.442695
  %v1062 = vpow.pop %v1061
  %v1063 = vmul.f32 %v1043, 1.442695
  %v1064 = vpow.pop %v1063
  %v1065 = vmul.f32 %v1044, 1.442695
  %v1066 = vpow.pop %v1065
  %v1067 = vmul.f32 %v1045, 1.442695
  %v1068 = vpow.pop %v1067
  %v1069 = vmul.f32 %v1046, 1.442695
  %v1070 = vpow.pop %v1069
  %v1071 = vmul.f32 %v1047, 1.442695
  %v1072 = vpow.pop %v1071
  %v1073 = vmul.f32 %v1048, 1.442695
  %v1074 = vpow.pop %v1073
  %v1075 = vmul.f32 %v1049, 1.442695
  %v1076 = vpow.pop %v1075
  %v1077 = vmul.f32 %v1050, 1.442695
  %v1078 = vpow.pop %v1077
  %v1079 = vmul.f32 %v1051, 1.442695
  %v1080 = vpow.pop %v1079
  %v1081 = vmul.f32 %v1052, 1.442695
  %v1082 = vpow.pop %v1081
  %v1083 = vmul.f32 %v1053, 1.442695
  %v1084 = vpow.pop %v1083
  %v1085 = vmul.f32 %v1054, 1.442695
  %v1086 = vpow.pop %v1085
  %v1087 = vadd.f32 %v1056, 1.0
  %v1088 = vadd.f32 %v1058, 1.0
  %v1089 = vadd.f32 %v1060, 1.0
  %v1090 = vadd.f32 %v1062, 1.0
  %v1091 = vadd.f32 %v1064, 1.0
  %v1092 = vadd.f32 %v1066, 1.0
  %v1093 = vadd.f32 %v1068, 1.0
  %v1094 = vadd.f32 %v1070, 1.0
  %v1095 = vadd.f32 %v1072, 1.0
  %v1096 = vadd.f32 %v1074, 1.0
  %v1097 = vadd.f32 %v1076, 1.0
  %v1098 = vadd.f32 %v1078, 1.0
  %v1099 = vadd.f32 %v1080, 1.0
  %v1100 = vadd.f32 %v1082, 1.0
  %v1101 = vadd.f32 %v1084, 1.0
  %v1102 = vadd.f32 %v1086, 1.0
  %v1103 = vrcp.pop %v1087
  %v1104 = vmul.f32 %v1087, %v1103
  %v1105 = vsub.f32 1.0, %v1104
  %v1106 = vmul.f32 %v1103, %v1105
  %v1107 = vadd.f32 %v1103, %v1106
  %vm1108 = vweird.f32 %v1087
  %vm1109 = vweird.f32 %v1103
  %vm1110 = vmor %vm1108, %vm1109
  %v1111 = vsel %vm1110, %v1103, %v1107
  %v1112 = vand.u32 2147483647, %v1087
  %vm1113 = vcmp.eq.f32.partialorder %v1112, 8.507059e+37
  %v1114 = vand.u32 %v1087, 2147483648
  %v1115 = vor.u32 1.1754944e-38, %v1114
  %v1116 = vsel %vm1113, %v1115, %v1111
  %v1117 = vmul.f32 1.0, %v1116
  %v1118 = vrcp.pop %v1088
  %v1119 = vmul.f32 %v1088, %v1118
  %v1120 = vsub.f32 1.0, %v1119
  %v1121 = vmul.f32 %v1118, %v1120
  %v1122 = vadd.f32 %v1118, %v1121
  %vm1123 = vweird.f32 %v1088
  %vm1124 = vweird.f32 %v1118
  %vm1125 = vmor %vm1123, %vm1124
  %v1126 = vsel %vm1125, %v1118, %v1122
  %v1127 = vand.u32 2147483647, %v1088
  %vm1128 = vcmp.eq.f32.partialorder %v1127, 8.507059e+37
  %v1129 = vand.u32 %v1088, 2147483648
  %v1130 = vor.u32 1.1754944e-38, %v1129
  %v1131 = vsel %vm1128, %v1130, %v1126
  %v1132 = vmul.f32 1.0, %v1131
  %v1133 = vrcp.pop %v1089
  %v1134 = vmul.f32 %v1089, %v1133
  %v1135 = vsub.f32 1.0, %v1134
  %v1136 = vmul.f32 %v1133, %v1135
  %v1137 = vadd.f32 %v1133, %v1136
  %vm1138 = vweird.f32 %v1089
  %vm1139 = vweird.f32 %v1133
  %vm1140 = vmor %vm1138, %vm1139
  %v1141 = vsel %vm1140, %v1133, %v1137
  %v1142 = vand.u32 2147483647, %v1089
  %vm1143 = vcmp.eq.f32.partialorder %v1142, 8.507059e+37
  %v1144 = vand.u32 %v1089, 2147483648
  %v1145 = vor.u32 1.1754944e-38, %v1144
  %v1146 = vsel %vm1143, %v1145, %v1141
  %v1147 = vmul.f32 1.0, %v1146
  %v1148 = vrcp.pop %v1090
  %v1149 = vmul.f32 %v1090, %v1148
  %v1150 = vsub.f32 1.0, %v1149
  %v1151 = vmul.f32 %v1148, %v1150
  %v1152 = vadd.f32 %v1148, %v1151
  %vm1153 = vweird.f32 %v1090
  %vm1154 = vweird.f32 %v1148
  %vm1155 = vmor %vm1153, %vm1154
  %v1156 = vsel %vm1155, %v1148, %v1152
  %v1157 = vand.u32 2147483647, %v1090
  %vm1158 = vcmp.eq.f32.partialorder %v1157, 8.507059e+37
  %v1159 = vand.u32 %v1090, 2147483648
  %v1160 = vor.u32 1.1754944e-38, %v1159
  %v1161 = vsel %vm1158, %v1160, %v1156
  %v1162 = vmul.f32 1.0, %v1161
  %v1163 = vrcp.pop %v1091
  %v1164 = vmul.f32 %v1091, %v1163
  %v1165 = vsub.f32 1.0, %v1164
  %v1166 = vmul.f32 %v1163, %v1165
  %v1167 = vadd.f32 %v1163, %v1166
  %vm1168 = vweird.f32 %v1091
  %vm1169 = vweird.f32 %v1163
  %vm1170 = vmor %vm1168, %vm1169
  %v1171 = vsel %vm1170, %v1163, %v1167
  %v1172 = vand.u32 2147483647, %v1091
  %vm1173 = vcmp.eq.f32.partialorder %v1172, 8.507059e+37
  %v1174 = vand.u32 %v1091, 2147483648
  %v1175 = vor.u32 1.1754944e-38, %v1174
  %v1176 = vsel %vm1173, %v1175, %v1171
  %v1177 = vmul.f32 1.0, %v1176
  %v1178 = vrcp.pop %v1092
  %v1179 = vmul.f32 %v1092, %v1178
  %v1180 = vsub.f32 1.0, %v1179
  %v1181 = vmul.f32 %v1178, %v1180
  %v1182 = vadd.f32 %v1178, %v1181
  %vm1183 = vweird.f32 %v1092
  %vm1184 = vweird.f32 %v1178
  %vm1185 = vmor %vm1183, %vm1184
  %v1186 = vsel %vm1185, %v1178, %v1182
  %v1187 = vand.u32 2147483647, %v1092
  %vm1188 = vcmp.eq.f32.partialorder %v1187, 8.507059e+37
  %v1189 = vand.u32 %v1092, 2147483648
  %v1190 = vor.u32 1.1754944e-38, %v1189
  %v1191 = vsel %vm1188, %v1190, %v1186
  %v1192 = vmul.f32 1.0, %v1191
  %v1193 = vrcp.pop %v1093
  %v1194 = vmul.f32 %v1093, %v1193
  %v1195 = vsub.f32 1.0, %v1194
  %v1196 = vmul.f32 %v1193, %v1195
  %v1197 = vadd.f32 %v1193, %v1196
  %vm1198 = vweird.f32 %v1093
  %vm1199 = vweird.f32 %v1193
  %vm1200 = vmor %vm1198, %vm1199
  %v1201 = vsel %vm1200, %v1193, %v1197
  %v1202 = vand.u32 2147483647, %v1093
  %vm1203 = vcmp.eq.f32.partialorder %v1202, 8.507059e+37
  %v1204 = vand.u32 %v1093, 2147483648
  %v1205 = vor.u32 1.1754944e-38, %v1204
  %v1206 = vsel %vm1203, %v1205, %v1201
  %v1207 = vmul.f32 1.0, %v1206
  %v1208 = vrcp.pop %v1094
  %v1209 = vmul.f32 %v1094, %v1208
  %v1210 = vsub.f32 1.0, %v1209
  %v1211 = vmul.f32 %v1208, %v1210
  %v1212 = vadd.f32 %v1208, %v1211
  %vm1213 = vweird.f32 %v1094
  %vm1214 = vweird.f32 %v1208
  %vm1215 = vmor %vm1213, %vm1214
  %v1216 = vsel %vm1215, %v1208, %v1212
  %v1217 = vand.u32 2147483647, %v1094
  %vm1218 = vcmp.eq.f32.partialorder %v1217, 8.507059e+37
  %v1219 = vand.u32 %v1094, 2147483648
  %v1220 = vor.u32 1.1754944e-38, %v1219
  %v1221 = vsel %vm1218, %v1220, %v1216
  %v1222 = vmul.f32 1.0, %v1221
  %v1223 = vrcp.pop %v1095
  %v1224 = vmul.f32 %v1095, %v1223
  %v1225 = vsub.f32 1.0, %v1224
  %v1226 = vmul.f32 %v1223, %v1225
  %v1227 = vadd.f32 %v1223, %v1226
  %vm1228 = vweird.f32 %v1095
  %vm1229 = vweird.f32 %v1223
  %vm1230 = vmor %vm1228, %vm1229
  %v1231 = vsel %vm1230, %v1223, %v1227
  %v1232 = vand.u32 2147483647, %v1095
  %vm1233 = vcmp.eq.f32.partialorder %v1232, 8.507059e+37
  %v1234 = vand.u32 %v1095, 2147483648
  %v1235 = vor.u32 1.1754944e-38, %v1234
  %v1236 = vsel %vm1233, %v1235, %v1231
  %v1237 = vmul.f32 1.0, %v1236
  %v1238 = vrcp.pop %v1096
  %v1239 = vmul.f32 %v1096, %v1238
  %v1240 = vsub.f32 1.0, %v1239
  %v1241 = vmul.f32 %v1238, %v1240
  %v1242 = vadd.f32 %v1238, %v1241
  %vm1243 = vweird.f32 %v1096
  %vm1244 = vweird.f32 %v1238
  %vm1245 = vmor %vm1243, %vm1244
  %v1246 = vsel %vm1245, %v1238, %v1242
  %v1247 = vand.u32 2147483647, %v1096
  %vm1248 = vcmp.eq.f32.partialorder %v1247, 8.507059e+37
  %v1249 = vand.u32 %v1096, 2147483648
  %v1250 = vor.u32 1.1754944e-38, %v1249
  %v1251 = vsel %vm1248, %v1250, %v1246
  %v1252 = vmul.f32 1.0, %v1251
  %v1253 = vrcp.pop %v1097
  %v1254 = vmul.f32 %v1097, %v1253
  %v1255 = vsub.f32 1.0, %v1254
  %v1256 = vmul.f32 %v1253, %v1255
  %v1257 = vadd.f32 %v1253, %v1256
  %vm1258 = vweird.f32 %v1097
  %vm1259 = vweird.f32 %v1253
  %vm1260 = vmor %vm1258, %vm1259
  %v1261 = vsel %vm1260, %v1253, %v1257
  %v1262 = vand.u32 2147483647, %v1097
  %vm1263 = vcmp.eq.f32.partialorder %v1262, 8.507059e+37
  %v1264 = vand.u32 %v1097, 2147483648
  %v1265 = vor.u32 1.1754944e-38, %v1264
  %v1266 = vsel %vm1263, %v1265, %v1261
  %v1267 = vmul.f32 1.0, %v1266
  %v1268 = vrcp.pop %v1098
  %v1269 = vmul.f32 %v1098, %v1268
  %v1270 = vsub.f32 1.0, %v1269
  %v1271 = vmul.f32 %v1268, %v1270
  %v1272 = vadd.f32 %v1268, %v1271
  %vm1273 = vweird.f32 %v1098
  %vm1274 = vweird.f32 %v1268
  %vm1275 = vmor %vm1273, %vm1274
  %v1276 = vsel %vm1275, %v1268, %v1272
  %v1277 = vand.u32 2147483647, %v1098
  %vm1278 = vcmp.eq.f32.partialorder %v1277, 8.507059e+37
  %v1279 = vand.u32 %v1098, 2147483648
  %v1280 = vor.u32 1.1754944e-38, %v1279
  %v1281 = vsel %vm1278, %v1280, %v1276
  %v1282 = vmul.f32 1.0, %v1281
  %v1283 = vrcp.pop %v1099
  %v1284 = vmul.f32 %v1099, %v1283
  %v1285 = vsub.f32 1.0, %v1284
  %v1286 = vmul.f32 %v1283, %v1285
  %v1287 = vadd.f32 %v1283, %v1286
  %vm1288 = vweird.f32 %v1099
  %vm1289 = vweird.f32 %v1283
  %vm1290 = vmor %vm1288, %vm1289
  %v1291 = vsel %vm1290, %v1283, %v1287
  %v1292 = vand.u32 2147483647, %v1099
  %vm1293 = vcmp.eq.f32.partialorder %v1292, 8.507059e+37
  %v1294 = vand.u32 %v1099, 2147483648
  %v1295 = vor.u32 1.1754944e-38, %v1294
  %v1296 = vsel %vm1293, %v1295, %v1291
  %v1297 = vmul.f32 1.0, %v1296
  %v1298 = vrcp.pop %v1100
  %v1299 = vmul.f32 %v1100, %v1298
  %v1300 = vsub.f32 1.0, %v1299
  %v1301 = vmul.f32 %v1298, %v1300
  %v1302 = vadd.f32 %v1298, %v1301
  %vm1303 = vweird.f32 %v1100
  %vm1304 = vweird.f32 %v1298
  %vm1305 = vmor %vm1303, %vm1304
  %v1306 = vsel %vm1305, %v1298, %v1302
  %v1307 = vand.u32 2147483647, %v1100
  %vm1308 = vcmp.eq.f32.partialorder %v1307, 8.507059e+37
  %v1309 = vand.u32 %v1100, 2147483648
  %v1310 = vor.u32 1.1754944e-38, %v1309
  %v1311 = vsel %vm1308, %v1310, %v1306
  %v1312 = vmul.f32 1.0, %v1311
  %v1313 = vrcp.pop %v1101
  %v1314 = vmul.f32 %v1101, %v1313
  %v1315 = vsub.f32 1.0, %v1314
  %v1316 = vmul.f32 %v1313, %v1315
  %v1317 = vadd.f32 %v1313, %v1316
  %vm1318 = vweird.f32 %v1101
  %vm1319 = vweird.f32 %v1313
  %vm1320 = vmor %vm1318, %vm1319
  %v1321 = vsel %vm1320, %v1313, %v1317
  %v1322 = vand.u32 2147483647, %v1101
  %vm1323 = vcmp.eq.f32.partialorder %v1322, 8.507059e+37
  %v1324 = vand.u32 %v1101, 2147483648
  %v1325 = vor.u32 1.1754944e-38, %v1324
  %v1326 = vsel %vm1323, %v1325, %v1321
  %v1327 = vmul.f32 1.0, %v1326
  %v1328 = vrcp.pop %v1102
  %v1329 = vmul.f32 %v1102, %v1328
  %v1330 = vsub.f32 1.0, %v1329
  %v1331 = vmul.f32 %v1328, %v1330
  %v1332 = vadd.f32 %v1328, %v1331
  %vm1333 = vweird.f32 %v1102
  %vm1334 = vweird.f32 %v1328
  %vm1335 = vmor %vm1333, %vm1334
  %v1336 = vsel %vm1335, %v1328, %v1332
  %v1337 = vand.u32 2147483647, %v1102
  %vm1338 = vcmp.eq.f32.partialorder %v1337, 8.507059e+37
  %v1339 = vand.u32 %v1102, 2147483648
  %v1340 = vor.u32 1.1754944e-38, %v1339
  %v1341 = vsel %vm1338, %v1340, %v1336
  %v1342 = vmul.f32 1.0, %v1341
  %v1343 = vmul.f32 %v1000, %v1117
  %v1344 = vmul.f32 %v1002, %v1132
  %v1345 = vmul.f32 %v1005, %v1147
  %v1346 = vmul.f32 %v1007, %v1162
  %v1347 = vmul.f32 %v1010, %v1177
  %v1348 = vmul.f32 %v1012, %v1192
  %v1349 = vmul.f32 %v1015, %v1207
  %v1350 = vmul.f32 %v1017, %v1222
  %v1351 = vmul.f32 %v1020, %v1237
  %v1352 = vmul.f32 %v1022, %v1252
  %v1353 = vmul.f32 %v1025, %v1267
  %v1354 = vmul.f32 %v1027, %v1282
  %v1355 = vmul.f32 %v1030, %v1297
  %v1356 = vmul.f32 %v1032, %v1312
  %v1357 = vmul.f32 %v1035, %v1327
  %v1358 = vmul.f32 %v1037, %v1342
  %1359 = vst [vmem:[%s5] sm:$0xff] %v854
  %1360 = vst [vmem:[%s5 + $0x8] sm:$0xff] %v856
  %1361 = vst [vmem:[%s5 + $0x10] sm:$0xff] %v858
  %1362 = vst [vmem:[%s5 + $0x18] sm:$0xff] %v860
  %1363 = vst [vmem:[%s5 + $0x20] sm:$0xff] %v862
  %1364 = vst [vmem:[%s5 + $0x28] sm:$0xff] %v864
  %1365 = vst [vmem:[%s5 + $0x30] sm:$0xff] %v866
  %1366 = vst [vmem:[%s5 + $0x38] sm:$0xff] %v868
  %1367 = vst [vmem:[%s5 + $0x40] sm:$0xff] %v870
  %1368 = vst [vmem:[%s5 + $0x48] sm:$0xff] %v872
  %1369 = vst [vmem:[%s5 + $0x50] sm:$0xff] %v874
  %1370 = vst [vmem:[%s5 + $0x58] sm:$0xff] %v876
  %1371 = vst [vmem:[%s5 + $0x60] sm:$0xff] %v878
  %1372 = vst [vmem:[%s5 + $0x68] sm:$0xff] %v880
  %1373 = vst [vmem:[%s5 + $0x70] sm:$0xff] %v882
  %1374 = vst [vmem:[%s5 + $0x78] sm:$0xff] %v884
  %v1375 = vpack.c.bf16 %v1343, %v1343
  %v1376 = vpack.c.bf16 %v1344, %v1344
  %v1377 = vpack.c.bf16 %v1345, %v1345
  %v1378 = vpack.c.bf16 %v1346, %v1346
  %v1379 = vpack.c.bf16 %v1347, %v1347
  %v1380 = vpack.c.bf16 %v1348, %v1348
  %v1381 = vpack.c.bf16 %v1349, %v1349
  %v1382 = vpack.c.bf16 %v1350, %v1350
  %v1383 = vpack.c.bf16 %v1351, %v1351
  %v1384 = vpack.c.bf16 %v1352, %v1352
  %v1385 = vpack.c.bf16 %v1353, %v1353
  %v1386 = vpack.c.bf16 %v1354, %v1354
  %v1387 = vpack.c.bf16 %v1355, %v1355
  %v1388 = vpack.c.bf16 %v1356, %v1356
  %v1389 = vpack.c.bf16 %v1357, %v1357
  %v1390 = vpack.c.bf16 %v1358, %v1358
  %1391 = vst [vmem:[%s6] sm:$0xf] %v1375
  %1392 = vst [vmem:[%s6 + $0x4] sm:$0xf] %v1376
  %1393 = vst [vmem:[%s6 + $0x8] sm:$0xf] %v1377
  %1394 = vst [vmem:[%s6 + $0xc] sm:$0xf] %v1378
  %1395 = vst [vmem:[%s6 + $0x10] sm:$0xf] %v1379
  %1396 = vst [vmem:[%s6 + $0x14] sm:$0xf] %v1380
  %1397 = vst [vmem:[%s6 + $0x18] sm:$0xf] %v1381
  %1398 = vst [vmem:[%s6 + $0x1c] sm:$0xf] %v1382
  %1399 = vst [vmem:[%s6 + $0x20] sm:$0xf] %v1383
  %1400 = vst [vmem:[%s6 + $0x24] sm:$0xf] %v1384
  %1401 = vst [vmem:[%s6 + $0x28] sm:$0xf] %v1385
  %1402 = vst [vmem:[%s6 + $0x2c] sm:$0xf] %v1386
  %1403 = vst [vmem:[%s6 + $0x30] sm:$0xf] %v1387
  %1404 = vst [vmem:[%s6 + $0x34] sm:$0xf] %v1388
  %1405 = vst [vmem:[%s6 + $0x38] sm:$0xf] %v1389
  %1406 = vst [vmem:[%s6 + $0x3c] sm:$0xf] %v1390
  // Predicated region
  $region22: #{forward.30} parent=0 // pred_check
    _
  $region23: #{forward.30} parent=0 // pred_check_branch
    %1408 = sbr.rel (0) target = $region25
  $region24: #{forward.30} parent=0 // pred_region
    _
  $region25: #{forward.30} parent=0 // pred_fallthru
    _
  // Predicated region
  $region26: #{forward.30} parent=0 // pred_check
    _
  $region27: #{forward.30} parent=0 // pred_check_branch
    %1410 = sbr.rel (0) target = $region29
  $region28: #{forward.30} parent=0 // pred_region
    _
  $region29: #{forward.30} parent=0 // pred_fallthru
    _
  // Predicated region
  $region30: #{forward.30} parent=0 // pred_check
    _
  $region31: #{forward.30} parent=0 // pred_check_branch
    %1412 = sbr.rel (0) target = $region33
  $region32: #{forward.30} parent=0 // pred_region
    _
  $region33: #{forward.30} parent=0 // pred_fallthru
    _
  // Predicated region
  $region34: #{forward.30} parent=0 // pred_check
    _
  $region35: #{forward.30} parent=0 // pred_check_branch
    %1414 = sbr.rel (0) target = $region37
  $region36: #{forward.30} parent=0 // pred_region
    _
  $region37: #{forward.30} parent=0 // pred_fallthru
    _

// kernel: forward.24
$region0: #{forward.24}
  #allocation0 [shape = 'u32[]', space=smem, size = 0x4, offset = 0x4, fixed_abs, tag = 'smem constant byte address 0x4 - core index']
  #allocation1 [shape = 'u32[72,128]{1,0:T(1,128)}', space=vmem, size = 0x9000, scoped, tag = 'internal scratch']
  %s0 = inlined_call_operand.vmem [shape: bf16[128,128], index: 0, kind: input, shape index: {}]
  %s1 = inlined_call_operand.vmem [shape: bf16[128,128], index: 1, kind: input, shape index: {}]
  %s2 = inlined_call_operand.vmem [shape: bf16[128,128], index: 2, kind: input, shape index: {}]
  %s3 = inlined_call_operand.vmem [shape: bf16[128,128], index: 3, kind: input, shape index: {}]
  %s4 = inlined_call_operand.vmem [shape: f32[1,128], index: 4, kind: input, shape index: {}]
  %s5 = inlined_call_operand.vmem [shape: bf16[128,128], index: 5, kind: input, shape index: {}]
  %s6 = inlined_call_operand.vmem [shape: bf16[128,128], index: 6, kind: input, shape index: {}]
  %s7 = inlined_call_operand.vmem [shape: bf16[128,128], index: 7, kind: input, shape index: {}]
  %s8 = inlined_call_operand.vmem [shape: f32[1,128], index: 8, kind: input, shape index: {}]
  %s9 = inlined_call_operand.vmem [shape: f32[128,128], index: 9, kind: output, shape index: {}]
  %s10 = sld [smem:[#allocation0]]
  $region46: #{forward.24} parent=0
    _
  %s12 = ssub.s32 1, %s10
  %s13 = scalar_select 0, %s12, %s10
  // Predicated region
  $region2: #{forward.24} parent=0 // pred_check
    _
  $region3: #{forward.24} parent=0 // pred_check_branch
    %15 = sbr.rel (0) target = $region5
  $region4: #{forward.24} parent=0 // pred_region
    _
  $region5: #{forward.24} parent=0 // pred_fallthru
    _
  // Predicated region
  $region6: #{forward.24} parent=0 // pred_check
    _
  $region7: #{forward.24} parent=0 // pred_check_branch
    %17 = sbr.rel (0) target = $region9
  $region8: #{forward.24} parent=0 // pred_region
    _
  $region9: #{forward.24} parent=0 // pred_fallthru
    _
  // Predicated region
  $region10: #{forward.24} parent=0 // pred_check
    _
  $region11: #{forward.24} parent=0 // pred_check_branch
    %19 = sbr.rel (0) target = $region13
  $region12: #{forward.24} parent=0 // pred_region
    _
  $region13: #{forward.24} parent=0 // pred_fallthru
    _
  // Predicated region
  $region14: #{forward.24} parent=0 // pred_check
    _
  $region15: #{forward.24} parent=0 // pred_check_branch
    %21 = sbr.rel (0) target = $region17
  $region16: #{forward.24} parent=0 // pred_region
    _
  $region17: #{forward.24} parent=0 // pred_fallthru
    _
  // Predicated region
  $region18: #{forward.24} parent=0 // pred_check
    _
  $region19: #{forward.24} parent=0 // pred_check_branch
    %23 = sbr.rel (0) target = $region21
  $region20: #{forward.24} parent=0 // pred_region
    _
  $region21: #{forward.24} parent=0 // pred_fallthru
    _
  // Predicated region
  $region22: #{forward.24} parent=0 // pred_check
    _
  $region23: #{forward.24} parent=0 // pred_check_branch
    %25 = sbr.rel (0) target = $region25
  $region24: #{forward.24} parent=0 // pred_region
    _
  $region25: #{forward.24} parent=0 // pred_fallthru
    _
  // Predicated region
  $region26: #{forward.24} parent=0 // pred_check
    _
  $region27: #{forward.24} parent=0 // pred_check_branch
    %27 = sbr.rel (0) target = $region29
  $region28: #{forward.24} parent=0 // pred_region
    _
  $region29: #{forward.24} parent=0 // pred_fallthru
    _
  // Predicated region
  $region30: #{forward.24} parent=0 // pred_check
    _
  $region31: #{forward.24} parent=0 // pred_check_branch
    %29 = sbr.rel (0) target = $region33
  $region32: #{forward.24} parent=0 // pred_region
    _
  $region33: #{forward.24} parent=0 // pred_fallthru
    _
  // Predicated region
  $region34: #{forward.24} parent=0 // pred_check
    _
  $region35: #{forward.24} parent=0 // pred_check_branch
    %31 = sbr.rel (0) target = $region37
  $region36: #{forward.24} parent=0 // pred_region
    _
  $region37: #{forward.24} parent=0 // pred_fallthru
    _
  %v32 = vld [vmem:[%s2] sm:$0xf]
  %v33 = vld [vmem:[%s2 + $0x4] sm:$0xf]
  %v34 = vld [vmem:[%s2 + $0x8] sm:$0xf]
  %v35 = vld [vmem:[%s2 + $0xc] sm:$0xf]
  %v36 = vld [vmem:[%s2 + $0x10] sm:$0xf]
  %v37 = vld [vmem:[%s2 + $0x14] sm:$0xf]
  %v38 = vld [vmem:[%s2 + $0x18] sm:$0xf]
  %v39 = vld [vmem:[%s2 + $0x1c] sm:$0xf]
  %v40 = vld [vmem:[%s2 + $0x20] sm:$0xf]
  %v41 = vld [vmem:[%s2 + $0x24] sm:$0xf]
  %v42 = vld [vmem:[%s2 + $0x28] sm:$0xf]
  %v43 = vld [vmem:[%s2 + $0x2c] sm:$0xf]
  %v44 = vld [vmem:[%s2 + $0x30] sm:$0xf]
  %v45 = vld [vmem:[%s2 + $0x34] sm:$0xf]
  %v46 = vld [vmem:[%s2 + $0x38] sm:$0xf]
  %v47 = vld [vmem:[%s2 + $0x3c] sm:$0xf]
  %v48 = vld [vmem:[%s3] sm:$0xf]
  %v49 = vld [vmem:[%s3 + $0x4] sm:$0xf]
  %v50 = vld [vmem:[%s3 + $0x8] sm:$0xf]
  %v51 = vld [vmem:[%s3 + $0xc] sm:$0xf]
  %v52 = vld [vmem:[%s3 + $0x10] sm:$0xf]
  %v53 = vld [vmem:[%s3 + $0x14] sm:$0xf]
  %v54 = vld [vmem:[%s3 + $0x18] sm:$0xf]
  %v55 = vld [vmem:[%s3 + $0x1c] sm:$0xf]
  %v56 = vld [vmem:[%s3 + $0x20] sm:$0xf]
  %v57 = vld [vmem:[%s3 + $0x24] sm:$0xf]
  %v58 = vld [vmem:[%s3 + $0x28] sm:$0xf]
  %v59 = vld [vmem:[%s3 + $0x2c] sm:$0xf]
  %v60 = vld [vmem:[%s3 + $0x30] sm:$0xf]
  %v61 = vld [vmem:[%s3 + $0x34] sm:$0xf]
  %v62 = vld [vmem:[%s3 + $0x38] sm:$0xf]
  %v63 = vld [vmem:[%s3 + $0x3c] sm:$0xf]
  %v64 = vld [vmem:[%s4] sm:$0x1]
  %v66 = vperm.slane %v64, 0
  %v84 = vunpack.c.l.b16 %v32
  %v85 = vunpack.c.l.b16 %v33
  %v86 = vunpack.c.l.b16 %v34
  %v87 = vunpack.c.l.b16 %v35
  %v88 = vunpack.c.l.b16 %v36
  %v89 = vunpack.c.l.b16 %v37
  %v90 = vunpack.c.l.b16 %v38
  %v91 = vunpack.c.l.b16 %v39
  %v92 = vunpack.c.l.b16 %v40
  %v93 = vunpack.c.l.b16 %v41
  %v94 = vunpack.c.l.b16 %v42
  %v95 = vunpack.c.l.b16 %v43
  %v96 = vunpack.c.l.b16 %v44
  %v97 = vunpack.c.l.b16 %v45
  %v98 = vunpack.c.l.b16 %v46
  %v99 = vunpack.c.l.b16 %v47
  %v100 = vpack.c.b16 %v85, %v84
  %v101 = vpack.c.b16 %v87, %v86
  %v102 = vpack.c.b16 %v89, %v88
  %v103 = vpack.c.b16 %v91, %v90
  %v104 = vpack.c.b16 %v93, %v92
  %v105 = vpack.c.b16 %v95, %v94
  %v106 = vpack.c.b16 %v97, %v96
  %v107 = vpack.c.b16 %v99, %v98
  %v132 = vunpack.c.l.b16 %v48
  %v133 = vunpack.c.l.b16 %v49
  %v134 = vunpack.c.l.b16 %v50
  %v135 = vunpack.c.l.b16 %v51
  %v136 = vunpack.c.l.b16 %v52
  %v137 = vunpack.c.l.b16 %v53
  %v138 = vunpack.c.l.b16 %v54
  %v139 = vunpack.c.l.b16 %v55
  %v140 = vunpack.c.l.b16 %v56
  %v141 = vunpack.c.l.b16 %v57
  %v142 = vunpack.c.l.b16 %v58
  %v143 = vunpack.c.l.b16 %v59
  %v144 = vunpack.c.l.b16 %v60
  %v145 = vunpack.c.l.b16 %v61
  %v146 = vunpack.c.l.b16 %v62
  %v147 = vunpack.c.l.b16 %v63
  %v148 = vpack.c.b16 %v133, %v132
  %v149 = vpack.c.b16 %v135, %v134
  %v150 = vpack.c.b16 %v137, %v136
  %v151 = vpack.c.b16 %v139, %v138
  %v152 = vpack.c.b16 %v141, %v140
  %v153 = vpack.c.b16 %v143, %v142
  %v154 = vpack.c.b16 %v145, %v144
  %v155 = vpack.c.b16 %v147, %v146
  %164 = vmatpush.bf16.msra.mxu0 %v155
  %165 = vmatpush.bf16.msra.mxu0 %v154
  %166 = vmatpush.bf16.msra.mxu0 %v153
  %167 = vmatpush.bf16.msra.mxu0 %v152
  %168 = vmatpush.bf16.msra.mxu0 %v151
  %169 = vmatpush.bf16.msra.mxu0 %v150
  %170 = vmatpush.bf16.msra.mxu0 %v149
  %171 = vmatpush.bf16.msra.mxu0 %v148
  %172 = vmatmul.bf16.gmra.mxu0 %v100
  %v173 = vpop.f32.mrf.mxu0
  %v174 = vadd.f32 %v66, %v173
  %v175 = vpop.f32.mrf.mxu0
  %v176 = vadd.f32 %v66, %v175
  %177 = vmatmul.bf16.gmra.mxu0 %v101
  %v178 = vpop.f32.mrf.mxu0
  %v179 = vadd.f32 %v66, %v178
  %v180 = vpop.f32.mrf.mxu0
  %v181 = vadd.f32 %v66, %v180
  %182 = vmatmul.bf16.gmra.mxu0 %v102
  %v183 = vpop.f32.mrf.mxu0
  %v184 = vadd.f32 %v66, %v183
  %v185 = vpop.f32.mrf.mxu0
  %v186 = vadd.f32 %v66, %v185
  %187 = vmatmul.bf16.gmra.mxu0 %v103
  %v188 = vpop.f32.mrf.mxu0
  %v189 = vadd.f32 %v66, %v188
  %v190 = vpop.f32.mrf.mxu0
  %v191 = vadd.f32 %v66, %v190
  %192 = vmatmul.bf16.gmra.mxu0 %v104
  %v193 = vpop.f32.mrf.mxu0
  %v194 = vadd.f32 %v66, %v193
  %v195 = vpop.f32.mrf.mxu0
  %v196 = vadd.f32 %v66, %v195
  %197 = vmatmul.bf16.gmra.mxu0 %v105
  %v198 = vpop.f32.mrf.mxu0
  %v199 = vadd.f32 %v66, %v198
  %v200 = vpop.f32.mrf.mxu0
  %v201 = vadd.f32 %v66, %v200
  %202 = vmatmul.bf16.gmra.mxu0 %v106
  %v203 = vpop.f32.mrf.mxu0
  %v204 = vadd.f32 %v66, %v203
  %v205 = vpop.f32.mrf.mxu0
  %v206 = vadd.f32 %v66, %v205
  %207 = vmatmul.bf16.gmra.mxu0 %v107
  %v208 = vpop.f32.mrf.mxu0
  %v209 = vadd.f32 %v66, %v208
  %v210 = vpop.f32.mrf.mxu0
  %v211 = vadd.f32 %v66, %v210
  %212 = vdwg.mxu0
  %v213 = vxor.u32 %v174, 2147483648
  %v214 = vxor.u32 %v176, 2147483648
  %v215 = vxor.u32 %v179, 2147483648
  %v216 = vxor.u32 %v181, 2147483648
  %v217 = vxor.u32 %v184, 2147483648
  %v218 = vxor.u32 %v186, 2147483648
  %v219 = vxor.u32 %v189, 2147483648
  %v220 = vxor.u32 %v191, 2147483648
  %v221 = vxor.u32 %v194, 2147483648
  %v222 = vxor.u32 %v196, 2147483648
  %v223 = vxor.u32 %v199, 2147483648
  %v224 = vxor.u32 %v201, 2147483648
  %v225 = vxor.u32 %v204, 2147483648
  %v226 = vxor.u32 %v206, 2147483648
  %v227 = vxor.u32 %v209, 2147483648
  %v228 = vxor.u32 %v211, 2147483648
  %v229 = vmul.f32 %v213, 1.442695
  %v230 = vpow.pop %v229
  %v231 = vmul.f32 %v214, 1.442695
  %v232 = vpow.pop %v231
  %v233 = vmul.f32 %v215, 1.442695
  %v234 = vpow.pop %v233
  %v235 = vmul.f32 %v216, 1.442695
  %v236 = vpow.pop %v235
  %v237 = vmul.f32 %v217, 1.442695
  %v238 = vpow.pop %v237
  %v239 = vmul.f32 %v218, 1.442695
  %v240 = vpow.pop %v239
  %v241 = vmul.f32 %v219, 1.442695
  %v242 = vpow.pop %v241
  %v243 = vmul.f32 %v220, 1.442695
  %v244 = vpow.pop %v243
  %v245 = vmul.f32 %v221, 1.442695
  %v246 = vpow.pop %v245
  %v247 = vmul.f32 %v222, 1.442695
  %v248 = vpow.pop %v247
  %v249 = vmul.f32 %v223, 1.442695
  %v250 = vpow.pop %v249
  %v251 = vmul.f32 %v224, 1.442695
  %v252 = vpow.pop %v251
  %v253 = vmul.f32 %v225, 1.442695
  %v254 = vpow.pop %v253
  %v255 = vmul.f32 %v226, 1.442695
  %v256 = vpow.pop %v255
  %v257 = vmul.f32 %v227, 1.442695
  %v258 = vpow.pop %v257
  %v259 = vmul.f32 %v228, 1.442695
  %v260 = vpow.pop %v259
  %v261 = vadd.f32 %v230, 1.0
  %v262 = vadd.f32 %v232, 1.0
  %v263 = vadd.f32 %v234, 1.0
  %v264 = vadd.f32 %v236, 1.0
  %v265 = vadd.f32 %v238, 1.0
  %v266 = vadd.f32 %v240, 1.0
  %v267 = vadd.f32 %v242, 1.0
  %v268 = vadd.f32 %v244, 1.0
  %v269 = vadd.f32 %v246, 1.0
  %v270 = vadd.f32 %v248, 1.0
  %v271 = vadd.f32 %v250, 1.0
  %v272 = vadd.f32 %v252, 1.0
  %v273 = vadd.f32 %v254, 1.0
  %v274 = vadd.f32 %v256, 1.0
  %v275 = vadd.f32 %v258, 1.0
  %v276 = vadd.f32 %v260, 1.0
  %v277 = vrcp.pop %v261
  %v278 = vmul.f32 %v261, %v277
  %v279 = vsub.f32 1.0, %v278
  %v280 = vmul.f32 %v277, %v279
  %v281 = vadd.f32 %v277, %v280
  %vm282 = vweird.f32 %v261
  %vm283 = vweird.f32 %v277
  %vm284 = vmor %vm282, %vm283
  %v285 = vsel %vm284, %v277, %v281
  %v286 = vand.u32 2147483647, %v261
  %vm287 = vcmp.eq.f32.partialorder %v286, 8.507059e+37
  %v288 = vand.u32 %v261, 2147483648
  %v289 = vor.u32 1.1754944e-38, %v288
  %v290 = vsel %vm287, %v289, %v285
  %v291 = vmul.f32 1.0, %v290
  %v292 = vrcp.pop %v262
  %v293 = vmul.f32 %v262, %v292
  %v294 = vsub.f32 1.0, %v293
  %v295 = vmul.f32 %v292, %v294
  %v296 = vadd.f32 %v292, %v295
  %vm297 = vweird.f32 %v262
  %vm298 = vweird.f32 %v292
  %vm299 = vmor %vm297, %vm298
  %v300 = vsel %vm299, %v292, %v296
  %v301 = vand.u32 2147483647, %v262
  %vm302 = vcmp.eq.f32.partialorder %v301, 8.507059e+37
  %v303 = vand.u32 %v262, 2147483648
  %v304 = vor.u32 1.1754944e-38, %v303
  %v305 = vsel %vm302, %v304, %v300
  %v306 = vmul.f32 1.0, %v305
  %v307 = vrcp.pop %v263
  %v308 = vmul.f32 %v263, %v307
  %v309 = vsub.f32 1.0, %v308
  %v310 = vmul.f32 %v307, %v309
  %v311 = vadd.f32 %v307, %v310
  %vm312 = vweird.f32 %v263
  %vm313 = vweird.f32 %v307
  %vm314 = vmor %vm312, %vm313
  %v315 = vsel %vm314, %v307, %v311
  %v316 = vand.u32 2147483647, %v263
  %vm317 = vcmp.eq.f32.partialorder %v316, 8.507059e+37
  %v318 = vand.u32 %v263, 2147483648
  %v319 = vor.u32 1.1754944e-38, %v318
  %v320 = vsel %vm317, %v319, %v315
  %v321 = vmul.f32 1.0, %v320
  %v322 = vrcp.pop %v264
  %v323 = vmul.f32 %v264, %v322
  %v324 = vsub.f32 1.0, %v323
  %v325 = vmul.f32 %v322, %v324
  %v326 = vadd.f32 %v322, %v325
  %vm327 = vweird.f32 %v264
  %vm328 = vweird.f32 %v322
  %vm329 = vmor %vm327, %vm328
  %v330 = vsel %vm329, %v322, %v326
  %v331 = vand.u32 2147483647, %v264
  %vm332 = vcmp.eq.f32.partialorder %v331, 8.507059e+37
  %v333 = vand.u32 %v264, 2147483648
  %v334 = vor.u32 1.1754944e-38, %v333
  %v335 = vsel %vm332, %v334, %v330
  %v336 = vmul.f32 1.0, %v335
  %v337 = vrcp.pop %v265
  %v338 = vmul.f32 %v265, %v337
  %v339 = vsub.f32 1.0, %v338
  %v340 = vmul.f32 %v337, %v339
  %v341 = vadd.f32 %v337, %v340
  %vm342 = vweird.f32 %v265
  %vm343 = vweird.f32 %v337
  %vm344 = vmor %vm342, %vm343
  %v345 = vsel %vm344, %v337, %v341
  %v346 = vand.u32 2147483647, %v265
  %vm347 = vcmp.eq.f32.partialorder %v346, 8.507059e+37
  %v348 = vand.u32 %v265, 2147483648
  %v349 = vor.u32 1.1754944e-38, %v348
  %v350 = vsel %vm347, %v349, %v345
  %v351 = vmul.f32 1.0, %v350
  %v352 = vrcp.pop %v266
  %v353 = vmul.f32 %v266, %v352
  %v354 = vsub.f32 1.0, %v353
  %v355 = vmul.f32 %v352, %v354
  %v356 = vadd.f32 %v352, %v355
  %vm357 = vweird.f32 %v266
  %vm358 = vweird.f32 %v352
  %vm359 = vmor %vm357, %vm358
  %v360 = vsel %vm359, %v352, %v356
  %v361 = vand.u32 2147483647, %v266
  %vm362 = vcmp.eq.f32.partialorder %v361, 8.507059e+37
  %v363 = vand.u32 %v266, 2147483648
  %v364 = vor.u32 1.1754944e-38, %v363
  %v365 = vsel %vm362, %v364, %v360
  %v366 = vmul.f32 1.0, %v365
  %v367 = vrcp.pop %v267
  %v368 = vmul.f32 %v267, %v367
  %v369 = vsub.f32 1.0, %v368
  %v370 = vmul.f32 %v367, %v369
  %v371 = vadd.f32 %v367, %v370
  %vm372 = vweird.f32 %v267
  %vm373 = vweird.f32 %v367
  %vm374 = vmor %vm372, %vm373
  %v375 = vsel %vm374, %v367, %v371
  %v376 = vand.u32 2147483647, %v267
  %vm377 = vcmp.eq.f32.partialorder %v376, 8.507059e+37
  %v378 = vand.u32 %v267, 2147483648
  %v379 = vor.u32 1.1754944e-38, %v378
  %v380 = vsel %vm377, %v379, %v375
  %v381 = vmul.f32 1.0, %v380
  %v382 = vrcp.pop %v268
  %v383 = vmul.f32 %v268, %v382
  %v384 = vsub.f32 1.0, %v383
  %v385 = vmul.f32 %v382, %v384
  %v386 = vadd.f32 %v382, %v385
  %vm387 = vweird.f32 %v268
  %vm388 = vweird.f32 %v382
  %vm389 = vmor %vm387, %vm388
  %v390 = vsel %vm389, %v382, %v386
  %v391 = vand.u32 2147483647, %v268
  %vm392 = vcmp.eq.f32.partialorder %v391, 8.507059e+37
  %v393 = vand.u32 %v268, 2147483648
  %v394 = vor.u32 1.1754944e-38, %v393
  %v395 = vsel %vm392, %v394, %v390
  %v396 = vmul.f32 1.0, %v395
  %v397 = vrcp.pop %v269
  %v398 = vmul.f32 %v269, %v397
  %v399 = vsub.f32 1.0, %v398
  %v400 = vmul.f32 %v397, %v399
  %v401 = vadd.f32 %v397, %v400
  %vm402 = vweird.f32 %v269
  %vm403 = vweird.f32 %v397
  %vm404 = vmor %vm402, %vm403
  %v405 = vsel %vm404, %v397, %v401
  %v406 = vand.u32 2147483647, %v269
  %vm407 = vcmp.eq.f32.partialorder %v406, 8.507059e+37
  %v408 = vand.u32 %v269, 2147483648
  %v409 = vor.u32 1.1754944e-38, %v408
  %v410 = vsel %vm407, %v409, %v405
  %v411 = vmul.f32 1.0, %v410
  %v412 = vrcp.pop %v270
  %v413 = vmul.f32 %v270, %v412
  %v414 = vsub.f32 1.0, %v413
  %v415 = vmul.f32 %v412, %v414
  %v416 = vadd.f32 %v412, %v415
  %vm417 = vweird.f32 %v270
  %vm418 = vweird.f32 %v412
  %vm419 = vmor %vm417, %vm418
  %v420 = vsel %vm419, %v412, %v416
  %v421 = vand.u32 2147483647, %v270
  %vm422 = vcmp.eq.f32.partialorder %v421, 8.507059e+37
  %v423 = vand.u32 %v270, 2147483648
  %v424 = vor.u32 1.1754944e-38, %v423
  %v425 = vsel %vm422, %v424, %v420
  %v426 = vmul.f32 1.0, %v425
  %v427 = vrcp.pop %v271
  %v428 = vmul.f32 %v271, %v427
  %v429 = vsub.f32 1.0, %v428
  %v430 = vmul.f32 %v427, %v429
  %v431 = vadd.f32 %v427, %v430
  %vm432 = vweird.f32 %v271
  %vm433 = vweird.f32 %v427
  %vm434 = vmor %vm432, %vm433
  %v435 = vsel %vm434, %v427, %v431
  %v436 = vand.u32 2147483647, %v271
  %vm437 = vcmp.eq.f32.partialorder %v436, 8.507059e+37
  %v438 = vand.u32 %v271, 2147483648
  %v439 = vor.u32 1.1754944e-38, %v438
  %v440 = vsel %vm437, %v439, %v435
  %v441 = vmul.f32 1.0, %v440
  %v442 = vrcp.pop %v272
  %v443 = vmul.f32 %v272, %v442
  %v444 = vsub.f32 1.0, %v443
  %v445 = vmul.f32 %v442, %v444
  %v446 = vadd.f32 %v442, %v445
  %vm447 = vweird.f32 %v272
  %vm448 = vweird.f32 %v442
  %vm449 = vmor %vm447, %vm448
  %v450 = vsel %vm449, %v442, %v446
  %v451 = vand.u32 2147483647, %v272
  %vm452 = vcmp.eq.f32.partialorder %v451, 8.507059e+37
  %v453 = vand.u32 %v272, 2147483648
  %v454 = vor.u32 1.1754944e-38, %v453
  %v455 = vsel %vm452, %v454, %v450
  %v456 = vmul.f32 1.0, %v455
  %v457 = vrcp.pop %v273
  %v458 = vmul.f32 %v273, %v457
  %v459 = vsub.f32 1.0, %v458
  %v460 = vmul.f32 %v457, %v459
  %v461 = vadd.f32 %v457, %v460
  %vm462 = vweird.f32 %v273
  %vm463 = vweird.f32 %v457
  %vm464 = vmor %vm462, %vm463
  %v465 = vsel %vm464, %v457, %v461
  %v466 = vand.u32 2147483647, %v273
  %vm467 = vcmp.eq.f32.partialorder %v466, 8.507059e+37
  %v468 = vand.u32 %v273, 2147483648
  %v469 = vor.u32 1.1754944e-38, %v468
  %v470 = vsel %vm467, %v469, %v465
  %v471 = vmul.f32 1.0, %v470
  %v472 = vrcp.pop %v274
  %v473 = vmul.f32 %v274, %v472
  %v474 = vsub.f32 1.0, %v473
  %v475 = vmul.f32 %v472, %v474
  %v476 = vadd.f32 %v472, %v475
  %vm477 = vweird.f32 %v274
  %vm478 = vweird.f32 %v472
  %vm479 = vmor %vm477, %vm478
  %v480 = vsel %vm479, %v472, %v476
  %v481 = vand.u32 2147483647, %v274
  %vm482 = vcmp.eq.f32.partialorder %v481, 8.507059e+37
  %v483 = vand.u32 %v274, 2147483648
  %v484 = vor.u32 1.1754944e-38, %v483
  %v485 = vsel %vm482, %v484, %v480
  %v486 = vmul.f32 1.0, %v485
  %v487 = vrcp.pop %v275
  %v488 = vmul.f32 %v275, %v487
  %v489 = vsub.f32 1.0, %v488
  %v490 = vmul.f32 %v487, %v489
  %v491 = vadd.f32 %v487, %v490
  %vm492 = vweird.f32 %v275
  %vm493 = vweird.f32 %v487
  %vm494 = vmor %vm492, %vm493
  %v495 = vsel %vm494, %v487, %v491
  %v496 = vand.u32 2147483647, %v275
  %vm497 = vcmp.eq.f32.partialorder %v496, 8.507059e+37
  %v498 = vand.u32 %v275, 2147483648
  %v499 = vor.u32 1.1754944e-38, %v498
  %v500 = vsel %vm497, %v499, %v495
  %v501 = vmul.f32 1.0, %v500
  %v502 = vrcp.pop %v276
  %v503 = vmul.f32 %v276, %v502
  %v504 = vsub.f32 1.0, %v503
  %v505 = vmul.f32 %v502, %v504
  %v506 = vadd.f32 %v502, %v505
  %vm507 = vweird.f32 %v276
  %vm508 = vweird.f32 %v502
  %vm509 = vmor %vm507, %vm508
  %v510 = vsel %vm509, %v502, %v506
  %v511 = vand.u32 2147483647, %v276
  %vm512 = vcmp.eq.f32.partialorder %v511, 8.507059e+37
  %v513 = vand.u32 %v276, 2147483648
  %v514 = vor.u32 1.1754944e-38, %v513
  %v515 = vsel %vm512, %v514, %v510
  %v516 = vmul.f32 1.0, %v515
  %v517 = vmul.f32 %v174, %v291
  %v518 = vmul.f32 %v176, %v306
  %v519 = vmul.f32 %v179, %v321
  %v520 = vmul.f32 %v181, %v336
  %v521 = vmul.f32 %v184, %v351
  %v522 = vmul.f32 %v186, %v366
  %v523 = vmul.f32 %v189, %v381
  %v524 = vmul.f32 %v191, %v396
  %v525 = vmul.f32 %v194, %v411
  %v526 = vmul.f32 %v196, %v426
  %v527 = vmul.f32 %v199, %v441
  %v528 = vmul.f32 %v201, %v456
  %v529 = vmul.f32 %v204, %v471
  %v530 = vmul.f32 %v206, %v486
  %v531 = vmul.f32 %v209, %v501
  %v532 = vmul.f32 %v211, %v516
  %v533 = vld [vmem:[%s0] sm:$0xf]
  %v534 = vld [vmem:[%s0 + $0x4] sm:$0xf]
  %v535 = vld [vmem:[%s0 + $0x8] sm:$0xf]
  %v536 = vld [vmem:[%s0 + $0xc] sm:$0xf]
  %v537 = vld [vmem:[%s0 + $0x10] sm:$0xf]
  %v538 = vld [vmem:[%s0 + $0x14] sm:$0xf]
  %v539 = vld [vmem:[%s0 + $0x18] sm:$0xf]
  %v540 = vld [vmem:[%s0 + $0x1c] sm:$0xf]
  %v541 = vld [vmem:[%s0 + $0x20] sm:$0xf]
  %v542 = vld [vmem:[%s0 + $0x24] sm:$0xf]
  %v543 = vld [vmem:[%s0 + $0x28] sm:$0xf]
  %v544 = vld [vmem:[%s0 + $0x2c] sm:$0xf]
  %v545 = vld [vmem:[%s0 + $0x30] sm:$0xf]
  %v546 = vld [vmem:[%s0 + $0x34] sm:$0xf]
  %v547 = vld [vmem:[%s0 + $0x38] sm:$0xf]
  %v548 = vld [vmem:[%s0 + $0x3c] sm:$0xf]
  %v549 = vld [vmem:[%s5] sm:$0xf]
  %v550 = vld [vmem:[%s5 + $0x4] sm:$0xf]
  %v551 = vld [vmem:[%s5 + $0x8] sm:$0xf]
  %v552 = vld [vmem:[%s5 + $0xc] sm:$0xf]
  %v553 = vld [vmem:[%s5 + $0x10] sm:$0xf]
  %v554 = vld [vmem:[%s5 + $0x14] sm:$0xf]
  %v555 = vld [vmem:[%s5 + $0x18] sm:$0xf]
  %v556 = vld [vmem:[%s5 + $0x1c] sm:$0xf]
  %v557 = vld [vmem:[%s5 + $0x20] sm:$0xf]
  %v558 = vld [vmem:[%s5 + $0x24] sm:$0xf]
  %v559 = vld [vmem:[%s5 + $0x28] sm:$0xf]
  %v560 = vld [vmem:[%s5 + $0x2c] sm:$0xf]
  %v561 = vld [vmem:[%s5 + $0x30] sm:$0xf]
  %v562 = vld [vmem:[%s5 + $0x34] sm:$0xf]
  %v563 = vld [vmem:[%s5 + $0x38] sm:$0xf]
  %v564 = vld [vmem:[%s5 + $0x3c] sm:$0xf]
  %v565 = vld [vmem:[%s1] sm:$0xf]
  %v566 = vld [vmem:[%s1 + $0x4] sm:$0xf]
  %v567 = vld [vmem:[%s1 + $0x8] sm:$0xf]
  %v568 = vld [vmem:[%s1 + $0xc] sm:$0xf]
  %v569 = vld [vmem:[%s1 + $0x10] sm:$0xf]
  %v570 = vld [vmem:[%s1 + $0x14] sm:$0xf]
  %v571 = vld [vmem:[%s1 + $0x18] sm:$0xf]
  %v572 = vld [vmem:[%s1 + $0x1c] sm:$0xf]
  %v573 = vld [vmem:[%s1 + $0x20] sm:$0xf]
  %v574 = vld [vmem:[%s1 + $0x24] sm:$0xf]
  %v575 = vld [vmem:[%s1 + $0x28] sm:$0xf]
  %v576 = vld [vmem:[%s1 + $0x2c] sm:$0xf]
  %v577 = vld [vmem:[%s1 + $0x30] sm:$0xf]
  %v578 = vld [vmem:[%s1 + $0x34] sm:$0xf]
  %v579 = vld [vmem:[%s1 + $0x38] sm:$0xf]
  %v580 = vld [vmem:[%s1 + $0x3c] sm:$0xf]
  %v581 = vld [vmem:[%s6] sm:$0xf]
  %v582 = vld [vmem:[%s6 + $0x4] sm:$0xf]
  %v583 = vld [vmem:[%s6 + $0x8] sm:$0xf]
  %v584 = vld [vmem:[%s6 + $0xc] sm:$0xf]
  %v585 = vld [vmem:[%s6 + $0x10] sm:$0xf]
  %v586 = vld [vmem:[%s6 + $0x14] sm:$0xf]
  %v587 = vld [vmem:[%s6 + $0x18] sm:$0xf]
  %v588 = vld [vmem:[%s6 + $0x1c] sm:$0xf]
  %v589 = vld [vmem:[%s6 + $0x20] sm:$0xf]
  %v590 = vld [vmem:[%s6 + $0x24] sm:$0xf]
  %v591 = vld [vmem:[%s6 + $0x28] sm:$0xf]
  %v592 = vld [vmem:[%s6 + $0x2c] sm:$0xf]
  %v593 = vld [vmem:[%s6 + $0x30] sm:$0xf]
  %v594 = vld [vmem:[%s6 + $0x34] sm:$0xf]
  %v595 = vld [vmem:[%s6 + $0x38] sm:$0xf]
  %v596 = vld [vmem:[%s6 + $0x3c] sm:$0xf]
  %v613 = vunpack.c.l.b16 %v565
  %v614 = vunpack.c.l.b16 %v566
  %v615 = vunpack.c.l.b16 %v567
  %v616 = vunpack.c.l.b16 %v568
  %v617 = vunpack.c.l.b16 %v569
  %v618 = vunpack.c.l.b16 %v570
  %v619 = vunpack.c.l.b16 %v571
  %v620 = vunpack.c.l.b16 %v572
  %v621 = vunpack.c.l.b16 %v573
  %v622 = vunpack.c.l.b16 %v574
  %v623 = vunpack.c.l.b16 %v575
  %v624 = vunpack.c.l.b16 %v576
  %v625 = vunpack.c.l.b16 %v577
  %v626 = vunpack.c.l.b16 %v578
  %v627 = vunpack.c.l.b16 %v579
  %v628 = vunpack.c.l.b16 %v580
  %v629 = vpack.c.b16 %v614, %v613
  %v630 = vpack.c.b16 %v616, %v615
  %v631 = vpack.c.b16 %v618, %v617
  %v632 = vpack.c.b16 %v620, %v619
  %v633 = vpack.c.b16 %v622, %v621
  %v634 = vpack.c.b16 %v624, %v623
  %v635 = vpack.c.b16 %v626, %v625
  %v636 = vpack.c.b16 %v628, %v627
  %v661 = vunpack.c.l.b16 %v581
  %v662 = vunpack.c.l.b16 %v582
  %v663 = vunpack.c.l.b16 %v583
  %v664 = vunpack.c.l.b16 %v584
  %v665 = vunpack.c.l.b16 %v585
  %v666 = vunpack.c.l.b16 %v586
  %v667 = vunpack.c.l.b16 %v587
  %v668 = vunpack.c.l.b16 %v588
  %v669 = vunpack.c.l.b16 %v589
  %v670 = vunpack.c.l.b16 %v590
  %v671 = vunpack.c.l.b16 %v591
  %v672 = vunpack.c.l.b16 %v592
  %v673 = vunpack.c.l.b16 %v593
  %v674 = vunpack.c.l.b16 %v594
  %v675 = vunpack.c.l.b16 %v595
  %v676 = vunpack.c.l.b16 %v596
  %v677 = vpack.c.b16 %v662, %v661
  %v678 = vpack.c.b16 %v664, %v663
  %v679 = vpack.c.b16 %v666, %v665
  %v680 = vpack.c.b16 %v668, %v667
  %v681 = vpack.c.b16 %v670, %v669
  %v682 = vpack.c.b16 %v672, %v671
  %v683 = vpack.c.b16 %v674, %v673
  %v684 = vpack.c.b16 %v676, %v675
  %693 = vmatpush.bf16.msra.mxu0 %v684
  %694 = vmatpush.bf16.msra.mxu0 %v683
  %695 = vmatpush.bf16.msra.mxu0 %v682
  %696 = vmatpush.bf16.msra.mxu0 %v681
  %697 = vmatpush.bf16.msra.mxu0 %v680
  %698 = vmatpush.bf16.msra.mxu0 %v679
  %699 = vmatpush.bf16.msra.mxu0 %v678
  %700 = vmatpush.bf16.msra.mxu0 %v677
  %701 = vmatmul.bf16.gmra.mxu0 %v629
  %v702 = vpop.f32.mrf.mxu0
  %v703 = vadd.f32 0.0, %v702
  %v704 = vpop.f32.mrf.mxu0
  %v705 = vadd.f32 0.0, %v704
  %706 = vmatmul.bf16.gmra.mxu0 %v630
  %v707 = vpop.f32.mrf.mxu0
  %v708 = vadd.f32 0.0, %v707
  %v709 = vpop.f32.mrf.mxu0
  %v710 = vadd.f32 0.0, %v709
  %711 = vmatmul.bf16.gmra.mxu0 %v631
  %v712 = vpop.f32.mrf.mxu0
  %v713 = vadd.f32 0.0, %v712
  %v714 = vpop.f32.mrf.mxu0
  %v715 = vadd.f32 0.0, %v714
  %716 = vmatmul.bf16.gmra.mxu0 %v632
  %v717 = vpop.f32.mrf.mxu0
  %v718 = vadd.f32 0.0, %v717
  %v719 = vpop.f32.mrf.mxu0
  %v720 = vadd.f32 0.0, %v719
  %721 = vmatmul.bf16.gmra.mxu0 %v633
  %v722 = vpop.f32.mrf.mxu0
  %v723 = vadd.f32 0.0, %v722
  %v724 = vpop.f32.mrf.mxu0
  %v725 = vadd.f32 0.0, %v724
  %726 = vmatmul.bf16.gmra.mxu0 %v634
  %v727 = vpop.f32.mrf.mxu0
  %v728 = vadd.f32 0.0, %v727
  %v729 = vpop.f32.mrf.mxu0
  %v730 = vadd.f32 0.0, %v729
  %731 = vmatmul.bf16.gmra.mxu0 %v635
  %v732 = vpop.f32.mrf.mxu0
  %v733 = vadd.f32 0.0, %v732
  %v734 = vpop.f32.mrf.mxu0
  %v735 = vadd.f32 0.0, %v734
  %736 = vmatmul.bf16.gmra.mxu0 %v636
  %v737 = vpop.f32.mrf.mxu0
  %v738 = vadd.f32 0.0, %v737
  %v739 = vpop.f32.mrf.mxu0
  %v740 = vadd.f32 0.0, %v739
  %741 = vdwg.mxu0
  %v758 = vunpack.c.l.b16 %v533
  %v759 = vunpack.c.l.b16 %v534
  %v760 = vunpack.c.l.b16 %v535
  %v761 = vunpack.c.l.b16 %v536
  %v762 = vunpack.c.l.b16 %v537
  %v763 = vunpack.c.l.b16 %v538
  %v764 = vunpack.c.l.b16 %v539
  %v765 = vunpack.c.l.b16 %v540
  %v766 = vunpack.c.l.b16 %v541
  %v767 = vunpack.c.l.b16 %v542
  %v768 = vunpack.c.l.b16 %v543
  %v769 = vunpack.c.l.b16 %v544
  %v770 = vunpack.c.l.b16 %v545
  %v771 = vunpack.c.l.b16 %v546
  %v772 = vunpack.c.l.b16 %v547
  %v773 = vunpack.c.l.b16 %v548
  %v774 = vpack.c.b16 %v759, %v758
  %v775 = vpack.c.b16 %v761, %v760
  %v776 = vpack.c.b16 %v763, %v762
  %v777 = vpack.c.b16 %v765, %v764
  %v778 = vpack.c.b16 %v767, %v766
  %v779 = vpack.c.b16 %v769, %v768
  %v780 = vpack.c.b16 %v771, %v770
  %v781 = vpack.c.b16 %v773, %v772
  %v806 = vunpack.c.l.b16 %v549
  %v807 = vunpack.c.l.b16 %v550
  %v808 = vunpack.c.l.b16 %v551
  %v809 = vunpack.c.l.b16 %v552
  %v810 = vunpack.c.l.b16 %v553
  %v811 = vunpack.c.l.b16 %v554
  %v812 = vunpack.c.l.b16 %v555
  %v813 = vunpack.c.l.b16 %v556
  %v814 = vunpack.c.l.b16 %v557
  %v815 = vunpack.c.l.b16 %v558
  %v816 = vunpack.c.l.b16 %v559
  %v817 = vunpack.c.l.b16 %v560
  %v818 = vunpack.c.l.b16 %v561
  %v819 = vunpack.c.l.b16 %v562
  %v820 = vunpack.c.l.b16 %v563
  %v821 = vunpack.c.l.b16 %v564
  %v822 = vpack.c.b16 %v807, %v806
  %v823 = vpack.c.b16 %v809, %v808
  %v824 = vpack.c.b16 %v811, %v810
  %v825 = vpack.c.b16 %v813, %v812
  %v826 = vpack.c.b16 %v815, %v814
  %v827 = vpack.c.b16 %v817, %v816
  %v828 = vpack.c.b16 %v819, %v818
  %v829 = vpack.c.b16 %v821, %v820
  %838 = vmatpush.bf16.msra.mxu0 %v829
  %839 = vmatpush.bf16.msra.mxu0 %v828
  %840 = vmatpush.bf16.msra.mxu0 %v827
  %841 = vmatpush.bf16.msra.mxu0 %v826
  %842 = vmatpush.bf16.msra.mxu0 %v825
  %843 = vmatpush.bf16.msra.mxu0 %v824
  %844 = vmatpush.bf16.msra.mxu0 %v823
  %845 = vmatpush.bf16.msra.mxu0 %v822
  %846 = vmatmul.bf16.gmra.mxu0 %v774
  %v847 = vpop.f32.mrf.mxu0
  %v848 = vadd.f32 %v703, %v847
  %v849 = vpop.f32.mrf.mxu0
  %v850 = vadd.f32 %v705, %v849
  %851 = vmatmul.bf16.gmra.mxu0 %v775
  %v852 = vpop.f32.mrf.mxu0
  %v853 = vadd.f32 %v708, %v852
  %v854 = vpop.f32.mrf.mxu0
  %v855 = vadd.f32 %v710, %v854
  %856 = vmatmul.bf16.gmra.mxu0 %v776
  %v857 = vpop.f32.mrf.mxu0
  %v858 = vadd.f32 %v713, %v857
  %v859 = vpop.f32.mrf.mxu0
  %v860 = vadd.f32 %v715, %v859
  %861 = vmatmul.bf16.gmra.mxu0 %v777
  %v862 = vpop.f32.mrf.mxu0
  %v863 = vadd.f32 %v718, %v862
  %v864 = vpop.f32.mrf.mxu0
  %v865 = vadd.f32 %v720, %v864
  %866 = vmatmul.bf16.gmra.mxu0 %v778
  %v867 = vpop.f32.mrf.mxu0
  %v868 = vadd.f32 %v723, %v867
  %v869 = vpop.f32.mrf.mxu0
  %v870 = vadd.f32 %v725, %v869
  %871 = vmatmul.bf16.gmra.mxu0 %v779
  %v872 = vpop.f32.mrf.mxu0
  %v873 = vadd.f32 %v728, %v872
  %v874 = vpop.f32.mrf.mxu0
  %v875 = vadd.f32 %v730, %v874
  %876 = vmatmul.bf16.gmra.mxu0 %v780
  %v877 = vpop.f32.mrf.mxu0
  %v878 = vadd.f32 %v733, %v877
  %v879 = vpop.f32.mrf.mxu0
  %v880 = vadd.f32 %v735, %v879
  %881 = vmatmul.bf16.gmra.mxu0 %v781
  %v882 = vpop.f32.mrf.mxu0
  %v883 = vadd.f32 %v738, %v882
  %v884 = vpop.f32.mrf.mxu0
  %v885 = vadd.f32 %v740, %v884
  %886 = vdwg.mxu0
  %v887 = vpack.c.bf16 %v518, %v517
  %v888 = vpack.c.bf16 %v520, %v519
  %v889 = vpack.c.bf16 %v522, %v521
  %v890 = vpack.c.bf16 %v524, %v523
  %v891 = vpack.c.bf16 %v526, %v525
  %v892 = vpack.c.bf16 %v528, %v527
  %v893 = vpack.c.bf16 %v530, %v529
  %v894 = vpack.c.bf16 %v532, %v531
  %v895 = vld [vmem:[%s7] sm:$0xf]
  %v896 = vld [vmem:[%s7 + $0x4] sm:$0xf]
  %v897 = vld [vmem:[%s7 + $0x8] sm:$0xf]
  %v898 = vld [vmem:[%s7 + $0xc] sm:$0xf]
  %v899 = vld [vmem:[%s7 + $0x10] sm:$0xf]
  %v900 = vld [vmem:[%s7 + $0x14] sm:$0xf]
  %v901 = vld [vmem:[%s7 + $0x18] sm:$0xf]
  %v902 = vld [vmem:[%s7 + $0x1c] sm:$0xf]
  %v903 = vld [vmem:[%s7 + $0x20] sm:$0xf]
  %v904 = vld [vmem:[%s7 + $0x24] sm:$0xf]
  %v905 = vld [vmem:[%s7 + $0x28] sm:$0xf]
  %v906 = vld [vmem:[%s7 + $0x2c] sm:$0xf]
  %v907 = vld [vmem:[%s7 + $0x30] sm:$0xf]
  %v908 = vld [vmem:[%s7 + $0x34] sm:$0xf]
  %v909 = vld [vmem:[%s7 + $0x38] sm:$0xf]
  %v910 = vld [vmem:[%s7 + $0x3c] sm:$0xf]
  %v927 = vunpack.c.l.b16 %v895
  %v928 = vunpack.c.l.b16 %v896
  %v929 = vunpack.c.l.b16 %v897
  %v930 = vunpack.c.l.b16 %v898
  %v931 = vunpack.c.l.b16 %v899
  %v932 = vunpack.c.l.b16 %v900
  %v933 = vunpack.c.l.b16 %v901
  %v934 = vunpack.c.l.b16 %v902
  %v935 = vunpack.c.l.b16 %v903
  %v936 = vunpack.c.l.b16 %v904
  %v937 = vunpack.c.l.b16 %v905
  %v938 = vunpack.c.l.b16 %v906
  %v939 = vunpack.c.l.b16 %v907
  %v940 = vunpack.c.l.b16 %v908
  %v941 = vunpack.c.l.b16 %v909
  %v942 = vunpack.c.l.b16 %v910
  %v943 = vpack.c.b16 %v928, %v927
  %v944 = vpack.c.b16 %v930, %v929
  %v945 = vpack.c.b16 %v932, %v931
  %v946 = vpack.c.b16 %v934, %v933
  %v947 = vpack.c.b16 %v936, %v935
  %v948 = vpack.c.b16 %v938, %v937
  %v949 = vpack.c.b16 %v940, %v939
  %v950 = vpack.c.b16 %v942, %v941
  %959 = vmatpush.bf16.msra.mxu0 %v950
  %960 = vmatpush.bf16.msra.mxu0 %v949
  %961 = vmatpush.bf16.msra.mxu0 %v948
  %962 = vmatpush.bf16.msra.mxu0 %v947
  %963 = vmatpush.bf16.msra.mxu0 %v946
  %964 = vmatpush.bf16.msra.mxu0 %v945
  %965 = vmatpush.bf16.msra.mxu0 %v944
  %966 = vmatpush.bf16.msra.mxu0 %v943
  %967 = vmatmul.bf16.gmra.mxu0 %v887
  %v968 = vpop.f32.mrf.mxu0
  %v969 = vadd.f32 0.0, %v968
  %v970 = vpop.f32.mrf.mxu0
  %v971 = vadd.f32 0.0, %v970
  %972 = vmatmul.bf16.gmra.mxu0 %v888
  %v973 = vpop.f32.mrf.mxu0
  %v974 = vadd.f32 0.0, %v973
  %v975 = vpop.f32.mrf.mxu0
  %v976 = vadd.f32 0.0, %v975
  %977 = vmatmul.bf16.gmra.mxu0 %v889
  %v978 = vpop.f32.mrf.mxu0
  %v979 = vadd.f32 0.0, %v978
  %v980 = vpop.f32.mrf.mxu0
  %v981 = vadd.f32 0.0, %v980
  %982 = vmatmul.bf16.gmra.mxu0 %v890
  %v983 = vpop.f32.mrf.mxu0
  %v984 = vadd.f32 0.0, %v983
  %v985 = vpop.f32.mrf.mxu0
  %v986 = vadd.f32 0.0, %v985
  %987 = vmatmul.bf16.gmra.mxu0 %v891
  %v988 = vpop.f32.mrf.mxu0
  %v989 = vadd.f32 0.0, %v988
  %v990 = vpop.f32.mrf.mxu0
  %v991 = vadd.f32 0.0, %v990
  %992 = vmatmul.bf16.gmra.mxu0 %v892
  %v993 = vpop.f32.mrf.mxu0
  %v994 = vadd.f32 0.0, %v993
  %v995 = vpop.f32.mrf.mxu0
  %v996 = vadd.f32 0.0, %v995
  %997 = vmatmul.bf16.gmra.mxu0 %v893
  %v998 = vpop.f32.mrf.mxu0
  %v999 = vadd.f32 0.0, %v998
  %v1000 = vpop.f32.mrf.mxu0
  %v1001 = vadd.f32 0.0, %v1000
  %1002 = vmatmul.bf16.gmra.mxu0 %v894
  %v1003 = vpop.f32.mrf.mxu0
  %v1004 = vadd.f32 0.0, %v1003
  %v1005 = vpop.f32.mrf.mxu0
  %v1006 = vadd.f32 0.0, %v1005
  %1007 = vdwg.mxu0
  %v1008 = vadd.f32 %v848, %v969
  %v1009 = vadd.f32 %v850, %v971
  %v1010 = vadd.f32 %v853, %v974
  %v1011 = vadd.f32 %v855, %v976
  %v1012 = vadd.f32 %v858, %v979
  %v1013 = vadd.f32 %v860, %v981
  %v1014 = vadd.f32 %v863, %v984
  %v1015 = vadd.f32 %v865, %v986
  %v1016 = vadd.f32 %v868, %v989
  %v1017 = vadd.f32 %v870, %v991
  %v1018 = vadd.f32 %v873, %v994
  %v1019 = vadd.f32 %v875, %v996
  %v1020 = vadd.f32 %v878, %v999
  %v1021 = vadd.f32 %v880, %v1001
  %v1022 = vadd.f32 %v883, %v1004
  %v1023 = vadd.f32 %v885, %v1006
  %v1024 = vld [vmem:[%s8] sm:$0x1]
  %v1026 = vperm.slane %v1024, 0
  %v1028 = vadd.f32 %v1008, %v1026
  %v1029 = vadd.f32 %v1009, %v1026
  %v1030 = vadd.f32 %v1010, %v1026
  %v1031 = vadd.f32 %v1011, %v1026
  %v1032 = vadd.f32 %v1012, %v1026
  %v1033 = vadd.f32 %v1013, %v1026
  %v1034 = vadd.f32 %v1014, %v1026
  %v1035 = vadd.f32 %v1015, %v1026
  %v1036 = vadd.f32 %v1016, %v1026
  %v1037 = vadd.f32 %v1017, %v1026
  %v1038 = vadd.f32 %v1018, %v1026
  %v1039 = vadd.f32 %v1019, %v1026
  %v1040 = vadd.f32 %v1020, %v1026
  %v1041 = vadd.f32 %v1021, %v1026
  %v1042 = vadd.f32 %v1022, %v1026
  %v1043 = vadd.f32 %v1023, %v1026
  %v1044 = vxor.u32 %v1028, 2147483648
  %v1045 = vxor.u32 %v1029, 2147483648
  %v1046 = vxor.u32 %v1030, 2147483648
  %v1047 = vxor.u32 %v1031, 2147483648
  %v1048 = vxor.u32 %v1032, 2147483648
  %v1049 = vxor.u32 %v1033, 2147483648
  %v1050 = vxor.u32 %v1034, 2147483648
  %v1051 = vxor.u32 %v1035, 2147483648
  %v1052 = vxor.u32 %v1036, 2147483648
  %v1053 = vxor.u32 %v1037, 2147483648
  %v1054 = vxor.u32 %v1038, 2147483648
  %v1055 = vxor.u32 %v1039, 2147483648
  %v1056 = vxor.u32 %v1040, 2147483648
  %v1057 = vxor.u32 %v1041, 2147483648
  %v1058 = vxor.u32 %v1042, 2147483648
  %v1059 = vxor.u32 %v1043, 2147483648
  %v1060 = vmul.f32 %v1044, 1.442695
  %v1061 = vpow.pop %v1060
  %v1062 = vmul.f32 %v1045, 1.442695
  %v1063 = vpow.pop %v1062
  %v1064 = vmul.f32 %v1046, 1.442695
  %v1065 = vpow.pop %v1064
  %v1066 = vmul.f32 %v1047, 1.442695
  %v1067 = vpow.pop %v1066
  %v1068 = vmul.f32 %v1048, 1.442695
  %v1069 = vpow.pop %v1068
  %v1070 = vmul.f32 %v1049, 1.442695
  %v1071 = vpow.pop %v1070
  %v1072 = vmul.f32 %v1050, 1.442695
  %v1073 = vpow.pop %v1072
  %v1074 = vmul.f32 %v1051, 1.442695
  %v1075 = vpow.pop %v1074
  %v1076 = vmul.f32 %v1052, 1.442695
  %v1077 = vpow.pop %v1076
  %v1078 = vmul.f32 %v1053, 1.442695
  %v1079 = vpow.pop %v1078
  %v1080 = vmul.f32 %v1054, 1.442695
  %v1081 = vpow.pop %v1080
  %v1082 = vmul.f32 %v1055, 1.442695
  %v1083 = vpow.pop %v1082
  %v1084 = vmul.f32 %v1056, 1.442695
  %v1085 = vpow.pop %v1084
  %v1086 = vmul.f32 %v1057, 1.442695
  %v1087 = vpow.pop %v1086
  %v1088 = vmul.f32 %v1058, 1.442695
  %v1089 = vpow.pop %v1088
  %v1090 = vmul.f32 %v1059, 1.442695
  %v1091 = vpow.pop %v1090
  %v1092 = vadd.f32 %v1061, 1.0
  %v1093 = vadd.f32 %v1063, 1.0
  %v1094 = vadd.f32 %v1065, 1.0
  %v1095 = vadd.f32 %v1067, 1.0
  %v1096 = vadd.f32 %v1069, 1.0
  %v1097 = vadd.f32 %v1071, 1.0
  %v1098 = vadd.f32 %v1073, 1.0
  %v1099 = vadd.f32 %v1075, 1.0
  %v1100 = vadd.f32 %v1077, 1.0
  %v1101 = vadd.f32 %v1079, 1.0
  %v1102 = vadd.f32 %v1081, 1.0
  %v1103 = vadd.f32 %v1083, 1.0
  %v1104 = vadd.f32 %v1085, 1.0
  %v1105 = vadd.f32 %v1087, 1.0
  %v1106 = vadd.f32 %v1089, 1.0
  %v1107 = vadd.f32 %v1091, 1.0
  %v1108 = vrcp.pop %v1092
  %v1109 = vmul.f32 %v1092, %v1108
  %v1110 = vsub.f32 1.0, %v1109
  %v1111 = vmul.f32 %v1108, %v1110
  %v1112 = vadd.f32 %v1108, %v1111
  %vm1113 = vweird.f32 %v1092
  %vm1114 = vweird.f32 %v1108
  %vm1115 = vmor %vm1113, %vm1114
  %v1116 = vsel %vm1115, %v1108, %v1112
  %v1117 = vand.u32 2147483647, %v1092
  %vm1118 = vcmp.eq.f32.partialorder %v1117, 8.507059e+37
  %v1119 = vand.u32 %v1092, 2147483648
  %v1120 = vor.u32 1.1754944e-38, %v1119
  %v1121 = vsel %vm1118, %v1120, %v1116
  %v1122 = vmul.f32 1.0, %v1121
  %v1123 = vrcp.pop %v1093
  %v1124 = vmul.f32 %v1093, %v1123
  %v1125 = vsub.f32 1.0, %v1124
  %v1126 = vmul.f32 %v1123, %v1125
  %v1127 = vadd.f32 %v1123, %v1126
  %vm1128 = vweird.f32 %v1093
  %vm1129 = vweird.f32 %v1123
  %vm1130 = vmor %vm1128, %vm1129
  %v1131 = vsel %vm1130, %v1123, %v1127
  %v1132 = vand.u32 2147483647, %v1093
  %vm1133 = vcmp.eq.f32.partialorder %v1132, 8.507059e+37
  %v1134 = vand.u32 %v1093, 2147483648
  %v1135 = vor.u32 1.1754944e-38, %v1134
  %v1136 = vsel %vm1133, %v1135, %v1131
  %v1137 = vmul.f32 1.0, %v1136
  %v1138 = vrcp.pop %v1094
  %v1139 = vmul.f32 %v1094, %v1138
  %v1140 = vsub.f32 1.0, %v1139
  %v1141 = vmul.f32 %v1138, %v1140
  %v1142 = vadd.f32 %v1138, %v1141
  %vm1143 = vweird.f32 %v1094
  %vm1144 = vweird.f32 %v1138
  %vm1145 = vmor %vm1143, %vm1144
  %v1146 = vsel %vm1145, %v1138, %v1142
  %v1147 = vand.u32 2147483647, %v1094
  %vm1148 = vcmp.eq.f32.partialorder %v1147, 8.507059e+37
  %v1149 = vand.u32 %v1094, 2147483648
  %v1150 = vor.u32 1.1754944e-38, %v1149
  %v1151 = vsel %vm1148, %v1150, %v1146
  %v1152 = vmul.f32 1.0, %v1151
  %v1153 = vrcp.pop %v1095
  %v1154 = vmul.f32 %v1095, %v1153
  %v1155 = vsub.f32 1.0, %v1154
  %v1156 = vmul.f32 %v1153, %v1155
  %v1157 = vadd.f32 %v1153, %v1156
  %vm1158 = vweird.f32 %v1095
  %vm1159 = vweird.f32 %v1153
  %vm1160 = vmor %vm1158, %vm1159
  %v1161 = vsel %vm1160, %v1153, %v1157
  %v1162 = vand.u32 2147483647, %v1095
  %vm1163 = vcmp.eq.f32.partialorder %v1162, 8.507059e+37
  %v1164 = vand.u32 %v1095, 2147483648
  %v1165 = vor.u32 1.1754944e-38, %v1164
  %v1166 = vsel %vm1163, %v1165, %v1161
  %v1167 = vmul.f32 1.0, %v1166
  %v1168 = vrcp.pop %v1096
  %v1169 = vmul.f32 %v1096, %v1168
  %v1170 = vsub.f32 1.0, %v1169
  %v1171 = vmul.f32 %v1168, %v1170
  %v1172 = vadd.f32 %v1168, %v1171
  %vm1173 = vweird.f32 %v1096
  %vm1174 = vweird.f32 %v1168
  %vm1175 = vmor %vm1173, %vm1174
  %v1176 = vsel %vm1175, %v1168, %v1172
  %v1177 = vand.u32 2147483647, %v1096
  %vm1178 = vcmp.eq.f32.partialorder %v1177, 8.507059e+37
  %v1179 = vand.u32 %v1096, 2147483648
  %v1180 = vor.u32 1.1754944e-38, %v1179
  %v1181 = vsel %vm1178, %v1180, %v1176
  %v1182 = vmul.f32 1.0, %v1181
  %v1183 = vrcp.pop %v1097
  %v1184 = vmul.f32 %v1097, %v1183
  %v1185 = vsub.f32 1.0, %v1184
  %v1186 = vmul.f32 %v1183, %v1185
  %v1187 = vadd.f32 %v1183, %v1186
  %vm1188 = vweird.f32 %v1097
  %vm1189 = vweird.f32 %v1183
  %vm1190 = vmor %vm1188, %vm1189
  %v1191 = vsel %vm1190, %v1183, %v1187
  %v1192 = vand.u32 2147483647, %v1097
  %vm1193 = vcmp.eq.f32.partialorder %v1192, 8.507059e+37
  %v1194 = vand.u32 %v1097, 2147483648
  %v1195 = vor.u32 1.1754944e-38, %v1194
  %v1196 = vsel %vm1193, %v1195, %v1191
  %v1197 = vmul.f32 1.0, %v1196
  %v1198 = vrcp.pop %v1098
  %v1199 = vmul.f32 %v1098, %v1198
  %v1200 = vsub.f32 1.0, %v1199
  %v1201 = vmul.f32 %v1198, %v1200
  %v1202 = vadd.f32 %v1198, %v1201
  %vm1203 = vweird.f32 %v1098
  %vm1204 = vweird.f32 %v1198
  %vm1205 = vmor %vm1203, %vm1204
  %v1206 = vsel %vm1205, %v1198, %v1202
  %v1207 = vand.u32 2147483647, %v1098
  %vm1208 = vcmp.eq.f32.partialorder %v1207, 8.507059e+37
  %v1209 = vand.u32 %v1098, 2147483648
  %v1210 = vor.u32 1.1754944e-38, %v1209
  %v1211 = vsel %vm1208, %v1210, %v1206
  %v1212 = vmul.f32 1.0, %v1211
  %v1213 = vrcp.pop %v1099
  %v1214 = vmul.f32 %v1099, %v1213
  %v1215 = vsub.f32 1.0, %v1214
  %v1216 = vmul.f32 %v1213, %v1215
  %v1217 = vadd.f32 %v1213, %v1216
  %vm1218 = vweird.f32 %v1099
  %vm1219 = vweird.f32 %v1213
  %vm1220 = vmor %vm1218, %vm1219
  %v1221 = vsel %vm1220, %v1213, %v1217
  %v1222 = vand.u32 2147483647, %v1099
  %vm1223 = vcmp.eq.f32.partialorder %v1222, 8.507059e+37
  %v1224 = vand.u32 %v1099, 2147483648
  %v1225 = vor.u32 1.1754944e-38, %v1224
  %v1226 = vsel %vm1223, %v1225, %v1221
  %v1227 = vmul.f32 1.0, %v1226
  %v1228 = vrcp.pop %v1100
  %v1229 = vmul.f32 %v1100, %v1228
  %v1230 = vsub.f32 1.0, %v1229
  %v1231 = vmul.f32 %v1228, %v1230
  %v1232 = vadd.f32 %v1228, %v1231
  %vm1233 = vweird.f32 %v1100
  %vm1234 = vweird.f32 %v1228
  %vm1235 = vmor %vm1233, %vm1234
  %v1236 = vsel %vm1235, %v1228, %v1232
  %v1237 = vand.u32 2147483647, %v1100
  %vm1238 = vcmp.eq.f32.partialorder %v1237, 8.507059e+37
  %v1239 = vand.u32 %v1100, 2147483648
  %v1240 = vor.u32 1.1754944e-38, %v1239
  %v1241 = vsel %vm1238, %v1240, %v1236
  %v1242 = vmul.f32 1.0, %v1241
  %v1243 = vrcp.pop %v1101
  %v1244 = vmul.f32 %v1101, %v1243
  %v1245 = vsub.f32 1.0, %v1244
  %v1246 = vmul.f32 %v1243, %v1245
  %v1247 = vadd.f32 %v1243, %v1246
  %vm1248 = vweird.f32 %v1101
  %vm1249 = vweird.f32 %v1243
  %vm1250 = vmor %vm1248, %vm1249
  %v1251 = vsel %vm1250, %v1243, %v1247
  %v1252 = vand.u32 2147483647, %v1101
  %vm1253 = vcmp.eq.f32.partialorder %v1252, 8.507059e+37
  %v1254 = vand.u32 %v1101, 2147483648
  %v1255 = vor.u32 1.1754944e-38, %v1254
  %v1256 = vsel %vm1253, %v1255, %v1251
  %v1257 = vmul.f32 1.0, %v1256
  %v1258 = vrcp.pop %v1102
  %v1259 = vmul.f32 %v1102, %v1258
  %v1260 = vsub.f32 1.0, %v1259
  %v1261 = vmul.f32 %v1258, %v1260
  %v1262 = vadd.f32 %v1258, %v1261
  %vm1263 = vweird.f32 %v1102
  %vm1264 = vweird.f32 %v1258
  %vm1265 = vmor %vm1263, %vm1264
  %v1266 = vsel %vm1265, %v1258, %v1262
  %v1267 = vand.u32 2147483647, %v1102
  %vm1268 = vcmp.eq.f32.partialorder %v1267, 8.507059e+37
  %v1269 = vand.u32 %v1102, 2147483648
  %v1270 = vor.u32 1.1754944e-38, %v1269
  %v1271 = vsel %vm1268, %v1270, %v1266
  %v1272 = vmul.f32 1.0, %v1271
  %v1273 = vrcp.pop %v1103
  %v1274 = vmul.f32 %v1103, %v1273
  %v1275 = vsub.f32 1.0, %v1274
  %v1276 = vmul.f32 %v1273, %v1275
  %v1277 = vadd.f32 %v1273, %v1276
  %vm1278 = vweird.f32 %v1103
  %vm1279 = vweird.f32 %v1273
  %vm1280 = vmor %vm1278, %vm1279
  %v1281 = vsel %vm1280, %v1273, %v1277
  %v1282 = vand.u32 2147483647, %v1103
  %vm1283 = vcmp.eq.f32.partialorder %v1282, 8.507059e+37
  %v1284 = vand.u32 %v1103, 2147483648
  %v1285 = vor.u32 1.1754944e-38, %v1284
  %v1286 = vsel %vm1283, %v1285, %v1281
  %v1287 = vmul.f32 1.0, %v1286
  %v1288 = vrcp.pop %v1104
  %v1289 = vmul.f32 %v1104, %v1288
  %v1290 = vsub.f32 1.0, %v1289
  %v1291 = vmul.f32 %v1288, %v1290
  %v1292 = vadd.f32 %v1288, %v1291
  %vm1293 = vweird.f32 %v1104
  %vm1294 = vweird.f32 %v1288
  %vm1295 = vmor %vm1293, %vm1294
  %v1296 = vsel %vm1295, %v1288, %v1292
  %v1297 = vand.u32 2147483647, %v1104
  %vm1298 = vcmp.eq.f32.partialorder %v1297, 8.507059e+37
  %v1299 = vand.u32 %v1104, 2147483648
  %v1300 = vor.u32 1.1754944e-38, %v1299
  %v1301 = vsel %vm1298, %v1300, %v1296
  %v1302 = vmul.f32 1.0, %v1301
  %v1303 = vrcp.pop %v1105
  %v1304 = vmul.f32 %v1105, %v1303
  %v1305 = vsub.f32 1.0, %v1304
  %v1306 = vmul.f32 %v1303, %v1305
  %v1307 = vadd.f32 %v1303, %v1306
  %vm1308 = vweird.f32 %v1105
  %vm1309 = vweird.f32 %v1303
  %vm1310 = vmor %vm1308, %vm1309
  %v1311 = vsel %vm1310, %v1303, %v1307
  %v1312 = vand.u32 2147483647, %v1105
  %vm1313 = vcmp.eq.f32.partialorder %v1312, 8.507059e+37
  %v1314 = vand.u32 %v1105, 2147483648
  %v1315 = vor.u32 1.1754944e-38, %v1314
  %v1316 = vsel %vm1313, %v1315, %v1311
  %v1317 = vmul.f32 1.0, %v1316
  %v1318 = vrcp.pop %v1106
  %v1319 = vmul.f32 %v1106, %v1318
  %v1320 = vsub.f32 1.0, %v1319
  %v1321 = vmul.f32 %v1318, %v1320
  %v1322 = vadd.f32 %v1318, %v1321
  %vm1323 = vweird.f32 %v1106
  %vm1324 = vweird.f32 %v1318
  %vm1325 = vmor %vm1323, %vm1324
  %v1326 = vsel %vm1325, %v1318, %v1322
  %v1327 = vand.u32 2147483647, %v1106
  %vm1328 = vcmp.eq.f32.partialorder %v1327, 8.507059e+37
  %v1329 = vand.u32 %v1106, 2147483648
  %v1330 = vor.u32 1.1754944e-38, %v1329
  %v1331 = vsel %vm1328, %v1330, %v1326
  %v1332 = vmul.f32 1.0, %v1331
  %v1333 = vrcp.pop %v1107
  %v1334 = vmul.f32 %v1107, %v1333
  %v1335 = vsub.f32 1.0, %v1334
  %v1336 = vmul.f32 %v1333, %v1335
  %v1337 = vadd.f32 %v1333, %v1336
  %vm1338 = vweird.f32 %v1107
  %vm1339 = vweird.f32 %v1333
  %vm1340 = vmor %vm1338, %vm1339
  %v1341 = vsel %vm1340, %v1333, %v1337
  %v1342 = vand.u32 2147483647, %v1107
  %vm1343 = vcmp.eq.f32.partialorder %v1342, 8.507059e+37
  %v1344 = vand.u32 %v1107, 2147483648
  %v1345 = vor.u32 1.1754944e-38, %v1344
  %v1346 = vsel %vm1343, %v1345, %v1341
  %v1347 = vmul.f32 1.0, %v1346
  %v1348 = vmul.f32 %v1028, %v1122
  %v1349 = vmul.f32 %v1029, %v1137
  %v1350 = vmul.f32 %v1030, %v1152
  %v1351 = vmul.f32 %v1031, %v1167
  %v1352 = vmul.f32 %v1032, %v1182
  %v1353 = vmul.f32 %v1033, %v1197
  %v1354 = vmul.f32 %v1034, %v1212
  %v1355 = vmul.f32 %v1035, %v1227
  %v1356 = vmul.f32 %v1036, %v1242
  %v1357 = vmul.f32 %v1037, %v1257
  %v1358 = vmul.f32 %v1038, %v1272
  %v1359 = vmul.f32 %v1039, %v1287
  %v1360 = vmul.f32 %v1040, %v1302
  %v1361 = vmul.f32 %v1041, %v1317
  %v1362 = vmul.f32 %v1042, %v1332
  %v1363 = vmul.f32 %v1043, %v1347
  %1364 = vst [vmem:[%s9] sm:$0xff] %v1348
  %1365 = vst [vmem:[%s9 + $0x8] sm:$0xff] %v1349
  %1366 = vst [vmem:[%s9 + $0x10] sm:$0xff] %v1350
  %1367 = vst [vmem:[%s9 + $0x18] sm:$0xff] %v1351
  %1368 = vst [vmem:[%s9 + $0x20] sm:$0xff] %v1352
  %1369 = vst [vmem:[%s9 + $0x28] sm:$0xff] %v1353
  %1370 = vst [vmem:[%s9 + $0x30] sm:$0xff] %v1354
  %1371 = vst [vmem:[%s9 + $0x38] sm:$0xff] %v1355
  %1372 = vst [vmem:[%s9 + $0x40] sm:$0xff] %v1356
  %1373 = vst [vmem:[%s9 + $0x48] sm:$0xff] %v1357
  %1374 = vst [vmem:[%s9 + $0x50] sm:$0xff] %v1358
  %1375 = vst [vmem:[%s9 + $0x58] sm:$0xff] %v1359
  %1376 = vst [vmem:[%s9 + $0x60] sm:$0xff] %v1360
  %1377 = vst [vmem:[%s9 + $0x68] sm:$0xff] %v1361
  %1378 = vst [vmem:[%s9 + $0x70] sm:$0xff] %v1362
  %1379 = vst [vmem:[%s9 + $0x78] sm:$0xff] %v1363
  // Predicated region
  $region38: #{forward.24} parent=0 // pred_check
    _
  $region39: #{forward.24} parent=0 // pred_check_branch
    %1381 = sbr.rel (0) target = $region41
  $region40: #{forward.24} parent=0 // pred_region
    _
  $region41: #{forward.24} parent=0 // pred_fallthru
    _
  // Predicated region
  $region42: #{forward.24} parent=0 // pred_check
    _
  $region43: #{forward.24} parent=0 // pred_check_branch
    %1383 = sbr.rel (0) target = $region45
  $region44: #{forward.24} parent=0 // pred_region
    _
  $region45: #{forward.24} parent=0 // pred_fallthru
    _

// kernel: forward.33
$region0: #{forward.33}
  #allocation0 [shape = 'u32[]', space=smem, size = 0x4, offset = 0x4, fixed_abs, tag = 'smem constant byte address 0x4 - core index']
  #allocation1 [shape = 'u32[72,128]{1,0:T(1,128)}', space=vmem, size = 0x9000, scoped, tag = 'internal scratch']
  %s0 = inlined_call_operand.vmem [shape: f32[128,128], index: 0, kind: input, shape index: {}]
  %s1 = inlined_call_operand.vmem [shape: bf16[128,128], index: 1, kind: input, shape index: {}]
  %s2 = inlined_call_operand.vmem [shape: f32[128,128], index: 2, kind: input, shape index: {}]
  %s3 = inlined_call_operand.vmem [shape: f32[128,128], index: 3, kind: output, shape index: {}]
  %s4 = sld [smem:[#allocation0]]
  $region22: #{forward.33} parent=0
    _
  %s6 = ssub.s32 1, %s4
  %s7 = scalar_select 0, %s6, %s4
  // Predicated region
  $region2: #{forward.33} parent=0 // pred_check
    _
  $region3: #{forward.33} parent=0 // pred_check_branch
    %9 = sbr.rel (0) target = $region5
  $region4: #{forward.33} parent=0 // pred_region
    _
  $region5: #{forward.33} parent=0 // pred_fallthru
    _
  // Predicated region
  $region6: #{forward.33} parent=0 // pred_check
    _
  $region7: #{forward.33} parent=0 // pred_check_branch
    %11 = sbr.rel (0) target = $region9
  $region8: #{forward.33} parent=0 // pred_region
    _
  $region9: #{forward.33} parent=0 // pred_fallthru
    _
  // Predicated region
  $region10: #{forward.33} parent=0 // pred_check
    _
  $region11: #{forward.33} parent=0 // pred_check_branch
    %13 = sbr.rel (0) target = $region13
  $region12: #{forward.33} parent=0 // pred_region
    _
  $region13: #{forward.33} parent=0 // pred_fallthru
    _
  %v14 = vld [vmem:[%s0] sm:$0xff]
  %v15 = vld [vmem:[%s0 + $0x8] sm:$0xff]
  %v16 = vld [vmem:[%s0 + $0x10] sm:$0xff]
  %v17 = vld [vmem:[%s0 + $0x18] sm:$0xff]
  %v18 = vld [vmem:[%s0 + $0x20] sm:$0xff]
  %v19 = vld [vmem:[%s0 + $0x28] sm:$0xff]
  %v20 = vld [vmem:[%s0 + $0x30] sm:$0xff]
  %v21 = vld [vmem:[%s0 + $0x38] sm:$0xff]
  %v22 = vld [vmem:[%s0 + $0x40] sm:$0xff]
  %v23 = vld [vmem:[%s0 + $0x48] sm:$0xff]
  %v24 = vld [vmem:[%s0 + $0x50] sm:$0xff]
  %v25 = vld [vmem:[%s0 + $0x58] sm:$0xff]
  %v26 = vld [vmem:[%s0 + $0x60] sm:$0xff]
  %v27 = vld [vmem:[%s0 + $0x68] sm:$0xff]
  %v28 = vld [vmem:[%s0 + $0x70] sm:$0xff]
  %v29 = vld [vmem:[%s0 + $0x78] sm:$0xff]
  %v30 = vpack.c.bf16 %v15, %v14
  %v31 = vpack.c.bf16 %v17, %v16
  %v32 = vpack.c.bf16 %v19, %v18
  %v33 = vpack.c.bf16 %v21, %v20
  %v34 = vpack.c.bf16 %v23, %v22
  %v35 = vpack.c.bf16 %v25, %v24
  %v36 = vpack.c.bf16 %v27, %v26
  %v37 = vpack.c.bf16 %v29, %v28
  %v38 = vld [vmem:[%s1] sm:$0xf]
  %v39 = vld [vmem:[%s1 + $0x4] sm:$0xf]
  %v40 = vld [vmem:[%s1 + $0x8] sm:$0xf]
  %v41 = vld [vmem:[%s1 + $0xc] sm:$0xf]
  %v42 = vld [vmem:[%s1 + $0x10] sm:$0xf]
  %v43 = vld [vmem:[%s1 + $0x14] sm:$0xf]
  %v44 = vld [vmem:[%s1 + $0x18] sm:$0xf]
  %v45 = vld [vmem:[%s1 + $0x1c] sm:$0xf]
  %v46 = vld [vmem:[%s1 + $0x20] sm:$0xf]
  %v47 = vld [vmem:[%s1 + $0x24] sm:$0xf]
  %v48 = vld [vmem:[%s1 + $0x28] sm:$0xf]
  %v49 = vld [vmem:[%s1 + $0x2c] sm:$0xf]
  %v50 = vld [vmem:[%s1 + $0x30] sm:$0xf]
  %v51 = vld [vmem:[%s1 + $0x34] sm:$0xf]
  %v52 = vld [vmem:[%s1 + $0x38] sm:$0xf]
  %v53 = vld [vmem:[%s1 + $0x3c] sm:$0xf]
  %v70 = vunpack.c.l.b16 %v38
  %v71 = vunpack.c.l.b16 %v39
  %v72 = vunpack.c.l.b16 %v40
  %v73 = vunpack.c.l.b16 %v41
  %v74 = vunpack.c.l.b16 %v42
  %v75 = vunpack.c.l.b16 %v43
  %v76 = vunpack.c.l.b16 %v44
  %v77 = vunpack.c.l.b16 %v45
  %v78 = vunpack.c.l.b16 %v46
  %v79 = vunpack.c.l.b16 %v47
  %v80 = vunpack.c.l.b16 %v48
  %v81 = vunpack.c.l.b16 %v49
  %v82 = vunpack.c.l.b16 %v50
  %v83 = vunpack.c.l.b16 %v51
  %v84 = vunpack.c.l.b16 %v52
  %v85 = vunpack.c.l.b16 %v53
  %v86 = vpack.c.b16 %v71, %v70
  %v87 = vpack.c.b16 %v73, %v72
  %v88 = vpack.c.b16 %v75, %v74
  %v89 = vpack.c.b16 %v77, %v76
  %v90 = vpack.c.b16 %v79, %v78
  %v91 = vpack.c.b16 %v81, %v80
  %v92 = vpack.c.b16 %v83, %v82
  %v93 = vpack.c.b16 %v85, %v84
  %102 = vmatpush.bf16.msra.mxu0 %v93
  %103 = vmatpush.bf16.msra.mxu0 %v92
  %104 = vmatpush.bf16.msra.mxu0 %v91
  %105 = vmatpush.bf16.msra.mxu0 %v90
  %106 = vmatpush.bf16.msra.mxu0 %v89
  %107 = vmatpush.bf16.msra.mxu0 %v88
  %108 = vmatpush.bf16.msra.mxu0 %v87
  %109 = vmatpush.bf16.msra.mxu0 %v86
  %110 = vmatmul.bf16.gmra.mxu0 %v30
  %v111 = vpop.f32.mrf.mxu0
  %v112 = vadd.f32 0.0, %v111
  %v113 = vpop.f32.mrf.mxu0
  %v114 = vadd.f32 0.0, %v113
  %115 = vmatmul.bf16.gmra.mxu0 %v31
  %v116 = vpop.f32.mrf.mxu0
  %v117 = vadd.f32 0.0, %v116
  %v118 = vpop.f32.mrf.mxu0
  %v119 = vadd.f32 0.0, %v118
  %120 = vmatmul.bf16.gmra.mxu0 %v32
  %v121 = vpop.f32.mrf.mxu0
  %v122 = vadd.f32 0.0, %v121
  %v123 = vpop.f32.mrf.mxu0
  %v124 = vadd.f32 0.0, %v123
  %125 = vmatmul.bf16.gmra.mxu0 %v33
  %v126 = vpop.f32.mrf.mxu0
  %v127 = vadd.f32 0.0, %v126
  %v128 = vpop.f32.mrf.mxu0
  %v129 = vadd.f32 0.0, %v128
  %130 = vmatmul.bf16.gmra.mxu0 %v34
  %v131 = vpop.f32.mrf.mxu0
  %v132 = vadd.f32 0.0, %v131
  %v133 = vpop.f32.mrf.mxu0
  %v134 = vadd.f32 0.0, %v133
  %135 = vmatmul.bf16.gmra.mxu0 %v35
  %v136 = vpop.f32.mrf.mxu0
  %v137 = vadd.f32 0.0, %v136
  %v138 = vpop.f32.mrf.mxu0
  %v139 = vadd.f32 0.0, %v138
  %140 = vmatmul.bf16.gmra.mxu0 %v36
  %v141 = vpop.f32.mrf.mxu0
  %v142 = vadd.f32 0.0, %v141
  %v143 = vpop.f32.mrf.mxu0
  %v144 = vadd.f32 0.0, %v143
  %145 = vmatmul.bf16.gmra.mxu0 %v37
  %v146 = vpop.f32.mrf.mxu0
  %v147 = vadd.f32 0.0, %v146
  %v148 = vpop.f32.mrf.mxu0
  %v149 = vadd.f32 0.0, %v148
  %150 = vdwg.mxu0
  %v151 = vxor.u32 %v112, 2147483648
  %v152 = vxor.u32 %v114, 2147483648
  %v153 = vxor.u32 %v117, 2147483648
  %v154 = vxor.u32 %v119, 2147483648
  %v155 = vxor.u32 %v122, 2147483648
  %v156 = vxor.u32 %v124, 2147483648
  %v157 = vxor.u32 %v127, 2147483648
  %v158 = vxor.u32 %v129, 2147483648
  %v159 = vxor.u32 %v132, 2147483648
  %v160 = vxor.u32 %v134, 2147483648
  %v161 = vxor.u32 %v137, 2147483648
  %v162 = vxor.u32 %v139, 2147483648
  %v163 = vxor.u32 %v142, 2147483648
  %v164 = vxor.u32 %v144, 2147483648
  %v165 = vxor.u32 %v147, 2147483648
  %v166 = vxor.u32 %v149, 2147483648
  %v167 = vmul.f32 %v151, 1.442695
  %v168 = vpow.pop %v167
  %v169 = vmul.f32 %v152, 1.442695
  %v170 = vpow.pop %v169
  %v171 = vmul.f32 %v153, 1.442695
  %v172 = vpow.pop %v171
  %v173 = vmul.f32 %v154, 1.442695
  %v174 = vpow.pop %v173
  %v175 = vmul.f32 %v155, 1.442695
  %v176 = vpow.pop %v175
  %v177 = vmul.f32 %v156, 1.442695
  %v178 = vpow.pop %v177
  %v179 = vmul.f32 %v157, 1.442695
  %v180 = vpow.pop %v179
  %v181 = vmul.f32 %v158, 1.442695
  %v182 = vpow.pop %v181
  %v183 = vmul.f32 %v159, 1.442695
  %v184 = vpow.pop %v183
  %v185 = vmul.f32 %v160, 1.442695
  %v186 = vpow.pop %v185
  %v187 = vmul.f32 %v161, 1.442695
  %v188 = vpow.pop %v187
  %v189 = vmul.f32 %v162, 1.442695
  %v190 = vpow.pop %v189
  %v191 = vmul.f32 %v163, 1.442695
  %v192 = vpow.pop %v191
  %v193 = vmul.f32 %v164, 1.442695
  %v194 = vpow.pop %v193
  %v195 = vmul.f32 %v165, 1.442695
  %v196 = vpow.pop %v195
  %v197 = vmul.f32 %v166, 1.442695
  %v198 = vpow.pop %v197
  %v199 = vadd.f32 %v168, 1.0
  %v200 = vadd.f32 %v170, 1.0
  %v201 = vadd.f32 %v172, 1.0
  %v202 = vadd.f32 %v174, 1.0
  %v203 = vadd.f32 %v176, 1.0
  %v204 = vadd.f32 %v178, 1.0
  %v205 = vadd.f32 %v180, 1.0
  %v206 = vadd.f32 %v182, 1.0
  %v207 = vadd.f32 %v184, 1.0
  %v208 = vadd.f32 %v186, 1.0
  %v209 = vadd.f32 %v188, 1.0
  %v210 = vadd.f32 %v190, 1.0
  %v211 = vadd.f32 %v192, 1.0
  %v212 = vadd.f32 %v194, 1.0
  %v213 = vadd.f32 %v196, 1.0
  %v214 = vadd.f32 %v198, 1.0
  %v215 = vrcp.pop %v199
  %v216 = vmul.f32 %v199, %v215
  %v217 = vsub.f32 1.0, %v216
  %v218 = vmul.f32 %v215, %v217
  %v219 = vadd.f32 %v215, %v218
  %vm220 = vweird.f32 %v199
  %vm221 = vweird.f32 %v215
  %vm222 = vmor %vm220, %vm221
  %v223 = vsel %vm222, %v215, %v219
  %v224 = vand.u32 2147483647, %v199
  %vm225 = vcmp.eq.f32.partialorder %v224, 8.507059e+37
  %v226 = vand.u32 %v199, 2147483648
  %v227 = vor.u32 1.1754944e-38, %v226
  %v228 = vsel %vm225, %v227, %v223
  %v229 = vmul.f32 1.0, %v228
  %v230 = vrcp.pop %v200
  %v231 = vmul.f32 %v200, %v230
  %v232 = vsub.f32 1.0, %v231
  %v233 = vmul.f32 %v230, %v232
  %v234 = vadd.f32 %v230, %v233
  %vm235 = vweird.f32 %v200
  %vm236 = vweird.f32 %v230
  %vm237 = vmor %vm235, %vm236
  %v238 = vsel %vm237, %v230, %v234
  %v239 = vand.u32 2147483647, %v200
  %vm240 = vcmp.eq.f32.partialorder %v239, 8.507059e+37
  %v241 = vand.u32 %v200, 2147483648
  %v242 = vor.u32 1.1754944e-38, %v241
  %v243 = vsel %vm240, %v242, %v238
  %v244 = vmul.f32 1.0, %v243
  %v245 = vrcp.pop %v201
  %v246 = vmul.f32 %v201, %v245
  %v247 = vsub.f32 1.0, %v246
  %v248 = vmul.f32 %v245, %v247
  %v249 = vadd.f32 %v245, %v248
  %vm250 = vweird.f32 %v201
  %vm251 = vweird.f32 %v245
  %vm252 = vmor %vm250, %vm251
  %v253 = vsel %vm252, %v245, %v249
  %v254 = vand.u32 2147483647, %v201
  %vm255 = vcmp.eq.f32.partialorder %v254, 8.507059e+37
  %v256 = vand.u32 %v201, 2147483648
  %v257 = vor.u32 1.1754944e-38, %v256
  %v258 = vsel %vm255, %v257, %v253
  %v259 = vmul.f32 1.0, %v258
  %v260 = vrcp.pop %v202
  %v261 = vmul.f32 %v202, %v260
  %v262 = vsub.f32 1.0, %v261
  %v263 = vmul.f32 %v260, %v262
  %v264 = vadd.f32 %v260, %v263
  %vm265 = vweird.f32 %v202
  %vm266 = vweird.f32 %v260
  %vm267 = vmor %vm265, %vm266
  %v268 = vsel %vm267, %v260, %v264
  %v269 = vand.u32 2147483647, %v202
  %vm270 = vcmp.eq.f32.partialorder %v269, 8.507059e+37
  %v271 = vand.u32 %v202, 2147483648
  %v272 = vor.u32 1.1754944e-38, %v271
  %v273 = vsel %vm270, %v272, %v268
  %v274 = vmul.f32 1.0, %v273
  %v275 = vrcp.pop %v203
  %v276 = vmul.f32 %v203, %v275
  %v277 = vsub.f32 1.0, %v276
  %v278 = vmul.f32 %v275, %v277
  %v279 = vadd.f32 %v275, %v278
  %vm280 = vweird.f32 %v203
  %vm281 = vweird.f32 %v275
  %vm282 = vmor %vm280, %vm281
  %v283 = vsel %vm282, %v275, %v279
  %v284 = vand.u32 2147483647, %v203
  %vm285 = vcmp.eq.f32.partialorder %v284, 8.507059e+37
  %v286 = vand.u32 %v203, 2147483648
  %v287 = vor.u32 1.1754944e-38, %v286
  %v288 = vsel %vm285, %v287, %v283
  %v289 = vmul.f32 1.0, %v288
  %v290 = vrcp.pop %v204
  %v291 = vmul.f32 %v204, %v290
  %v292 = vsub.f32 1.0, %v291
  %v293 = vmul.f32 %v290, %v292
  %v294 = vadd.f32 %v290, %v293
  %vm295 = vweird.f32 %v204
  %vm296 = vweird.f32 %v290
  %vm297 = vmor %vm295, %vm296
  %v298 = vsel %vm297, %v290, %v294
  %v299 = vand.u32 2147483647, %v204
  %vm300 = vcmp.eq.f32.partialorder %v299, 8.507059e+37
  %v301 = vand.u32 %v204, 2147483648
  %v302 = vor.u32 1.1754944e-38, %v301
  %v303 = vsel %vm300, %v302, %v298
  %v304 = vmul.f32 1.0, %v303
  %v305 = vrcp.pop %v205
  %v306 = vmul.f32 %v205, %v305
  %v307 = vsub.f32 1.0, %v306
  %v308 = vmul.f32 %v305, %v307
  %v309 = vadd.f32 %v305, %v308
  %vm310 = vweird.f32 %v205
  %vm311 = vweird.f32 %v305
  %vm312 = vmor %vm310, %vm311
  %v313 = vsel %vm312, %v305, %v309
  %v314 = vand.u32 2147483647, %v205
  %vm315 = vcmp.eq.f32.partialorder %v314, 8.507059e+37
  %v316 = vand.u32 %v205, 2147483648
  %v317 = vor.u32 1.1754944e-38, %v316
  %v318 = vsel %vm315, %v317, %v313
  %v319 = vmul.f32 1.0, %v318
  %v320 = vrcp.pop %v206
  %v321 = vmul.f32 %v206, %v320
  %v322 = vsub.f32 1.0, %v321
  %v323 = vmul.f32 %v320, %v322
  %v324 = vadd.f32 %v320, %v323
  %vm325 = vweird.f32 %v206
  %vm326 = vweird.f32 %v320
  %vm327 = vmor %vm325, %vm326
  %v328 = vsel %vm327, %v320, %v324
  %v329 = vand.u32 2147483647, %v206
  %vm330 = vcmp.eq.f32.partialorder %v329, 8.507059e+37
  %v331 = vand.u32 %v206, 2147483648
  %v332 = vor.u32 1.1754944e-38, %v331
  %v333 = vsel %vm330, %v332, %v328
  %v334 = vmul.f32 1.0, %v333
  %v335 = vrcp.pop %v207
  %v336 = vmul.f32 %v207, %v335
  %v337 = vsub.f32 1.0, %v336
  %v338 = vmul.f32 %v335, %v337
  %v339 = vadd.f32 %v335, %v338
  %vm340 = vweird.f32 %v207
  %vm341 = vweird.f32 %v335
  %vm342 = vmor %vm340, %vm341
  %v343 = vsel %vm342, %v335, %v339
  %v344 = vand.u32 2147483647, %v207
  %vm345 = vcmp.eq.f32.partialorder %v344, 8.507059e+37
  %v346 = vand.u32 %v207, 2147483648
  %v347 = vor.u32 1.1754944e-38, %v346
  %v348 = vsel %vm345, %v347, %v343
  %v349 = vmul.f32 1.0, %v348
  %v350 = vrcp.pop %v208
  %v351 = vmul.f32 %v208, %v350
  %v352 = vsub.f32 1.0, %v351
  %v353 = vmul.f32 %v350, %v352
  %v354 = vadd.f32 %v350, %v353
  %vm355 = vweird.f32 %v208
  %vm356 = vweird.f32 %v350
  %vm357 = vmor %vm355, %vm356
  %v358 = vsel %vm357, %v350, %v354
  %v359 = vand.u32 2147483647, %v208
  %vm360 = vcmp.eq.f32.partialorder %v359, 8.507059e+37
  %v361 = vand.u32 %v208, 2147483648
  %v362 = vor.u32 1.1754944e-38, %v361
  %v363 = vsel %vm360, %v362, %v358
  %v364 = vmul.f32 1.0, %v363
  %v365 = vrcp.pop %v209
  %v366 = vmul.f32 %v209, %v365
  %v367 = vsub.f32 1.0, %v366
  %v368 = vmul.f32 %v365, %v367
  %v369 = vadd.f32 %v365, %v368
  %vm370 = vweird.f32 %v209
  %vm371 = vweird.f32 %v365
  %vm372 = vmor %vm370, %vm371
  %v373 = vsel %vm372, %v365, %v369
  %v374 = vand.u32 2147483647, %v209
  %vm375 = vcmp.eq.f32.partialorder %v374, 8.507059e+37
  %v376 = vand.u32 %v209, 2147483648
  %v377 = vor.u32 1.1754944e-38, %v376
  %v378 = vsel %vm375, %v377, %v373
  %v379 = vmul.f32 1.0, %v378
  %v380 = vrcp.pop %v210
  %v381 = vmul.f32 %v210, %v380
  %v382 = vsub.f32 1.0, %v381
  %v383 = vmul.f32 %v380, %v382
  %v384 = vadd.f32 %v380, %v383
  %vm385 = vweird.f32 %v210
  %vm386 = vweird.f32 %v380
  %vm387 = vmor %vm385, %vm386
  %v388 = vsel %vm387, %v380, %v384
  %v389 = vand.u32 2147483647, %v210
  %vm390 = vcmp.eq.f32.partialorder %v389, 8.507059e+37
  %v391 = vand.u32 %v210, 2147483648
  %v392 = vor.u32 1.1754944e-38, %v391
  %v393 = vsel %vm390, %v392, %v388
  %v394 = vmul.f32 1.0, %v393
  %v395 = vrcp.pop %v211
  %v396 = vmul.f32 %v211, %v395
  %v397 = vsub.f32 1.0, %v396
  %v398 = vmul.f32 %v395, %v397
  %v399 = vadd.f32 %v395, %v398
  %vm400 = vweird.f32 %v211
  %vm401 = vweird.f32 %v395
  %vm402 = vmor %vm400, %vm401
  %v403 = vsel %vm402, %v395, %v399
  %v404 = vand.u32 2147483647, %v211
  %vm405 = vcmp.eq.f32.partialorder %v404, 8.507059e+37
  %v406 = vand.u32 %v211, 2147483648
  %v407 = vor.u32 1.1754944e-38, %v406
  %v408 = vsel %vm405, %v407, %v403
  %v409 = vmul.f32 1.0, %v408
  %v410 = vrcp.pop %v212
  %v411 = vmul.f32 %v212, %v410
  %v412 = vsub.f32 1.0, %v411
  %v413 = vmul.f32 %v410, %v412
  %v414 = vadd.f32 %v410, %v413
  %vm415 = vweird.f32 %v212
  %vm416 = vweird.f32 %v410
  %vm417 = vmor %vm415, %vm416
  %v418 = vsel %vm417, %v410, %v414
  %v419 = vand.u32 2147483647, %v212
  %vm420 = vcmp.eq.f32.partialorder %v419, 8.507059e+37
  %v421 = vand.u32 %v212, 2147483648
  %v422 = vor.u32 1.1754944e-38, %v421
  %v423 = vsel %vm420, %v422, %v418
  %v424 = vmul.f32 1.0, %v423
  %v425 = vrcp.pop %v213
  %v426 = vmul.f32 %v213, %v425
  %v427 = vsub.f32 1.0, %v426
  %v428 = vmul.f32 %v425, %v427
  %v429 = vadd.f32 %v425, %v428
  %vm430 = vweird.f32 %v213
  %vm431 = vweird.f32 %v425
  %vm432 = vmor %vm430, %vm431
  %v433 = vsel %vm432, %v425, %v429
  %v434 = vand.u32 2147483647, %v213
  %vm435 = vcmp.eq.f32.partialorder %v434, 8.507059e+37
  %v436 = vand.u32 %v213, 2147483648
  %v437 = vor.u32 1.1754944e-38, %v436
  %v438 = vsel %vm435, %v437, %v433
  %v439 = vmul.f32 1.0, %v438
  %v440 = vrcp.pop %v214
  %v441 = vmul.f32 %v214, %v440
  %v442 = vsub.f32 1.0, %v441
  %v443 = vmul.f32 %v440, %v442
  %v444 = vadd.f32 %v440, %v443
  %vm445 = vweird.f32 %v214
  %vm446 = vweird.f32 %v440
  %vm447 = vmor %vm445, %vm446
  %v448 = vsel %vm447, %v440, %v444
  %v449 = vand.u32 2147483647, %v214
  %vm450 = vcmp.eq.f32.partialorder %v449, 8.507059e+37
  %v451 = vand.u32 %v214, 2147483648
  %v452 = vor.u32 1.1754944e-38, %v451
  %v453 = vsel %vm450, %v452, %v448
  %v454 = vmul.f32 1.0, %v453
  %v455 = vmul.f32 %v112, %v229
  %v456 = vmul.f32 %v114, %v244
  %v457 = vmul.f32 %v117, %v259
  %v458 = vmul.f32 %v119, %v274
  %v459 = vmul.f32 %v122, %v289
  %v460 = vmul.f32 %v124, %v304
  %v461 = vmul.f32 %v127, %v319
  %v462 = vmul.f32 %v129, %v334
  %v463 = vmul.f32 %v132, %v349
  %v464 = vmul.f32 %v134, %v364
  %v465 = vmul.f32 %v137, %v379
  %v466 = vmul.f32 %v139, %v394
  %v467 = vmul.f32 %v142, %v409
  %v468 = vmul.f32 %v144, %v424
  %v469 = vmul.f32 %v147, %v439
  %v470 = vmul.f32 %v149, %v454
  %v471 = vld [vmem:[%s2] sm:$0xff]
  %v472 = vld [vmem:[%s2 + $0x8] sm:$0xff]
  %v473 = vld [vmem:[%s2 + $0x10] sm:$0xff]
  %v474 = vld [vmem:[%s2 + $0x18] sm:$0xff]
  %v475 = vld [vmem:[%s2 + $0x20] sm:$0xff]
  %v476 = vld [vmem:[%s2 + $0x28] sm:$0xff]
  %v477 = vld [vmem:[%s2 + $0x30] sm:$0xff]
  %v478 = vld [vmem:[%s2 + $0x38] sm:$0xff]
  %v479 = vld [vmem:[%s2 + $0x40] sm:$0xff]
  %v480 = vld [vmem:[%s2 + $0x48] sm:$0xff]
  %v481 = vld [vmem:[%s2 + $0x50] sm:$0xff]
  %v482 = vld [vmem:[%s2 + $0x58] sm:$0xff]
  %v483 = vld [vmem:[%s2 + $0x60] sm:$0xff]
  %v484 = vld [vmem:[%s2 + $0x68] sm:$0xff]
  %v485 = vld [vmem:[%s2 + $0x70] sm:$0xff]
  %v486 = vld [vmem:[%s2 + $0x78] sm:$0xff]
  %v487 = vadd.f32 %v455, %v471
  %v488 = vadd.f32 %v456, %v472
  %v489 = vadd.f32 %v457, %v473
  %v490 = vadd.f32 %v458, %v474
  %v491 = vadd.f32 %v459, %v475
  %v492 = vadd.f32 %v460, %v476
  %v493 = vadd.f32 %v461, %v477
  %v494 = vadd.f32 %v462, %v478
  %v495 = vadd.f32 %v463, %v479
  %v496 = vadd.f32 %v464, %v480
  %v497 = vadd.f32 %v465, %v481
  %v498 = vadd.f32 %v466, %v482
  %v499 = vadd.f32 %v467, %v483
  %v500 = vadd.f32 %v468, %v484
  %v501 = vadd.f32 %v469, %v485
  %v502 = vadd.f32 %v470, %v486
  %503 = vst [vmem:[%s3] sm:$0xff] %v487
  %504 = vst [vmem:[%s3 + $0x8] sm:$0xff] %v488
  %505 = vst [vmem:[%s3 + $0x10] sm:$0xff] %v489
  %506 = vst [vmem:[%s3 + $0x18] sm:$0xff] %v490
  %507 = vst [vmem:[%s3 + $0x20] sm:$0xff] %v491
  %508 = vst [vmem:[%s3 + $0x28] sm:$0xff] %v492
  %509 = vst [vmem:[%s3 + $0x30] sm:$0xff] %v493
  %510 = vst [vmem:[%s3 + $0x38] sm:$0xff] %v494
  %511 = vst [vmem:[%s3 + $0x40] sm:$0xff] %v495
  %512 = vst [vmem:[%s3 + $0x48] sm:$0xff] %v496
  %513 = vst [vmem:[%s3 + $0x50] sm:$0xff] %v497
  %514 = vst [vmem:[%s3 + $0x58] sm:$0xff] %v498
  %515 = vst [vmem:[%s3 + $0x60] sm:$0xff] %v499
  %516 = vst [vmem:[%s3 + $0x68] sm:$0xff] %v500
  %517 = vst [vmem:[%s3 + $0x70] sm:$0xff] %v501
  %518 = vst [vmem:[%s3 + $0x78] sm:$0xff] %v502
  // Predicated region
  $region14: #{forward.33} parent=0 // pred_check
    _
  $region15: #{forward.33} parent=0 // pred_check_branch
    %520 = sbr.rel (0) target = $region17
  $region16: #{forward.33} parent=0 // pred_region
    _
  $region17: #{forward.33} parent=0 // pred_fallthru
    _
  // Predicated region
  $region18: #{forward.33} parent=0 // pred_check
    _
  $region19: #{forward.33} parent=0 // pred_check_branch
    %522 = sbr.rel (0) target = $region21
  $region20: #{forward.33} parent=0 // pred_region
    _
  $region21: #{forward.33} parent=0 // pred_fallthru
    _

// kernel: forward.32
$region0: #{forward.32}
  #allocation0 [shape = 'u32[]', space=smem, size = 0x4, offset = 0x4, fixed_abs, tag = 'smem constant byte address 0x4 - core index']
  #allocation1 [shape = 'u32[72,128]{1,0:T(1,128)}', space=vmem, size = 0x9000, scoped, tag = 'internal scratch']
  #allocation2 [shape = 's32[1]{0}', space=sflag, size = 0x4, scoped, tag = 'scoped memory for forward.32']
  #allocation3 [shape = 's32[1]{0:T(128)S(6)}', space=smem, size = 0x200, scoped, tag = 'prefetched SMEM operand 0']
  #allocation4 [shape = 's32[1]{0:T(128)S(6)}', space=smem, size = 0x200, scoped, tag = 'prefetched SMEM operand 1']
  %s0 = inlined_call_operand.<no memory space> [shape: s32[1], index: 0, kind: input, shape index: {}]
  %s1 = inlined_call_operand.<no memory space> [shape: s32[1], index: 1, kind: input, shape index: {}]
  %s2 = inlined_call_operand.vmem [shape: s32[1,128], index: 2, kind: input, shape index: {}]
  %s3 = inlined_call_operand.vmem [shape: bf16[128,128], index: 3, kind: input, shape index: {}]
  %s4 = inlined_call_operand.vmem [shape: f32[128,128], index: 4, kind: output, shape index: {}]
  %s5 = sld [smem:[#allocation0]]
  $region26: #{forward.32} parent=0
    _
  %s7 = ssub.s32 1, %s5
  %s8 = scalar_select 0, %s7, %s5
  %9 = sst [smem:[#allocation3]] %s0
  %10 = sst [smem:[#allocation4]] %s1
  // Predicated region
  $region2: #{forward.32} parent=0 // pred_check
    _
  $region3: #{forward.32} parent=0 // pred_check_branch
    %12 = sbr.rel (0) target = $region5
  $region4: #{forward.32} parent=0 // pred_region
    %s13 = sld [smem:[#allocation3]]
    %s14 = sadd.s32 %s13, 0
    %p15 = scmp.lt.s32.totalorder %s14, 0
    %s16 = scalar_select %p15, %s14, 0
    %p17 = scmp.lt.s32.totalorder %s16, 0
    %s18 = scalar_select %p17, %s16, 0
    %s19 = scalar_lea.vmem %s2, %s18
    %s20 = sld [smem:[#allocation3]]
    %s21 = sadd.s32 %s20, 0
    %p22 = scmp.lt.s32.totalorder %s21, 0
    %s23 = scalar_select %p22, %s21, 0
  $region5: #{forward.32} parent=0 // pred_fallthru
    _
  // Predicated region
  $region6: #{forward.32} parent=0 // pred_check
    _
  $region7: #{forward.32} parent=0 // pred_check_branch
    %25 = sbr.rel (0) target = $region9
  $region8: #{forward.32} parent=0 // pred_region
    %s26 = sld [smem:[#allocation3]]
    %s27 = sadd.s32 %s26, 0
    %p28 = scmp.lt.s32.totalorder %s27, 0
    %s29 = scalar_select %p28, %s27, 0
    %s30 = smul.u32 16, %s29
    %p31 = scmp.lt.s32.totalorder %s30, 15
    %s32 = scalar_select %p31, %s30, 15
    %s33 = smul.addr %s32, 4
    %s34 = scalar_lea.vmem %s3, %s33
    %s35 = sld [smem:[#allocation3]]
    %s36 = sadd.s32 %s35, 0
    %p37 = scmp.lt.s32.totalorder %s36, 0
    %s38 = scalar_select %p37, %s36, 0
    %s39 = smul.u32 16, %s38
  $region9: #{forward.32} parent=0 // pred_fallthru
    _
  %s40 = sld [smem:[#allocation3]]
  %s41 = sadd.s32 %s40, 0
  %p42 = scmp.lt.s32.totalorder %s41, 0
  %s43 = scalar_select %p42, %s41, 0
  %p44 = scmp.lt.s32.totalorder %s43, 0
  %s45 = scalar_select %p44, %s43, 0
  %s46 = scalar_lea.vmem %s2, %s45
  %s47 = sld [smem:[#allocation3]]
  %s48 = sadd.s32 %s47, 0
  %p49 = scmp.lt.s32.totalorder %s48, 0
  %s50 = scalar_select %p49, %s48, 0
  %s51 = smul.u32 16, %s50
  %p52 = scmp.lt.s32.totalorder %s51, 15
  %s53 = scalar_select %p52, %s51, 15
  %s54 = smul.addr %s53, 4
  %s55 = scalar_lea.vmem %s3, %s54
  %s56 = sld [smem:[#allocation3]]
  %s57 = sadd.s32 %s56, 0
  %p58 = scmp.lt.s32.totalorder %s57, 0
  %s59 = scalar_select %p58, %s57, 0
  %p60 = scmp.lt.s32.totalorder %s59, 0
  %s61 = scalar_select %p60, %s59, 0
  %s62 = scalar_lea.vmem %s2, %s61
  %s63 = sld [smem:[#allocation3]]
  %s64 = sadd.s32 %s63, 0
  %p65 = scmp.lt.s32.totalorder %s64, 0
  %s66 = scalar_select %p65, %s64, 0
  %s67 = sld [smem:[#allocation3]]
  %s68 = sadd.s32 %s67, 0
  %p69 = scmp.lt.s32.totalorder %s68, 0
  %s70 = scalar_select %p69, %s68, 0
  %s71 = smul.u32 16, %s70
  %p72 = scmp.lt.s32.totalorder %s71, 15
  %s73 = scalar_select %p72, %s71, 15
  %s74 = smul.addr %s73, 4
  %s75 = scalar_lea.vmem %s3, %s74
  %s76 = sld [smem:[#allocation3]]
  %s77 = sadd.s32 %s76, 0
  %p78 = scmp.lt.s32.totalorder %s77, 0
  %s79 = scalar_select %p78, %s77, 0
  %s80 = smul.u32 16, %s79
  %p81 = scmp.eq.s32.totalorder 0, 0
  // Predicated region
  $region10: #{forward.32} parent=0 // pred_check
    %p82 = pneg %p81
  $region11: #{forward.32} parent=0 // pred_check_branch
    %84 = sbr.rel (%p82) target = $region13
  $region12: #{forward.32} parent=0 // pred_region
    %85 = vst [vmem:[%s4] sm:$0xff] 0.0
    %86 = vst [vmem:[%s4 + $0x8] sm:$0xff] 0.0
    %87 = vst [vmem:[%s4 + $0x10] sm:$0xff] 0.0
    %88 = vst [vmem:[%s4 + $0x18] sm:$0xff] 0.0
    %89 = vst [vmem:[%s4 + $0x20] sm:$0xff] 0.0
    %90 = vst [vmem:[%s4 + $0x28] sm:$0xff] 0.0
    %91 = vst [vmem:[%s4 + $0x30] sm:$0xff] 0.0
    %92 = vst [vmem:[%s4 + $0x38] sm:$0xff] 0.0
    %93 = vst [vmem:[%s4 + $0x40] sm:$0xff] 0.0
    %94 = vst [vmem:[%s4 + $0x48] sm:$0xff] 0.0
    %95 = vst [vmem:[%s4 + $0x50] sm:$0xff] 0.0
    %96 = vst [vmem:[%s4 + $0x58] sm:$0xff] 0.0
    %97 = vst [vmem:[%s4 + $0x60] sm:$0xff] 0.0
    %98 = vst [vmem:[%s4 + $0x68] sm:$0xff] 0.0
    %99 = vst [vmem:[%s4 + $0x70] sm:$0xff] 0.0
    %100 = vst [vmem:[%s4 + $0x78] sm:$0xff] 0.0
  $region13: #{forward.32} parent=0 // pred_fallthru
    _
  %s101 = sld [smem:[#allocation4]]
  %p102 = scmp.lt.s32.totalorder 0, %s101
  // Predicated region
  $region14: #{forward.32} parent=0 // pred_check
    %p103 = pneg %p102
  $region15: #{forward.32} parent=0 // pred_check_branch
    %105 = sbr.rel (%p103) target = $region17
  $region16: #{forward.32} parent=0 // pred_region
    %v106 = vld [vmem:[%s62] sm:$0x1]
    %v107 = vlaneseq
    %v108 = vshrl.u32 %v107, 7
    %v109 = vadd.s32 %v108, 8
    %v110 = vadd.s32 %v108, 16
    %v111 = vadd.s32 %v108, 24
    %v112 = vadd.s32 %v108, 32
    %v113 = vadd.s32 %v108, 40
    %v114 = vadd.s32 %v108, 48
    %v115 = vadd.s32 %v108, 56
    %v116 = vadd.s32 %v108, 64
    %v117 = vadd.s32 %v108, 72
    %v118 = vadd.s32 %v108, 80
    %v119 = vadd.s32 %v108, 88
    %v120 = vadd.s32 %v108, 96
    %v121 = vadd.s32 %v108, 104
    %v122 = vadd.s32 %v108, 112
    %v123 = vadd.s32 %v108, 120
    %s124 = smul.u32 0, 128
    %v125 = vstv %s124
    %v126 = vadd.s32 %v108, %v125
    %v127 = vadd.s32 %v109, %v125
    %v128 = vadd.s32 %v110, %v125
    %v129 = vadd.s32 %v111, %v125
    %v130 = vadd.s32 %v112, %v125
    %v131 = vadd.s32 %v113, %v125
    %v132 = vadd.s32 %v114, %v125
    %v133 = vadd.s32 %v115, %v125
    %v134 = vadd.s32 %v116, %v125
    %v135 = vadd.s32 %v117, %v125
    %v136 = vadd.s32 %v118, %v125
    %v137 = vadd.s32 %v119, %v125
    %v138 = vadd.s32 %v120, %v125
    %v139 = vadd.s32 %v121, %v125
    %v140 = vadd.s32 %v122, %v125
    %v141 = vadd.s32 %v123, %v125
    %v142 = vperm.slane %v106, 0
    %vm143 = vcmp.eq.s32.totalorder %v126, %v142
    %vm144 = vcmp.eq.s32.totalorder %v127, %v142
    %vm145 = vcmp.eq.s32.totalorder %v128, %v142
    %vm146 = vcmp.eq.s32.totalorder %v129, %v142
    %vm147 = vcmp.eq.s32.totalorder %v130, %v142
    %vm148 = vcmp.eq.s32.totalorder %v131, %v142
    %vm149 = vcmp.eq.s32.totalorder %v132, %v142
    %vm150 = vcmp.eq.s32.totalorder %v133, %v142
    %vm151 = vcmp.eq.s32.totalorder %v134, %v142
    %vm152 = vcmp.eq.s32.totalorder %v135, %v142
    %vm153 = vcmp.eq.s32.totalorder %v136, %v142
    %vm154 = vcmp.eq.s32.totalorder %v137, %v142
    %vm155 = vcmp.eq.s32.totalorder %v138, %v142
    %vm156 = vcmp.eq.s32.totalorder %v139, %v142
    %vm157 = vcmp.eq.s32.totalorder %v140, %v142
    %vm158 = vcmp.eq.s32.totalorder %v141, %v142
    %v159 = vsel %vm143, 1, 0
    %v160 = vsel %vm144, 1, 0
    %v161 = vsel %vm145, 1, 0
    %v162 = vsel %vm146, 1, 0
    %v163 = vsel %vm147, 1, 0
    %v164 = vsel %vm148, 1, 0
    %v165 = vsel %vm149, 1, 0
    %v166 = vsel %vm150, 1, 0
    %v167 = vsel %vm151, 1, 0
    %v168 = vsel %vm152, 1, 0
    %v169 = vsel %vm153, 1, 0
    %v170 = vsel %vm154, 1, 0
    %v171 = vsel %vm155, 1, 0
    %v172 = vsel %vm156, 1, 0
    %v173 = vsel %vm157, 1, 0
    %v174 = vsel %vm158, 1, 0
    %v175 = vcvt.s32.f32 %v159
    %v176 = vcvt.s32.f32 %v160
    %v177 = vcvt.s32.f32 %v161
    %v178 = vcvt.s32.f32 %v162
    %v179 = vcvt.s32.f32 %v163
    %v180 = vcvt.s32.f32 %v164
    %v181 = vcvt.s32.f32 %v165
    %v182 = vcvt.s32.f32 %v166
    %v183 = vcvt.s32.f32 %v167
    %v184 = vcvt.s32.f32 %v168
    %v185 = vcvt.s32.f32 %v169
    %v186 = vcvt.s32.f32 %v170
    %v187 = vcvt.s32.f32 %v171
    %v188 = vcvt.s32.f32 %v172
    %v189 = vcvt.s32.f32 %v173
    %v190 = vcvt.s32.f32 %v174
    %v191 = vpack.c.bf16 %v176, %v175
    %v192 = vpack.c.bf16 %v178, %v177
    %v193 = vpack.c.bf16 %v180, %v179
    %v194 = vpack.c.bf16 %v182, %v181
    %v195 = vpack.c.bf16 %v184, %v183
    %v196 = vpack.c.bf16 %v186, %v185
    %v197 = vpack.c.bf16 %v188, %v187
    %v198 = vpack.c.bf16 %v190, %v189
    %v199 = vld [vmem:[%s75] sm:$0xf]
    %v200 = vld [vmem:[%s75 + $0x4] sm:$0xf]
    %v201 = vld [vmem:[%s75 + $0x8] sm:$0xf]
    %v202 = vld [vmem:[%s75 + $0xc] sm:$0xf]
    %v203 = vld [vmem:[%s75 + $0x10] sm:$0xf]
    %v204 = vld [vmem:[%s75 + $0x14] sm:$0xf]
    %v205 = vld [vmem:[%s75 + $0x18] sm:$0xf]
    %v206 = vld [vmem:[%s75 + $0x1c] sm:$0xf]
    %v207 = vld [vmem:[%s75 + $0x20] sm:$0xf]
    %v208 = vld [vmem:[%s75 + $0x24] sm:$0xf]
    %v209 = vld [vmem:[%s75 + $0x28] sm:$0xf]
    %v210 = vld [vmem:[%s75 + $0x2c] sm:$0xf]
    %v211 = vld [vmem:[%s75 + $0x30] sm:$0xf]
    %v212 = vld [vmem:[%s75 + $0x34] sm:$0xf]
    %v213 = vld [vmem:[%s75 + $0x38] sm:$0xf]
    %v214 = vld [vmem:[%s75 + $0x3c] sm:$0xf]
    %v215 = vld [vmem:[%s4] sm:$0xff]
    %v216 = vld [vmem:[%s4 + $0x8] sm:$0xff]
    %v217 = vld [vmem:[%s4 + $0x10] sm:$0xff]
    %v218 = vld [vmem:[%s4 + $0x18] sm:$0xff]
    %v219 = vld [vmem:[%s4 + $0x20] sm:$0xff]
    %v220 = vld [vmem:[%s4 + $0x28] sm:$0xff]
    %v221 = vld [vmem:[%s4 + $0x30] sm:$0xff]
    %v222 = vld [vmem:[%s4 + $0x38] sm:$0xff]
    %v223 = vld [vmem:[%s4 + $0x40] sm:$0xff]
    %v224 = vld [vmem:[%s4 + $0x48] sm:$0xff]
    %v225 = vld [vmem:[%s4 + $0x50] sm:$0xff]
    %v226 = vld [vmem:[%s4 + $0x58] sm:$0xff]
    %v227 = vld [vmem:[%s4 + $0x60] sm:$0xff]
    %v228 = vld [vmem:[%s4 + $0x68] sm:$0xff]
    %v229 = vld [vmem:[%s4 + $0x70] sm:$0xff]
    %v230 = vld [vmem:[%s4 + $0x78] sm:$0xff]
    %v247 = vunpack.c.l.b16 %v199
    %v248 = vunpack.c.l.b16 %v200
    %v249 = vunpack.c.l.b16 %v201
    %v250 = vunpack.c.l.b16 %v202
    %v251 = vunpack.c.l.b16 %v203
    %v252 = vunpack.c.l.b16 %v204
    %v253 = vunpack.c.l.b16 %v205
    %v254 = vunpack.c.l.b16 %v206
    %v255 = vunpack.c.l.b16 %v207
    %v256 = vunpack.c.l.b16 %v208
    %v257 = vunpack.c.l.b16 %v209
    %v258 = vunpack.c.l.b16 %v210
    %v259 = vunpack.c.l.b16 %v211
    %v260 = vunpack.c.l.b16 %v212
    %v261 = vunpack.c.l.b16 %v213
    %v262 = vunpack.c.l.b16 %v214
    %v263 = vpack.c.b16 %v248, %v247
    %v264 = vpack.c.b16 %v250, %v249
    %v265 = vpack.c.b16 %v252, %v251
    %v266 = vpack.c.b16 %v254, %v253
    %v267 = vpack.c.b16 %v256, %v255
    %v268 = vpack.c.b16 %v258, %v257
    %v269 = vpack.c.b16 %v260, %v259
    %v270 = vpack.c.b16 %v262, %v261
    %279 = vmatpush.bf16.msra.mxu0 %v270
    %280 = vmatpush.bf16.msra.mxu0 %v269
    %281 = vmatpush.bf16.msra.mxu0 %v268
    %282 = vmatpush.bf16.msra.mxu0 %v267
    %283 = vmatpush.bf16.msra.mxu0 %v266
    %284 = vmatpush.bf16.msra.mxu0 %v265
    %285 = vmatpush.bf16.msra.mxu0 %v264
    %286 = vmatpush.bf16.msra.mxu0 %v263
    %287 = vmatmul.bf16.gmra.mxu0 %v191
    %v288 = vpop.f32.mrf.mxu0
    %v289 = vadd.f32 0.0, %v288
    %v290 = vpop.f32.mrf.mxu0
    %v291 = vadd.f32 0.0, %v290
    %292 = vmatmul.bf16.gmra.mxu0 %v192
    %v293 = vpop.f32.mrf.mxu0
    %v294 = vadd.f32 0.0, %v293
    %v295 = vpop.f32.mrf.mxu0
    %v296 = vadd.f32 0.0, %v295
    %297 = vmatmul.bf16.gmra.mxu0 %v193
    %v298 = vpop.f32.mrf.mxu0
    %v299 = vadd.f32 0.0, %v298
    %v300 = vpop.f32.mrf.mxu0
    %v301 = vadd.f32 0.0, %v300
    %302 = vmatmul.bf16.gmra.mxu0 %v194
    %v303 = vpop.f32.mrf.mxu0
    %v304 = vadd.f32 0.0, %v303
    %v305 = vpop.f32.mrf.mxu0
    %v306 = vadd.f32 0.0, %v305
    %307 = vmatmul.bf16.gmra.mxu0 %v195
    %v308 = vpop.f32.mrf.mxu0
    %v309 = vadd.f32 0.0, %v308
    %v310 = vpop.f32.mrf.mxu0
    %v311 = vadd.f32 0.0, %v310
    %312 = vmatmul.bf16.gmra.mxu0 %v196
    %v313 = vpop.f32.mrf.mxu0
    %v314 = vadd.f32 0.0, %v313
    %v315 = vpop.f32.mrf.mxu0
    %v316 = vadd.f32 0.0, %v315
    %317 = vmatmul.bf16.gmra.mxu0 %v197
    %v318 = vpop.f32.mrf.mxu0
    %v319 = vadd.f32 0.0, %v318
    %v320 = vpop.f32.mrf.mxu0
    %v321 = vadd.f32 0.0, %v320
    %322 = vmatmul.bf16.gmra.mxu0 %v198
    %v323 = vpop.f32.mrf.mxu0
    %v324 = vadd.f32 0.0, %v323
    %v325 = vpop.f32.mrf.mxu0
    %v326 = vadd.f32 0.0, %v325
    %327 = vdwg.mxu0
    %v328 = vadd.f32 %v215, %v289
    %v329 = vadd.f32 %v216, %v291
    %v330 = vadd.f32 %v217, %v294
    %v331 = vadd.f32 %v218, %v296
    %v332 = vadd.f32 %v219, %v299
    %v333 = vadd.f32 %v220, %v301
    %v334 = vadd.f32 %v221, %v304
    %v335 = vadd.f32 %v222, %v306
    %v336 = vadd.f32 %v223, %v309
    %v337 = vadd.f32 %v224, %v311
    %v338 = vadd.f32 %v225, %v314
    %v339 = vadd.f32 %v226, %v316
    %v340 = vadd.f32 %v227, %v319
    %v341 = vadd.f32 %v228, %v321
    %v342 = vadd.f32 %v229, %v324
    %v343 = vadd.f32 %v230, %v326
    %344 = vst [vmem:[%s4] sm:$0xff] %v328
    %345 = vst [vmem:[%s4 + $0x8] sm:$0xff] %v329
    %346 = vst [vmem:[%s4 + $0x10] sm:$0xff] %v330
    %347 = vst [vmem:[%s4 + $0x18] sm:$0xff] %v331
    %348 = vst [vmem:[%s4 + $0x20] sm:$0xff] %v332
    %349 = vst [vmem:[%s4 + $0x28] sm:$0xff] %v333
    %350 = vst [vmem:[%s4 + $0x30] sm:$0xff] %v334
    %351 = vst [vmem:[%s4 + $0x38] sm:$0xff] %v335
    %352 = vst [vmem:[%s4 + $0x40] sm:$0xff] %v336
    %353 = vst [vmem:[%s4 + $0x48] sm:$0xff] %v337
    %354 = vst [vmem:[%s4 + $0x50] sm:$0xff] %v338
    %355 = vst [vmem:[%s4 + $0x58] sm:$0xff] %v339
    %356 = vst [vmem:[%s4 + $0x60] sm:$0xff] %v340
    %357 = vst [vmem:[%s4 + $0x68] sm:$0xff] %v341
    %358 = vst [vmem:[%s4 + $0x70] sm:$0xff] %v342
    %359 = vst [vmem:[%s4 + $0x78] sm:$0xff] %v343
  $region17: #{forward.32} parent=0 // pred_fallthru
    _
  // Predicated region
  $region18: #{forward.32} parent=0 // pred_check
    _
  $region19: #{forward.32} parent=0 // pred_check_branch
    %361 = sbr.rel (0) target = $region21
  $region20: #{forward.32} parent=0 // pred_region
    _
  $region21: #{forward.32} parent=0 // pred_fallthru
    _
  // Predicated region
  $region22: #{forward.32} parent=0 // pred_check
    _
  $region23: #{forward.32} parent=0 // pred_check_branch
    %363 = sbr.rel (0) target = $region25
  $region24: #{forward.32} parent=0 // pred_region
    _
  $region25: #{forward.32} parent=0 // pred_fallthru
    _

// kernel: forward.35
$region0: #{forward.35}
  #allocation0 [shape = 'u32[]', space=smem, size = 0x4, offset = 0x4, fixed_abs, tag = 'smem constant byte address 0x4 - core index']
  #allocation1 [shape = 'u32[72,128]{1,0:T(1,128)}', space=vmem, size = 0x9000, scoped, tag = 'internal scratch']
  %s0 = inlined_call_operand.vmem [shape: f32[128,128], index: 0, kind: input, shape index: {}]
  %s1 = inlined_call_operand.vmem [shape: bf16[128,128], index: 1, kind: input, shape index: {}]
  %s2 = inlined_call_operand.vmem [shape: f32[1,128], index: 2, kind: input, shape index: {}]
  %s3 = inlined_call_operand.vmem [shape: f32[128,128], index: 3, kind: input, shape index: {}]
  %s4 = inlined_call_operand.vmem [shape: f32[128,128], index: 4, kind: output, shape index: {}]
  %s5 = sld [smem:[#allocation0]]
  $region26: #{forward.35} parent=0
    _
  %s7 = ssub.s32 1, %s5
  %s8 = scalar_select 0, %s7, %s5
  // Predicated region
  $region2: #{forward.35} parent=0 // pred_check
    _
  $region3: #{forward.35} parent=0 // pred_check_branch
    %10 = sbr.rel (0) target = $region5
  $region4: #{forward.35} parent=0 // pred_region
    _
  $region5: #{forward.35} parent=0 // pred_fallthru
    _
  // Predicated region
  $region6: #{forward.35} parent=0 // pred_check
    _
  $region7: #{forward.35} parent=0 // pred_check_branch
    %12 = sbr.rel (0) target = $region9
  $region8: #{forward.35} parent=0 // pred_region
    _
  $region9: #{forward.35} parent=0 // pred_fallthru
    _
  // Predicated region
  $region10: #{forward.35} parent=0 // pred_check
    _
  $region11: #{forward.35} parent=0 // pred_check_branch
    %14 = sbr.rel (0) target = $region13
  $region12: #{forward.35} parent=0 // pred_region
    _
  $region13: #{forward.35} parent=0 // pred_fallthru
    _
  // Predicated region
  $region14: #{forward.35} parent=0 // pred_check
    _
  $region15: #{forward.35} parent=0 // pred_check_branch
    %16 = sbr.rel (0) target = $region17
  $region16: #{forward.35} parent=0 // pred_region
    _
  $region17: #{forward.35} parent=0 // pred_fallthru
    _
  %v17 = vld [vmem:[%s0] sm:$0xff]
  %v18 = vld [vmem:[%s0 + $0x8] sm:$0xff]
  %v19 = vld [vmem:[%s0 + $0x10] sm:$0xff]
  %v20 = vld [vmem:[%s0 + $0x18] sm:$0xff]
  %v21 = vld [vmem:[%s0 + $0x20] sm:$0xff]
  %v22 = vld [vmem:[%s0 + $0x28] sm:$0xff]
  %v23 = vld [vmem:[%s0 + $0x30] sm:$0xff]
  %v24 = vld [vmem:[%s0 + $0x38] sm:$0xff]
  %v25 = vld [vmem:[%s0 + $0x40] sm:$0xff]
  %v26 = vld [vmem:[%s0 + $0x48] sm:$0xff]
  %v27 = vld [vmem:[%s0 + $0x50] sm:$0xff]
  %v28 = vld [vmem:[%s0 + $0x58] sm:$0xff]
  %v29 = vld [vmem:[%s0 + $0x60] sm:$0xff]
  %v30 = vld [vmem:[%s0 + $0x68] sm:$0xff]
  %v31 = vld [vmem:[%s0 + $0x70] sm:$0xff]
  %v32 = vld [vmem:[%s0 + $0x78] sm:$0xff]
  %v33 = vpack.c.bf16 %v18, %v17
  %v34 = vpack.c.bf16 %v20, %v19
  %v35 = vpack.c.bf16 %v22, %v21
  %v36 = vpack.c.bf16 %v24, %v23
  %v37 = vpack.c.bf16 %v26, %v25
  %v38 = vpack.c.bf16 %v28, %v27
  %v39 = vpack.c.bf16 %v30, %v29
  %v40 = vpack.c.bf16 %v32, %v31
  %v41 = vld [vmem:[%s1] sm:$0xf]
  %v42 = vld [vmem:[%s1 + $0x4] sm:$0xf]
  %v43 = vld [vmem:[%s1 + $0x8] sm:$0xf]
  %v44 = vld [vmem:[%s1 + $0xc] sm:$0xf]
  %v45 = vld [vmem:[%s1 + $0x10] sm:$0xf]
  %v46 = vld [vmem:[%s1 + $0x14] sm:$0xf]
  %v47 = vld [vmem:[%s1 + $0x18] sm:$0xf]
  %v48 = vld [vmem:[%s1 + $0x1c] sm:$0xf]
  %v49 = vld [vmem:[%s1 + $0x20] sm:$0xf]
  %v50 = vld [vmem:[%s1 + $0x24] sm:$0xf]
  %v51 = vld [vmem:[%s1 + $0x28] sm:$0xf]
  %v52 = vld [vmem:[%s1 + $0x2c] sm:$0xf]
  %v53 = vld [vmem:[%s1 + $0x30] sm:$0xf]
  %v54 = vld [vmem:[%s1 + $0x34] sm:$0xf]
  %v55 = vld [vmem:[%s1 + $0x38] sm:$0xf]
  %v56 = vld [vmem:[%s1 + $0x3c] sm:$0xf]
  %v57 = vld [vmem:[%s2] sm:$0x1]
  %v59 = vperm.slane %v57, 0
  %v77 = vunpack.c.l.b16 %v41
  %v78 = vunpack.c.l.b16 %v42
  %v79 = vunpack.c.l.b16 %v43
  %v80 = vunpack.c.l.b16 %v44
  %v81 = vunpack.c.l.b16 %v45
  %v82 = vunpack.c.l.b16 %v46
  %v83 = vunpack.c.l.b16 %v47
  %v84 = vunpack.c.l.b16 %v48
  %v85 = vunpack.c.l.b16 %v49
  %v86 = vunpack.c.l.b16 %v50
  %v87 = vunpack.c.l.b16 %v51
  %v88 = vunpack.c.l.b16 %v52
  %v89 = vunpack.c.l.b16 %v53
  %v90 = vunpack.c.l.b16 %v54
  %v91 = vunpack.c.l.b16 %v55
  %v92 = vunpack.c.l.b16 %v56
  %v93 = vpack.c.b16 %v78, %v77
  %v94 = vpack.c.b16 %v80, %v79
  %v95 = vpack.c.b16 %v82, %v81
  %v96 = vpack.c.b16 %v84, %v83
  %v97 = vpack.c.b16 %v86, %v85
  %v98 = vpack.c.b16 %v88, %v87
  %v99 = vpack.c.b16 %v90, %v89
  %v100 = vpack.c.b16 %v92, %v91
  %109 = vmatpush.bf16.msra.mxu0 %v100
  %110 = vmatpush.bf16.msra.mxu0 %v99
  %111 = vmatpush.bf16.msra.mxu0 %v98
  %112 = vmatpush.bf16.msra.mxu0 %v97
  %113 = vmatpush.bf16.msra.mxu0 %v96
  %114 = vmatpush.bf16.msra.mxu0 %v95
  %115 = vmatpush.bf16.msra.mxu0 %v94
  %116 = vmatpush.bf16.msra.mxu0 %v93
  %117 = vmatmul.bf16.gmra.mxu0 %v33
  %v118 = vpop.f32.mrf.mxu0
  %v119 = vadd.f32 %v59, %v118
  %v120 = vpop.f32.mrf.mxu0
  %v121 = vadd.f32 %v59, %v120
  %122 = vmatmul.bf16.gmra.mxu0 %v34
  %v123 = vpop.f32.mrf.mxu0
  %v124 = vadd.f32 %v59, %v123
  %v125 = vpop.f32.mrf.mxu0
  %v126 = vadd.f32 %v59, %v125
  %127 = vmatmul.bf16.gmra.mxu0 %v35
  %v128 = vpop.f32.mrf.mxu0
  %v129 = vadd.f32 %v59, %v128
  %v130 = vpop.f32.mrf.mxu0
  %v131 = vadd.f32 %v59, %v130
  %132 = vmatmul.bf16.gmra.mxu0 %v36
  %v133 = vpop.f32.mrf.mxu0
  %v134 = vadd.f32 %v59, %v133
  %v135 = vpop.f32.mrf.mxu0
  %v136 = vadd.f32 %v59, %v135
  %137 = vmatmul.bf16.gmra.mxu0 %v37
  %v138 = vpop.f32.mrf.mxu0
  %v139 = vadd.f32 %v59, %v138
  %v140 = vpop.f32.mrf.mxu0
  %v141 = vadd.f32 %v59, %v140
  %142 = vmatmul.bf16.gmra.mxu0 %v38
  %v143 = vpop.f32.mrf.mxu0
  %v144 = vadd.f32 %v59, %v143
  %v145 = vpop.f32.mrf.mxu0
  %v146 = vadd.f32 %v59, %v145
  %147 = vmatmul.bf16.gmra.mxu0 %v39
  %v148 = vpop.f32.mrf.mxu0
  %v149 = vadd.f32 %v59, %v148
  %v150 = vpop.f32.mrf.mxu0
  %v151 = vadd.f32 %v59, %v150
  %152 = vmatmul.bf16.gmra.mxu0 %v40
  %v153 = vpop.f32.mrf.mxu0
  %v154 = vadd.f32 %v59, %v153
  %v155 = vpop.f32.mrf.mxu0
  %v156 = vadd.f32 %v59, %v155
  %157 = vdwg.mxu0
  %v158 = vxor.u32 %v119, 2147483648
  %v159 = vxor.u32 %v121, 2147483648
  %v160 = vxor.u32 %v124, 2147483648
  %v161 = vxor.u32 %v126, 2147483648
  %v162 = vxor.u32 %v129, 2147483648
  %v163 = vxor.u32 %v131, 2147483648
  %v164 = vxor.u32 %v134, 2147483648
  %v165 = vxor.u32 %v136, 2147483648
  %v166 = vxor.u32 %v139, 2147483648
  %v167 = vxor.u32 %v141, 2147483648
  %v168 = vxor.u32 %v144, 2147483648
  %v169 = vxor.u32 %v146, 2147483648
  %v170 = vxor.u32 %v149, 2147483648
  %v171 = vxor.u32 %v151, 2147483648
  %v172 = vxor.u32 %v154, 2147483648
  %v173 = vxor.u32 %v156, 2147483648
  %v174 = vmul.f32 %v158, 1.442695
  %v175 = vpow.pop %v174
  %v176 = vmul.f32 %v159, 1.442695
  %v177 = vpow.pop %v176
  %v178 = vmul.f32 %v160, 1.442695
  %v179 = vpow.pop %v178
  %v180 = vmul.f32 %v161, 1.442695
  %v181 = vpow.pop %v180
  %v182 = vmul.f32 %v162, 1.442695
  %v183 = vpow.pop %v182
  %v184 = vmul.f32 %v163, 1.442695
  %v185 = vpow.pop %v184
  %v186 = vmul.f32 %v164, 1.442695
  %v187 = vpow.pop %v186
  %v188 = vmul.f32 %v165, 1.442695
  %v189 = vpow.pop %v188
  %v190 = vmul.f32 %v166, 1.442695
  %v191 = vpow.pop %v190
  %v192 = vmul.f32 %v167, 1.442695
  %v193 = vpow.pop %v192
  %v194 = vmul.f32 %v168, 1.442695
  %v195 = vpow.pop %v194
  %v196 = vmul.f32 %v169, 1.442695
  %v197 = vpow.pop %v196
  %v198 = vmul.f32 %v170, 1.442695
  %v199 = vpow.pop %v198
  %v200 = vmul.f32 %v171, 1.442695
  %v201 = vpow.pop %v200
  %v202 = vmul.f32 %v172, 1.442695
  %v203 = vpow.pop %v202
  %v204 = vmul.f32 %v173, 1.442695
  %v205 = vpow.pop %v204
  %v206 = vadd.f32 %v175, 1.0
  %v207 = vadd.f32 %v177, 1.0
  %v208 = vadd.f32 %v179, 1.0
  %v209 = vadd.f32 %v181, 1.0
  %v210 = vadd.f32 %v183, 1.0
  %v211 = vadd.f32 %v185, 1.0
  %v212 = vadd.f32 %v187, 1.0
  %v213 = vadd.f32 %v189, 1.0
  %v214 = vadd.f32 %v191, 1.0
  %v215 = vadd.f32 %v193, 1.0
  %v216 = vadd.f32 %v195, 1.0
  %v217 = vadd.f32 %v197, 1.0
  %v218 = vadd.f32 %v199, 1.0
  %v219 = vadd.f32 %v201, 1.0
  %v220 = vadd.f32 %v203, 1.0
  %v221 = vadd.f32 %v205, 1.0
  %v222 = vrcp.pop %v206
  %v223 = vmul.f32 %v206, %v222
  %v224 = vsub.f32 1.0, %v223
  %v225 = vmul.f32 %v222, %v224
  %v226 = vadd.f32 %v222, %v225
  %vm227 = vweird.f32 %v206
  %vm228 = vweird.f32 %v222
  %vm229 = vmor %vm227, %vm228
  %v230 = vsel %vm229, %v222, %v226
  %v231 = vand.u32 2147483647, %v206
  %vm232 = vcmp.eq.f32.partialorder %v231, 8.507059e+37
  %v233 = vand.u32 %v206, 2147483648
  %v234 = vor.u32 1.1754944e-38, %v233
  %v235 = vsel %vm232, %v234, %v230
  %v236 = vmul.f32 1.0, %v235
  %v237 = vrcp.pop %v207
  %v238 = vmul.f32 %v207, %v237
  %v239 = vsub.f32 1.0, %v238
  %v240 = vmul.f32 %v237, %v239
  %v241 = vadd.f32 %v237, %v240
  %vm242 = vweird.f32 %v207
  %vm243 = vweird.f32 %v237
  %vm244 = vmor %vm242, %vm243
  %v245 = vsel %vm244, %v237, %v241
  %v246 = vand.u32 2147483647, %v207
  %vm247 = vcmp.eq.f32.partialorder %v246, 8.507059e+37
  %v248 = vand.u32 %v207, 2147483648
  %v249 = vor.u32 1.1754944e-38, %v248
  %v250 = vsel %vm247, %v249, %v245
  %v251 = vmul.f32 1.0, %v250
  %v252 = vrcp.pop %v208
  %v253 = vmul.f32 %v208, %v252
  %v254 = vsub.f32 1.0, %v253
  %v255 = vmul.f32 %v252, %v254
  %v256 = vadd.f32 %v252, %v255
  %vm257 = vweird.f32 %v208
  %vm258 = vweird.f32 %v252
  %vm259 = vmor %vm257, %vm258
  %v260 = vsel %vm259, %v252, %v256
  %v261 = vand.u32 2147483647, %v208
  %vm262 = vcmp.eq.f32.partialorder %v261, 8.507059e+37
  %v263 = vand.u32 %v208, 2147483648
  %v264 = vor.u32 1.1754944e-38, %v263
  %v265 = vsel %vm262, %v264, %v260
  %v266 = vmul.f32 1.0, %v265
  %v267 = vrcp.pop %v209
  %v268 = vmul.f32 %v209, %v267
  %v269 = vsub.f32 1.0, %v268
  %v270 = vmul.f32 %v267, %v269
  %v271 = vadd.f32 %v267, %v270
  %vm272 = vweird.f32 %v209
  %vm273 = vweird.f32 %v267
  %vm274 = vmor %vm272, %vm273
  %v275 = vsel %vm274, %v267, %v271
  %v276 = vand.u32 2147483647, %v209
  %vm277 = vcmp.eq.f32.partialorder %v276, 8.507059e+37
  %v278 = vand.u32 %v209, 2147483648
  %v279 = vor.u32 1.1754944e-38, %v278
  %v280 = vsel %vm277, %v279, %v275
  %v281 = vmul.f32 1.0, %v280
  %v282 = vrcp.pop %v210
  %v283 = vmul.f32 %v210, %v282
  %v284 = vsub.f32 1.0, %v283
  %v285 = vmul.f32 %v282, %v284
  %v286 = vadd.f32 %v282, %v285
  %vm287 = vweird.f32 %v210
  %vm288 = vweird.f32 %v282
  %vm289 = vmor %vm287, %vm288
  %v290 = vsel %vm289, %v282, %v286
  %v291 = vand.u32 2147483647, %v210
  %vm292 = vcmp.eq.f32.partialorder %v291, 8.507059e+37
  %v293 = vand.u32 %v210, 2147483648
  %v294 = vor.u32 1.1754944e-38, %v293
  %v295 = vsel %vm292, %v294, %v290
  %v296 = vmul.f32 1.0, %v295
  %v297 = vrcp.pop %v211
  %v298 = vmul.f32 %v211, %v297
  %v299 = vsub.f32 1.0, %v298
  %v300 = vmul.f32 %v297, %v299
  %v301 = vadd.f32 %v297, %v300
  %vm302 = vweird.f32 %v211
  %vm303 = vweird.f32 %v297
  %vm304 = vmor %vm302, %vm303
  %v305 = vsel %vm304, %v297, %v301
  %v306 = vand.u32 2147483647, %v211
  %vm307 = vcmp.eq.f32.partialorder %v306, 8.507059e+37
  %v308 = vand.u32 %v211, 2147483648
  %v309 = vor.u32 1.1754944e-38, %v308
  %v310 = vsel %vm307, %v309, %v305
  %v311 = vmul.f32 1.0, %v310
  %v312 = vrcp.pop %v212
  %v313 = vmul.f32 %v212, %v312
  %v314 = vsub.f32 1.0, %v313
  %v315 = vmul.f32 %v312, %v314
  %v316 = vadd.f32 %v312, %v315
  %vm317 = vweird.f32 %v212
  %vm318 = vweird.f32 %v312
  %vm319 = vmor %vm317, %vm318
  %v320 = vsel %vm319, %v312, %v316
  %v321 = vand.u32 2147483647, %v212
  %vm322 = vcmp.eq.f32.partialorder %v321, 8.507059e+37
  %v323 = vand.u32 %v212, 2147483648
  %v324 = vor.u32 1.1754944e-38, %v323
  %v325 = vsel %vm322, %v324, %v320
  %v326 = vmul.f32 1.0, %v325
  %v327 = vrcp.pop %v213
  %v328 = vmul.f32 %v213, %v327
  %v329 = vsub.f32 1.0, %v328
  %v330 = vmul.f32 %v327, %v329
  %v331 = vadd.f32 %v327, %v330
  %vm332 = vweird.f32 %v213
  %vm333 = vweird.f32 %v327
  %vm334 = vmor %vm332, %vm333
  %v335 = vsel %vm334, %v327, %v331
  %v336 = vand.u32 2147483647, %v213
  %vm337 = vcmp.eq.f32.partialorder %v336, 8.507059e+37
  %v338 = vand.u32 %v213, 2147483648
  %v339 = vor.u32 1.1754944e-38, %v338
  %v340 = vsel %vm337, %v339, %v335
  %v341 = vmul.f32 1.0, %v340
  %v342 = vrcp.pop %v214
  %v343 = vmul.f32 %v214, %v342
  %v344 = vsub.f32 1.0, %v343
  %v345 = vmul.f32 %v342, %v344
  %v346 = vadd.f32 %v342, %v345
  %vm347 = vweird.f32 %v214
  %vm348 = vweird.f32 %v342
  %vm349 = vmor %vm347, %vm348
  %v350 = vsel %vm349, %v342, %v346
  %v351 = vand.u32 2147483647, %v214
  %vm352 = vcmp.eq.f32.partialorder %v351, 8.507059e+37
  %v353 = vand.u32 %v214, 2147483648
  %v354 = vor.u32 1.1754944e-38, %v353
  %v355 = vsel %vm352, %v354, %v350
  %v356 = vmul.f32 1.0, %v355
  %v357 = vrcp.pop %v215
  %v358 = vmul.f32 %v215, %v357
  %v359 = vsub.f32 1.0, %v358
  %v360 = vmul.f32 %v357, %v359
  %v361 = vadd.f32 %v357, %v360
  %vm362 = vweird.f32 %v215
  %vm363 = vweird.f32 %v357
  %vm364 = vmor %vm362, %vm363
  %v365 = vsel %vm364, %v357, %v361
  %v366 = vand.u32 2147483647, %v215
  %vm367 = vcmp.eq.f32.partialorder %v366, 8.507059e+37
  %v368 = vand.u32 %v215, 2147483648
  %v369 = vor.u32 1.1754944e-38, %v368
  %v370 = vsel %vm367, %v369, %v365
  %v371 = vmul.f32 1.0, %v370
  %v372 = vrcp.pop %v216
  %v373 = vmul.f32 %v216, %v372
  %v374 = vsub.f32 1.0, %v373
  %v375 = vmul.f32 %v372, %v374
  %v376 = vadd.f32 %v372, %v375
  %vm377 = vweird.f32 %v216
  %vm378 = vweird.f32 %v372
  %vm379 = vmor %vm377, %vm378
  %v380 = vsel %vm379, %v372, %v376
  %v381 = vand.u32 2147483647, %v216
  %vm382 = vcmp.eq.f32.partialorder %v381, 8.507059e+37
  %v383 = vand.u32 %v216, 2147483648
  %v384 = vor.u32 1.1754944e-38, %v383
  %v385 = vsel %vm382, %v384, %v380
  %v386 = vmul.f32 1.0, %v385
  %v387 = vrcp.pop %v217
  %v388 = vmul.f32 %v217, %v387
  %v389 = vsub.f32 1.0, %v388
  %v390 = vmul.f32 %v387, %v389
  %v391 = vadd.f32 %v387, %v390
  %vm392 = vweird.f32 %v217
  %vm393 = vweird.f32 %v387
  %vm394 = vmor %vm392, %vm393
  %v395 = vsel %vm394, %v387, %v391
  %v396 = vand.u32 2147483647, %v217
  %vm397 = vcmp.eq.f32.partialorder %v396, 8.507059e+37
  %v398 = vand.u32 %v217, 2147483648
  %v399 = vor.u32 1.1754944e-38, %v398
  %v400 = vsel %vm397, %v399, %v395
  %v401 = vmul.f32 1.0, %v400
  %v402 = vrcp.pop %v218
  %v403 = vmul.f32 %v218, %v402
  %v404 = vsub.f32 1.0, %v403
  %v405 = vmul.f32 %v402, %v404
  %v406 = vadd.f32 %v402, %v405
  %vm407 = vweird.f32 %v218
  %vm408 = vweird.f32 %v402
  %vm409 = vmor %vm407, %vm408
  %v410 = vsel %vm409, %v402, %v406
  %v411 = vand.u32 2147483647, %v218
  %vm412 = vcmp.eq.f32.partialorder %v411, 8.507059e+37
  %v413 = vand.u32 %v218, 2147483648
  %v414 = vor.u32 1.1754944e-38, %v413
  %v415 = vsel %vm412, %v414, %v410
  %v416 = vmul.f32 1.0, %v415
  %v417 = vrcp.pop %v219
  %v418 = vmul.f32 %v219, %v417
  %v419 = vsub.f32 1.0, %v418
  %v420 = vmul.f32 %v417, %v419
  %v421 = vadd.f32 %v417, %v420
  %vm422 = vweird.f32 %v219
  %vm423 = vweird.f32 %v417
  %vm424 = vmor %vm422, %vm423
  %v425 = vsel %vm424, %v417, %v421
  %v426 = vand.u32 2147483647, %v219
  %vm427 = vcmp.eq.f32.partialorder %v426, 8.507059e+37
  %v428 = vand.u32 %v219, 2147483648
  %v429 = vor.u32 1.1754944e-38, %v428
  %v430 = vsel %vm427, %v429, %v425
  %v431 = vmul.f32 1.0, %v430
  %v432 = vrcp.pop %v220
  %v433 = vmul.f32 %v220, %v432
  %v434 = vsub.f32 1.0, %v433
  %v435 = vmul.f32 %v432, %v434
  %v436 = vadd.f32 %v432, %v435
  %vm437 = vweird.f32 %v220
  %vm438 = vweird.f32 %v432
  %vm439 = vmor %vm437, %vm438
  %v440 = vsel %vm439, %v432, %v436
  %v441 = vand.u32 2147483647, %v220
  %vm442 = vcmp.eq.f32.partialorder %v441, 8.507059e+37
  %v443 = vand.u32 %v220, 2147483648
  %v444 = vor.u32 1.1754944e-38, %v443
  %v445 = vsel %vm442, %v444, %v440
  %v446 = vmul.f32 1.0, %v445
  %v447 = vrcp.pop %v221
  %v448 = vmul.f32 %v221, %v447
  %v449 = vsub.f32 1.0, %v448
  %v450 = vmul.f32 %v447, %v449
  %v451 = vadd.f32 %v447, %v450
  %vm452 = vweird.f32 %v221
  %vm453 = vweird.f32 %v447
  %vm454 = vmor %vm452, %vm453
  %v455 = vsel %vm454, %v447, %v451
  %v456 = vand.u32 2147483647, %v221
  %vm457 = vcmp.eq.f32.partialorder %v456, 8.507059e+37
  %v458 = vand.u32 %v221, 2147483648
  %v459 = vor.u32 1.1754944e-38, %v458
  %v460 = vsel %vm457, %v459, %v455
  %v461 = vmul.f32 1.0, %v460
  %v462 = vmul.f32 %v119, %v236
  %v463 = vmul.f32 %v121, %v251
  %v464 = vmul.f32 %v124, %v266
  %v465 = vmul.f32 %v126, %v281
  %v466 = vmul.f32 %v129, %v296
  %v467 = vmul.f32 %v131, %v311
  %v468 = vmul.f32 %v134, %v326
  %v469 = vmul.f32 %v136, %v341
  %v470 = vmul.f32 %v139, %v356
  %v471 = vmul.f32 %v141, %v371
  %v472 = vmul.f32 %v144, %v386
  %v473 = vmul.f32 %v146, %v401
  %v474 = vmul.f32 %v149, %v416
  %v475 = vmul.f32 %v151, %v431
  %v476 = vmul.f32 %v154, %v446
  %v477 = vmul.f32 %v156, %v461
  %v478 = vld [vmem:[%s3] sm:$0xff]
  %v479 = vld [vmem:[%s3 + $0x8] sm:$0xff]
  %v480 = vld [vmem:[%s3 + $0x10] sm:$0xff]
  %v481 = vld [vmem:[%s3 + $0x18] sm:$0xff]
  %v482 = vld [vmem:[%s3 + $0x20] sm:$0xff]
  %v483 = vld [vmem:[%s3 + $0x28] sm:$0xff]
  %v484 = vld [vmem:[%s3 + $0x30] sm:$0xff]
  %v485 = vld [vmem:[%s3 + $0x38] sm:$0xff]
  %v486 = vld [vmem:[%s3 + $0x40] sm:$0xff]
  %v487 = vld [vmem:[%s3 + $0x48] sm:$0xff]
  %v488 = vld [vmem:[%s3 + $0x50] sm:$0xff]
  %v489 = vld [vmem:[%s3 + $0x58] sm:$0xff]
  %v490 = vld [vmem:[%s3 + $0x60] sm:$0xff]
  %v491 = vld [vmem:[%s3 + $0x68] sm:$0xff]
  %v492 = vld [vmem:[%s3 + $0x70] sm:$0xff]
  %v493 = vld [vmem:[%s3 + $0x78] sm:$0xff]
  %v494 = vadd.f32 %v462, %v478
  %v495 = vadd.f32 %v463, %v479
  %v496 = vadd.f32 %v464, %v480
  %v497 = vadd.f32 %v465, %v481
  %v498 = vadd.f32 %v466, %v482
  %v499 = vadd.f32 %v467, %v483
  %v500 = vadd.f32 %v468, %v484
  %v501 = vadd.f32 %v469, %v485
  %v502 = vadd.f32 %v470, %v486
  %v503 = vadd.f32 %v471, %v487
  %v504 = vadd.f32 %v472, %v488
  %v505 = vadd.f32 %v473, %v489
  %v506 = vadd.f32 %v474, %v490
  %v507 = vadd.f32 %v475, %v491
  %v508 = vadd.f32 %v476, %v492
  %v509 = vadd.f32 %v477, %v493
  %510 = vst [vmem:[%s4] sm:$0xff] %v494
  %511 = vst [vmem:[%s4 + $0x8] sm:$0xff] %v495
  %512 = vst [vmem:[%s4 + $0x10] sm:$0xff] %v496
  %513 = vst [vmem:[%s4 + $0x18] sm:$0xff] %v497
  %514 = vst [vmem:[%s4 + $0x20] sm:$0xff] %v498
  %515 = vst [vmem:[%s4 + $0x28] sm:$0xff] %v499
  %516 = vst [vmem:[%s4 + $0x30] sm:$0xff] %v500
  %517 = vst [vmem:[%s4 + $0x38] sm:$0xff] %v501
  %518 = vst [vmem:[%s4 + $0x40] sm:$0xff] %v502
  %519 = vst [vmem:[%s4 + $0x48] sm:$0xff] %v503
  %520 = vst [vmem:[%s4 + $0x50] sm:$0xff] %v504
  %521 = vst [vmem:[%s4 + $0x58] sm:$0xff] %v505
  %522 = vst [vmem:[%s4 + $0x60] sm:$0xff] %v506
  %523 = vst [vmem:[%s4 + $0x68] sm:$0xff] %v507
  %524 = vst [vmem:[%s4 + $0x70] sm:$0xff] %v508
  %525 = vst [vmem:[%s4 + $0x78] sm:$0xff] %v509
  // Predicated region
  $region18: #{forward.35} parent=0 // pred_check
    _
  $region19: #{forward.35} parent=0 // pred_check_branch
    %527 = sbr.rel (0) target = $region21
  $region20: #{forward.35} parent=0 // pred_region
    _
  $region21: #{forward.35} parent=0 // pred_fallthru
    _
  // Predicated region
  $region22: #{forward.35} parent=0 // pred_check
    _
  $region23: #{forward.35} parent=0 // pred_check_branch
    %529 = sbr.rel (0) target = $region25
  $region24: #{forward.35} parent=0 // pred_region
    _
  $region25: #{forward.35} parent=0 // pred_fallthru
    _

// kernel: forward.34
$region0: #{forward.34}
  #allocation0 [shape = 'u32[]', space=smem, size = 0x4, offset = 0x4, fixed_abs, tag = 'smem constant byte address 0x4 - core index']
  #allocation1 [shape = 'u32[72,128]{1,0:T(1,128)}', space=vmem, size = 0x9000, scoped, tag = 'internal scratch']
  %s0 = inlined_call_operand.vmem [shape: f32[128,128], index: 0, kind: input, shape index: {}]
  %s1 = inlined_call_operand.vmem [shape: bf16[1,128,128], index: 1, kind: input, shape index: {}]
  %s2 = inlined_call_operand.vmem [shape: f32[1,1,128], index: 2, kind: input, shape index: {}]
  %s3 = inlined_call_operand.vmem [shape: bf16[1,128,128], index: 3, kind: input, shape index: {}]
  %s4 = inlined_call_operand.vmem [shape: f32[1,1,128], index: 4, kind: input, shape index: {}]
  %s5 = inlined_call_operand.vmem [shape: f32[128,128], index: 5, kind: output, shape index: {}]
  %s6 = sld [smem:[#allocation0]]
  $region30: #{forward.34} parent=0
    _
  %s8 = ssub.s32 1, %s6
  %s9 = scalar_select 0, %s8, %s6
  // Predicated region
  $region2: #{forward.34} parent=0 // pred_check
    _
  $region3: #{forward.34} parent=0 // pred_check_branch
    %11 = sbr.rel (0) target = $region5
  $region4: #{forward.34} parent=0 // pred_region
    _
  $region5: #{forward.34} parent=0 // pred_fallthru
    _
  // Predicated region
  $region6: #{forward.34} parent=0 // pred_check
    _
  $region7: #{forward.34} parent=0 // pred_check_branch
    %13 = sbr.rel (0) target = $region9
  $region8: #{forward.34} parent=0 // pred_region
    _
  $region9: #{forward.34} parent=0 // pred_fallthru
    _
  // Predicated region
  $region10: #{forward.34} parent=0 // pred_check
    _
  $region11: #{forward.34} parent=0 // pred_check_branch
    %15 = sbr.rel (0) target = $region13
  $region12: #{forward.34} parent=0 // pred_region
    _
  $region13: #{forward.34} parent=0 // pred_fallthru
    _
  // Predicated region
  $region14: #{forward.34} parent=0 // pred_check
    _
  $region15: #{forward.34} parent=0 // pred_check_branch
    %17 = sbr.rel (0) target = $region17
  $region16: #{forward.34} parent=0 // pred_region
    _
  $region17: #{forward.34} parent=0 // pred_fallthru
    _
  // Predicated region
  $region18: #{forward.34} parent=0 // pred_check
    _
  $region19: #{forward.34} parent=0 // pred_check_branch
    %19 = sbr.rel (0) target = $region21
  $region20: #{forward.34} parent=0 // pred_region
    _
  $region21: #{forward.34} parent=0 // pred_fallthru
    _
  %v20 = vld [vmem:[%s0] sm:$0xff]
  %v21 = vld [vmem:[%s0 + $0x8] sm:$0xff]
  %v22 = vld [vmem:[%s0 + $0x10] sm:$0xff]
  %v23 = vld [vmem:[%s0 + $0x18] sm:$0xff]
  %v24 = vld [vmem:[%s0 + $0x20] sm:$0xff]
  %v25 = vld [vmem:[%s0 + $0x28] sm:$0xff]
  %v26 = vld [vmem:[%s0 + $0x30] sm:$0xff]
  %v27 = vld [vmem:[%s0 + $0x38] sm:$0xff]
  %v28 = vld [vmem:[%s0 + $0x40] sm:$0xff]
  %v29 = vld [vmem:[%s0 + $0x48] sm:$0xff]
  %v30 = vld [vmem:[%s0 + $0x50] sm:$0xff]
  %v31 = vld [vmem:[%s0 + $0x58] sm:$0xff]
  %v32 = vld [vmem:[%s0 + $0x60] sm:$0xff]
  %v33 = vld [vmem:[%s0 + $0x68] sm:$0xff]
  %v34 = vld [vmem:[%s0 + $0x70] sm:$0xff]
  %v35 = vld [vmem:[%s0 + $0x78] sm:$0xff]
  %v36 = vpack.c.bf16 %v21, %v20
  %v37 = vpack.c.bf16 %v23, %v22
  %v38 = vpack.c.bf16 %v25, %v24
  %v39 = vpack.c.bf16 %v27, %v26
  %v40 = vpack.c.bf16 %v29, %v28
  %v41 = vpack.c.bf16 %v31, %v30
  %v42 = vpack.c.bf16 %v33, %v32
  %v43 = vpack.c.bf16 %v35, %v34
  %v44 = vld [vmem:[%s1] sm:$0xf]
  %v45 = vld [vmem:[%s1 + $0x4] sm:$0xf]
  %v46 = vld [vmem:[%s1 + $0x8] sm:$0xf]
  %v47 = vld [vmem:[%s1 + $0xc] sm:$0xf]
  %v48 = vld [vmem:[%s1 + $0x10] sm:$0xf]
  %v49 = vld [vmem:[%s1 + $0x14] sm:$0xf]
  %v50 = vld [vmem:[%s1 + $0x18] sm:$0xf]
  %v51 = vld [vmem:[%s1 + $0x1c] sm:$0xf]
  %v52 = vld [vmem:[%s1 + $0x20] sm:$0xf]
  %v53 = vld [vmem:[%s1 + $0x24] sm:$0xf]
  %v54 = vld [vmem:[%s1 + $0x28] sm:$0xf]
  %v55 = vld [vmem:[%s1 + $0x2c] sm:$0xf]
  %v56 = vld [vmem:[%s1 + $0x30] sm:$0xf]
  %v57 = vld [vmem:[%s1 + $0x34] sm:$0xf]
  %v58 = vld [vmem:[%s1 + $0x38] sm:$0xf]
  %v59 = vld [vmem:[%s1 + $0x3c] sm:$0xf]
  %v60 = vld [vmem:[%s2] sm:$0x1]
  %v62 = vperm.slane %v60, 0
  %v80 = vunpack.c.l.b16 %v44
  %v81 = vunpack.c.l.b16 %v45
  %v82 = vunpack.c.l.b16 %v46
  %v83 = vunpack.c.l.b16 %v47
  %v84 = vunpack.c.l.b16 %v48
  %v85 = vunpack.c.l.b16 %v49
  %v86 = vunpack.c.l.b16 %v50
  %v87 = vunpack.c.l.b16 %v51
  %v88 = vunpack.c.l.b16 %v52
  %v89 = vunpack.c.l.b16 %v53
  %v90 = vunpack.c.l.b16 %v54
  %v91 = vunpack.c.l.b16 %v55
  %v92 = vunpack.c.l.b16 %v56
  %v93 = vunpack.c.l.b16 %v57
  %v94 = vunpack.c.l.b16 %v58
  %v95 = vunpack.c.l.b16 %v59
  %v96 = vpack.c.b16 %v81, %v80
  %v97 = vpack.c.b16 %v83, %v82
  %v98 = vpack.c.b16 %v85, %v84
  %v99 = vpack.c.b16 %v87, %v86
  %v100 = vpack.c.b16 %v89, %v88
  %v101 = vpack.c.b16 %v91, %v90
  %v102 = vpack.c.b16 %v93, %v92
  %v103 = vpack.c.b16 %v95, %v94
  %112 = vmatpush.bf16.msra.mxu0 %v103
  %113 = vmatpush.bf16.msra.mxu0 %v102
  %114 = vmatpush.bf16.msra.mxu0 %v101
  %115 = vmatpush.bf16.msra.mxu0 %v100
  %116 = vmatpush.bf16.msra.mxu0 %v99
  %117 = vmatpush.bf16.msra.mxu0 %v98
  %118 = vmatpush.bf16.msra.mxu0 %v97
  %119 = vmatpush.bf16.msra.mxu0 %v96
  %120 = vmatmul.bf16.gmra.mxu0 %v36
  %v121 = vpop.f32.mrf.mxu0
  %v122 = vadd.f32 %v62, %v121
  %v123 = vpop.f32.mrf.mxu0
  %v124 = vadd.f32 %v62, %v123
  %125 = vmatmul.bf16.gmra.mxu0 %v37
  %v126 = vpop.f32.mrf.mxu0
  %v127 = vadd.f32 %v62, %v126
  %v128 = vpop.f32.mrf.mxu0
  %v129 = vadd.f32 %v62, %v128
  %130 = vmatmul.bf16.gmra.mxu0 %v38
  %v131 = vpop.f32.mrf.mxu0
  %v132 = vadd.f32 %v62, %v131
  %v133 = vpop.f32.mrf.mxu0
  %v134 = vadd.f32 %v62, %v133
  %135 = vmatmul.bf16.gmra.mxu0 %v39
  %v136 = vpop.f32.mrf.mxu0
  %v137 = vadd.f32 %v62, %v136
  %v138 = vpop.f32.mrf.mxu0
  %v139 = vadd.f32 %v62, %v138
  %140 = vmatmul.bf16.gmra.mxu0 %v40
  %v141 = vpop.f32.mrf.mxu0
  %v142 = vadd.f32 %v62, %v141
  %v143 = vpop.f32.mrf.mxu0
  %v144 = vadd.f32 %v62, %v143
  %145 = vmatmul.bf16.gmra.mxu0 %v41
  %v146 = vpop.f32.mrf.mxu0
  %v147 = vadd.f32 %v62, %v146
  %v148 = vpop.f32.mrf.mxu0
  %v149 = vadd.f32 %v62, %v148
  %150 = vmatmul.bf16.gmra.mxu0 %v42
  %v151 = vpop.f32.mrf.mxu0
  %v152 = vadd.f32 %v62, %v151
  %v153 = vpop.f32.mrf.mxu0
  %v154 = vadd.f32 %v62, %v153
  %155 = vmatmul.bf16.gmra.mxu0 %v43
  %v156 = vpop.f32.mrf.mxu0
  %v157 = vadd.f32 %v62, %v156
  %v158 = vpop.f32.mrf.mxu0
  %v159 = vadd.f32 %v62, %v158
  %160 = vdwg.mxu0
  %v161 = vxor.u32 %v122, 2147483648
  %v162 = vxor.u32 %v124, 2147483648
  %v163 = vxor.u32 %v127, 2147483648
  %v164 = vxor.u32 %v129, 2147483648
  %v165 = vxor.u32 %v132, 2147483648
  %v166 = vxor.u32 %v134, 2147483648
  %v167 = vxor.u32 %v137, 2147483648
  %v168 = vxor.u32 %v139, 2147483648
  %v169 = vxor.u32 %v142, 2147483648
  %v170 = vxor.u32 %v144, 2147483648
  %v171 = vxor.u32 %v147, 2147483648
  %v172 = vxor.u32 %v149, 2147483648
  %v173 = vxor.u32 %v152, 2147483648
  %v174 = vxor.u32 %v154, 2147483648
  %v175 = vxor.u32 %v157, 2147483648
  %v176 = vxor.u32 %v159, 2147483648
  %v177 = vmul.f32 %v161, 1.442695
  %v178 = vpow.pop %v177
  %v179 = vmul.f32 %v162, 1.442695
  %v180 = vpow.pop %v179
  %v181 = vmul.f32 %v163, 1.442695
  %v182 = vpow.pop %v181
  %v183 = vmul.f32 %v164, 1.442695
  %v184 = vpow.pop %v183
  %v185 = vmul.f32 %v165, 1.442695
  %v186 = vpow.pop %v185
  %v187 = vmul.f32 %v166, 1.442695
  %v188 = vpow.pop %v187
  %v189 = vmul.f32 %v167, 1.442695
  %v190 = vpow.pop %v189
  %v191 = vmul.f32 %v168, 1.442695
  %v192 = vpow.pop %v191
  %v193 = vmul.f32 %v169, 1.442695
  %v194 = vpow.pop %v193
  %v195 = vmul.f32 %v170, 1.442695
  %v196 = vpow.pop %v195
  %v197 = vmul.f32 %v171, 1.442695
  %v198 = vpow.pop %v197
  %v199 = vmul.f32 %v172, 1.442695
  %v200 = vpow.pop %v199
  %v201 = vmul.f32 %v173, 1.442695
  %v202 = vpow.pop %v201
  %v203 = vmul.f32 %v174, 1.442695
  %v204 = vpow.pop %v203
  %v205 = vmul.f32 %v175, 1.442695
  %v206 = vpow.pop %v205
  %v207 = vmul.f32 %v176, 1.442695
  %v208 = vpow.pop %v207
  %v209 = vadd.f32 %v178, 1.0
  %v210 = vadd.f32 %v180, 1.0
  %v211 = vadd.f32 %v182, 1.0
  %v212 = vadd.f32 %v184, 1.0
  %v213 = vadd.f32 %v186, 1.0
  %v214 = vadd.f32 %v188, 1.0
  %v215 = vadd.f32 %v190, 1.0
  %v216 = vadd.f32 %v192, 1.0
  %v217 = vadd.f32 %v194, 1.0
  %v218 = vadd.f32 %v196, 1.0
  %v219 = vadd.f32 %v198, 1.0
  %v220 = vadd.f32 %v200, 1.0
  %v221 = vadd.f32 %v202, 1.0
  %v222 = vadd.f32 %v204, 1.0
  %v223 = vadd.f32 %v206, 1.0
  %v224 = vadd.f32 %v208, 1.0
  %v225 = vrcp.pop %v209
  %v226 = vmul.f32 %v209, %v225
  %v227 = vsub.f32 1.0, %v226
  %v228 = vmul.f32 %v225, %v227
  %v229 = vadd.f32 %v225, %v228
  %vm230 = vweird.f32 %v209
  %vm231 = vweird.f32 %v225
  %vm232 = vmor %vm230, %vm231
  %v233 = vsel %vm232, %v225, %v229
  %v234 = vand.u32 2147483647, %v209
  %vm235 = vcmp.eq.f32.partialorder %v234, 8.507059e+37
  %v236 = vand.u32 %v209, 2147483648
  %v237 = vor.u32 1.1754944e-38, %v236
  %v238 = vsel %vm235, %v237, %v233
  %v239 = vmul.f32 1.0, %v238
  %v240 = vrcp.pop %v210
  %v241 = vmul.f32 %v210, %v240
  %v242 = vsub.f32 1.0, %v241
  %v243 = vmul.f32 %v240, %v242
  %v244 = vadd.f32 %v240, %v243
  %vm245 = vweird.f32 %v210
  %vm246 = vweird.f32 %v240
  %vm247 = vmor %vm245, %vm246
  %v248 = vsel %vm247, %v240, %v244
  %v249 = vand.u32 2147483647, %v210
  %vm250 = vcmp.eq.f32.partialorder %v249, 8.507059e+37
  %v251 = vand.u32 %v210, 2147483648
  %v252 = vor.u32 1.1754944e-38, %v251
  %v253 = vsel %vm250, %v252, %v248
  %v254 = vmul.f32 1.0, %v253
  %v255 = vrcp.pop %v211
  %v256 = vmul.f32 %v211, %v255
  %v257 = vsub.f32 1.0, %v256
  %v258 = vmul.f32 %v255, %v257
  %v259 = vadd.f32 %v255, %v258
  %vm260 = vweird.f32 %v211
  %vm261 = vweird.f32 %v255
  %vm262 = vmor %vm260, %vm261
  %v263 = vsel %vm262, %v255, %v259
  %v264 = vand.u32 2147483647, %v211
  %vm265 = vcmp.eq.f32.partialorder %v264, 8.507059e+37
  %v266 = vand.u32 %v211, 2147483648
  %v267 = vor.u32 1.1754944e-38, %v266
  %v268 = vsel %vm265, %v267, %v263
  %v269 = vmul.f32 1.0, %v268
  %v270 = vrcp.pop %v212
  %v271 = vmul.f32 %v212, %v270
  %v272 = vsub.f32 1.0, %v271
  %v273 = vmul.f32 %v270, %v272
  %v274 = vadd.f32 %v270, %v273
  %vm275 = vweird.f32 %v212
  %vm276 = vweird.f32 %v270
  %vm277 = vmor %vm275, %vm276
  %v278 = vsel %vm277, %v270, %v274
  %v279 = vand.u32 2147483647, %v212
  %vm280 = vcmp.eq.f32.partialorder %v279, 8.507059e+37
  %v281 = vand.u32 %v212, 2147483648
  %v282 = vor.u32 1.1754944e-38, %v281
  %v283 = vsel %vm280, %v282, %v278
  %v284 = vmul.f32 1.0, %v283
  %v285 = vrcp.pop %v213
  %v286 = vmul.f32 %v213, %v285
  %v287 = vsub.f32 1.0, %v286
  %v288 = vmul.f32 %v285, %v287
  %v289 = vadd.f32 %v285, %v288
  %vm290 = vweird.f32 %v213
  %vm291 = vweird.f32 %v285
  %vm292 = vmor %vm290, %vm291
  %v293 = vsel %vm292, %v285, %v289
  %v294 = vand.u32 2147483647, %v213
  %vm295 = vcmp.eq.f32.partialorder %v294, 8.507059e+37
  %v296 = vand.u32 %v213, 2147483648
  %v297 = vor.u32 1.1754944e-38, %v296
  %v298 = vsel %vm295, %v297, %v293
  %v299 = vmul.f32 1.0, %v298
  %v300 = vrcp.pop %v214
  %v301 = vmul.f32 %v214, %v300
  %v302 = vsub.f32 1.0, %v301
  %v303 = vmul.f32 %v300, %v302
  %v304 = vadd.f32 %v300, %v303
  %vm305 = vweird.f32 %v214
  %vm306 = vweird.f32 %v300
  %vm307 = vmor %vm305, %vm306
  %v308 = vsel %vm307, %v300, %v304
  %v309 = vand.u32 2147483647, %v214
  %vm310 = vcmp.eq.f32.partialorder %v309, 8.507059e+37
  %v311 = vand.u32 %v214, 2147483648
  %v312 = vor.u32 1.1754944e-38, %v311
  %v313 = vsel %vm310, %v312, %v308
  %v314 = vmul.f32 1.0, %v313
  %v315 = vrcp.pop %v215
  %v316 = vmul.f32 %v215, %v315
  %v317 = vsub.f32 1.0, %v316
  %v318 = vmul.f32 %v315, %v317
  %v319 = vadd.f32 %v315, %v318
  %vm320 = vweird.f32 %v215
  %vm321 = vweird.f32 %v315
  %vm322 = vmor %vm320, %vm321
  %v323 = vsel %vm322, %v315, %v319
  %v324 = vand.u32 2147483647, %v215
  %vm325 = vcmp.eq.f32.partialorder %v324, 8.507059e+37
  %v326 = vand.u32 %v215, 2147483648
  %v327 = vor.u32 1.1754944e-38, %v326
  %v328 = vsel %vm325, %v327, %v323
  %v329 = vmul.f32 1.0, %v328
  %v330 = vrcp.pop %v216
  %v331 = vmul.f32 %v216, %v330
  %v332 = vsub.f32 1.0, %v331
  %v333 = vmul.f32 %v330, %v332
  %v334 = vadd.f32 %v330, %v333
  %vm335 = vweird.f32 %v216
  %vm336 = vweird.f32 %v330
  %vm337 = vmor %vm335, %vm336
  %v338 = vsel %vm337, %v330, %v334
  %v339 = vand.u32 2147483647, %v216
  %vm340 = vcmp.eq.f32.partialorder %v339, 8.507059e+37
  %v341 = vand.u32 %v216, 2147483648
  %v342 = vor.u32 1.1754944e-38, %v341
  %v343 = vsel %vm340, %v342, %v338
  %v344 = vmul.f32 1.0, %v343
  %v345 = vrcp.pop %v217
  %v346 = vmul.f32 %v217, %v345
  %v347 = vsub.f32 1.0, %v346
  %v348 = vmul.f32 %v345, %v347
  %v349 = vadd.f32 %v345, %v348
  %vm350 = vweird.f32 %v217
  %vm351 = vweird.f32 %v345
  %vm352 = vmor %vm350, %vm351
  %v353 = vsel %vm352, %v345, %v349
  %v354 = vand.u32 2147483647, %v217
  %vm355 = vcmp.eq.f32.partialorder %v354, 8.507059e+37
  %v356 = vand.u32 %v217, 2147483648
  %v357 = vor.u32 1.1754944e-38, %v356
  %v358 = vsel %vm355, %v357, %v353
  %v359 = vmul.f32 1.0, %v358
  %v360 = vrcp.pop %v218
  %v361 = vmul.f32 %v218, %v360
  %v362 = vsub.f32 1.0, %v361
  %v363 = vmul.f32 %v360, %v362
  %v364 = vadd.f32 %v360, %v363
  %vm365 = vweird.f32 %v218
  %vm366 = vweird.f32 %v360
  %vm367 = vmor %vm365, %vm366
  %v368 = vsel %vm367, %v360, %v364
  %v369 = vand.u32 2147483647, %v218
  %vm370 = vcmp.eq.f32.partialorder %v369, 8.507059e+37
  %v371 = vand.u32 %v218, 2147483648
  %v372 = vor.u32 1.1754944e-38, %v371
  %v373 = vsel %vm370, %v372, %v368
  %v374 = vmul.f32 1.0, %v373
  %v375 = vrcp.pop %v219
  %v376 = vmul.f32 %v219, %v375
  %v377 = vsub.f32 1.0, %v376
  %v378 = vmul.f32 %v375, %v377
  %v379 = vadd.f32 %v375, %v378
  %vm380 = vweird.f32 %v219
  %vm381 = vweird.f32 %v375
  %vm382 = vmor %vm380, %vm381
  %v383 = vsel %vm382, %v375, %v379
  %v384 = vand.u32 2147483647, %v219
  %vm385 = vcmp.eq.f32.partialorder %v384, 8.507059e+37
  %v386 = vand.u32 %v219, 2147483648
  %v387 = vor.u32 1.1754944e-38, %v386
  %v388 = vsel %vm385, %v387, %v383
  %v389 = vmul.f32 1.0, %v388
  %v390 = vrcp.pop %v220
  %v391 = vmul.f32 %v220, %v390
  %v392 = vsub.f32 1.0, %v391
  %v393 = vmul.f32 %v390, %v392
  %v394 = vadd.f32 %v390, %v393
  %vm395 = vweird.f32 %v220
  %vm396 = vweird.f32 %v390
  %vm397 = vmor %vm395, %vm396
  %v398 = vsel %vm397, %v390, %v394
  %v399 = vand.u32 2147483647, %v220
  %vm400 = vcmp.eq.f32.partialorder %v399, 8.507059e+37
  %v401 = vand.u32 %v220, 2147483648
  %v402 = vor.u32 1.1754944e-38, %v401
  %v403 = vsel %vm400, %v402, %v398
  %v404 = vmul.f32 1.0, %v403
  %v405 = vrcp.pop %v221
  %v406 = vmul.f32 %v221, %v405
  %v407 = vsub.f32 1.0, %v406
  %v408 = vmul.f32 %v405, %v407
  %v409 = vadd.f32 %v405, %v408
  %vm410 = vweird.f32 %v221
  %vm411 = vweird.f32 %v405
  %vm412 = vmor %vm410, %vm411
  %v413 = vsel %vm412, %v405, %v409
  %v414 = vand.u32 2147483647, %v221
  %vm415 = vcmp.eq.f32.partialorder %v414, 8.507059e+37
  %v416 = vand.u32 %v221, 2147483648
  %v417 = vor.u32 1.1754944e-38, %v416
  %v418 = vsel %vm415, %v417, %v413
  %v419 = vmul.f32 1.0, %v418
  %v420 = vrcp.pop %v222
  %v421 = vmul.f32 %v222, %v420
  %v422 = vsub.f32 1.0, %v421
  %v423 = vmul.f32 %v420, %v422
  %v424 = vadd.f32 %v420, %v423
  %vm425 = vweird.f32 %v222
  %vm426 = vweird.f32 %v420
  %vm427 = vmor %vm425, %vm426
  %v428 = vsel %vm427, %v420, %v424
  %v429 = vand.u32 2147483647, %v222
  %vm430 = vcmp.eq.f32.partialorder %v429, 8.507059e+37
  %v431 = vand.u32 %v222, 2147483648
  %v432 = vor.u32 1.1754944e-38, %v431
  %v433 = vsel %vm430, %v432, %v428
  %v434 = vmul.f32 1.0, %v433
  %v435 = vrcp.pop %v223
  %v436 = vmul.f32 %v223, %v435
  %v437 = vsub.f32 1.0, %v436
  %v438 = vmul.f32 %v435, %v437
  %v439 = vadd.f32 %v435, %v438
  %vm440 = vweird.f32 %v223
  %vm441 = vweird.f32 %v435
  %vm442 = vmor %vm440, %vm441
  %v443 = vsel %vm442, %v435, %v439
  %v444 = vand.u32 2147483647, %v223
  %vm445 = vcmp.eq.f32.partialorder %v444, 8.507059e+37
  %v446 = vand.u32 %v223, 2147483648
  %v447 = vor.u32 1.1754944e-38, %v446
  %v448 = vsel %vm445, %v447, %v443
  %v449 = vmul.f32 1.0, %v448
  %v450 = vrcp.pop %v224
  %v451 = vmul.f32 %v224, %v450
  %v452 = vsub.f32 1.0, %v451
  %v453 = vmul.f32 %v450, %v452
  %v454 = vadd.f32 %v450, %v453
  %vm455 = vweird.f32 %v224
  %vm456 = vweird.f32 %v450
  %vm457 = vmor %vm455, %vm456
  %v458 = vsel %vm457, %v450, %v454
  %v459 = vand.u32 2147483647, %v224
  %vm460 = vcmp.eq.f32.partialorder %v459, 8.507059e+37
  %v461 = vand.u32 %v224, 2147483648
  %v462 = vor.u32 1.1754944e-38, %v461
  %v463 = vsel %vm460, %v462, %v458
  %v464 = vmul.f32 1.0, %v463
  %v465 = vmul.f32 %v122, %v239
  %v466 = vmul.f32 %v124, %v254
  %v467 = vmul.f32 %v127, %v269
  %v468 = vmul.f32 %v129, %v284
  %v469 = vmul.f32 %v132, %v299
  %v470 = vmul.f32 %v134, %v314
  %v471 = vmul.f32 %v137, %v329
  %v472 = vmul.f32 %v139, %v344
  %v473 = vmul.f32 %v142, %v359
  %v474 = vmul.f32 %v144, %v374
  %v475 = vmul.f32 %v147, %v389
  %v476 = vmul.f32 %v149, %v404
  %v477 = vmul.f32 %v152, %v419
  %v478 = vmul.f32 %v154, %v434
  %v479 = vmul.f32 %v157, %v449
  %v480 = vmul.f32 %v159, %v464
  %v481 = vpack.c.bf16 %v466, %v465
  %v482 = vpack.c.bf16 %v468, %v467
  %v483 = vpack.c.bf16 %v470, %v469
  %v484 = vpack.c.bf16 %v472, %v471
  %v485 = vpack.c.bf16 %v474, %v473
  %v486 = vpack.c.bf16 %v476, %v475
  %v487 = vpack.c.bf16 %v478, %v477
  %v488 = vpack.c.bf16 %v480, %v479
  %v489 = vld [vmem:[%s3] sm:$0xf]
  %v490 = vld [vmem:[%s3 + $0x4] sm:$0xf]
  %v491 = vld [vmem:[%s3 + $0x8] sm:$0xf]
  %v492 = vld [vmem:[%s3 + $0xc] sm:$0xf]
  %v493 = vld [vmem:[%s3 + $0x10] sm:$0xf]
  %v494 = vld [vmem:[%s3 + $0x14] sm:$0xf]
  %v495 = vld [vmem:[%s3 + $0x18] sm:$0xf]
  %v496 = vld [vmem:[%s3 + $0x1c] sm:$0xf]
  %v497 = vld [vmem:[%s3 + $0x20] sm:$0xf]
  %v498 = vld [vmem:[%s3 + $0x24] sm:$0xf]
  %v499 = vld [vmem:[%s3 + $0x28] sm:$0xf]
  %v500 = vld [vmem:[%s3 + $0x2c] sm:$0xf]
  %v501 = vld [vmem:[%s3 + $0x30] sm:$0xf]
  %v502 = vld [vmem:[%s3 + $0x34] sm:$0xf]
  %v503 = vld [vmem:[%s3 + $0x38] sm:$0xf]
  %v504 = vld [vmem:[%s3 + $0x3c] sm:$0xf]
  %v505 = vld [vmem:[%s4] sm:$0x1]
  %v507 = vperm.slane %v505, 0
  %v525 = vunpack.c.l.b16 %v489
  %v526 = vunpack.c.l.b16 %v490
  %v527 = vunpack.c.l.b16 %v491
  %v528 = vunpack.c.l.b16 %v492
  %v529 = vunpack.c.l.b16 %v493
  %v530 = vunpack.c.l.b16 %v494
  %v531 = vunpack.c.l.b16 %v495
  %v532 = vunpack.c.l.b16 %v496
  %v533 = vunpack.c.l.b16 %v497
  %v534 = vunpack.c.l.b16 %v498
  %v535 = vunpack.c.l.b16 %v499
  %v536 = vunpack.c.l.b16 %v500
  %v537 = vunpack.c.l.b16 %v501
  %v538 = vunpack.c.l.b16 %v502
  %v539 = vunpack.c.l.b16 %v503
  %v540 = vunpack.c.l.b16 %v504
  %v541 = vpack.c.b16 %v526, %v525
  %v542 = vpack.c.b16 %v528, %v527
  %v543 = vpack.c.b16 %v530, %v529
  %v544 = vpack.c.b16 %v532, %v531
  %v545 = vpack.c.b16 %v534, %v533
  %v546 = vpack.c.b16 %v536, %v535
  %v547 = vpack.c.b16 %v538, %v537
  %v548 = vpack.c.b16 %v540, %v539
  %557 = vmatpush.bf16.msra.mxu0 %v548
  %558 = vmatpush.bf16.msra.mxu0 %v547
  %559 = vmatpush.bf16.msra.mxu0 %v546
  %560 = vmatpush.bf16.msra.mxu0 %v545
  %561 = vmatpush.bf16.msra.mxu0 %v544
  %562 = vmatpush.bf16.msra.mxu0 %v543
  %563 = vmatpush.bf16.msra.mxu0 %v542
  %564 = vmatpush.bf16.msra.mxu0 %v541
  %565 = vmatmul.bf16.gmra.mxu0 %v481
  %v566 = vpop.f32.mrf.mxu0
  %v567 = vadd.f32 %v507, %v566
  %v568 = vpop.f32.mrf.mxu0
  %v569 = vadd.f32 %v507, %v568
  %570 = vmatmul.bf16.gmra.mxu0 %v482
  %v571 = vpop.f32.mrf.mxu0
  %v572 = vadd.f32 %v507, %v571
  %v573 = vpop.f32.mrf.mxu0
  %v574 = vadd.f32 %v507, %v573
  %575 = vmatmul.bf16.gmra.mxu0 %v483
  %v576 = vpop.f32.mrf.mxu0
  %v577 = vadd.f32 %v507, %v576
  %v578 = vpop.f32.mrf.mxu0
  %v579 = vadd.f32 %v507, %v578
  %580 = vmatmul.bf16.gmra.mxu0 %v484
  %v581 = vpop.f32.mrf.mxu0
  %v582 = vadd.f32 %v507, %v581
  %v583 = vpop.f32.mrf.mxu0
  %v584 = vadd.f32 %v507, %v583
  %585 = vmatmul.bf16.gmra.mxu0 %v485
  %v586 = vpop.f32.mrf.mxu0
  %v587 = vadd.f32 %v507, %v586
  %v588 = vpop.f32.mrf.mxu0
  %v589 = vadd.f32 %v507, %v588
  %590 = vmatmul.bf16.gmra.mxu0 %v486
  %v591 = vpop.f32.mrf.mxu0
  %v592 = vadd.f32 %v507, %v591
  %v593 = vpop.f32.mrf.mxu0
  %v594 = vadd.f32 %v507, %v593
  %595 = vmatmul.bf16.gmra.mxu0 %v487
  %v596 = vpop.f32.mrf.mxu0
  %v597 = vadd.f32 %v507, %v596
  %v598 = vpop.f32.mrf.mxu0
  %v599 = vadd.f32 %v507, %v598
  %600 = vmatmul.bf16.gmra.mxu0 %v488
  %v601 = vpop.f32.mrf.mxu0
  %v602 = vadd.f32 %v507, %v601
  %v603 = vpop.f32.mrf.mxu0
  %v604 = vadd.f32 %v507, %v603
  %605 = vdwg.mxu0
  %v606 = vxor.u32 %v567, 2147483648
  %v607 = vxor.u32 %v569, 2147483648
  %v608 = vxor.u32 %v572, 2147483648
  %v609 = vxor.u32 %v574, 2147483648
  %v610 = vxor.u32 %v577, 2147483648
  %v611 = vxor.u32 %v579, 2147483648
  %v612 = vxor.u32 %v582, 2147483648
  %v613 = vxor.u32 %v584, 2147483648
  %v614 = vxor.u32 %v587, 2147483648
  %v615 = vxor.u32 %v589, 2147483648
  %v616 = vxor.u32 %v592, 2147483648
  %v617 = vxor.u32 %v594, 2147483648
  %v618 = vxor.u32 %v597, 2147483648
  %v619 = vxor.u32 %v599, 2147483648
  %v620 = vxor.u32 %v602, 2147483648
  %v621 = vxor.u32 %v604, 2147483648
  %v622 = vmul.f32 %v606, 1.442695
  %v623 = vpow.pop %v622
  %v624 = vmul.f32 %v607, 1.442695
  %v625 = vpow.pop %v624
  %v626 = vmul.f32 %v608, 1.442695
  %v627 = vpow.pop %v626
  %v628 = vmul.f32 %v609, 1.442695
  %v629 = vpow.pop %v628
  %v630 = vmul.f32 %v610, 1.442695
  %v631 = vpow.pop %v630
  %v632 = vmul.f32 %v611, 1.442695
  %v633 = vpow.pop %v632
  %v634 = vmul.f32 %v612, 1.442695
  %v635 = vpow.pop %v634
  %v636 = vmul.f32 %v613, 1.442695
  %v637 = vpow.pop %v636
  %v638 = vmul.f32 %v614, 1.442695
  %v639 = vpow.pop %v638
  %v640 = vmul.f32 %v615, 1.442695
  %v641 = vpow.pop %v640
  %v642 = vmul.f32 %v616, 1.442695
  %v643 = vpow.pop %v642
  %v644 = vmul.f32 %v617, 1.442695
  %v645 = vpow.pop %v644
  %v646 = vmul.f32 %v618, 1.442695
  %v647 = vpow.pop %v646
  %v648 = vmul.f32 %v619, 1.442695
  %v649 = vpow.pop %v648
  %v650 = vmul.f32 %v620, 1.442695
  %v651 = vpow.pop %v650
  %v652 = vmul.f32 %v621, 1.442695
  %v653 = vpow.pop %v652
  %v654 = vadd.f32 %v623, 1.0
  %v655 = vadd.f32 %v625, 1.0
  %v656 = vadd.f32 %v627, 1.0
  %v657 = vadd.f32 %v629, 1.0
  %v658 = vadd.f32 %v631, 1.0
  %v659 = vadd.f32 %v633, 1.0
  %v660 = vadd.f32 %v635, 1.0
  %v661 = vadd.f32 %v637, 1.0
  %v662 = vadd.f32 %v639, 1.0
  %v663 = vadd.f32 %v641, 1.0
  %v664 = vadd.f32 %v643, 1.0
  %v665 = vadd.f32 %v645, 1.0
  %v666 = vadd.f32 %v647, 1.0
  %v667 = vadd.f32 %v649, 1.0
  %v668 = vadd.f32 %v651, 1.0
  %v669 = vadd.f32 %v653, 1.0
  %v670 = vrcp.pop %v654
  %v671 = vmul.f32 %v654, %v670
  %v672 = vsub.f32 1.0, %v671
  %v673 = vmul.f32 %v670, %v672
  %v674 = vadd.f32 %v670, %v673
  %vm675 = vweird.f32 %v654
  %vm676 = vweird.f32 %v670
  %vm677 = vmor %vm675, %vm676
  %v678 = vsel %vm677, %v670, %v674
  %v679 = vand.u32 2147483647, %v654
  %vm680 = vcmp.eq.f32.partialorder %v679, 8.507059e+37
  %v681 = vand.u32 %v654, 2147483648
  %v682 = vor.u32 1.1754944e-38, %v681
  %v683 = vsel %vm680, %v682, %v678
  %v684 = vmul.f32 1.0, %v683
  %v685 = vrcp.pop %v655
  %v686 = vmul.f32 %v655, %v685
  %v687 = vsub.f32 1.0, %v686
  %v688 = vmul.f32 %v685, %v687
  %v689 = vadd.f32 %v685, %v688
  %vm690 = vweird.f32 %v655
  %vm691 = vweird.f32 %v685
  %vm692 = vmor %vm690, %vm691
  %v693 = vsel %vm692, %v685, %v689
  %v694 = vand.u32 2147483647, %v655
  %vm695 = vcmp.eq.f32.partialorder %v694, 8.507059e+37
  %v696 = vand.u32 %v655, 2147483648
  %v697 = vor.u32 1.1754944e-38, %v696
  %v698 = vsel %vm695, %v697, %v693
  %v699 = vmul.f32 1.0, %v698
  %v700 = vrcp.pop %v656
  %v701 = vmul.f32 %v656, %v700
  %v702 = vsub.f32 1.0, %v701
  %v703 = vmul.f32 %v700, %v702
  %v704 = vadd.f32 %v700, %v703
  %vm705 = vweird.f32 %v656
  %vm706 = vweird.f32 %v700
  %vm707 = vmor %vm705, %vm706
  %v708 = vsel %vm707, %v700, %v704
  %v709 = vand.u32 2147483647, %v656
  %vm710 = vcmp.eq.f32.partialorder %v709, 8.507059e+37
  %v711 = vand.u32 %v656, 2147483648
  %v712 = vor.u32 1.1754944e-38, %v711
  %v713 = vsel %vm710, %v712, %v708
  %v714 = vmul.f32 1.0, %v713
  %v715 = vrcp.pop %v657
  %v716 = vmul.f32 %v657, %v715
  %v717 = vsub.f32 1.0, %v716
  %v718 = vmul.f32 %v715, %v717
  %v719 = vadd.f32 %v715, %v718
  %vm720 = vweird.f32 %v657
  %vm721 = vweird.f32 %v715
  %vm722 = vmor %vm720, %vm721
  %v723 = vsel %vm722, %v715, %v719
  %v724 = vand.u32 2147483647, %v657
  %vm725 = vcmp.eq.f32.partialorder %v724, 8.507059e+37
  %v726 = vand.u32 %v657, 2147483648
  %v727 = vor.u32 1.1754944e-38, %v726
  %v728 = vsel %vm725, %v727, %v723
  %v729 = vmul.f32 1.0, %v728
  %v730 = vrcp.pop %v658
  %v731 = vmul.f32 %v658, %v730
  %v732 = vsub.f32 1.0, %v731
  %v733 = vmul.f32 %v730, %v732
  %v734 = vadd.f32 %v730, %v733
  %vm735 = vweird.f32 %v658
  %vm736 = vweird.f32 %v730
  %vm737 = vmor %vm735, %vm736
  %v738 = vsel %vm737, %v730, %v734
  %v739 = vand.u32 2147483647, %v658
  %vm740 = vcmp.eq.f32.partialorder %v739, 8.507059e+37
  %v741 = vand.u32 %v658, 2147483648
  %v742 = vor.u32 1.1754944e-38, %v741
  %v743 = vsel %vm740, %v742, %v738
  %v744 = vmul.f32 1.0, %v743
  %v745 = vrcp.pop %v659
  %v746 = vmul.f32 %v659, %v745
  %v747 = vsub.f32 1.0, %v746
  %v748 = vmul.f32 %v745, %v747
  %v749 = vadd.f32 %v745, %v748
  %vm750 = vweird.f32 %v659
  %vm751 = vweird.f32 %v745
  %vm752 = vmor %vm750, %vm751
  %v753 = vsel %vm752, %v745, %v749
  %v754 = vand.u32 2147483647, %v659
  %vm755 = vcmp.eq.f32.partialorder %v754, 8.507059e+37
  %v756 = vand.u32 %v659, 2147483648
  %v757 = vor.u32 1.1754944e-38, %v756
  %v758 = vsel %vm755, %v757, %v753
  %v759 = vmul.f32 1.0, %v758
  %v760 = vrcp.pop %v660
  %v761 = vmul.f32 %v660, %v760
  %v762 = vsub.f32 1.0, %v761
  %v763 = vmul.f32 %v760, %v762
  %v764 = vadd.f32 %v760, %v763
  %vm765 = vweird.f32 %v660
  %vm766 = vweird.f32 %v760
  %vm767 = vmor %vm765, %vm766
  %v768 = vsel %vm767, %v760, %v764
  %v769 = vand.u32 2147483647, %v660
  %vm770 = vcmp.eq.f32.partialorder %v769, 8.507059e+37
  %v771 = vand.u32 %v660, 2147483648
  %v772 = vor.u32 1.1754944e-38, %v771
  %v773 = vsel %vm770, %v772, %v768
  %v774 = vmul.f32 1.0, %v773
  %v775 = vrcp.pop %v661
  %v776 = vmul.f32 %v661, %v775
  %v777 = vsub.f32 1.0, %v776
  %v778 = vmul.f32 %v775, %v777
  %v779 = vadd.f32 %v775, %v778
  %vm780 = vweird.f32 %v661
  %vm781 = vweird.f32 %v775
  %vm782 = vmor %vm780, %vm781
  %v783 = vsel %vm782, %v775, %v779
  %v784 = vand.u32 2147483647, %v661
  %vm785 = vcmp.eq.f32.partialorder %v784, 8.507059e+37
  %v786 = vand.u32 %v661, 2147483648
  %v787 = vor.u32 1.1754944e-38, %v786
  %v788 = vsel %vm785, %v787, %v783
  %v789 = vmul.f32 1.0, %v788
  %v790 = vrcp.pop %v662
  %v791 = vmul.f32 %v662, %v790
  %v792 = vsub.f32 1.0, %v791
  %v793 = vmul.f32 %v790, %v792
  %v794 = vadd.f32 %v790, %v793
  %vm795 = vweird.f32 %v662
  %vm796 = vweird.f32 %v790
  %vm797 = vmor %vm795, %vm796
  %v798 = vsel %vm797, %v790, %v794
  %v799 = vand.u32 2147483647, %v662
  %vm800 = vcmp.eq.f32.partialorder %v799, 8.507059e+37
  %v801 = vand.u32 %v662, 2147483648
  %v802 = vor.u32 1.1754944e-38, %v801
  %v803 = vsel %vm800, %v802, %v798
  %v804 = vmul.f32 1.0, %v803
  %v805 = vrcp.pop %v663
  %v806 = vmul.f32 %v663, %v805
  %v807 = vsub.f32 1.0, %v806
  %v808 = vmul.f32 %v805, %v807
  %v809 = vadd.f32 %v805, %v808
  %vm810 = vweird.f32 %v663
  %vm811 = vweird.f32 %v805
  %vm812 = vmor %vm810, %vm811
  %v813 = vsel %vm812, %v805, %v809
  %v814 = vand.u32 2147483647, %v663
  %vm815 = vcmp.eq.f32.partialorder %v814, 8.507059e+37
  %v816 = vand.u32 %v663, 2147483648
  %v817 = vor.u32 1.1754944e-38, %v816
  %v818 = vsel %vm815, %v817, %v813
  %v819 = vmul.f32 1.0, %v818
  %v820 = vrcp.pop %v664
  %v821 = vmul.f32 %v664, %v820
  %v822 = vsub.f32 1.0, %v821
  %v823 = vmul.f32 %v820, %v822
  %v824 = vadd.f32 %v820, %v823
  %vm825 = vweird.f32 %v664
  %vm826 = vweird.f32 %v820
  %vm827 = vmor %vm825, %vm826
  %v828 = vsel %vm827, %v820, %v824
  %v829 = vand.u32 2147483647, %v664
  %vm830 = vcmp.eq.f32.partialorder %v829, 8.507059e+37
  %v831 = vand.u32 %v664, 2147483648
  %v832 = vor.u32 1.1754944e-38, %v831
  %v833 = vsel %vm830, %v832, %v828
  %v834 = vmul.f32 1.0, %v833
  %v835 = vrcp.pop %v665
  %v836 = vmul.f32 %v665, %v835
  %v837 = vsub.f32 1.0, %v836
  %v838 = vmul.f32 %v835, %v837
  %v839 = vadd.f32 %v835, %v838
  %vm840 = vweird.f32 %v665
  %vm841 = vweird.f32 %v835
  %vm842 = vmor %vm840, %vm841
  %v843 = vsel %vm842, %v835, %v839
  %v844 = vand.u32 2147483647, %v665
  %vm845 = vcmp.eq.f32.partialorder %v844, 8.507059e+37
  %v846 = vand.u32 %v665, 2147483648
  %v847 = vor.u32 1.1754944e-38, %v846
  %v848 = vsel %vm845, %v847, %v843
  %v849 = vmul.f32 1.0, %v848
  %v850 = vrcp.pop %v666
  %v851 = vmul.f32 %v666, %v850
  %v852 = vsub.f32 1.0, %v851
  %v853 = vmul.f32 %v850, %v852
  %v854 = vadd.f32 %v850, %v853
  %vm855 = vweird.f32 %v666
  %vm856 = vweird.f32 %v850
  %vm857 = vmor %vm855, %vm856
  %v858 = vsel %vm857, %v850, %v854
  %v859 = vand.u32 2147483647, %v666
  %vm860 = vcmp.eq.f32.partialorder %v859, 8.507059e+37
  %v861 = vand.u32 %v666, 2147483648
  %v862 = vor.u32 1.1754944e-38, %v861
  %v863 = vsel %vm860, %v862, %v858
  %v864 = vmul.f32 1.0, %v863
  %v865 = vrcp.pop %v667
  %v866 = vmul.f32 %v667, %v865
  %v867 = vsub.f32 1.0, %v866
  %v868 = vmul.f32 %v865, %v867
  %v869 = vadd.f32 %v865, %v868
  %vm870 = vweird.f32 %v667
  %vm871 = vweird.f32 %v865
  %vm872 = vmor %vm870, %vm871
  %v873 = vsel %vm872, %v865, %v869
  %v874 = vand.u32 2147483647, %v667
  %vm875 = vcmp.eq.f32.partialorder %v874, 8.507059e+37
  %v876 = vand.u32 %v667, 2147483648
  %v877 = vor.u32 1.1754944e-38, %v876
  %v878 = vsel %vm875, %v877, %v873
  %v879 = vmul.f32 1.0, %v878
  %v880 = vrcp.pop %v668
  %v881 = vmul.f32 %v668, %v880
  %v882 = vsub.f32 1.0, %v881
  %v883 = vmul.f32 %v880, %v882
  %v884 = vadd.f32 %v880, %v883
  %vm885 = vweird.f32 %v668
  %vm886 = vweird.f32 %v880
  %vm887 = vmor %vm885, %vm886
  %v888 = vsel %vm887, %v880, %v884
  %v889 = vand.u32 2147483647, %v668
  %vm890 = vcmp.eq.f32.partialorder %v889, 8.507059e+37
  %v891 = vand.u32 %v668, 2147483648
  %v892 = vor.u32 1.1754944e-38, %v891
  %v893 = vsel %vm890, %v892, %v888
  %v894 = vmul.f32 1.0, %v893
  %v895 = vrcp.pop %v669
  %v896 = vmul.f32 %v669, %v895
  %v897 = vsub.f32 1.0, %v896
  %v898 = vmul.f32 %v895, %v897
  %v899 = vadd.f32 %v895, %v898
  %vm900 = vweird.f32 %v669
  %vm901 = vweird.f32 %v895
  %vm902 = vmor %vm900, %vm901
  %v903 = vsel %vm902, %v895, %v899
  %v904 = vand.u32 2147483647, %v669
  %vm905 = vcmp.eq.f32.partialorder %v904, 8.507059e+37
  %v906 = vand.u32 %v669, 2147483648
  %v907 = vor.u32 1.1754944e-38, %v906
  %v908 = vsel %vm905, %v907, %v903
  %v909 = vmul.f32 1.0, %v908
  %v910 = vmul.f32 %v567, %v684
  %v911 = vmul.f32 %v569, %v699
  %v912 = vmul.f32 %v572, %v714
  %v913 = vmul.f32 %v574, %v729
  %v914 = vmul.f32 %v577, %v744
  %v915 = vmul.f32 %v579, %v759
  %v916 = vmul.f32 %v582, %v774
  %v917 = vmul.f32 %v584, %v789
  %v918 = vmul.f32 %v587, %v804
  %v919 = vmul.f32 %v589, %v819
  %v920 = vmul.f32 %v592, %v834
  %v921 = vmul.f32 %v594, %v849
  %v922 = vmul.f32 %v597, %v864
  %v923 = vmul.f32 %v599, %v879
  %v924 = vmul.f32 %v602, %v894
  %v925 = vmul.f32 %v604, %v909
  %v926 = vadd.f32 %v20, %v910
  %v927 = vadd.f32 %v21, %v911
  %v928 = vadd.f32 %v22, %v912
  %v929 = vadd.f32 %v23, %v913
  %v930 = vadd.f32 %v24, %v914
  %v931 = vadd.f32 %v25, %v915
  %v932 = vadd.f32 %v26, %v916
  %v933 = vadd.f32 %v27, %v917
  %v934 = vadd.f32 %v28, %v918
  %v935 = vadd.f32 %v29, %v919
  %v936 = vadd.f32 %v30, %v920
  %v937 = vadd.f32 %v31, %v921
  %v938 = vadd.f32 %v32, %v922
  %v939 = vadd.f32 %v33, %v923
  %v940 = vadd.f32 %v34, %v924
  %v941 = vadd.f32 %v35, %v925
  %942 = vst [vmem:[%s5] sm:$0xff] %v926
  %943 = vst [vmem:[%s5 + $0x8] sm:$0xff] %v927
  %944 = vst [vmem:[%s5 + $0x10] sm:$0xff] %v928
  %945 = vst [vmem:[%s5 + $0x18] sm:$0xff] %v929
  %946 = vst [vmem:[%s5 + $0x20] sm:$0xff] %v930
  %947 = vst [vmem:[%s5 + $0x28] sm:$0xff] %v931
  %948 = vst [vmem:[%s5 + $0x30] sm:$0xff] %v932
  %949 = vst [vmem:[%s5 + $0x38] sm:$0xff] %v933
  %950 = vst [vmem:[%s5 + $0x40] sm:$0xff] %v934
  %951 = vst [vmem:[%s5 + $0x48] sm:$0xff] %v935
  %952 = vst [vmem:[%s5 + $0x50] sm:$0xff] %v936
  %953 = vst [vmem:[%s5 + $0x58] sm:$0xff] %v937
  %954 = vst [vmem:[%s5 + $0x60] sm:$0xff] %v938
  %955 = vst [vmem:[%s5 + $0x68] sm:$0xff] %v939
  %956 = vst [vmem:[%s5 + $0x70] sm:$0xff] %v940
  %957 = vst [vmem:[%s5 + $0x78] sm:$0xff] %v941
  // Predicated region
  $region22: #{forward.34} parent=0 // pred_check
    _
  $region23: #{forward.34} parent=0 // pred_check_branch
    %959 = sbr.rel (0) target = $region25
  $region24: #{forward.34} parent=0 // pred_region
    _
  $region25: #{forward.34} parent=0 // pred_fallthru
    _
  // Predicated region
  $region26: #{forward.34} parent=0 // pred_check
    _
  $region27: #{forward.34} parent=0 // pred_check_branch
    %961 = sbr.rel (0) target = $region29
  $region28: #{forward.34} parent=0 // pred_region
    _
  $region29: #{forward.34} parent=0 // pred_fallthru
    _

// kernel: forward.25
$region0: #{forward.25}
  #allocation0 [shape = 'u32[]', space=smem, size = 0x4, offset = 0x4, fixed_abs, tag = 'smem constant byte address 0x4 - core index']
  #allocation1 [shape = 'u32[72,128]{1,0:T(1,128)}', space=vmem, size = 0x9000, scoped, tag = 'internal scratch']
  %s0 = inlined_call_operand.vmem [shape: bf16[128,128], index: 0, kind: input, shape index: {}]
  %s1 = inlined_call_operand.vmem [shape: bf16[128,384], index: 1, kind: input, shape index: {}]
  %s2 = inlined_call_operand.vmem [shape: f32[128,384], index: 2, kind: output, shape index: {}]
  %s3 = sld [smem:[#allocation0]]
  $region18: #{forward.25} parent=0
    _
  %s5 = ssub.s32 1, %s3
  %s6 = scalar_select 0, %s5, %s3
  // Predicated region
  $region2: #{forward.25} parent=0 // pred_check
    _
  $region3: #{forward.25} parent=0 // pred_check_branch
    %8 = sbr.rel (0) target = $region5
  $region4: #{forward.25} parent=0 // pred_region
    _
  $region5: #{forward.25} parent=0 // pred_fallthru
    _
  // Predicated region
  $region6: #{forward.25} parent=0 // pred_check
    _
  $region7: #{forward.25} parent=0 // pred_check_branch
    %10 = sbr.rel (0) target = $region9
  $region8: #{forward.25} parent=0 // pred_region
    _
  $region9: #{forward.25} parent=0 // pred_fallthru
    _
  %v11 = vld [vmem:[%s0] sm:$0xf]
  %v12 = vld [vmem:[%s0 + $0x4] sm:$0xf]
  %v13 = vld [vmem:[%s0 + $0x8] sm:$0xf]
  %v14 = vld [vmem:[%s0 + $0xc] sm:$0xf]
  %v15 = vld [vmem:[%s0 + $0x10] sm:$0xf]
  %v16 = vld [vmem:[%s0 + $0x14] sm:$0xf]
  %v17 = vld [vmem:[%s0 + $0x18] sm:$0xf]
  %v18 = vld [vmem:[%s0 + $0x1c] sm:$0xf]
  %v19 = vld [vmem:[%s0 + $0x20] sm:$0xf]
  %v20 = vld [vmem:[%s0 + $0x24] sm:$0xf]
  %v21 = vld [vmem:[%s0 + $0x28] sm:$0xf]
  %v22 = vld [vmem:[%s0 + $0x2c] sm:$0xf]
  %v23 = vld [vmem:[%s0 + $0x30] sm:$0xf]
  %v24 = vld [vmem:[%s0 + $0x34] sm:$0xf]
  %v25 = vld [vmem:[%s0 + $0x38] sm:$0xf]
  %v26 = vld [vmem:[%s0 + $0x3c] sm:$0xf]
  %v27 = vld [vmem:[%s1] sm:$0xff]
  %v28 = vld [vmem:[%s1 + $0x8] sm:$0xf]
  %v29 = vld [vmem:[%s1 + $0xc] sm:$0xff]
  %v30 = vld [vmem:[%s1 + $0x14] sm:$0xf]
  %v31 = vld [vmem:[%s1 + $0x18] sm:$0xff]
  %v32 = vld [vmem:[%s1 + $0x20] sm:$0xf]
  %v33 = vld [vmem:[%s1 + $0x24] sm:$0xff]
  %v34 = vld [vmem:[%s1 + $0x2c] sm:$0xf]
  %v35 = vld [vmem:[%s1 + $0x30] sm:$0xff]
  %v36 = vld [vmem:[%s1 + $0x38] sm:$0xf]
  %v37 = vld [vmem:[%s1 + $0x3c] sm:$0xff]
  %v38 = vld [vmem:[%s1 + $0x44] sm:$0xf]
  %v39 = vld [vmem:[%s1 + $0x48] sm:$0xff]
  %v40 = vld [vmem:[%s1 + $0x50] sm:$0xf]
  %v41 = vld [vmem:[%s1 + $0x54] sm:$0xff]
  %v42 = vld [vmem:[%s1 + $0x5c] sm:$0xf]
  %v43 = vld [vmem:[%s1 + $0x60] sm:$0xff]
  %v44 = vld [vmem:[%s1 + $0x68] sm:$0xf]
  %v45 = vld [vmem:[%s1 + $0x6c] sm:$0xff]
  %v46 = vld [vmem:[%s1 + $0x74] sm:$0xf]
  %v47 = vld [vmem:[%s1 + $0x78] sm:$0xff]
  %v48 = vld [vmem:[%s1 + $0x80] sm:$0xf]
  %v49 = vld [vmem:[%s1 + $0x84] sm:$0xff]
  %v50 = vld [vmem:[%s1 + $0x8c] sm:$0xf]
  %v51 = vld [vmem:[%s1 + $0x90] sm:$0xff]
  %v52 = vld [vmem:[%s1 + $0x98] sm:$0xf]
  %v53 = vld [vmem:[%s1 + $0x9c] sm:$0xff]
  %v54 = vld [vmem:[%s1 + $0xa4] sm:$0xf]
  %v55 = vld [vmem:[%s1 + $0xa8] sm:$0xff]
  %v56 = vld [vmem:[%s1 + $0xb0] sm:$0xf]
  %v57 = vld [vmem:[%s1 + $0xb4] sm:$0xff]
  %v58 = vld [vmem:[%s1 + $0xbc] sm:$0xf]
  %v75 = vunpack.c.l.b16 %v11
  %v76 = vunpack.c.l.b16 %v12
  %v77 = vunpack.c.l.b16 %v13
  %v78 = vunpack.c.l.b16 %v14
  %v79 = vunpack.c.l.b16 %v15
  %v80 = vunpack.c.l.b16 %v16
  %v81 = vunpack.c.l.b16 %v17
  %v82 = vunpack.c.l.b16 %v18
  %v83 = vunpack.c.l.b16 %v19
  %v84 = vunpack.c.l.b16 %v20
  %v85 = vunpack.c.l.b16 %v21
  %v86 = vunpack.c.l.b16 %v22
  %v87 = vunpack.c.l.b16 %v23
  %v88 = vunpack.c.l.b16 %v24
  %v89 = vunpack.c.l.b16 %v25
  %v90 = vunpack.c.l.b16 %v26
  %v91 = vpack.c.b16 %v76, %v75
  %v92 = vpack.c.b16 %v78, %v77
  %v93 = vpack.c.b16 %v80, %v79
  %v94 = vpack.c.b16 %v82, %v81
  %v95 = vpack.c.b16 %v84, %v83
  %v96 = vpack.c.b16 %v86, %v85
  %v97 = vpack.c.b16 %v88, %v87
  %v98 = vpack.c.b16 %v90, %v89
  %v139 = vunpack.c.l.b16 %v27
  %v140 = vunpack.c.h.b16 %v27
  %v141 = vunpack.c.l.b16 %v28
  %v142 = vunpack.c.l.b16 %v29
  %v143 = vunpack.c.h.b16 %v29
  %v144 = vunpack.c.l.b16 %v30
  %v145 = vunpack.c.l.b16 %v31
  %v146 = vunpack.c.h.b16 %v31
  %v147 = vunpack.c.l.b16 %v32
  %v148 = vunpack.c.l.b16 %v33
  %v149 = vunpack.c.h.b16 %v33
  %v150 = vunpack.c.l.b16 %v34
  %v151 = vunpack.c.l.b16 %v35
  %v152 = vunpack.c.h.b16 %v35
  %v153 = vunpack.c.l.b16 %v36
  %v154 = vunpack.c.l.b16 %v37
  %v155 = vunpack.c.h.b16 %v37
  %v156 = vunpack.c.l.b16 %v38
  %v157 = vunpack.c.l.b16 %v39
  %v158 = vunpack.c.h.b16 %v39
  %v159 = vunpack.c.l.b16 %v40
  %v160 = vunpack.c.l.b16 %v41
  %v161 = vunpack.c.h.b16 %v41
  %v162 = vunpack.c.l.b16 %v42
  %v163 = vunpack.c.l.b16 %v43
  %v164 = vunpack.c.h.b16 %v43
  %v165 = vunpack.c.l.b16 %v44
  %v166 = vunpack.c.l.b16 %v45
  %v167 = vunpack.c.h.b16 %v45
  %v168 = vunpack.c.l.b16 %v46
  %v169 = vunpack.c.l.b16 %v47
  %v170 = vunpack.c.h.b16 %v47
  %v171 = vunpack.c.l.b16 %v48
  %v172 = vunpack.c.l.b16 %v49
  %v173 = vunpack.c.h.b16 %v49
  %v174 = vunpack.c.l.b16 %v50
  %v175 = vunpack.c.l.b16 %v51
  %v176 = vunpack.c.h.b16 %v51
  %v177 = vunpack.c.l.b16 %v52
  %v178 = vunpack.c.l.b16 %v53
  %v179 = vunpack.c.h.b16 %v53
  %v180 = vunpack.c.l.b16 %v54
  %v181 = vunpack.c.l.b16 %v55
  %v182 = vunpack.c.h.b16 %v55
  %v183 = vunpack.c.l.b16 %v56
  %v184 = vunpack.c.l.b16 %v57
  %v185 = vunpack.c.h.b16 %v57
  %v186 = vunpack.c.l.b16 %v58
  %v187 = vpack.c.b16 %v142, %v139
  %v188 = vpack.c.b16 %v143, %v140
  %v189 = vpack.c.b16 %v144, %v141
  %v190 = vpack.c.b16 %v148, %v145
  %v191 = vpack.c.b16 %v149, %v146
  %v192 = vpack.c.b16 %v150, %v147
  %v193 = vpack.c.b16 %v154, %v151
  %v194 = vpack.c.b16 %v155, %v152
  %v195 = vpack.c.b16 %v156, %v153
  %v196 = vpack.c.b16 %v160, %v157
  %v197 = vpack.c.b16 %v161, %v158
  %v198 = vpack.c.b16 %v162, %v159
  %v199 = vpack.c.b16 %v166, %v163
  %v200 = vpack.c.b16 %v167, %v164
  %v201 = vpack.c.b16 %v168, %v165
  %v202 = vpack.c.b16 %v172, %v169
  %v203 = vpack.c.b16 %v173, %v170
  %v204 = vpack.c.b16 %v174, %v171
  %v205 = vpack.c.b16 %v178, %v175
  %v206 = vpack.c.b16 %v179, %v176
  %v207 = vpack.c.b16 %v180, %v177
  %v208 = vpack.c.b16 %v184, %v181
  %v209 = vpack.c.b16 %v185, %v182
  %v210 = vpack.c.b16 %v186, %v183
  %235 = vmatpush.bf16.msra.mxu0 %v208
  %236 = vmatpush.bf16.msra.mxu0 %v205
  %237 = vmatpush.bf16.msra.mxu0 %v202
  %238 = vmatpush.bf16.msra.mxu0 %v199
  %239 = vmatpush.bf16.msra.mxu0 %v196
  %240 = vmatpush.bf16.msra.mxu0 %v193
  %241 = vmatpush.bf16.msra.mxu0 %v190
  %242 = vmatpush.bf16.msra.mxu0 %v187
  %243 = vmatmul.bf16.gmra.mxu0 %v91
  %v244 = vpop.f32.mrf.mxu0
  %v245 = vadd.f32 0.0, %v244
  %v246 = vpop.f32.mrf.mxu0
  %v247 = vadd.f32 0.0, %v246
  %248 = vmatmul.bf16.gmra.mxu0 %v92
  %v249 = vpop.f32.mrf.mxu0
  %v250 = vadd.f32 0.0, %v249
  %v251 = vpop.f32.mrf.mxu0
  %v252 = vadd.f32 0.0, %v251
  %253 = vmatmul.bf16.gmra.mxu0 %v93
  %v254 = vpop.f32.mrf.mxu0
  %v255 = vadd.f32 0.0, %v254
  %v256 = vpop.f32.mrf.mxu0
  %v257 = vadd.f32 0.0, %v256
  %258 = vmatmul.bf16.gmra.mxu0 %v94
  %v259 = vpop.f32.mrf.mxu0
  %v260 = vadd.f32 0.0, %v259
  %v261 = vpop.f32.mrf.mxu0
  %v262 = vadd.f32 0.0, %v261
  %263 = vmatmul.bf16.gmra.mxu0 %v95
  %v264 = vpop.f32.mrf.mxu0
  %v265 = vadd.f32 0.0, %v264
  %v266 = vpop.f32.mrf.mxu0
  %v267 = vadd.f32 0.0, %v266
  %268 = vmatmul.bf16.gmra.mxu0 %v96
  %v269 = vpop.f32.mrf.mxu0
  %v270 = vadd.f32 0.0, %v269
  %v271 = vpop.f32.mrf.mxu0
  %v272 = vadd.f32 0.0, %v271
  %273 = vmatmul.bf16.gmra.mxu0 %v97
  %v274 = vpop.f32.mrf.mxu0
  %v275 = vadd.f32 0.0, %v274
  %v276 = vpop.f32.mrf.mxu0
  %v277 = vadd.f32 0.0, %v276
  %278 = vmatmul.bf16.gmra.mxu0 %v98
  %v279 = vpop.f32.mrf.mxu0
  %v280 = vadd.f32 0.0, %v279
  %v281 = vpop.f32.mrf.mxu0
  %v282 = vadd.f32 0.0, %v281
  %283 = vdwg.mxu0
  %284 = vmatpush.bf16.msra.mxu0 %v209
  %285 = vmatpush.bf16.msra.mxu0 %v206
  %286 = vmatpush.bf16.msra.mxu0 %v203
  %287 = vmatpush.bf16.msra.mxu0 %v200
  %288 = vmatpush.bf16.msra.mxu0 %v197
  %289 = vmatpush.bf16.msra.mxu0 %v194
  %290 = vmatpush.bf16.msra.mxu0 %v191
  %291 = vmatpush.bf16.msra.mxu0 %v188
  %292 = vmatmul.bf16.gmra.mxu0 %v91
  %v293 = vpop.f32.mrf.mxu0
  %v294 = vadd.f32 0.0, %v293
  %v295 = vpop.f32.mrf.mxu0
  %v296 = vadd.f32 0.0, %v295
  %297 = vmatmul.bf16.gmra.mxu0 %v92
  %v298 = vpop.f32.mrf.mxu0
  %v299 = vadd.f32 0.0, %v298
  %v300 = vpop.f32.mrf.mxu0
  %v301 = vadd.f32 0.0, %v300
  %302 = vmatmul.bf16.gmra.mxu0 %v93
  %v303 = vpop.f32.mrf.mxu0
  %v304 = vadd.f32 0.0, %v303
  %v305 = vpop.f32.mrf.mxu0
  %v306 = vadd.f32 0.0, %v305
  %307 = vmatmul.bf16.gmra.mxu0 %v94
  %v308 = vpop.f32.mrf.mxu0
  %v309 = vadd.f32 0.0, %v308
  %v310 = vpop.f32.mrf.mxu0
  %v311 = vadd.f32 0.0, %v310
  %312 = vmatmul.bf16.gmra.mxu0 %v95
  %v313 = vpop.f32.mrf.mxu0
  %v314 = vadd.f32 0.0, %v313
  %v315 = vpop.f32.mrf.mxu0
  %v316 = vadd.f32 0.0, %v315
  %317 = vmatmul.bf16.gmra.mxu0 %v96
  %v318 = vpop.f32.mrf.mxu0
  %v319 = vadd.f32 0.0, %v318
  %v320 = vpop.f32.mrf.mxu0
  %v321 = vadd.f32 0.0, %v320
  %322 = vmatmul.bf16.gmra.mxu0 %v97
  %v323 = vpop.f32.mrf.mxu0
  %v324 = vadd.f32 0.0, %v323
  %v325 = vpop.f32.mrf.mxu0
  %v326 = vadd.f32 0.0, %v325
  %327 = vmatmul.bf16.gmra.mxu0 %v98
  %v328 = vpop.f32.mrf.mxu0
  %v329 = vadd.f32 0.0, %v328
  %v330 = vpop.f32.mrf.mxu0
  %v331 = vadd.f32 0.0, %v330
  %332 = vdwg.mxu0
  %333 = vmatpush.bf16.msra.mxu0 %v210
  %334 = vmatpush.bf16.msra.mxu0 %v207
  %335 = vmatpush.bf16.msra.mxu0 %v204
  %336 = vmatpush.bf16.msra.mxu0 %v201
  %337 = vmatpush.bf16.msra.mxu0 %v198
  %338 = vmatpush.bf16.msra.mxu0 %v195
  %339 = vmatpush.bf16.msra.mxu0 %v192
  %340 = vmatpush.bf16.msra.mxu0 %v189
  %341 = vmatmul.bf16.gmra.mxu0 %v91
  %v342 = vpop.f32.mrf.mxu0
  %v343 = vadd.f32 0.0, %v342
  %v344 = vpop.f32.mrf.mxu0
  %v345 = vadd.f32 0.0, %v344
  %346 = vmatmul.bf16.gmra.mxu0 %v92
  %v347 = vpop.f32.mrf.mxu0
  %v348 = vadd.f32 0.0, %v347
  %v349 = vpop.f32.mrf.mxu0
  %v350 = vadd.f32 0.0, %v349
  %351 = vmatmul.bf16.gmra.mxu0 %v93
  %v352 = vpop.f32.mrf.mxu0
  %v353 = vadd.f32 0.0, %v352
  %v354 = vpop.f32.mrf.mxu0
  %v355 = vadd.f32 0.0, %v354
  %356 = vmatmul.bf16.gmra.mxu0 %v94
  %v357 = vpop.f32.mrf.mxu0
  %v358 = vadd.f32 0.0, %v357
  %v359 = vpop.f32.mrf.mxu0
  %v360 = vadd.f32 0.0, %v359
  %361 = vmatmul.bf16.gmra.mxu0 %v95
  %v362 = vpop.f32.mrf.mxu0
  %v363 = vadd.f32 0.0, %v362
  %v364 = vpop.f32.mrf.mxu0
  %v365 = vadd.f32 0.0, %v364
  %366 = vmatmul.bf16.gmra.mxu0 %v96
  %v367 = vpop.f32.mrf.mxu0
  %v368 = vadd.f32 0.0, %v367
  %v369 = vpop.f32.mrf.mxu0
  %v370 = vadd.f32 0.0, %v369
  %371 = vmatmul.bf16.gmra.mxu0 %v97
  %v372 = vpop.f32.mrf.mxu0
  %v373 = vadd.f32 0.0, %v372
  %v374 = vpop.f32.mrf.mxu0
  %v375 = vadd.f32 0.0, %v374
  %376 = vmatmul.bf16.gmra.mxu0 %v98
  %v377 = vpop.f32.mrf.mxu0
  %v378 = vadd.f32 0.0, %v377
  %v379 = vpop.f32.mrf.mxu0
  %v380 = vadd.f32 0.0, %v379
  %381 = vdwg.mxu0
  %382 = vst [vmem:[%s2] sm:$0xff] %v245
  %383 = vst [vmem:[%s2 + $0x8] sm:$0xff] %v294
  %384 = vst [vmem:[%s2 + $0x10] sm:$0xff] %v343
  %385 = vst [vmem:[%s2 + $0x18] sm:$0xff] %v247
  %386 = vst [vmem:[%s2 + $0x20] sm:$0xff] %v296
  %387 = vst [vmem:[%s2 + $0x28] sm:$0xff] %v345
  %388 = vst [vmem:[%s2 + $0x30] sm:$0xff] %v250
  %389 = vst [vmem:[%s2 + $0x38] sm:$0xff] %v299
  %390 = vst [vmem:[%s2 + $0x40] sm:$0xff] %v348
  %391 = vst [vmem:[%s2 + $0x48] sm:$0xff] %v252
  %392 = vst [vmem:[%s2 + $0x50] sm:$0xff] %v301
  %393 = vst [vmem:[%s2 + $0x58] sm:$0xff] %v350
  %394 = vst [vmem:[%s2 + $0x60] sm:$0xff] %v255
  %395 = vst [vmem:[%s2 + $0x68] sm:$0xff] %v304
  %396 = vst [vmem:[%s2 + $0x70] sm:$0xff] %v353
  %397 = vst [vmem:[%s2 + $0x78] sm:$0xff] %v257
  %398 = vst [vmem:[%s2 + $0x80] sm:$0xff] %v306
  %399 = vst [vmem:[%s2 + $0x88] sm:$0xff] %v355
  %400 = vst [vmem:[%s2 + $0x90] sm:$0xff] %v260
  %401 = vst [vmem:[%s2 + $0x98] sm:$0xff] %v309
  %402 = vst [vmem:[%s2 + $0xa0] sm:$0xff] %v358
  %403 = vst [vmem:[%s2 + $0xa8] sm:$0xff] %v262
  %404 = vst [vmem:[%s2 + $0xb0] sm:$0xff] %v311
  %405 = vst [vmem:[%s2 + $0xb8] sm:$0xff] %v360
  %406 = vst [vmem:[%s2 + $0xc0] sm:$0xff] %v265
  %407 = vst [vmem:[%s2 + $0xc8] sm:$0xff] %v314
  %408 = vst [vmem:[%s2 + $0xd0] sm:$0xff] %v363
  %409 = vst [vmem:[%s2 + $0xd8] sm:$0xff] %v267
  %410 = vst [vmem:[%s2 + $0xe0] sm:$0xff] %v316
  %411 = vst [vmem:[%s2 + $0xe8] sm:$0xff] %v365
  %412 = vst [vmem:[%s2 + $0xf0] sm:$0xff] %v270
  %413 = vst [vmem:[%s2 + $0xf8] sm:$0xff] %v319
  %414 = vst [vmem:[%s2 + $0x100] sm:$0xff] %v368
  %415 = vst [vmem:[%s2 + $0x108] sm:$0xff] %v272
  %416 = vst [vmem:[%s2 + $0x110] sm:$0xff] %v321
  %417 = vst [vmem:[%s2 + $0x118] sm:$0xff] %v370
  %418 = vst [vmem:[%s2 + $0x120] sm:$0xff] %v275
  %419 = vst [vmem:[%s2 + $0x128] sm:$0xff] %v324
  %420 = vst [vmem:[%s2 + $0x130] sm:$0xff] %v373
  %421 = vst [vmem:[%s2 + $0x138] sm:$0xff] %v277
  %422 = vst [vmem:[%s2 + $0x140] sm:$0xff] %v326
  %423 = vst [vmem:[%s2 + $0x148] sm:$0xff] %v375
  %424 = vst [vmem:[%s2 + $0x150] sm:$0xff] %v280
  %425 = vst [vmem:[%s2 + $0x158] sm:$0xff] %v329
  %426 = vst [vmem:[%s2 + $0x160] sm:$0xff] %v378
  %427 = vst [vmem:[%s2 + $0x168] sm:$0xff] %v282
  %428 = vst [vmem:[%s2 + $0x170] sm:$0xff] %v331
  %429 = vst [vmem:[%s2 + $0x178] sm:$0xff] %v380
  // Predicated region
  $region10: #{forward.25} parent=0 // pred_check
    _
  $region11: #{forward.25} parent=0 // pred_check_branch
    %431 = sbr.rel (0) target = $region13
  $region12: #{forward.25} parent=0 // pred_region
    _
  $region13: #{forward.25} parent=0 // pred_fallthru
    _
  // Predicated region
  $region14: #{forward.25} parent=0 // pred_check
    _
  $region15: #{forward.25} parent=0 // pred_check_branch
    %433 = sbr.rel (0) target = $region17
  $region16: #{forward.25} parent=0 // pred_region
    _
  $region17: #{forward.25} parent=0 // pred_fallthru
    _

// kernel: forward.36
$region0: #{forward.36}
  #allocation0 [shape = 'u32[]', space=smem, size = 0x4, offset = 0x4, fixed_abs, tag = 'smem constant byte address 0x4 - core index']
  #allocation1 [shape = 'u32[72,128]{1,0:T(1,128)}', space=vmem, size = 0x9000, scoped, tag = 'internal scratch']
  %s0 = inlined_call_operand.vmem [shape: f32[128,128], index: 0, kind: input, shape index: {}]
  %s1 = inlined_call_operand.vmem [shape: bf16[2,128,128], index: 1, kind: input, shape index: {}]
  %s2 = inlined_call_operand.vmem [shape: f32[2,1,128], index: 2, kind: input, shape index: {}]
  %s3 = inlined_call_operand.vmem [shape: bf16[2,128,128], index: 3, kind: input, shape index: {}]
  %s4 = inlined_call_operand.vmem [shape: f32[2,1,128], index: 4, kind: input, shape index: {}]
  %s5 = inlined_call_operand.vmem [shape: f32[128,128], index: 5, kind: output, shape index: {}]
  %s6 = sld [smem:[#allocation0]]
  $region30: #{forward.36} parent=0
    _
  %s8 = ssub.s32 1, %s6
  %s9 = scalar_select 0, %s8, %s6
  // Predicated region
  $region2: #{forward.36} parent=0 // pred_check
    _
  $region3: #{forward.36} parent=0 // pred_check_branch
    %11 = sbr.rel (0) target = $region5
  $region4: #{forward.36} parent=0 // pred_region
    _
  $region5: #{forward.36} parent=0 // pred_fallthru
    _
  // Predicated region
  $region6: #{forward.36} parent=0 // pred_check
    _
  $region7: #{forward.36} parent=0 // pred_check_branch
    %13 = sbr.rel (0) target = $region9
  $region8: #{forward.36} parent=0 // pred_region
    _
  $region9: #{forward.36} parent=0 // pred_fallthru
    _
  // Predicated region
  $region10: #{forward.36} parent=0 // pred_check
    _
  $region11: #{forward.36} parent=0 // pred_check_branch
    %15 = sbr.rel (0) target = $region13
  $region12: #{forward.36} parent=0 // pred_region
    _
  $region13: #{forward.36} parent=0 // pred_fallthru
    _
  // Predicated region
  $region14: #{forward.36} parent=0 // pred_check
    _
  $region15: #{forward.36} parent=0 // pred_check_branch
    %17 = sbr.rel (0) target = $region17
  $region16: #{forward.36} parent=0 // pred_region
    _
  $region17: #{forward.36} parent=0 // pred_fallthru
    _
  // Predicated region
  $region18: #{forward.36} parent=0 // pred_check
    _
  $region19: #{forward.36} parent=0 // pred_check_branch
    %19 = sbr.rel (0) target = $region21
  $region20: #{forward.36} parent=0 // pred_region
    _
  $region21: #{forward.36} parent=0 // pred_fallthru
    _
  %v20 = vld [vmem:[%s0] sm:$0xff]
  %v21 = vld [vmem:[%s0 + $0x8] sm:$0xff]
  %v22 = vld [vmem:[%s0 + $0x10] sm:$0xff]
  %v23 = vld [vmem:[%s0 + $0x18] sm:$0xff]
  %v24 = vld [vmem:[%s0 + $0x20] sm:$0xff]
  %v25 = vld [vmem:[%s0 + $0x28] sm:$0xff]
  %v26 = vld [vmem:[%s0 + $0x30] sm:$0xff]
  %v27 = vld [vmem:[%s0 + $0x38] sm:$0xff]
  %v28 = vld [vmem:[%s0 + $0x40] sm:$0xff]
  %v29 = vld [vmem:[%s0 + $0x48] sm:$0xff]
  %v30 = vld [vmem:[%s0 + $0x50] sm:$0xff]
  %v31 = vld [vmem:[%s0 + $0x58] sm:$0xff]
  %v32 = vld [vmem:[%s0 + $0x60] sm:$0xff]
  %v33 = vld [vmem:[%s0 + $0x68] sm:$0xff]
  %v34 = vld [vmem:[%s0 + $0x70] sm:$0xff]
  %v35 = vld [vmem:[%s0 + $0x78] sm:$0xff]
  %v36 = vpack.c.bf16 %v21, %v20
  %v37 = vpack.c.bf16 %v23, %v22
  %v38 = vpack.c.bf16 %v25, %v24
  %v39 = vpack.c.bf16 %v27, %v26
  %v40 = vpack.c.bf16 %v29, %v28
  %v41 = vpack.c.bf16 %v31, %v30
  %v42 = vpack.c.bf16 %v33, %v32
  %v43 = vpack.c.bf16 %v35, %v34
  %v44 = vld [vmem:[%s1] sm:$0xf]
  %v45 = vld [vmem:[%s1 + $0x4] sm:$0xf]
  %v46 = vld [vmem:[%s1 + $0x8] sm:$0xf]
  %v47 = vld [vmem:[%s1 + $0xc] sm:$0xf]
  %v48 = vld [vmem:[%s1 + $0x10] sm:$0xf]
  %v49 = vld [vmem:[%s1 + $0x14] sm:$0xf]
  %v50 = vld [vmem:[%s1 + $0x18] sm:$0xf]
  %v51 = vld [vmem:[%s1 + $0x1c] sm:$0xf]
  %v52 = vld [vmem:[%s1 + $0x20] sm:$0xf]
  %v53 = vld [vmem:[%s1 + $0x24] sm:$0xf]
  %v54 = vld [vmem:[%s1 + $0x28] sm:$0xf]
  %v55 = vld [vmem:[%s1 + $0x2c] sm:$0xf]
  %v56 = vld [vmem:[%s1 + $0x30] sm:$0xf]
  %v57 = vld [vmem:[%s1 + $0x34] sm:$0xf]
  %v58 = vld [vmem:[%s1 + $0x38] sm:$0xf]
  %v59 = vld [vmem:[%s1 + $0x3c] sm:$0xf]
  %v60 = vld [vmem:[%s2] sm:$0x1]
  %v62 = vperm.slane %v60, 0
  %v80 = vunpack.c.l.b16 %v44
  %v81 = vunpack.c.l.b16 %v45
  %v82 = vunpack.c.l.b16 %v46
  %v83 = vunpack.c.l.b16 %v47
  %v84 = vunpack.c.l.b16 %v48
  %v85 = vunpack.c.l.b16 %v49
  %v86 = vunpack.c.l.b16 %v50
  %v87 = vunpack.c.l.b16 %v51
  %v88 = vunpack.c.l.b16 %v52
  %v89 = vunpack.c.l.b16 %v53
  %v90 = vunpack.c.l.b16 %v54
  %v91 = vunpack.c.l.b16 %v55
  %v92 = vunpack.c.l.b16 %v56
  %v93 = vunpack.c.l.b16 %v57
  %v94 = vunpack.c.l.b16 %v58
  %v95 = vunpack.c.l.b16 %v59
  %v96 = vpack.c.b16 %v81, %v80
  %v97 = vpack.c.b16 %v83, %v82
  %v98 = vpack.c.b16 %v85, %v84
  %v99 = vpack.c.b16 %v87, %v86
  %v100 = vpack.c.b16 %v89, %v88
  %v101 = vpack.c.b16 %v91, %v90
  %v102 = vpack.c.b16 %v93, %v92
  %v103 = vpack.c.b16 %v95, %v94
  %112 = vmatpush.bf16.msra.mxu0 %v103
  %113 = vmatpush.bf16.msra.mxu0 %v102
  %114 = vmatpush.bf16.msra.mxu0 %v101
  %115 = vmatpush.bf16.msra.mxu0 %v100
  %116 = vmatpush.bf16.msra.mxu0 %v99
  %117 = vmatpush.bf16.msra.mxu0 %v98
  %118 = vmatpush.bf16.msra.mxu0 %v97
  %119 = vmatpush.bf16.msra.mxu0 %v96
  %120 = vmatmul.bf16.gmra.mxu0 %v36
  %v121 = vpop.f32.mrf.mxu0
  %v122 = vadd.f32 %v62, %v121
  %v123 = vpop.f32.mrf.mxu0
  %v124 = vadd.f32 %v62, %v123
  %125 = vmatmul.bf16.gmra.mxu0 %v37
  %v126 = vpop.f32.mrf.mxu0
  %v127 = vadd.f32 %v62, %v126
  %v128 = vpop.f32.mrf.mxu0
  %v129 = vadd.f32 %v62, %v128
  %130 = vmatmul.bf16.gmra.mxu0 %v38
  %v131 = vpop.f32.mrf.mxu0
  %v132 = vadd.f32 %v62, %v131
  %v133 = vpop.f32.mrf.mxu0
  %v134 = vadd.f32 %v62, %v133
  %135 = vmatmul.bf16.gmra.mxu0 %v39
  %v136 = vpop.f32.mrf.mxu0
  %v137 = vadd.f32 %v62, %v136
  %v138 = vpop.f32.mrf.mxu0
  %v139 = vadd.f32 %v62, %v138
  %140 = vmatmul.bf16.gmra.mxu0 %v40
  %v141 = vpop.f32.mrf.mxu0
  %v142 = vadd.f32 %v62, %v141
  %v143 = vpop.f32.mrf.mxu0
  %v144 = vadd.f32 %v62, %v143
  %145 = vmatmul.bf16.gmra.mxu0 %v41
  %v146 = vpop.f32.mrf.mxu0
  %v147 = vadd.f32 %v62, %v146
  %v148 = vpop.f32.mrf.mxu0
  %v149 = vadd.f32 %v62, %v148
  %150 = vmatmul.bf16.gmra.mxu0 %v42
  %v151 = vpop.f32.mrf.mxu0
  %v152 = vadd.f32 %v62, %v151
  %v153 = vpop.f32.mrf.mxu0
  %v154 = vadd.f32 %v62, %v153
  %155 = vmatmul.bf16.gmra.mxu0 %v43
  %v156 = vpop.f32.mrf.mxu0
  %v157 = vadd.f32 %v62, %v156
  %v158 = vpop.f32.mrf.mxu0
  %v159 = vadd.f32 %v62, %v158
  %160 = vdwg.mxu0
  %v161 = vxor.u32 %v122, 2147483648
  %v162 = vxor.u32 %v124, 2147483648
  %v163 = vxor.u32 %v127, 2147483648
  %v164 = vxor.u32 %v129, 2147483648
  %v165 = vxor.u32 %v132, 2147483648
  %v166 = vxor.u32 %v134, 2147483648
  %v167 = vxor.u32 %v137, 2147483648
  %v168 = vxor.u32 %v139, 2147483648
  %v169 = vxor.u32 %v142, 2147483648
  %v170 = vxor.u32 %v144, 2147483648
  %v171 = vxor.u32 %v147, 2147483648
  %v172 = vxor.u32 %v149, 2147483648
  %v173 = vxor.u32 %v152, 2147483648
  %v174 = vxor.u32 %v154, 2147483648
  %v175 = vxor.u32 %v157, 2147483648
  %v176 = vxor.u32 %v159, 2147483648
  %v177 = vmul.f32 %v161, 1.442695
  %v178 = vpow.pop %v177
  %v179 = vmul.f32 %v162, 1.442695
  %v180 = vpow.pop %v179
  %v181 = vmul.f32 %v163, 1.442695
  %v182 = vpow.pop %v181
  %v183 = vmul.f32 %v164, 1.442695
  %v184 = vpow.pop %v183
  %v185 = vmul.f32 %v165, 1.442695
  %v186 = vpow.pop %v185
  %v187 = vmul.f32 %v166, 1.442695
  %v188 = vpow.pop %v187
  %v189 = vmul.f32 %v167, 1.442695
  %v190 = vpow.pop %v189
  %v191 = vmul.f32 %v168, 1.442695
  %v192 = vpow.pop %v191
  %v193 = vmul.f32 %v169, 1.442695
  %v194 = vpow.pop %v193
  %v195 = vmul.f32 %v170, 1.442695
  %v196 = vpow.pop %v195
  %v197 = vmul.f32 %v171, 1.442695
  %v198 = vpow.pop %v197
  %v199 = vmul.f32 %v172, 1.442695
  %v200 = vpow.pop %v199
  %v201 = vmul.f32 %v173, 1.442695
  %v202 = vpow.pop %v201
  %v203 = vmul.f32 %v174, 1.442695
  %v204 = vpow.pop %v203
  %v205 = vmul.f32 %v175, 1.442695
  %v206 = vpow.pop %v205
  %v207 = vmul.f32 %v176, 1.442695
  %v208 = vpow.pop %v207
  %v209 = vadd.f32 %v178, 1.0
  %v210 = vadd.f32 %v180, 1.0
  %v211 = vadd.f32 %v182, 1.0
  %v212 = vadd.f32 %v184, 1.0
  %v213 = vadd.f32 %v186, 1.0
  %v214 = vadd.f32 %v188, 1.0
  %v215 = vadd.f32 %v190, 1.0
  %v216 = vadd.f32 %v192, 1.0
  %v217 = vadd.f32 %v194, 1.0
  %v218 = vadd.f32 %v196, 1.0
  %v219 = vadd.f32 %v198, 1.0
  %v220 = vadd.f32 %v200, 1.0
  %v221 = vadd.f32 %v202, 1.0
  %v222 = vadd.f32 %v204, 1.0
  %v223 = vadd.f32 %v206, 1.0
  %v224 = vadd.f32 %v208, 1.0
  %v225 = vrcp.pop %v209
  %v226 = vmul.f32 %v209, %v225
  %v227 = vsub.f32 1.0, %v226
  %v228 = vmul.f32 %v225, %v227
  %v229 = vadd.f32 %v225, %v228
  %vm230 = vweird.f32 %v209
  %vm231 = vweird.f32 %v225
  %vm232 = vmor %vm230, %vm231
  %v233 = vsel %vm232, %v225, %v229
  %v234 = vand.u32 2147483647, %v209
  %vm235 = vcmp.eq.f32.partialorder %v234, 8.507059e+37
  %v236 = vand.u32 %v209, 2147483648
  %v237 = vor.u32 1.1754944e-38, %v236
  %v238 = vsel %vm235, %v237, %v233
  %v239 = vmul.f32 1.0, %v238
  %v240 = vrcp.pop %v210
  %v241 = vmul.f32 %v210, %v240
  %v242 = vsub.f32 1.0, %v241
  %v243 = vmul.f32 %v240, %v242
  %v244 = vadd.f32 %v240, %v243
  %vm245 = vweird.f32 %v210
  %vm246 = vweird.f32 %v240
  %vm247 = vmor %vm245, %vm246
  %v248 = vsel %vm247, %v240, %v244
  %v249 = vand.u32 2147483647, %v210
  %vm250 = vcmp.eq.f32.partialorder %v249, 8.507059e+37
  %v251 = vand.u32 %v210, 2147483648
  %v252 = vor.u32 1.1754944e-38, %v251
  %v253 = vsel %vm250, %v252, %v248
  %v254 = vmul.f32 1.0, %v253
  %v255 = vrcp.pop %v211
  %v256 = vmul.f32 %v211, %v255
  %v257 = vsub.f32 1.0, %v256
  %v258 = vmul.f32 %v255, %v257
  %v259 = vadd.f32 %v255, %v258
  %vm260 = vweird.f32 %v211
  %vm261 = vweird.f32 %v255
  %vm262 = vmor %vm260, %vm261
  %v263 = vsel %vm262, %v255, %v259
  %v264 = vand.u32 2147483647, %v211
  %vm265 = vcmp.eq.f32.partialorder %v264, 8.507059e+37
  %v266 = vand.u32 %v211, 2147483648
  %v267 = vor.u32 1.1754944e-38, %v266
  %v268 = vsel %vm265, %v267, %v263
  %v269 = vmul.f32 1.0, %v268
  %v270 = vrcp.pop %v212
  %v271 = vmul.f32 %v212, %v270
  %v272 = vsub.f32 1.0, %v271
  %v273 = vmul.f32 %v270, %v272
  %v274 = vadd.f32 %v270, %v273
  %vm275 = vweird.f32 %v212
  %vm276 = vweird.f32 %v270
  %vm277 = vmor %vm275, %vm276
  %v278 = vsel %vm277, %v270, %v274
  %v279 = vand.u32 2147483647, %v212
  %vm280 = vcmp.eq.f32.partialorder %v279, 8.507059e+37
  %v281 = vand.u32 %v212, 2147483648
  %v282 = vor.u32 1.1754944e-38, %v281
  %v283 = vsel %vm280, %v282, %v278
  %v284 = vmul.f32 1.0, %v283
  %v285 = vrcp.pop %v213
  %v286 = vmul.f32 %v213, %v285
  %v287 = vsub.f32 1.0, %v286
  %v288 = vmul.f32 %v285, %v287
  %v289 = vadd.f32 %v285, %v288
  %vm290 = vweird.f32 %v213
  %vm291 = vweird.f32 %v285
  %vm292 = vmor %vm290, %vm291
  %v293 = vsel %vm292, %v285, %v289
  %v294 = vand.u32 2147483647, %v213
  %vm295 = vcmp.eq.f32.partialorder %v294, 8.507059e+37
  %v296 = vand.u32 %v213, 2147483648
  %v297 = vor.u32 1.1754944e-38, %v296
  %v298 = vsel %vm295, %v297, %v293
  %v299 = vmul.f32 1.0, %v298
  %v300 = vrcp.pop %v214
  %v301 = vmul.f32 %v214, %v300
  %v302 = vsub.f32 1.0, %v301
  %v303 = vmul.f32 %v300, %v302
  %v304 = vadd.f32 %v300, %v303
  %vm305 = vweird.f32 %v214
  %vm306 = vweird.f32 %v300
  %vm307 = vmor %vm305, %vm306
  %v308 = vsel %vm307, %v300, %v304
  %v309 = vand.u32 2147483647, %v214
  %vm310 = vcmp.eq.f32.partialorder %v309, 8.507059e+37
  %v311 = vand.u32 %v214, 2147483648
  %v312 = vor.u32 1.1754944e-38, %v311
  %v313 = vsel %vm310, %v312, %v308
  %v314 = vmul.f32 1.0, %v313
  %v315 = vrcp.pop %v215
  %v316 = vmul.f32 %v215, %v315
  %v317 = vsub.f32 1.0, %v316
  %v318 = vmul.f32 %v315, %v317
  %v319 = vadd.f32 %v315, %v318
  %vm320 = vweird.f32 %v215
  %vm321 = vweird.f32 %v315
  %vm322 = vmor %vm320, %vm321
  %v323 = vsel %vm322, %v315, %v319
  %v324 = vand.u32 2147483647, %v215
  %vm325 = vcmp.eq.f32.partialorder %v324, 8.507059e+37
  %v326 = vand.u32 %v215, 2147483648
  %v327 = vor.u32 1.1754944e-38, %v326
  %v328 = vsel %vm325, %v327, %v323
  %v329 = vmul.f32 1.0, %v328
  %v330 = vrcp.pop %v216
  %v331 = vmul.f32 %v216, %v330
  %v332 = vsub.f32 1.0, %v331
  %v333 = vmul.f32 %v330, %v332
  %v334 = vadd.f32 %v330, %v333
  %vm335 = vweird.f32 %v216
  %vm336 = vweird.f32 %v330
  %vm337 = vmor %vm335, %vm336
  %v338 = vsel %vm337, %v330, %v334
  %v339 = vand.u32 2147483647, %v216
  %vm340 = vcmp.eq.f32.partialorder %v339, 8.507059e+37
  %v341 = vand.u32 %v216, 2147483648
  %v342 = vor.u32 1.1754944e-38, %v341
  %v343 = vsel %vm340, %v342, %v338
  %v344 = vmul.f32 1.0, %v343
  %v345 = vrcp.pop %v217
  %v346 = vmul.f32 %v217, %v345
  %v347 = vsub.f32 1.0, %v346
  %v348 = vmul.f32 %v345, %v347
  %v349 = vadd.f32 %v345, %v348
  %vm350 = vweird.f32 %v217
  %vm351 = vweird.f32 %v345
  %vm352 = vmor %vm350, %vm351
  %v353 = vsel %vm352, %v345, %v349
  %v354 = vand.u32 2147483647, %v217
  %vm355 = vcmp.eq.f32.partialorder %v354, 8.507059e+37
  %v356 = vand.u32 %v217, 2147483648
  %v357 = vor.u32 1.1754944e-38, %v356
  %v358 = vsel %vm355, %v357, %v353
  %v359 = vmul.f32 1.0, %v358
  %v360 = vrcp.pop %v218
  %v361 = vmul.f32 %v218, %v360
  %v362 = vsub.f32 1.0, %v361
  %v363 = vmul.f32 %v360, %v362
  %v364 = vadd.f32 %v360, %v363
  %vm365 = vweird.f32 %v218
  %vm366 = vweird.f32 %v360
  %vm367 = vmor %vm365, %vm366
  %v368 = vsel %vm367, %v360, %v364
  %v369 = vand.u32 2147483647, %v218
  %vm370 = vcmp.eq.f32.partialorder %v369, 8.507059e+37
  %v371 = vand.u32 %v218, 2147483648
  %v372 = vor.u32 1.1754944e-38, %v371
  %v373 = vsel %vm370, %v372, %v368
  %v374 = vmul.f32 1.0, %v373
  %v375 = vrcp.pop %v219
  %v376 = vmul.f32 %v219, %v375
  %v377 = vsub.f32 1.0, %v376
  %v378 = vmul.f32 %v375, %v377
  %v379 = vadd.f32 %v375, %v378
  %vm380 = vweird.f32 %v219
  %vm381 = vweird.f32 %v375
  %vm382 = vmor %vm380, %vm381
  %v383 = vsel %vm382, %v375, %v379
  %v384 = vand.u32 2147483647, %v219
  %vm385 = vcmp.eq.f32.partialorder %v384, 8.507059e+37
  %v386 = vand.u32 %v219, 2147483648
  %v387 = vor.u32 1.1754944e-38, %v386
  %v388 = vsel %vm385, %v387, %v383
  %v389 = vmul.f32 1.0, %v388
  %v390 = vrcp.pop %v220
  %v391 = vmul.f32 %v220, %v390
  %v392 = vsub.f32 1.0, %v391
  %v393 = vmul.f32 %v390, %v392
  %v394 = vadd.f32 %v390, %v393
  %vm395 = vweird.f32 %v220
  %vm396 = vweird.f32 %v390
  %vm397 = vmor %vm395, %vm396
  %v398 = vsel %vm397, %v390, %v394
  %v399 = vand.u32 2147483647, %v220
  %vm400 = vcmp.eq.f32.partialorder %v399, 8.507059e+37
  %v401 = vand.u32 %v220, 2147483648
  %v402 = vor.u32 1.1754944e-38, %v401
  %v403 = vsel %vm400, %v402, %v398
  %v404 = vmul.f32 1.0, %v403
  %v405 = vrcp.pop %v221
  %v406 = vmul.f32 %v221, %v405
  %v407 = vsub.f32 1.0, %v406
  %v408 = vmul.f32 %v405, %v407
  %v409 = vadd.f32 %v405, %v408
  %vm410 = vweird.f32 %v221
  %vm411 = vweird.f32 %v405
  %vm412 = vmor %vm410, %vm411
  %v413 = vsel %vm412, %v405, %v409
  %v414 = vand.u32 2147483647, %v221
  %vm415 = vcmp.eq.f32.partialorder %v414, 8.507059e+37
  %v416 = vand.u32 %v221, 2147483648
  %v417 = vor.u32 1.1754944e-38, %v416
  %v418 = vsel %vm415, %v417, %v413
  %v419 = vmul.f32 1.0, %v418
  %v420 = vrcp.pop %v222
  %v421 = vmul.f32 %v222, %v420
  %v422 = vsub.f32 1.0, %v421
  %v423 = vmul.f32 %v420, %v422
  %v424 = vadd.f32 %v420, %v423
  %vm425 = vweird.f32 %v222
  %vm426 = vweird.f32 %v420
  %vm427 = vmor %vm425, %vm426
  %v428 = vsel %vm427, %v420, %v424
  %v429 = vand.u32 2147483647, %v222
  %vm430 = vcmp.eq.f32.partialorder %v429, 8.507059e+37
  %v431 = vand.u32 %v222, 2147483648
  %v432 = vor.u32 1.1754944e-38, %v431
  %v433 = vsel %vm430, %v432, %v428
  %v434 = vmul.f32 1.0, %v433
  %v435 = vrcp.pop %v223
  %v436 = vmul.f32 %v223, %v435
  %v437 = vsub.f32 1.0, %v436
  %v438 = vmul.f32 %v435, %v437
  %v439 = vadd.f32 %v435, %v438
  %vm440 = vweird.f32 %v223
  %vm441 = vweird.f32 %v435
  %vm442 = vmor %vm440, %vm441
  %v443 = vsel %vm442, %v435, %v439
  %v444 = vand.u32 2147483647, %v223
  %vm445 = vcmp.eq.f32.partialorder %v444, 8.507059e+37
  %v446 = vand.u32 %v223, 2147483648
  %v447 = vor.u32 1.1754944e-38, %v446
  %v448 = vsel %vm445, %v447, %v443
  %v449 = vmul.f32 1.0, %v448
  %v450 = vrcp.pop %v224
  %v451 = vmul.f32 %v224, %v450
  %v452 = vsub.f32 1.0, %v451
  %v453 = vmul.f32 %v450, %v452
  %v454 = vadd.f32 %v450, %v453
  %vm455 = vweird.f32 %v224
  %vm456 = vweird.f32 %v450
  %vm457 = vmor %vm455, %vm456
  %v458 = vsel %vm457, %v450, %v454
  %v459 = vand.u32 2147483647, %v224
  %vm460 = vcmp.eq.f32.partialorder %v459, 8.507059e+37
  %v461 = vand.u32 %v224, 2147483648
  %v462 = vor.u32 1.1754944e-38, %v461
  %v463 = vsel %vm460, %v462, %v458
  %v464 = vmul.f32 1.0, %v463
  %v465 = vmul.f32 %v122, %v239
  %v466 = vmul.f32 %v124, %v254
  %v467 = vmul.f32 %v127, %v269
  %v468 = vmul.f32 %v129, %v284
  %v469 = vmul.f32 %v132, %v299
  %v470 = vmul.f32 %v134, %v314
  %v471 = vmul.f32 %v137, %v329
  %v472 = vmul.f32 %v139, %v344
  %v473 = vmul.f32 %v142, %v359
  %v474 = vmul.f32 %v144, %v374
  %v475 = vmul.f32 %v147, %v389
  %v476 = vmul.f32 %v149, %v404
  %v477 = vmul.f32 %v152, %v419
  %v478 = vmul.f32 %v154, %v434
  %v479 = vmul.f32 %v157, %v449
  %v480 = vmul.f32 %v159, %v464
  %v481 = vpack.c.bf16 %v466, %v465
  %v482 = vpack.c.bf16 %v468, %v467
  %v483 = vpack.c.bf16 %v470, %v469
  %v484 = vpack.c.bf16 %v472, %v471
  %v485 = vpack.c.bf16 %v474, %v473
  %v486 = vpack.c.bf16 %v476, %v475
  %v487 = vpack.c.bf16 %v478, %v477
  %v488 = vpack.c.bf16 %v480, %v479
  %v489 = vld [vmem:[%s3] sm:$0xf]
  %v490 = vld [vmem:[%s3 + $0x4] sm:$0xf]
  %v491 = vld [vmem:[%s3 + $0x8] sm:$0xf]
  %v492 = vld [vmem:[%s3 + $0xc] sm:$0xf]
  %v493 = vld [vmem:[%s3 + $0x10] sm:$0xf]
  %v494 = vld [vmem:[%s3 + $0x14] sm:$0xf]
  %v495 = vld [vmem:[%s3 + $0x18] sm:$0xf]
  %v496 = vld [vmem:[%s3 + $0x1c] sm:$0xf]
  %v497 = vld [vmem:[%s3 + $0x20] sm:$0xf]
  %v498 = vld [vmem:[%s3 + $0x24] sm:$0xf]
  %v499 = vld [vmem:[%s3 + $0x28] sm:$0xf]
  %v500 = vld [vmem:[%s3 + $0x2c] sm:$0xf]
  %v501 = vld [vmem:[%s3 + $0x30] sm:$0xf]
  %v502 = vld [vmem:[%s3 + $0x34] sm:$0xf]
  %v503 = vld [vmem:[%s3 + $0x38] sm:$0xf]
  %v504 = vld [vmem:[%s3 + $0x3c] sm:$0xf]
  %v505 = vld [vmem:[%s4] sm:$0x1]
  %v507 = vperm.slane %v505, 0
  %v525 = vunpack.c.l.b16 %v489
  %v526 = vunpack.c.l.b16 %v490
  %v527 = vunpack.c.l.b16 %v491
  %v528 = vunpack.c.l.b16 %v492
  %v529 = vunpack.c.l.b16 %v493
  %v530 = vunpack.c.l.b16 %v494
  %v531 = vunpack.c.l.b16 %v495
  %v532 = vunpack.c.l.b16 %v496
  %v533 = vunpack.c.l.b16 %v497
  %v534 = vunpack.c.l.b16 %v498
  %v535 = vunpack.c.l.b16 %v499
  %v536 = vunpack.c.l.b16 %v500
  %v537 = vunpack.c.l.b16 %v501
  %v538 = vunpack.c.l.b16 %v502
  %v539 = vunpack.c.l.b16 %v503
  %v540 = vunpack.c.l.b16 %v504
  %v541 = vpack.c.b16 %v526, %v525
  %v542 = vpack.c.b16 %v528, %v527
  %v543 = vpack.c.b16 %v530, %v529
  %v544 = vpack.c.b16 %v532, %v531
  %v545 = vpack.c.b16 %v534, %v533
  %v546 = vpack.c.b16 %v536, %v535
  %v547 = vpack.c.b16 %v538, %v537
  %v548 = vpack.c.b16 %v540, %v539
  %557 = vmatpush.bf16.msra.mxu0 %v548
  %558 = vmatpush.bf16.msra.mxu0 %v547
  %559 = vmatpush.bf16.msra.mxu0 %v546
  %560 = vmatpush.bf16.msra.mxu0 %v545
  %561 = vmatpush.bf16.msra.mxu0 %v544
  %562 = vmatpush.bf16.msra.mxu0 %v543
  %563 = vmatpush.bf16.msra.mxu0 %v542
  %564 = vmatpush.bf16.msra.mxu0 %v541
  %565 = vmatmul.bf16.gmra.mxu0 %v481
  %v566 = vpop.f32.mrf.mxu0
  %v567 = vadd.f32 %v507, %v566
  %v568 = vpop.f32.mrf.mxu0
  %v569 = vadd.f32 %v507, %v568
  %570 = vmatmul.bf16.gmra.mxu0 %v482
  %v571 = vpop.f32.mrf.mxu0
  %v572 = vadd.f32 %v507, %v571
  %v573 = vpop.f32.mrf.mxu0
  %v574 = vadd.f32 %v507, %v573
  %575 = vmatmul.bf16.gmra.mxu0 %v483
  %v576 = vpop.f32.mrf.mxu0
  %v577 = vadd.f32 %v507, %v576
  %v578 = vpop.f32.mrf.mxu0
  %v579 = vadd.f32 %v507, %v578
  %580 = vmatmul.bf16.gmra.mxu0 %v484
  %v581 = vpop.f32.mrf.mxu0
  %v582 = vadd.f32 %v507, %v581
  %v583 = vpop.f32.mrf.mxu0
  %v584 = vadd.f32 %v507, %v583
  %585 = vmatmul.bf16.gmra.mxu0 %v485
  %v586 = vpop.f32.mrf.mxu0
  %v587 = vadd.f32 %v507, %v586
  %v588 = vpop.f32.mrf.mxu0
  %v589 = vadd.f32 %v507, %v588
  %590 = vmatmul.bf16.gmra.mxu0 %v486
  %v591 = vpop.f32.mrf.mxu0
  %v592 = vadd.f32 %v507, %v591
  %v593 = vpop.f32.mrf.mxu0
  %v594 = vadd.f32 %v507, %v593
  %595 = vmatmul.bf16.gmra.mxu0 %v487
  %v596 = vpop.f32.mrf.mxu0
  %v597 = vadd.f32 %v507, %v596
  %v598 = vpop.f32.mrf.mxu0
  %v599 = vadd.f32 %v507, %v598
  %600 = vmatmul.bf16.gmra.mxu0 %v488
  %v601 = vpop.f32.mrf.mxu0
  %v602 = vadd.f32 %v507, %v601
  %v603 = vpop.f32.mrf.mxu0
  %v604 = vadd.f32 %v507, %v603
  %605 = vdwg.mxu0
  %v606 = vxor.u32 %v567, 2147483648
  %v607 = vxor.u32 %v569, 2147483648
  %v608 = vxor.u32 %v572, 2147483648
  %v609 = vxor.u32 %v574, 2147483648
  %v610 = vxor.u32 %v577, 2147483648
  %v611 = vxor.u32 %v579, 2147483648
  %v612 = vxor.u32 %v582, 2147483648
  %v613 = vxor.u32 %v584, 2147483648
  %v614 = vxor.u32 %v587, 2147483648
  %v615 = vxor.u32 %v589, 2147483648
  %v616 = vxor.u32 %v592, 2147483648
  %v617 = vxor.u32 %v594, 2147483648
  %v618 = vxor.u32 %v597, 2147483648
  %v619 = vxor.u32 %v599, 2147483648
  %v620 = vxor.u32 %v602, 2147483648
  %v621 = vxor.u32 %v604, 2147483648
  %v622 = vmul.f32 %v606, 1.442695
  %v623 = vpow.pop %v622
  %v624 = vmul.f32 %v607, 1.442695
  %v625 = vpow.pop %v624
  %v626 = vmul.f32 %v608, 1.442695
  %v627 = vpow.pop %v626
  %v628 = vmul.f32 %v609, 1.442695
  %v629 = vpow.pop %v628
  %v630 = vmul.f32 %v610, 1.442695
  %v631 = vpow.pop %v630
  %v632 = vmul.f32 %v611, 1.442695
  %v633 = vpow.pop %v632
  %v634 = vmul.f32 %v612, 1.442695
  %v635 = vpow.pop %v634
  %v636 = vmul.f32 %v613, 1.442695
  %v637 = vpow.pop %v636
  %v638 = vmul.f32 %v614, 1.442695
  %v639 = vpow.pop %v638
  %v640 = vmul.f32 %v615, 1.442695
  %v641 = vpow.pop %v640
  %v642 = vmul.f32 %v616, 1.442695
  %v643 = vpow.pop %v642
  %v644 = vmul.f32 %v617, 1.442695
  %v645 = vpow.pop %v644
  %v646 = vmul.f32 %v618, 1.442695
  %v647 = vpow.pop %v646
  %v648 = vmul.f32 %v619, 1.442695
  %v649 = vpow.pop %v648
  %v650 = vmul.f32 %v620, 1.442695
  %v651 = vpow.pop %v650
  %v652 = vmul.f32 %v621, 1.442695
  %v653 = vpow.pop %v652
  %v654 = vadd.f32 %v623, 1.0
  %v655 = vadd.f32 %v625, 1.0
  %v656 = vadd.f32 %v627, 1.0
  %v657 = vadd.f32 %v629, 1.0
  %v658 = vadd.f32 %v631, 1.0
  %v659 = vadd.f32 %v633, 1.0
  %v660 = vadd.f32 %v635, 1.0
  %v661 = vadd.f32 %v637, 1.0
  %v662 = vadd.f32 %v639, 1.0
  %v663 = vadd.f32 %v641, 1.0
  %v664 = vadd.f32 %v643, 1.0
  %v665 = vadd.f32 %v645, 1.0
  %v666 = vadd.f32 %v647, 1.0
  %v667 = vadd.f32 %v649, 1.0
  %v668 = vadd.f32 %v651, 1.0
  %v669 = vadd.f32 %v653, 1.0
  %v670 = vrcp.pop %v654
  %v671 = vmul.f32 %v654, %v670
  %v672 = vsub.f32 1.0, %v671
  %v673 = vmul.f32 %v670, %v672
  %v674 = vadd.f32 %v670, %v673
  %vm675 = vweird.f32 %v654
  %vm676 = vweird.f32 %v670
  %vm677 = vmor %vm675, %vm676
  %v678 = vsel %vm677, %v670, %v674
  %v679 = vand.u32 2147483647, %v654
  %vm680 = vcmp.eq.f32.partialorder %v679, 8.507059e+37
  %v681 = vand.u32 %v654, 2147483648
  %v682 = vor.u32 1.1754944e-38, %v681
  %v683 = vsel %vm680, %v682, %v678
  %v684 = vmul.f32 1.0, %v683
  %v685 = vrcp.pop %v655
  %v686 = vmul.f32 %v655, %v685
  %v687 = vsub.f32 1.0, %v686
  %v688 = vmul.f32 %v685, %v687
  %v689 = vadd.f32 %v685, %v688
  %vm690 = vweird.f32 %v655
  %vm691 = vweird.f32 %v685
  %vm692 = vmor %vm690, %vm691
  %v693 = vsel %vm692, %v685, %v689
  %v694 = vand.u32 2147483647, %v655
  %vm695 = vcmp.eq.f32.partialorder %v694, 8.507059e+37
  %v696 = vand.u32 %v655, 2147483648
  %v697 = vor.u32 1.1754944e-38, %v696
  %v698 = vsel %vm695, %v697, %v693
  %v699 = vmul.f32 1.0, %v698
  %v700 = vrcp.pop %v656
  %v701 = vmul.f32 %v656, %v700
  %v702 = vsub.f32 1.0, %v701
  %v703 = vmul.f32 %v700, %v702
  %v704 = vadd.f32 %v700, %v703
  %vm705 = vweird.f32 %v656
  %vm706 = vweird.f32 %v700
  %vm707 = vmor %vm705, %vm706
  %v708 = vsel %vm707, %v700, %v704
  %v709 = vand.u32 2147483647, %v656
  %vm710 = vcmp.eq.f32.partialorder %v709, 8.507059e+37
  %v711 = vand.u32 %v656, 2147483648
  %v712 = vor.u32 1.1754944e-38, %v711
  %v713 = vsel %vm710, %v712, %v708
  %v714 = vmul.f32 1.0, %v713
  %v715 = vrcp.pop %v657
  %v716 = vmul.f32 %v657, %v715
  %v717 = vsub.f32 1.0, %v716
  %v718 = vmul.f32 %v715, %v717
  %v719 = vadd.f32 %v715, %v718
  %vm720 = vweird.f32 %v657
  %vm721 = vweird.f32 %v715
  %vm722 = vmor %vm720, %vm721
  %v723 = vsel %vm722, %v715, %v719
  %v724 = vand.u32 2147483647, %v657
  %vm725 = vcmp.eq.f32.partialorder %v724, 8.507059e+37
  %v726 = vand.u32 %v657, 2147483648
  %v727 = vor.u32 1.1754944e-38, %v726
  %v728 = vsel %vm725, %v727, %v723
  %v729 = vmul.f32 1.0, %v728
  %v730 = vrcp.pop %v658
  %v731 = vmul.f32 %v658, %v730
  %v732 = vsub.f32 1.0, %v731
  %v733 = vmul.f32 %v730, %v732
  %v734 = vadd.f32 %v730, %v733
  %vm735 = vweird.f32 %v658
  %vm736 = vweird.f32 %v730
  %vm737 = vmor %vm735, %vm736
  %v738 = vsel %vm737, %v730, %v734
  %v739 = vand.u32 2147483647, %v658
  %vm740 = vcmp.eq.f32.partialorder %v739, 8.507059e+37
  %v741 = vand.u32 %v658, 2147483648
  %v742 = vor.u32 1.1754944e-38, %v741
  %v743 = vsel %vm740, %v742, %v738
  %v744 = vmul.f32 1.0, %v743
  %v745 = vrcp.pop %v659
  %v746 = vmul.f32 %v659, %v745
  %v747 = vsub.f32 1.0, %v746
  %v748 = vmul.f32 %v745, %v747
  %v749 = vadd.f32 %v745, %v748
  %vm750 = vweird.f32 %v659
  %vm751 = vweird.f32 %v745
  %vm752 = vmor %vm750, %vm751
  %v753 = vsel %vm752, %v745, %v749
  %v754 = vand.u32 2147483647, %v659
  %vm755 = vcmp.eq.f32.partialorder %v754, 8.507059e+37
  %v756 = vand.u32 %v659, 2147483648
  %v757 = vor.u32 1.1754944e-38, %v756
  %v758 = vsel %vm755, %v757, %v753
  %v759 = vmul.f32 1.0, %v758
  %v760 = vrcp.pop %v660
  %v761 = vmul.f32 %v660, %v760
  %v762 = vsub.f32 1.0, %v761
  %v763 = vmul.f32 %v760, %v762
  %v764 = vadd.f32 %v760, %v763
  %vm765 = vweird.f32 %v660
  %vm766 = vweird.f32 %v760
  %vm767 = vmor %vm765, %vm766
  %v768 = vsel %vm767, %v760, %v764
  %v769 = vand.u32 2147483647, %v660
  %vm770 = vcmp.eq.f32.partialorder %v769, 8.507059e+37
  %v771 = vand.u32 %v660, 2147483648
  %v772 = vor.u32 1.1754944e-38, %v771
  %v773 = vsel %vm770, %v772, %v768
  %v774 = vmul.f32 1.0, %v773
  %v775 = vrcp.pop %v661
  %v776 = vmul.f32 %v661, %v775
  %v777 = vsub.f32 1.0, %v776
  %v778 = vmul.f32 %v775, %v777
  %v779 = vadd.f32 %v775, %v778
  %vm780 = vweird.f32 %v661
  %vm781 = vweird.f32 %v775
  %vm782 = vmor %vm780, %vm781
  %v783 = vsel %vm782, %v775, %v779
  %v784 = vand.u32 2147483647, %v661
  %vm785 = vcmp.eq.f32.partialorder %v784, 8.507059e+37
  %v786 = vand.u32 %v661, 2147483648
  %v787 = vor.u32 1.1754944e-38, %v786
  %v788 = vsel %vm785, %v787, %v783
  %v789 = vmul.f32 1.0, %v788
  %v790 = vrcp.pop %v662
  %v791 = vmul.f32 %v662, %v790
  %v792 = vsub.f32 1.0, %v791
  %v793 = vmul.f32 %v790, %v792
  %v794 = vadd.f32 %v790, %v793
  %vm795 = vweird.f32 %v662
  %vm796 = vweird.f32 %v790
  %vm797 = vmor %vm795, %vm796
  %v798 = vsel %vm797, %v790, %v794
  %v799 = vand.u32 2147483647, %v662
  %vm800 = vcmp.eq.f32.partialorder %v799, 8.507059e+37
  %v801 = vand.u32 %v662, 2147483648
  %v802 = vor.u32 1.1754944e-38, %v801
  %v803 = vsel %vm800, %v802, %v798
  %v804 = vmul.f32 1.0, %v803
  %v805 = vrcp.pop %v663
  %v806 = vmul.f32 %v663, %v805
  %v807 = vsub.f32 1.0, %v806
  %v808 = vmul.f32 %v805, %v807
  %v809 = vadd.f32 %v805, %v808
  %vm810 = vweird.f32 %v663
  %vm811 = vweird.f32 %v805
  %vm812 = vmor %vm810, %vm811
  %v813 = vsel %vm812, %v805, %v809
  %v814 = vand.u32 2147483647, %v663
  %vm815 = vcmp.eq.f32.partialorder %v814, 8.507059e+37
  %v816 = vand.u32 %v663, 2147483648
  %v817 = vor.u32 1.1754944e-38, %v816
  %v818 = vsel %vm815, %v817, %v813
  %v819 = vmul.f32 1.0, %v818
  %v820 = vrcp.pop %v664
  %v821 = vmul.f32 %v664, %v820
  %v822 = vsub.f32 1.0, %v821
  %v823 = vmul.f32 %v820, %v822
  %v824 = vadd.f32 %v820, %v823
  %vm825 = vweird.f32 %v664
  %vm826 = vweird.f32 %v820
  %vm827 = vmor %vm825, %vm826
  %v828 = vsel %vm827, %v820, %v824
  %v829 = vand.u32 2147483647, %v664
  %vm830 = vcmp.eq.f32.partialorder %v829, 8.507059e+37
  %v831 = vand.u32 %v664, 2147483648
  %v832 = vor.u32 1.1754944e-38, %v831
  %v833 = vsel %vm830, %v832, %v828
  %v834 = vmul.f32 1.0, %v833
  %v835 = vrcp.pop %v665
  %v836 = vmul.f32 %v665, %v835
  %v837 = vsub.f32 1.0, %v836
  %v838 = vmul.f32 %v835, %v837
  %v839 = vadd.f32 %v835, %v838
  %vm840 = vweird.f32 %v665
  %vm841 = vweird.f32 %v835
  %vm842 = vmor %vm840, %vm841
  %v843 = vsel %vm842, %v835, %v839
  %v844 = vand.u32 2147483647, %v665
  %vm845 = vcmp.eq.f32.partialorder %v844, 8.507059e+37
  %v846 = vand.u32 %v665, 2147483648
  %v847 = vor.u32 1.1754944e-38, %v846
  %v848 = vsel %vm845, %v847, %v843
  %v849 = vmul.f32 1.0, %v848
  %v850 = vrcp.pop %v666
  %v851 = vmul.f32 %v666, %v850
  %v852 = vsub.f32 1.0, %v851
  %v853 = vmul.f32 %v850, %v852
  %v854 = vadd.f32 %v850, %v853
  %vm855 = vweird.f32 %v666
  %vm856 = vweird.f32 %v850
  %vm857 = vmor %vm855, %vm856
  %v858 = vsel %vm857, %v850, %v854
  %v859 = vand.u32 2147483647, %v666
  %vm860 = vcmp.eq.f32.partialorder %v859, 8.507059e+37
  %v861 = vand.u32 %v666, 2147483648
  %v862 = vor.u32 1.1754944e-38, %v861
  %v863 = vsel %vm860, %v862, %v858
  %v864 = vmul.f32 1.0, %v863
  %v865 = vrcp.pop %v667
  %v866 = vmul.f32 %v667, %v865
  %v867 = vsub.f32 1.0, %v866
  %v868 = vmul.f32 %v865, %v867
  %v869 = vadd.f32 %v865, %v868
  %vm870 = vweird.f32 %v667
  %vm871 = vweird.f32 %v865
  %vm872 = vmor %vm870, %vm871
  %v873 = vsel %vm872, %v865, %v869
  %v874 = vand.u32 2147483647, %v667
  %vm875 = vcmp.eq.f32.partialorder %v874, 8.507059e+37
  %v876 = vand.u32 %v667, 2147483648
  %v877 = vor.u32 1.1754944e-38, %v876
  %v878 = vsel %vm875, %v877, %v873
  %v879 = vmul.f32 1.0, %v878
  %v880 = vrcp.pop %v668
  %v881 = vmul.f32 %v668, %v880
  %v882 = vsub.f32 1.0, %v881
  %v883 = vmul.f32 %v880, %v882
  %v884 = vadd.f32 %v880, %v883
  %vm885 = vweird.f32 %v668
  %vm886 = vweird.f32 %v880
  %vm887 = vmor %vm885, %vm886
  %v888 = vsel %vm887, %v880, %v884
  %v889 = vand.u32 2147483647, %v668
  %vm890 = vcmp.eq.f32.partialorder %v889, 8.507059e+37
  %v891 = vand.u32 %v668, 2147483648
  %v892 = vor.u32 1.1754944e-38, %v891
  %v893 = vsel %vm890, %v892, %v888
  %v894 = vmul.f32 1.0, %v893
  %v895 = vrcp.pop %v669
  %v896 = vmul.f32 %v669, %v895
  %v897 = vsub.f32 1.0, %v896
  %v898 = vmul.f32 %v895, %v897
  %v899 = vadd.f32 %v895, %v898
  %vm900 = vweird.f32 %v669
  %vm901 = vweird.f32 %v895
  %vm902 = vmor %vm900, %vm901
  %v903 = vsel %vm902, %v895, %v899
  %v904 = vand.u32 2147483647, %v669
  %vm905 = vcmp.eq.f32.partialorder %v904, 8.507059e+37
  %v906 = vand.u32 %v669, 2147483648
  %v907 = vor.u32 1.1754944e-38, %v906
  %v908 = vsel %vm905, %v907, %v903
  %v909 = vmul.f32 1.0, %v908
  %v910 = vmul.f32 %v567, %v684
  %v911 = vmul.f32 %v569, %v699
  %v912 = vmul.f32 %v572, %v714
  %v913 = vmul.f32 %v574, %v729
  %v914 = vmul.f32 %v577, %v744
  %v915 = vmul.f32 %v579, %v759
  %v916 = vmul.f32 %v582, %v774
  %v917 = vmul.f32 %v584, %v789
  %v918 = vmul.f32 %v587, %v804
  %v919 = vmul.f32 %v589, %v819
  %v920 = vmul.f32 %v592, %v834
  %v921 = vmul.f32 %v594, %v849
  %v922 = vmul.f32 %v597, %v864
  %v923 = vmul.f32 %v599, %v879
  %v924 = vmul.f32 %v602, %v894
  %v925 = vmul.f32 %v604, %v909
  %v926 = vadd.f32 %v20, %v910
  %v927 = vadd.f32 %v21, %v911
  %v928 = vadd.f32 %v22, %v912
  %v929 = vadd.f32 %v23, %v913
  %v930 = vadd.f32 %v24, %v914
  %v931 = vadd.f32 %v25, %v915
  %v932 = vadd.f32 %v26, %v916
  %v933 = vadd.f32 %v27, %v917
  %v934 = vadd.f32 %v28, %v918
  %v935 = vadd.f32 %v29, %v919
  %v936 = vadd.f32 %v30, %v920
  %v937 = vadd.f32 %v31, %v921
  %v938 = vadd.f32 %v32, %v922
  %v939 = vadd.f32 %v33, %v923
  %v940 = vadd.f32 %v34, %v924
  %v941 = vadd.f32 %v35, %v925
  %v942 = vpack.c.bf16 %v927, %v926
  %v943 = vpack.c.bf16 %v929, %v928
  %v944 = vpack.c.bf16 %v931, %v930
  %v945 = vpack.c.bf16 %v933, %v932
  %v946 = vpack.c.bf16 %v935, %v934
  %v947 = vpack.c.bf16 %v937, %v936
  %v948 = vpack.c.bf16 %v939, %v938
  %v949 = vpack.c.bf16 %v941, %v940
  %s950 = scalar_lea.vmem %s1, 64
  %v951 = vld [vmem:[%s950] sm:$0xf]
  %v952 = vld [vmem:[%s950 + $0x4] sm:$0xf]
  %v953 = vld [vmem:[%s950 + $0x8] sm:$0xf]
  %v954 = vld [vmem:[%s950 + $0xc] sm:$0xf]
  %v955 = vld [vmem:[%s950 + $0x10] sm:$0xf]
  %v956 = vld [vmem:[%s950 + $0x14] sm:$0xf]
  %v957 = vld [vmem:[%s950 + $0x18] sm:$0xf]
  %v958 = vld [vmem:[%s950 + $0x1c] sm:$0xf]
  %v959 = vld [vmem:[%s950 + $0x20] sm:$0xf]
  %v960 = vld [vmem:[%s950 + $0x24] sm:$0xf]
  %v961 = vld [vmem:[%s950 + $0x28] sm:$0xf]
  %v962 = vld [vmem:[%s950 + $0x2c] sm:$0xf]
  %v963 = vld [vmem:[%s950 + $0x30] sm:$0xf]
  %v964 = vld [vmem:[%s950 + $0x34] sm:$0xf]
  %v965 = vld [vmem:[%s950 + $0x38] sm:$0xf]
  %v966 = vld [vmem:[%s950 + $0x3c] sm:$0xf]
  %s967 = scalar_lea.vmem %s2, 1
  %v968 = vld [vmem:[%s967] sm:$0x1]
  %v970 = vperm.slane %v968, 0
  %v988 = vunpack.c.l.b16 %v951
  %v989 = vunpack.c.l.b16 %v952
  %v990 = vunpack.c.l.b16 %v953
  %v991 = vunpack.c.l.b16 %v954
  %v992 = vunpack.c.l.b16 %v955
  %v993 = vunpack.c.l.b16 %v956
  %v994 = vunpack.c.l.b16 %v957
  %v995 = vunpack.c.l.b16 %v958
  %v996 = vunpack.c.l.b16 %v959
  %v997 = vunpack.c.l.b16 %v960
  %v998 = vunpack.c.l.b16 %v961
  %v999 = vunpack.c.l.b16 %v962
  %v1000 = vunpack.c.l.b16 %v963
  %v1001 = vunpack.c.l.b16 %v964
  %v1002 = vunpack.c.l.b16 %v965
  %v1003 = vunpack.c.l.b16 %v966
  %v1004 = vpack.c.b16 %v989, %v988
  %v1005 = vpack.c.b16 %v991, %v990
  %v1006 = vpack.c.b16 %v993, %v992
  %v1007 = vpack.c.b16 %v995, %v994
  %v1008 = vpack.c.b16 %v997, %v996
  %v1009 = vpack.c.b16 %v999, %v998
  %v1010 = vpack.c.b16 %v1001, %v1000
  %v1011 = vpack.c.b16 %v1003, %v1002
  %1020 = vmatpush.bf16.msra.mxu0 %v1011
  %1021 = vmatpush.bf16.msra.mxu0 %v1010
  %1022 = vmatpush.bf16.msra.mxu0 %v1009
  %1023 = vmatpush.bf16.msra.mxu0 %v1008
  %1024 = vmatpush.bf16.msra.mxu0 %v1007
  %1025 = vmatpush.bf16.msra.mxu0 %v1006
  %1026 = vmatpush.bf16.msra.mxu0 %v1005
  %1027 = vmatpush.bf16.msra.mxu0 %v1004
  %1028 = vmatmul.bf16.gmra.mxu0 %v942
  %v1029 = vpop.f32.mrf.mxu0
  %v1030 = vadd.f32 %v970, %v1029
  %v1031 = vpop.f32.mrf.mxu0
  %v1032 = vadd.f32 %v970, %v1031
  %1033 = vmatmul.bf16.gmra.mxu0 %v943
  %v1034 = vpop.f32.mrf.mxu0
  %v1035 = vadd.f32 %v970, %v1034
  %v1036 = vpop.f32.mrf.mxu0
  %v1037 = vadd.f32 %v970, %v1036
  %1038 = vmatmul.bf16.gmra.mxu0 %v944
  %v1039 = vpop.f32.mrf.mxu0
  %v1040 = vadd.f32 %v970, %v1039
  %v1041 = vpop.f32.mrf.mxu0
  %v1042 = vadd.f32 %v970, %v1041
  %1043 = vmatmul.bf16.gmra.mxu0 %v945
  %v1044 = vpop.f32.mrf.mxu0
  %v1045 = vadd.f32 %v970, %v1044
  %v1046 = vpop.f32.mrf.mxu0
  %v1047 = vadd.f32 %v970, %v1046
  %1048 = vmatmul.bf16.gmra.mxu0 %v946
  %v1049 = vpop.f32.mrf.mxu0
  %v1050 = vadd.f32 %v970, %v1049
  %v1051 = vpop.f32.mrf.mxu0
  %v1052 = vadd.f32 %v970, %v1051
  %1053 = vmatmul.bf16.gmra.mxu0 %v947
  %v1054 = vpop.f32.mrf.mxu0
  %v1055 = vadd.f32 %v970, %v1054
  %v1056 = vpop.f32.mrf.mxu0
  %v1057 = vadd.f32 %v970, %v1056
  %1058 = vmatmul.bf16.gmra.mxu0 %v948
  %v1059 = vpop.f32.mrf.mxu0
  %v1060 = vadd.f32 %v970, %v1059
  %v1061 = vpop.f32.mrf.mxu0
  %v1062 = vadd.f32 %v970, %v1061
  %1063 = vmatmul.bf16.gmra.mxu0 %v949
  %v1064 = vpop.f32.mrf.mxu0
  %v1065 = vadd.f32 %v970, %v1064
  %v1066 = vpop.f32.mrf.mxu0
  %v1067 = vadd.f32 %v970, %v1066
  %1068 = vdwg.mxu0
  %v1069 = vxor.u32 %v1030, 2147483648
  %v1070 = vxor.u32 %v1032, 2147483648
  %v1071 = vxor.u32 %v1035, 2147483648
  %v1072 = vxor.u32 %v1037, 2147483648
  %v1073 = vxor.u32 %v1040, 2147483648
  %v1074 = vxor.u32 %v1042, 2147483648
  %v1075 = vxor.u32 %v1045, 2147483648
  %v1076 = vxor.u32 %v1047, 2147483648
  %v1077 = vxor.u32 %v1050, 2147483648
  %v1078 = vxor.u32 %v1052, 2147483648
  %v1079 = vxor.u32 %v1055, 2147483648
  %v1080 = vxor.u32 %v1057, 2147483648
  %v1081 = vxor.u32 %v1060, 2147483648
  %v1082 = vxor.u32 %v1062, 2147483648
  %v1083 = vxor.u32 %v1065, 2147483648
  %v1084 = vxor.u32 %v1067, 2147483648
  %v1085 = vmul.f32 %v1069, 1.442695
  %v1086 = vpow.pop %v1085
  %v1087 = vmul.f32 %v1070, 1.442695
  %v1088 = vpow.pop %v1087
  %v1089 = vmul.f32 %v1071, 1.442695
  %v1090 = vpow.pop %v1089
  %v1091 = vmul.f32 %v1072, 1.442695
  %v1092 = vpow.pop %v1091
  %v1093 = vmul.f32 %v1073, 1.442695
  %v1094 = vpow.pop %v1093
  %v1095 = vmul.f32 %v1074, 1.442695
  %v1096 = vpow.pop %v1095
  %v1097 = vmul.f32 %v1075, 1.442695
  %v1098 = vpow.pop %v1097
  %v1099 = vmul.f32 %v1076, 1.442695
  %v1100 = vpow.pop %v1099
  %v1101 = vmul.f32 %v1077, 1.442695
  %v1102 = vpow.pop %v1101
  %v1103 = vmul.f32 %v1078, 1.442695
  %v1104 = vpow.pop %v1103
  %v1105 = vmul.f32 %v1079, 1.442695
  %v1106 = vpow.pop %v1105
  %v1107 = vmul.f32 %v1080, 1.442695
  %v1108 = vpow.pop %v1107
  %v1109 = vmul.f32 %v1081, 1.442695
  %v1110 = vpow.pop %v1109
  %v1111 = vmul.f32 %v1082, 1.442695
  %v1112 = vpow.pop %v1111
  %v1113 = vmul.f32 %v1083, 1.442695
  %v1114 = vpow.pop %v1113
  %v1115 = vmul.f32 %v1084, 1.442695
  %v1116 = vpow.pop %v1115
  %v1117 = vadd.f32 %v1086, 1.0
  %v1118 = vadd.f32 %v1088, 1.0
  %v1119 = vadd.f32 %v1090, 1.0
  %v1120 = vadd.f32 %v1092, 1.0
  %v1121 = vadd.f32 %v1094, 1.0
  %v1122 = vadd.f32 %v1096, 1.0
  %v1123 = vadd.f32 %v1098, 1.0
  %v1124 = vadd.f32 %v1100, 1.0
  %v1125 = vadd.f32 %v1102, 1.0
  %v1126 = vadd.f32 %v1104, 1.0
  %v1127 = vadd.f32 %v1106, 1.0
  %v1128 = vadd.f32 %v1108, 1.0
  %v1129 = vadd.f32 %v1110, 1.0
  %v1130 = vadd.f32 %v1112, 1.0
  %v1131 = vadd.f32 %v1114, 1.0
  %v1132 = vadd.f32 %v1116, 1.0
  %v1133 = vrcp.pop %v1117
  %v1134 = vmul.f32 %v1117, %v1133
  %v1135 = vsub.f32 1.0, %v1134
  %v1136 = vmul.f32 %v1133, %v1135
  %v1137 = vadd.f32 %v1133, %v1136
  %vm1138 = vweird.f32 %v1117
  %vm1139 = vweird.f32 %v1133
  %vm1140 = vmor %vm1138, %vm1139
  %v1141 = vsel %vm1140, %v1133, %v1137
  %v1142 = vand.u32 2147483647, %v1117
  %vm1143 = vcmp.eq.f32.partialorder %v1142, 8.507059e+37
  %v1144 = vand.u32 %v1117, 2147483648
  %v1145 = vor.u32 1.1754944e-38, %v1144
  %v1146 = vsel %vm1143, %v1145, %v1141
  %v1147 = vmul.f32 1.0, %v1146
  %v1148 = vrcp.pop %v1118
  %v1149 = vmul.f32 %v1118, %v1148
  %v1150 = vsub.f32 1.0, %v1149
  %v1151 = vmul.f32 %v1148, %v1150
  %v1152 = vadd.f32 %v1148, %v1151
  %vm1153 = vweird.f32 %v1118
  %vm1154 = vweird.f32 %v1148
  %vm1155 = vmor %vm1153, %vm1154
  %v1156 = vsel %vm1155, %v1148, %v1152
  %v1157 = vand.u32 2147483647, %v1118
  %vm1158 = vcmp.eq.f32.partialorder %v1157, 8.507059e+37
  %v1159 = vand.u32 %v1118, 2147483648
  %v1160 = vor.u32 1.1754944e-38, %v1159
  %v1161 = vsel %vm1158, %v1160, %v1156
  %v1162 = vmul.f32 1.0, %v1161
  %v1163 = vrcp.pop %v1119
  %v1164 = vmul.f32 %v1119, %v1163
  %v1165 = vsub.f32 1.0, %v1164
  %v1166 = vmul.f32 %v1163, %v1165
  %v1167 = vadd.f32 %v1163, %v1166
  %vm1168 = vweird.f32 %v1119
  %vm1169 = vweird.f32 %v1163
  %vm1170 = vmor %vm1168, %vm1169
  %v1171 = vsel %vm1170, %v1163, %v1167
  %v1172 = vand.u32 2147483647, %v1119
  %vm1173 = vcmp.eq.f32.partialorder %v1172, 8.507059e+37
  %v1174 = vand.u32 %v1119, 2147483648
  %v1175 = vor.u32 1.1754944e-38, %v1174
  %v1176 = vsel %vm1173, %v1175, %v1171
  %v1177 = vmul.f32 1.0, %v1176
  %v1178 = vrcp.pop %v1120
  %v1179 = vmul.f32 %v1120, %v1178
  %v1180 = vsub.f32 1.0, %v1179
  %v1181 = vmul.f32 %v1178, %v1180
  %v1182 = vadd.f32 %v1178, %v1181
  %vm1183 = vweird.f32 %v1120
  %vm1184 = vweird.f32 %v1178
  %vm1185 = vmor %vm1183, %vm1184
  %v1186 = vsel %vm1185, %v1178, %v1182
  %v1187 = vand.u32 2147483647, %v1120
  %vm1188 = vcmp.eq.f32.partialorder %v1187, 8.507059e+37
  %v1189 = vand.u32 %v1120, 2147483648
  %v1190 = vor.u32 1.1754944e-38, %v1189
  %v1191 = vsel %vm1188, %v1190, %v1186
  %v1192 = vmul.f32 1.0, %v1191
  %v1193 = vrcp.pop %v1121
  %v1194 = vmul.f32 %v1121, %v1193
  %v1195 = vsub.f32 1.0, %v1194
  %v1196 = vmul.f32 %v1193, %v1195
  %v1197 = vadd.f32 %v1193, %v1196
  %vm1198 = vweird.f32 %v1121
  %vm1199 = vweird.f32 %v1193
  %vm1200 = vmor %vm1198, %vm1199
  %v1201 = vsel %vm1200, %v1193, %v1197
  %v1202 = vand.u32 2147483647, %v1121
  %vm1203 = vcmp.eq.f32.partialorder %v1202, 8.507059e+37
  %v1204 = vand.u32 %v1121, 2147483648
  %v1205 = vor.u32 1.1754944e-38, %v1204
  %v1206 = vsel %vm1203, %v1205, %v1201
  %v1207 = vmul.f32 1.0, %v1206
  %v1208 = vrcp.pop %v1122
  %v1209 = vmul.f32 %v1122, %v1208
  %v1210 = vsub.f32 1.0, %v1209
  %v1211 = vmul.f32 %v1208, %v1210
  %v1212 = vadd.f32 %v1208, %v1211
  %vm1213 = vweird.f32 %v1122
  %vm1214 = vweird.f32 %v1208
  %vm1215 = vmor %vm1213, %vm1214
  %v1216 = vsel %vm1215, %v1208, %v1212
  %v1217 = vand.u32 2147483647, %v1122
  %vm1218 = vcmp.eq.f32.partialorder %v1217, 8.507059e+37
  %v1219 = vand.u32 %v1122, 2147483648
  %v1220 = vor.u32 1.1754944e-38, %v1219
  %v1221 = vsel %vm1218, %v1220, %v1216
  %v1222 = vmul.f32 1.0, %v1221
  %v1223 = vrcp.pop %v1123
  %v1224 = vmul.f32 %v1123, %v1223
  %v1225 = vsub.f32 1.0, %v1224
  %v1226 = vmul.f32 %v1223, %v1225
  %v1227 = vadd.f32 %v1223, %v1226
  %vm1228 = vweird.f32 %v1123
  %vm1229 = vweird.f32 %v1223
  %vm1230 = vmor %vm1228, %vm1229
  %v1231 = vsel %vm1230, %v1223, %v1227
  %v1232 = vand.u32 2147483647, %v1123
  %vm1233 = vcmp.eq.f32.partialorder %v1232, 8.507059e+37
  %v1234 = vand.u32 %v1123, 2147483648
  %v1235 = vor.u32 1.1754944e-38, %v1234
  %v1236 = vsel %vm1233, %v1235, %v1231
  %v1237 = vmul.f32 1.0, %v1236
  %v1238 = vrcp.pop %v1124
  %v1239 = vmul.f32 %v1124, %v1238
  %v1240 = vsub.f32 1.0, %v1239
  %v1241 = vmul.f32 %v1238, %v1240
  %v1242 = vadd.f32 %v1238, %v1241
  %vm1243 = vweird.f32 %v1124
  %vm1244 = vweird.f32 %v1238
  %vm1245 = vmor %vm1243, %vm1244
  %v1246 = vsel %vm1245, %v1238, %v1242
  %v1247 = vand.u32 2147483647, %v1124
  %vm1248 = vcmp.eq.f32.partialorder %v1247, 8.507059e+37
  %v1249 = vand.u32 %v1124, 2147483648
  %v1250 = vor.u32 1.1754944e-38, %v1249
  %v1251 = vsel %vm1248, %v1250, %v1246
  %v1252 = vmul.f32 1.0, %v1251
  %v1253 = vrcp.pop %v1125
  %v1254 = vmul.f32 %v1125, %v1253
  %v1255 = vsub.f32 1.0, %v1254
  %v1256 = vmul.f32 %v1253, %v1255
  %v1257 = vadd.f32 %v1253, %v1256
  %vm1258 = vweird.f32 %v1125
  %vm1259 = vweird.f32 %v1253
  %vm1260 = vmor %vm1258, %vm1259
  %v1261 = vsel %vm1260, %v1253, %v1257
  %v1262 = vand.u32 2147483647, %v1125
  %vm1263 = vcmp.eq.f32.partialorder %v1262, 8.507059e+37
  %v1264 = vand.u32 %v1125, 2147483648
  %v1265 = vor.u32 1.1754944e-38, %v1264
  %v1266 = vsel %vm1263, %v1265, %v1261
  %v1267 = vmul.f32 1.0, %v1266
  %v1268 = vrcp.pop %v1126
  %v1269 = vmul.f32 %v1126, %v1268
  %v1270 = vsub.f32 1.0, %v1269
  %v1271 = vmul.f32 %v1268, %v1270
  %v1272 = vadd.f32 %v1268, %v1271
  %vm1273 = vweird.f32 %v1126
  %vm1274 = vweird.f32 %v1268
  %vm1275 = vmor %vm1273, %vm1274
  %v1276 = vsel %vm1275, %v1268, %v1272
  %v1277 = vand.u32 2147483647, %v1126
  %vm1278 = vcmp.eq.f32.partialorder %v1277, 8.507059e+37
  %v1279 = vand.u32 %v1126, 2147483648
  %v1280 = vor.u32 1.1754944e-38, %v1279
  %v1281 = vsel %vm1278, %v1280, %v1276
  %v1282 = vmul.f32 1.0, %v1281
  %v1283 = vrcp.pop %v1127
  %v1284 = vmul.f32 %v1127, %v1283
  %v1285 = vsub.f32 1.0, %v1284
  %v1286 = vmul.f32 %v1283, %v1285
  %v1287 = vadd.f32 %v1283, %v1286
  %vm1288 = vweird.f32 %v1127
  %vm1289 = vweird.f32 %v1283
  %vm1290 = vmor %vm1288, %vm1289
  %v1291 = vsel %vm1290, %v1283, %v1287
  %v1292 = vand.u32 2147483647, %v1127
  %vm1293 = vcmp.eq.f32.partialorder %v1292, 8.507059e+37
  %v1294 = vand.u32 %v1127, 2147483648
  %v1295 = vor.u32 1.1754944e-38, %v1294
  %v1296 = vsel %vm1293, %v1295, %v1291
  %v1297 = vmul.f32 1.0, %v1296
  %v1298 = vrcp.pop %v1128
  %v1299 = vmul.f32 %v1128, %v1298
  %v1300 = vsub.f32 1.0, %v1299
  %v1301 = vmul.f32 %v1298, %v1300
  %v1302 = vadd.f32 %v1298, %v1301
  %vm1303 = vweird.f32 %v1128
  %vm1304 = vweird.f32 %v1298
  %vm1305 = vmor %vm1303, %vm1304
  %v1306 = vsel %vm1305, %v1298, %v1302
  %v1307 = vand.u32 2147483647, %v1128
  %vm1308 = vcmp.eq.f32.partialorder %v1307, 8.507059e+37
  %v1309 = vand.u32 %v1128, 2147483648
  %v1310 = vor.u32 1.1754944e-38, %v1309
  %v1311 = vsel %vm1308, %v1310, %v1306
  %v1312 = vmul.f32 1.0, %v1311
  %v1313 = vrcp.pop %v1129
  %v1314 = vmul.f32 %v1129, %v1313
  %v1315 = vsub.f32 1.0, %v1314
  %v1316 = vmul.f32 %v1313, %v1315
  %v1317 = vadd.f32 %v1313, %v1316
  %vm1318 = vweird.f32 %v1129
  %vm1319 = vweird.f32 %v1313
  %vm1320 = vmor %vm1318, %vm1319
  %v1321 = vsel %vm1320, %v1313, %v1317
  %v1322 = vand.u32 2147483647, %v1129
  %vm1323 = vcmp.eq.f32.partialorder %v1322, 8.507059e+37
  %v1324 = vand.u32 %v1129, 2147483648
  %v1325 = vor.u32 1.1754944e-38, %v1324
  %v1326 = vsel %vm1323, %v1325, %v1321
  %v1327 = vmul.f32 1.0, %v1326
  %v1328 = vrcp.pop %v1130
  %v1329 = vmul.f32 %v1130, %v1328
  %v1330 = vsub.f32 1.0, %v1329
  %v1331 = vmul.f32 %v1328, %v1330
  %v1332 = vadd.f32 %v1328, %v1331
  %vm1333 = vweird.f32 %v1130
  %vm1334 = vweird.f32 %v1328
  %vm1335 = vmor %vm1333, %vm1334
  %v1336 = vsel %vm1335, %v1328, %v1332
  %v1337 = vand.u32 2147483647, %v1130
  %vm1338 = vcmp.eq.f32.partialorder %v1337, 8.507059e+37
  %v1339 = vand.u32 %v1130, 2147483648
  %v1340 = vor.u32 1.1754944e-38, %v1339
  %v1341 = vsel %vm1338, %v1340, %v1336
  %v1342 = vmul.f32 1.0, %v1341
  %v1343 = vrcp.pop %v1131
  %v1344 = vmul.f32 %v1131, %v1343
  %v1345 = vsub.f32 1.0, %v1344
  %v1346 = vmul.f32 %v1343, %v1345
  %v1347 = vadd.f32 %v1343, %v1346
  %vm1348 = vweird.f32 %v1131
  %vm1349 = vweird.f32 %v1343
  %vm1350 = vmor %vm1348, %vm1349
  %v1351 = vsel %vm1350, %v1343, %v1347
  %v1352 = vand.u32 2147483647, %v1131
  %vm1353 = vcmp.eq.f32.partialorder %v1352, 8.507059e+37
  %v1354 = vand.u32 %v1131, 2147483648
  %v1355 = vor.u32 1.1754944e-38, %v1354
  %v1356 = vsel %vm1353, %v1355, %v1351
  %v1357 = vmul.f32 1.0, %v1356
  %v1358 = vrcp.pop %v1132
  %v1359 = vmul.f32 %v1132, %v1358
  %v1360 = vsub.f32 1.0, %v1359
  %v1361 = vmul.f32 %v1358, %v1360
  %v1362 = vadd.f32 %v1358, %v1361
  %vm1363 = vweird.f32 %v1132
  %vm1364 = vweird.f32 %v1358
  %vm1365 = vmor %vm1363, %vm1364
  %v1366 = vsel %vm1365, %v1358, %v1362
  %v1367 = vand.u32 2147483647, %v1132
  %vm1368 = vcmp.eq.f32.partialorder %v1367, 8.507059e+37
  %v1369 = vand.u32 %v1132, 2147483648
  %v1370 = vor.u32 1.1754944e-38, %v1369
  %v1371 = vsel %vm1368, %v1370, %v1366
  %v1372 = vmul.f32 1.0, %v1371
  %v1373 = vmul.f32 %v1030, %v1147
  %v1374 = vmul.f32 %v1032, %v1162
  %v1375 = vmul.f32 %v1035, %v1177
  %v1376 = vmul.f32 %v1037, %v1192
  %v1377 = vmul.f32 %v1040, %v1207
  %v1378 = vmul.f32 %v1042, %v1222
  %v1379 = vmul.f32 %v1045, %v1237
  %v1380 = vmul.f32 %v1047, %v1252
  %v1381 = vmul.f32 %v1050, %v1267
  %v1382 = vmul.f32 %v1052, %v1282
  %v1383 = vmul.f32 %v1055, %v1297
  %v1384 = vmul.f32 %v1057, %v1312
  %v1385 = vmul.f32 %v1060, %v1327
  %v1386 = vmul.f32 %v1062, %v1342
  %v1387 = vmul.f32 %v1065, %v1357
  %v1388 = vmul.f32 %v1067, %v1372
  %v1389 = vpack.c.bf16 %v1374, %v1373
  %v1390 = vpack.c.bf16 %v1376, %v1375
  %v1391 = vpack.c.bf16 %v1378, %v1377
  %v1392 = vpack.c.bf16 %v1380, %v1379
  %v1393 = vpack.c.bf16 %v1382, %v1381
  %v1394 = vpack.c.bf16 %v1384, %v1383
  %v1395 = vpack.c.bf16 %v1386, %v1385
  %v1396 = vpack.c.bf16 %v1388, %v1387
  %s1397 = scalar_lea.vmem %s3, 64
  %v1398 = vld [vmem:[%s1397] sm:$0xf]
  %v1399 = vld [vmem:[%s1397 + $0x4] sm:$0xf]
  %v1400 = vld [vmem:[%s1397 + $0x8] sm:$0xf]
  %v1401 = vld [vmem:[%s1397 + $0xc] sm:$0xf]
  %v1402 = vld [vmem:[%s1397 + $0x10] sm:$0xf]
  %v1403 = vld [vmem:[%s1397 + $0x14] sm:$0xf]
  %v1404 = vld [vmem:[%s1397 + $0x18] sm:$0xf]
  %v1405 = vld [vmem:[%s1397 + $0x1c] sm:$0xf]
  %v1406 = vld [vmem:[%s1397 + $0x20] sm:$0xf]
  %v1407 = vld [vmem:[%s1397 + $0x24] sm:$0xf]
  %v1408 = vld [vmem:[%s1397 + $0x28] sm:$0xf]
  %v1409 = vld [vmem:[%s1397 + $0x2c] sm:$0xf]
  %v1410 = vld [vmem:[%s1397 + $0x30] sm:$0xf]
  %v1411 = vld [vmem:[%s1397 + $0x34] sm:$0xf]
  %v1412 = vld [vmem:[%s1397 + $0x38] sm:$0xf]
  %v1413 = vld [vmem:[%s1397 + $0x3c] sm:$0xf]
  %s1414 = scalar_lea.vmem %s4, 1
  %v1415 = vld [vmem:[%s1414] sm:$0x1]
  %v1417 = vperm.slane %v1415, 0
  %v1435 = vunpack.c.l.b16 %v1398
  %v1436 = vunpack.c.l.b16 %v1399
  %v1437 = vunpack.c.l.b16 %v1400
  %v1438 = vunpack.c.l.b16 %v1401
  %v1439 = vunpack.c.l.b16 %v1402
  %v1440 = vunpack.c.l.b16 %v1403
  %v1441 = vunpack.c.l.b16 %v1404
  %v1442 = vunpack.c.l.b16 %v1405
  %v1443 = vunpack.c.l.b16 %v1406
  %v1444 = vunpack.c.l.b16 %v1407
  %v1445 = vunpack.c.l.b16 %v1408
  %v1446 = vunpack.c.l.b16 %v1409
  %v1447 = vunpack.c.l.b16 %v1410
  %v1448 = vunpack.c.l.b16 %v1411
  %v1449 = vunpack.c.l.b16 %v1412
  %v1450 = vunpack.c.l.b16 %v1413
  %v1451 = vpack.c.b16 %v1436, %v1435
  %v1452 = vpack.c.b16 %v1438, %v1437
  %v1453 = vpack.c.b16 %v1440, %v1439
  %v1454 = vpack.c.b16 %v1442, %v1441
  %v1455 = vpack.c.b16 %v1444, %v1443
  %v1456 = vpack.c.b16 %v1446, %v1445
  %v1457 = vpack.c.b16 %v1448, %v1447
  %v1458 = vpack.c.b16 %v1450, %v1449
  %1467 = vmatpush.bf16.msra.mxu0 %v1458
  %1468 = vmatpush.bf16.msra.mxu0 %v1457
  %1469 = vmatpush.bf16.msra.mxu0 %v1456
  %1470 = vmatpush.bf16.msra.mxu0 %v1455
  %1471 = vmatpush.bf16.msra.mxu0 %v1454
  %1472 = vmatpush.bf16.msra.mxu0 %v1453
  %1473 = vmatpush.bf16.msra.mxu0 %v1452
  %1474 = vmatpush.bf16.msra.mxu0 %v1451
  %1475 = vmatmul.bf16.gmra.mxu0 %v1389
  %v1476 = vpop.f32.mrf.mxu0
  %v1477 = vadd.f32 %v1417, %v1476
  %v1478 = vpop.f32.mrf.mxu0
  %v1479 = vadd.f32 %v1417, %v1478
  %1480 = vmatmul.bf16.gmra.mxu0 %v1390
  %v1481 = vpop.f32.mrf.mxu0
  %v1482 = vadd.f32 %v1417, %v1481
  %v1483 = vpop.f32.mrf.mxu0
  %v1484 = vadd.f32 %v1417, %v1483
  %1485 = vmatmul.bf16.gmra.mxu0 %v1391
  %v1486 = vpop.f32.mrf.mxu0
  %v1487 = vadd.f32 %v1417, %v1486
  %v1488 = vpop.f32.mrf.mxu0
  %v1489 = vadd.f32 %v1417, %v1488
  %1490 = vmatmul.bf16.gmra.mxu0 %v1392
  %v1491 = vpop.f32.mrf.mxu0
  %v1492 = vadd.f32 %v1417, %v1491
  %v1493 = vpop.f32.mrf.mxu0
  %v1494 = vadd.f32 %v1417, %v1493
  %1495 = vmatmul.bf16.gmra.mxu0 %v1393
  %v1496 = vpop.f32.mrf.mxu0
  %v1497 = vadd.f32 %v1417, %v1496
  %v1498 = vpop.f32.mrf.mxu0
  %v1499 = vadd.f32 %v1417, %v1498
  %1500 = vmatmul.bf16.gmra.mxu0 %v1394
  %v1501 = vpop.f32.mrf.mxu0
  %v1502 = vadd.f32 %v1417, %v1501
  %v1503 = vpop.f32.mrf.mxu0
  %v1504 = vadd.f32 %v1417, %v1503
  %1505 = vmatmul.bf16.gmra.mxu0 %v1395
  %v1506 = vpop.f32.mrf.mxu0
  %v1507 = vadd.f32 %v1417, %v1506
  %v1508 = vpop.f32.mrf.mxu0
  %v1509 = vadd.f32 %v1417, %v1508
  %1510 = vmatmul.bf16.gmra.mxu0 %v1396
  %v1511 = vpop.f32.mrf.mxu0
  %v1512 = vadd.f32 %v1417, %v1511
  %v1513 = vpop.f32.mrf.mxu0
  %v1514 = vadd.f32 %v1417, %v1513
  %1515 = vdwg.mxu0
  %v1516 = vxor.u32 %v1477, 2147483648
  %v1517 = vxor.u32 %v1479, 2147483648
  %v1518 = vxor.u32 %v1482, 2147483648
  %v1519 = vxor.u32 %v1484, 2147483648
  %v1520 = vxor.u32 %v1487, 2147483648
  %v1521 = vxor.u32 %v1489, 2147483648
  %v1522 = vxor.u32 %v1492, 2147483648
  %v1523 = vxor.u32 %v1494, 2147483648
  %v1524 = vxor.u32 %v1497, 2147483648
  %v1525 = vxor.u32 %v1499, 2147483648
  %v1526 = vxor.u32 %v1502, 2147483648
  %v1527 = vxor.u32 %v1504, 2147483648
  %v1528 = vxor.u32 %v1507, 2147483648
  %v1529 = vxor.u32 %v1509, 2147483648
  %v1530 = vxor.u32 %v1512, 2147483648
  %v1531 = vxor.u32 %v1514, 2147483648
  %v1532 = vmul.f32 %v1516, 1.442695
  %v1533 = vpow.pop %v1532
  %v1534 = vmul.f32 %v1517, 1.442695
  %v1535 = vpow.pop %v1534
  %v1536 = vmul.f32 %v1518, 1.442695
  %v1537 = vpow.pop %v1536
  %v1538 = vmul.f32 %v1519, 1.442695
  %v1539 = vpow.pop %v1538
  %v1540 = vmul.f32 %v1520, 1.442695
  %v1541 = vpow.pop %v1540
  %v1542 = vmul.f32 %v1521, 1.442695
  %v1543 = vpow.pop %v1542
  %v1544 = vmul.f32 %v1522, 1.442695
  %v1545 = vpow.pop %v1544
  %v1546 = vmul.f32 %v1523, 1.442695
  %v1547 = vpow.pop %v1546
  %v1548 = vmul.f32 %v1524, 1.442695
  %v1549 = vpow.pop %v1548
  %v1550 = vmul.f32 %v1525, 1.442695
  %v1551 = vpow.pop %v1550
  %v1552 = vmul.f32 %v1526, 1.442695
  %v1553 = vpow.pop %v1552
  %v1554 = vmul.f32 %v1527, 1.442695
  %v1555 = vpow.pop %v1554
  %v1556 = vmul.f32 %v1528, 1.442695
  %v1557 = vpow.pop %v1556
  %v1558 = vmul.f32 %v1529, 1.442695
  %v1559 = vpow.pop %v1558
  %v1560 = vmul.f32 %v1530, 1.442695
  %v1561 = vpow.pop %v1560
  %v1562 = vmul.f32 %v1531, 1.442695
  %v1563 = vpow.pop %v1562
  %v1564 = vadd.f32 %v1533, 1.0
  %v1565 = vadd.f32 %v1535, 1.0
  %v1566 = vadd.f32 %v1537, 1.0
  %v1567 = vadd.f32 %v1539, 1.0
  %v1568 = vadd.f32 %v1541, 1.0
  %v1569 = vadd.f32 %v1543, 1.0
  %v1570 = vadd.f32 %v1545, 1.0
  %v1571 = vadd.f32 %v1547, 1.0
  %v1572 = vadd.f32 %v1549, 1.0
  %v1573 = vadd.f32 %v1551, 1.0
  %v1574 = vadd.f32 %v1553, 1.0
  %v1575 = vadd.f32 %v1555, 1.0
  %v1576 = vadd.f32 %v1557, 1.0
  %v1577 = vadd.f32 %v1559, 1.0
  %v1578 = vadd.f32 %v1561, 1.0
  %v1579 = vadd.f32 %v1563, 1.0
  %v1580 = vrcp.pop %v1564
  %v1581 = vmul.f32 %v1564, %v1580
  %v1582 = vsub.f32 1.0, %v1581
  %v1583 = vmul.f32 %v1580, %v1582
  %v1584 = vadd.f32 %v1580, %v1583
  %vm1585 = vweird.f32 %v1564
  %vm1586 = vweird.f32 %v1580
  %vm1587 = vmor %vm1585, %vm1586
  %v1588 = vsel %vm1587, %v1580, %v1584
  %v1589 = vand.u32 2147483647, %v1564
  %vm1590 = vcmp.eq.f32.partialorder %v1589, 8.507059e+37
  %v1591 = vand.u32 %v1564, 2147483648
  %v1592 = vor.u32 1.1754944e-38, %v1591
  %v1593 = vsel %vm1590, %v1592, %v1588
  %v1594 = vmul.f32 1.0, %v1593
  %v1595 = vrcp.pop %v1565
  %v1596 = vmul.f32 %v1565, %v1595
  %v1597 = vsub.f32 1.0, %v1596
  %v1598 = vmul.f32 %v1595, %v1597
  %v1599 = vadd.f32 %v1595, %v1598
  %vm1600 = vweird.f32 %v1565
  %vm1601 = vweird.f32 %v1595
  %vm1602 = vmor %vm1600, %vm1601
  %v1603 = vsel %vm1602, %v1595, %v1599
  %v1604 = vand.u32 2147483647, %v1565
  %vm1605 = vcmp.eq.f32.partialorder %v1604, 8.507059e+37
  %v1606 = vand.u32 %v1565, 2147483648
  %v1607 = vor.u32 1.1754944e-38, %v1606
  %v1608 = vsel %vm1605, %v1607, %v1603
  %v1609 = vmul.f32 1.0, %v1608
  %v1610 = vrcp.pop %v1566
  %v1611 = vmul.f32 %v1566, %v1610
  %v1612 = vsub.f32 1.0, %v1611
  %v1613 = vmul.f32 %v1610, %v1612
  %v1614 = vadd.f32 %v1610, %v1613
  %vm1615 = vweird.f32 %v1566
  %vm1616 = vweird.f32 %v1610
  %vm1617 = vmor %vm1615, %vm1616
  %v1618 = vsel %vm1617, %v1610, %v1614
  %v1619 = vand.u32 2147483647, %v1566
  %vm1620 = vcmp.eq.f32.partialorder %v1619, 8.507059e+37
  %v1621 = vand.u32 %v1566, 2147483648
  %v1622 = vor.u32 1.1754944e-38, %v1621
  %v1623 = vsel %vm1620, %v1622, %v1618
  %v1624 = vmul.f32 1.0, %v1623
  %v1625 = vrcp.pop %v1567
  %v1626 = vmul.f32 %v1567, %v1625
  %v1627 = vsub.f32 1.0, %v1626
  %v1628 = vmul.f32 %v1625, %v1627
  %v1629 = vadd.f32 %v1625, %v1628
  %vm1630 = vweird.f32 %v1567
  %vm1631 = vweird.f32 %v1625
  %vm1632 = vmor %vm1630, %vm1631
  %v1633 = vsel %vm1632, %v1625, %v1629
  %v1634 = vand.u32 2147483647, %v1567
  %vm1635 = vcmp.eq.f32.partialorder %v1634, 8.507059e+37
  %v1636 = vand.u32 %v1567, 2147483648
  %v1637 = vor.u32 1.1754944e-38, %v1636
  %v1638 = vsel %vm1635, %v1637, %v1633
  %v1639 = vmul.f32 1.0, %v1638
  %v1640 = vrcp.pop %v1568
  %v1641 = vmul.f32 %v1568, %v1640
  %v1642 = vsub.f32 1.0, %v1641
  %v1643 = vmul.f32 %v1640, %v1642
  %v1644 = vadd.f32 %v1640, %v1643
  %vm1645 = vweird.f32 %v1568
  %vm1646 = vweird.f32 %v1640
  %vm1647 = vmor %vm1645, %vm1646
  %v1648 = vsel %vm1647, %v1640, %v1644
  %v1649 = vand.u32 2147483647, %v1568
  %vm1650 = vcmp.eq.f32.partialorder %v1649, 8.507059e+37
  %v1651 = vand.u32 %v1568, 2147483648
  %v1652 = vor.u32 1.1754944e-38, %v1651
  %v1653 = vsel %vm1650, %v1652, %v1648
  %v1654 = vmul.f32 1.0, %v1653
  %v1655 = vrcp.pop %v1569
  %v1656 = vmul.f32 %v1569, %v1655
  %v1657 = vsub.f32 1.0, %v1656
  %v1658 = vmul.f32 %v1655, %v1657
  %v1659 = vadd.f32 %v1655, %v1658
  %vm1660 = vweird.f32 %v1569
  %vm1661 = vweird.f32 %v1655
  %vm1662 = vmor %vm1660, %vm1661
  %v1663 = vsel %vm1662, %v1655, %v1659
  %v1664 = vand.u32 2147483647, %v1569
  %vm1665 = vcmp.eq.f32.partialorder %v1664, 8.507059e+37
  %v1666 = vand.u32 %v1569, 2147483648
  %v1667 = vor.u32 1.1754944e-38, %v1666
  %v1668 = vsel %vm1665, %v1667, %v1663
  %v1669 = vmul.f32 1.0, %v1668
  %v1670 = vrcp.pop %v1570
  %v1671 = vmul.f32 %v1570, %v1670
  %v1672 = vsub.f32 1.0, %v1671
  %v1673 = vmul.f32 %v1670, %v1672
  %v1674 = vadd.f32 %v1670, %v1673
  %vm1675 = vweird.f32 %v1570
  %vm1676 = vweird.f32 %v1670
  %vm1677 = vmor %vm1675, %vm1676
  %v1678 = vsel %vm1677, %v1670, %v1674
  %v1679 = vand.u32 2147483647, %v1570
  %vm1680 = vcmp.eq.f32.partialorder %v1679, 8.507059e+37
  %v1681 = vand.u32 %v1570, 2147483648
  %v1682 = vor.u32 1.1754944e-38, %v1681
  %v1683 = vsel %vm1680, %v1682, %v1678
  %v1684 = vmul.f32 1.0, %v1683
  %v1685 = vrcp.pop %v1571
  %v1686 = vmul.f32 %v1571, %v1685
  %v1687 = vsub.f32 1.0, %v1686
  %v1688 = vmul.f32 %v1685, %v1687
  %v1689 = vadd.f32 %v1685, %v1688
  %vm1690 = vweird.f32 %v1571
  %vm1691 = vweird.f32 %v1685
  %vm1692 = vmor %vm1690, %vm1691
  %v1693 = vsel %vm1692, %v1685, %v1689
  %v1694 = vand.u32 2147483647, %v1571
  %vm1695 = vcmp.eq.f32.partialorder %v1694, 8.507059e+37
  %v1696 = vand.u32 %v1571, 2147483648
  %v1697 = vor.u32 1.1754944e-38, %v1696
  %v1698 = vsel %vm1695, %v1697, %v1693
  %v1699 = vmul.f32 1.0, %v1698
  %v1700 = vrcp.pop %v1572
  %v1701 = vmul.f32 %v1572, %v1700
  %v1702 = vsub.f32 1.0, %v1701
  %v1703 = vmul.f32 %v1700, %v1702
  %v1704 = vadd.f32 %v1700, %v1703
  %vm1705 = vweird.f32 %v1572
  %vm1706 = vweird.f32 %v1700
  %vm1707 = vmor %vm1705, %vm1706
  %v1708 = vsel %vm1707, %v1700, %v1704
  %v1709 = vand.u32 2147483647, %v1572
  %vm1710 = vcmp.eq.f32.partialorder %v1709, 8.507059e+37
  %v1711 = vand.u32 %v1572, 2147483648
  %v1712 = vor.u32 1.1754944e-38, %v1711
  %v1713 = vsel %vm1710, %v1712, %v1708
  %v1714 = vmul.f32 1.0, %v1713
  %v1715 = vrcp.pop %v1573
  %v1716 = vmul.f32 %v1573, %v1715
  %v1717 = vsub.f32 1.0, %v1716
  %v1718 = vmul.f32 %v1715, %v1717
  %v1719 = vadd.f32 %v1715, %v1718
  %vm1720 = vweird.f32 %v1573
  %vm1721 = vweird.f32 %v1715
  %vm1722 = vmor %vm1720, %vm1721
  %v1723 = vsel %vm1722, %v1715, %v1719
  %v1724 = vand.u32 2147483647, %v1573
  %vm1725 = vcmp.eq.f32.partialorder %v1724, 8.507059e+37
  %v1726 = vand.u32 %v1573, 2147483648
  %v1727 = vor.u32 1.1754944e-38, %v1726
  %v1728 = vsel %vm1725, %v1727, %v1723
  %v1729 = vmul.f32 1.0, %v1728
  %v1730 = vrcp.pop %v1574
  %v1731 = vmul.f32 %v1574, %v1730
  %v1732 = vsub.f32 1.0, %v1731
  %v1733 = vmul.f32 %v1730, %v1732
  %v1734 = vadd.f32 %v1730, %v1733
  %vm1735 = vweird.f32 %v1574
  %vm1736 = vweird.f32 %v1730
  %vm1737 = vmor %vm1735, %vm1736
  %v1738 = vsel %vm1737, %v1730, %v1734
  %v1739 = vand.u32 2147483647, %v1574
  %vm1740 = vcmp.eq.f32.partialorder %v1739, 8.507059e+37
  %v1741 = vand.u32 %v1574, 2147483648
  %v1742 = vor.u32 1.1754944e-38, %v1741
  %v1743 = vsel %vm1740, %v1742, %v1738
  %v1744 = vmul.f32 1.0, %v1743
  %v1745 = vrcp.pop %v1575
  %v1746 = vmul.f32 %v1575, %v1745
  %v1747 = vsub.f32 1.0, %v1746
  %v1748 = vmul.f32 %v1745, %v1747
  %v1749 = vadd.f32 %v1745, %v1748
  %vm1750 = vweird.f32 %v1575
  %vm1751 = vweird.f32 %v1745
  %vm1752 = vmor %vm1750, %vm1751
  %v1753 = vsel %vm1752, %v1745, %v1749
  %v1754 = vand.u32 2147483647, %v1575
  %vm1755 = vcmp.eq.f32.partialorder %v1754, 8.507059e+37
  %v1756 = vand.u32 %v1575, 2147483648
  %v1757 = vor.u32 1.1754944e-38, %v1756
  %v1758 = vsel %vm1755, %v1757, %v1753
  %v1759 = vmul.f32 1.0, %v1758
  %v1760 = vrcp.pop %v1576
  %v1761 = vmul.f32 %v1576, %v1760
  %v1762 = vsub.f32 1.0, %v1761
  %v1763 = vmul.f32 %v1760, %v1762
  %v1764 = vadd.f32 %v1760, %v1763
  %vm1765 = vweird.f32 %v1576
  %vm1766 = vweird.f32 %v1760
  %vm1767 = vmor %vm1765, %vm1766
  %v1768 = vsel %vm1767, %v1760, %v1764
  %v1769 = vand.u32 2147483647, %v1576
  %vm1770 = vcmp.eq.f32.partialorder %v1769, 8.507059e+37
  %v1771 = vand.u32 %v1576, 2147483648
  %v1772 = vor.u32 1.1754944e-38, %v1771
  %v1773 = vsel %vm1770, %v1772, %v1768
  %v1774 = vmul.f32 1.0, %v1773
  %v1775 = vrcp.pop %v1577
  %v1776 = vmul.f32 %v1577, %v1775
  %v1777 = vsub.f32 1.0, %v1776
  %v1778 = vmul.f32 %v1775, %v1777
  %v1779 = vadd.f32 %v1775, %v1778
  %vm1780 = vweird.f32 %v1577
  %vm1781 = vweird.f32 %v1775
  %vm1782 = vmor %vm1780, %vm1781
  %v1783 = vsel %vm1782, %v1775, %v1779
  %v1784 = vand.u32 2147483647, %v1577
  %vm1785 = vcmp.eq.f32.partialorder %v1784, 8.507059e+37
  %v1786 = vand.u32 %v1577, 2147483648
  %v1787 = vor.u32 1.1754944e-38, %v1786
  %v1788 = vsel %vm1785, %v1787, %v1783
  %v1789 = vmul.f32 1.0, %v1788
  %v1790 = vrcp.pop %v1578
  %v1791 = vmul.f32 %v1578, %v1790
  %v1792 = vsub.f32 1.0, %v1791
  %v1793 = vmul.f32 %v1790, %v1792
  %v1794 = vadd.f32 %v1790, %v1793
  %vm1795 = vweird.f32 %v1578
  %vm1796 = vweird.f32 %v1790
  %vm1797 = vmor %vm1795, %vm1796
  %v1798 = vsel %vm1797, %v1790, %v1794
  %v1799 = vand.u32 2147483647, %v1578
  %vm1800 = vcmp.eq.f32.partialorder %v1799, 8.507059e+37
  %v1801 = vand.u32 %v1578, 2147483648
  %v1802 = vor.u32 1.1754944e-38, %v1801
  %v1803 = vsel %vm1800, %v1802, %v1798
  %v1804 = vmul.f32 1.0, %v1803
  %v1805 = vrcp.pop %v1579
  %v1806 = vmul.f32 %v1579, %v1805
  %v1807 = vsub.f32 1.0, %v1806
  %v1808 = vmul.f32 %v1805, %v1807
  %v1809 = vadd.f32 %v1805, %v1808
  %vm1810 = vweird.f32 %v1579
  %vm1811 = vweird.f32 %v1805
  %vm1812 = vmor %vm1810, %vm1811
  %v1813 = vsel %vm1812, %v1805, %v1809
  %v1814 = vand.u32 2147483647, %v1579
  %vm1815 = vcmp.eq.f32.partialorder %v1814, 8.507059e+37
  %v1816 = vand.u32 %v1579, 2147483648
  %v1817 = vor.u32 1.1754944e-38, %v1816
  %v1818 = vsel %vm1815, %v1817, %v1813
  %v1819 = vmul.f32 1.0, %v1818
  %v1820 = vmul.f32 %v1477, %v1594
  %v1821 = vmul.f32 %v1479, %v1609
  %v1822 = vmul.f32 %v1482, %v1624
  %v1823 = vmul.f32 %v1484, %v1639
  %v1824 = vmul.f32 %v1487, %v1654
  %v1825 = vmul.f32 %v1489, %v1669
  %v1826 = vmul.f32 %v1492, %v1684
  %v1827 = vmul.f32 %v1494, %v1699
  %v1828 = vmul.f32 %v1497, %v1714
  %v1829 = vmul.f32 %v1499, %v1729
  %v1830 = vmul.f32 %v1502, %v1744
  %v1831 = vmul.f32 %v1504, %v1759
  %v1832 = vmul.f32 %v1507, %v1774
  %v1833 = vmul.f32 %v1509, %v1789
  %v1834 = vmul.f32 %v1512, %v1804
  %v1835 = vmul.f32 %v1514, %v1819
  %v1836 = vadd.f32 %v926, %v1820
  %v1837 = vadd.f32 %v927, %v1821
  %v1838 = vadd.f32 %v928, %v1822
  %v1839 = vadd.f32 %v929, %v1823
  %v1840 = vadd.f32 %v930, %v1824
  %v1841 = vadd.f32 %v931, %v1825
  %v1842 = vadd.f32 %v932, %v1826
  %v1843 = vadd.f32 %v933, %v1827
  %v1844 = vadd.f32 %v934, %v1828
  %v1845 = vadd.f32 %v935, %v1829
  %v1846 = vadd.f32 %v936, %v1830
  %v1847 = vadd.f32 %v937, %v1831
  %v1848 = vadd.f32 %v938, %v1832
  %v1849 = vadd.f32 %v939, %v1833
  %v1850 = vadd.f32 %v940, %v1834
  %v1851 = vadd.f32 %v941, %v1835
  %1852 = vst [vmem:[%s5] sm:$0xff] %v1836
  %1853 = vst [vmem:[%s5 + $0x8] sm:$0xff] %v1837
  %1854 = vst [vmem:[%s5 + $0x10] sm:$0xff] %v1838
  %1855 = vst [vmem:[%s5 + $0x18] sm:$0xff] %v1839
  %1856 = vst [vmem:[%s5 + $0x20] sm:$0xff] %v1840
  %1857 = vst [vmem:[%s5 + $0x28] sm:$0xff] %v1841
  %1858 = vst [vmem:[%s5 + $0x30] sm:$0xff] %v1842
  %1859 = vst [vmem:[%s5 + $0x38] sm:$0xff] %v1843
  %1860 = vst [vmem:[%s5 + $0x40] sm:$0xff] %v1844
  %1861 = vst [vmem:[%s5 + $0x48] sm:$0xff] %v1845
  %1862 = vst [vmem:[%s5 + $0x50] sm:$0xff] %v1846
  %1863 = vst [vmem:[%s5 + $0x58] sm:$0xff] %v1847
  %1864 = vst [vmem:[%s5 + $0x60] sm:$0xff] %v1848
  %1865 = vst [vmem:[%s5 + $0x68] sm:$0xff] %v1849
  %1866 = vst [vmem:[%s5 + $0x70] sm:$0xff] %v1850
  %1867 = vst [vmem:[%s5 + $0x78] sm:$0xff] %v1851
  // Predicated region
  $region22: #{forward.36} parent=0 // pred_check
    _
  $region23: #{forward.36} parent=0 // pred_check_branch
    %1869 = sbr.rel (0) target = $region25
  $region24: #{forward.36} parent=0 // pred_region
    _
  $region25: #{forward.36} parent=0 // pred_fallthru
    _
  // Predicated region
  $region26: #{forward.36} parent=0 // pred_check
    _
  $region27: #{forward.36} parent=0 // pred_check_branch
    %1871 = sbr.rel (0) target = $region29
  $region28: #{forward.36} parent=0 // pred_region
    _
  $region29: #{forward.36} parent=0 // pred_fallthru
    _

// kernel: forward.46
$region0: #{forward.46}
  #allocation0 [shape = 'u32[]', space=smem, size = 0x4, offset = 0x4, fixed_abs, tag = 'smem constant byte address 0x4 - core index']
  #allocation1 [shape = 'u32[72,128]{1,0:T(1,128)}', space=vmem, size = 0x9000, scoped, tag = 'internal scratch']
  #allocation2 [shape = 's32[1]{0}', space=sflag, size = 0x4, scoped, tag = 'scoped memory for forward.46']
  #allocation3 [shape = 's32[1]{0:T(128)S(6)}', space=smem, size = 0x200, scoped, tag = 'prefetched SMEM operand 0']
  #allocation4 [shape = 's32[1]{0:T(128)S(6)}', space=smem, size = 0x200, scoped, tag = 'prefetched SMEM operand 1']
  %s0 = inlined_call_operand.<no memory space> [shape: s32[1], index: 0, kind: input, shape index: {}]
  %s1 = inlined_call_operand.<no memory space> [shape: s32[1], index: 1, kind: input, shape index: {}]
  %s2 = inlined_call_operand.vmem [shape: s32[1,128], index: 2, kind: input, shape index: {}]
  %s3 = inlined_call_operand.vmem [shape: f32[128,128], index: 3, kind: input, shape index: {}]
  %s4 = inlined_call_operand.vmem [shape: f32[128,128], index: 4, kind: input, shape index: {}]
  %s5 = inlined_call_operand.vmem [shape: f32[8,128], index: 5, kind: output, shape index: {}]
  %s6 = sld [smem:[#allocation0]]
  $region30: #{forward.46} parent=0
    _
  %s8 = ssub.s32 1, %s6
  %s9 = scalar_select 0, %s8, %s6
  %10 = sst [smem:[#allocation3]] %s0
  %11 = sst [smem:[#allocation4]] %s1
  // Predicated region
  $region2: #{forward.46} parent=0 // pred_check
    _
  $region3: #{forward.46} parent=0 // pred_check_branch
    %13 = sbr.rel (0) target = $region5
  $region4: #{forward.46} parent=0 // pred_region
    %s14 = sld [smem:[#allocation3]]
    %s15 = sadd.s32 %s14, 0
    %p16 = scmp.lt.s32.totalorder %s15, 0
    %s17 = scalar_select %p16, %s15, 0
    %p18 = scmp.lt.s32.totalorder %s17, 0
    %s19 = scalar_select %p18, %s17, 0
    %s20 = scalar_lea.vmem %s2, %s19
    %s21 = sld [smem:[#allocation3]]
    %s22 = sadd.s32 %s21, 0
    %p23 = scmp.lt.s32.totalorder %s22, 0
    %s24 = scalar_select %p23, %s22, 0
  $region5: #{forward.46} parent=0 // pred_fallthru
    _
  // Predicated region
  $region6: #{forward.46} parent=0 // pred_check
    _
  $region7: #{forward.46} parent=0 // pred_check_branch
    %26 = sbr.rel (0) target = $region9
  $region8: #{forward.46} parent=0 // pred_region
    %s27 = sld [smem:[#allocation3]]
    %s28 = sadd.s32 %s27, 0
    %p29 = scmp.lt.s32.totalorder %s28, 0
    %s30 = scalar_select %p29, %s28, 0
    %s31 = smul.u32 16, %s30
    %p32 = scmp.lt.s32.totalorder %s31, 15
    %s33 = scalar_select %p32, %s31, 15
    %s34 = smul.addr %s33, 8
    %s35 = scalar_lea.vmem %s3, %s34
    %s36 = sld [smem:[#allocation3]]
    %s37 = sadd.s32 %s36, 0
    %p38 = scmp.lt.s32.totalorder %s37, 0
    %s39 = scalar_select %p38, %s37, 0
    %s40 = smul.u32 16, %s39
  $region9: #{forward.46} parent=0 // pred_fallthru
    _
  // Predicated region
  $region10: #{forward.46} parent=0 // pred_check
    _
  $region11: #{forward.46} parent=0 // pred_check_branch
    %42 = sbr.rel (0) target = $region13
  $region12: #{forward.46} parent=0 // pred_region
    %s43 = sld [smem:[#allocation3]]
    %s44 = sadd.s32 %s43, 0
    %p45 = scmp.lt.s32.totalorder %s44, 0
    %s46 = scalar_select %p45, %s44, 0
    %s47 = smul.u32 16, %s46
    %p48 = scmp.lt.s32.totalorder %s47, 15
    %s49 = scalar_select %p48, %s47, 15
    %s50 = smul.addr %s49, 8
    %s51 = scalar_lea.vmem %s4, %s50
    %s52 = sld [smem:[#allocation3]]
    %s53 = sadd.s32 %s52, 0
    %p54 = scmp.lt.s32.totalorder %s53, 0
    %s55 = scalar_select %p54, %s53, 0
    %s56 = smul.u32 16, %s55
  $region13: #{forward.46} parent=0 // pred_fallthru
    _
  %s57 = sld [smem:[#allocation3]]
  %s58 = sadd.s32 %s57, 0
  %p59 = scmp.lt.s32.totalorder %s58, 0
  %s60 = scalar_select %p59, %s58, 0
  %p61 = scmp.lt.s32.totalorder %s60, 0
  %s62 = scalar_select %p61, %s60, 0
  %s63 = scalar_lea.vmem %s2, %s62
  %s64 = sld [smem:[#allocation3]]
  %s65 = sadd.s32 %s64, 0
  %p66 = scmp.lt.s32.totalorder %s65, 0
  %s67 = scalar_select %p66, %s65, 0
  %s68 = smul.u32 16, %s67
  %p69 = scmp.lt.s32.totalorder %s68, 15
  %s70 = scalar_select %p69, %s68, 15
  %s71 = smul.addr %s70, 8
  %s72 = scalar_lea.vmem %s3, %s71
  %s73 = sld [smem:[#allocation3]]
  %s74 = sadd.s32 %s73, 0
  %p75 = scmp.lt.s32.totalorder %s74, 0
  %s76 = scalar_select %p75, %s74, 0
  %s77 = smul.u32 16, %s76
  %p78 = scmp.lt.s32.totalorder %s77, 15
  %s79 = scalar_select %p78, %s77, 15
  %s80 = smul.addr %s79, 8
  %s81 = scalar_lea.vmem %s4, %s80
  %s82 = sld [smem:[#allocation3]]
  %s83 = sadd.s32 %s82, 0
  %p84 = scmp.lt.s32.totalorder %s83, 0
  %s85 = scalar_select %p84, %s83, 0
  %p86 = scmp.lt.s32.totalorder %s85, 0
  %s87 = scalar_select %p86, %s85, 0
  %s88 = scalar_lea.vmem %s2, %s87
  %s89 = sld [smem:[#allocation3]]
  %s90 = sadd.s32 %s89, 0
  %p91 = scmp.lt.s32.totalorder %s90, 0
  %s92 = scalar_select %p91, %s90, 0
  %s93 = sld [smem:[#allocation3]]
  %s94 = sadd.s32 %s93, 0
  %p95 = scmp.lt.s32.totalorder %s94, 0
  %s96 = scalar_select %p95, %s94, 0
  %s97 = smul.u32 16, %s96
  %p98 = scmp.lt.s32.totalorder %s97, 15
  %s99 = scalar_select %p98, %s97, 15
  %s100 = smul.addr %s99, 8
  %s101 = scalar_lea.vmem %s3, %s100
  %s102 = sld [smem:[#allocation3]]
  %s103 = sadd.s32 %s102, 0
  %p104 = scmp.lt.s32.totalorder %s103, 0
  %s105 = scalar_select %p104, %s103, 0
  %s106 = smul.u32 16, %s105
  %s107 = sld [smem:[#allocation3]]
  %s108 = sadd.s32 %s107, 0
  %p109 = scmp.lt.s32.totalorder %s108, 0
  %s110 = scalar_select %p109, %s108, 0
  %s111 = smul.u32 16, %s110
  %p112 = scmp.lt.s32.totalorder %s111, 15
  %s113 = scalar_select %p112, %s111, 15
  %s114 = smul.addr %s113, 8
  %s115 = scalar_lea.vmem %s4, %s114
  %s116 = sld [smem:[#allocation3]]
  %s117 = sadd.s32 %s116, 0
  %p118 = scmp.lt.s32.totalorder %s117, 0
  %s119 = scalar_select %p118, %s117, 0
  %s120 = smul.u32 16, %s119
  %p121 = scmp.eq.s32.totalorder 0, 0
  // Predicated region
  $region14: #{forward.46} parent=0 // pred_check
    %p122 = pneg %p121
  $region15: #{forward.46} parent=0 // pred_check_branch
    %124 = sbr.rel (%p122) target = $region17
  $region16: #{forward.46} parent=0 // pred_region
    %125 = vst [vmem:[%s5] sm:$0xff] 0.0
  $region17: #{forward.46} parent=0 // pred_fallthru
    _
  %s126 = sld [smem:[#allocation4]]
  %p127 = scmp.lt.s32.totalorder 0, %s126
  // Predicated region
  $region18: #{forward.46} parent=0 // pred_check
    %p128 = pneg %p127
  $region19: #{forward.46} parent=0 // pred_check_branch
    %130 = sbr.rel (%p128) target = $region21
  $region20: #{forward.46} parent=0 // pred_region
    %v131 = vld [vmem:[%s88] sm:$0x1]
    %v132 = vlaneseq
    %v133 = vshrl.u32 %v132, 7
    %s134 = smul.u32 0, 8
    %v135 = vstv %s134
    %v136 = vadd.s32 %v133, %v135
    %v137 = vperm.slane %v131, 0
    %vm138 = vcmp.eq.s32.totalorder %v136, %v137
    %v139 = vsel %vm138, 1, 0
    %v140 = vcvt.s32.f32 %v139
    %v141 = vpack.c.bf16 %v140, %v140
    %v142 = vld [vmem:[%s101] sm:$0xff]
    %v143 = vld [vmem:[%s101 + $0x8] sm:$0xff]
    %v144 = vld [vmem:[%s101 + $0x10] sm:$0xff]
    %v145 = vld [vmem:[%s101 + $0x18] sm:$0xff]
    %v146 = vld [vmem:[%s101 + $0x20] sm:$0xff]
    %v147 = vld [vmem:[%s101 + $0x28] sm:$0xff]
    %v148 = vld [vmem:[%s101 + $0x30] sm:$0xff]
    %v149 = vld [vmem:[%s101 + $0x38] sm:$0xff]
    %v150 = vld [vmem:[%s101 + $0x40] sm:$0xff]
    %v151 = vld [vmem:[%s101 + $0x48] sm:$0xff]
    %v152 = vld [vmem:[%s101 + $0x50] sm:$0xff]
    %v153 = vld [vmem:[%s101 + $0x58] sm:$0xff]
    %v154 = vld [vmem:[%s101 + $0x60] sm:$0xff]
    %v155 = vld [vmem:[%s101 + $0x68] sm:$0xff]
    %v156 = vld [vmem:[%s101 + $0x70] sm:$0xff]
    %v157 = vld [vmem:[%s101 + $0x78] sm:$0xff]
    %v158 = vld [vmem:[%s115] sm:$0xff]
    %v159 = vld [vmem:[%s115 + $0x8] sm:$0xff]
    %v160 = vld [vmem:[%s115 + $0x10] sm:$0xff]
    %v161 = vld [vmem:[%s115 + $0x18] sm:$0xff]
    %v162 = vld [vmem:[%s115 + $0x20] sm:$0xff]
    %v163 = vld [vmem:[%s115 + $0x28] sm:$0xff]
    %v164 = vld [vmem:[%s115 + $0x30] sm:$0xff]
    %v165 = vld [vmem:[%s115 + $0x38] sm:$0xff]
    %v166 = vld [vmem:[%s115 + $0x40] sm:$0xff]
    %v167 = vld [vmem:[%s115 + $0x48] sm:$0xff]
    %v168 = vld [vmem:[%s115 + $0x50] sm:$0xff]
    %v169 = vld [vmem:[%s115 + $0x58] sm:$0xff]
    %v170 = vld [vmem:[%s115 + $0x60] sm:$0xff]
    %v171 = vld [vmem:[%s115 + $0x68] sm:$0xff]
    %v172 = vld [vmem:[%s115 + $0x70] sm:$0xff]
    %v173 = vld [vmem:[%s115 + $0x78] sm:$0xff]
    %v174 = vmul.f32 %v142, %v158
    %v175 = vmul.f32 %v143, %v159
    %v176 = vmul.f32 %v144, %v160
    %v177 = vmul.f32 %v145, %v161
    %v178 = vmul.f32 %v146, %v162
    %v179 = vmul.f32 %v147, %v163
    %v180 = vmul.f32 %v148, %v164
    %v181 = vmul.f32 %v149, %v165
    %v182 = vmul.f32 %v150, %v166
    %v183 = vmul.f32 %v151, %v167
    %v184 = vmul.f32 %v152, %v168
    %v185 = vmul.f32 %v153, %v169
    %v186 = vmul.f32 %v154, %v170
    %v187 = vmul.f32 %v155, %v171
    %v188 = vmul.f32 %v156, %v172
    %v189 = vmul.f32 %v157, %v173
    %v190 = vld [vmem:[%s5] sm:$0xff]
    %v191 = vpack.c.bf16 %v175, %v174
    %v192 = vpack.c.bf16 %v177, %v176
    %v193 = vpack.c.bf16 %v179, %v178
    %v194 = vpack.c.bf16 %v181, %v180
    %v195 = vpack.c.bf16 %v183, %v182
    %v196 = vpack.c.bf16 %v185, %v184
    %v197 = vpack.c.bf16 %v187, %v186
    %v198 = vpack.c.bf16 %v189, %v188
    %199 = vmatpush.bf16.msra.mxu0 %v198
    %200 = vmatpush.bf16.msra.mxu0 %v197
    %201 = vmatpush.bf16.msra.mxu0 %v196
    %202 = vmatpush.bf16.msra.mxu0 %v195
    %203 = vmatpush.bf16.msra.mxu0 %v194
    %204 = vmatpush.bf16.msra.mxu0 %v193
    %205 = vmatpush.bf16.msra.mxu0 %v192
    %206 = vmatpush.bf16.msra.mxu0 %v191
    %207 = vmatmul.bf16.gmra.mxu0 %v141
    %v208 = vpop.f32.mrf.mxu0
    %v209 = vadd.f32 0.0, %v208
    %v210 = vpop.f32.mrf.mxu0
    %211 = vdwg.mxu0
    %v212 = vadd.f32 %v190, %v209
    %213 = vst [vmem:[%s5] sm:$0xff] %v212
  $region21: #{forward.46} parent=0 // pred_fallthru
    _
  // Predicated region
  $region22: #{forward.46} parent=0 // pred_check
    _
  $region23: #{forward.46} parent=0 // pred_check_branch
    %215 = sbr.rel (0) target = $region25
  $region24: #{forward.46} parent=0 // pred_region
    _
  $region25: #{forward.46} parent=0 // pred_fallthru
    _
  // Predicated region
  $region26: #{forward.46} parent=0 // pred_check
    _
  $region27: #{forward.46} parent=0 // pred_check_branch
    %217 = sbr.rel (0) target = $region29
  $region28: #{forward.46} parent=0 // pred_region
    _
  $region29: #{forward.46} parent=0 // pred_fallthru
    _

// kernel: forward.47
$region0: #{forward.47}
  #allocation0 [shape = 'u32[]', space=smem, size = 0x4, offset = 0x4, fixed_abs, tag = 'smem constant byte address 0x4 - core index']
  #allocation1 [shape = 'u32[72,128]{1,0:T(1,128)}', space=vmem, size = 0x9000, scoped, tag = 'internal scratch']
  %s0 = inlined_call_operand.vmem [shape: f32[8,128], index: 0, kind: input, shape index: {}]
  %s1 = inlined_call_operand.vmem [shape: bf16[128,128], index: 1, kind: input, shape index: {}]
  %s2 = inlined_call_operand.vmem [shape: bf16[2,128,128], index: 2, kind: input, shape index: {}]
  %s3 = inlined_call_operand.vmem [shape: f32[2,1,128], index: 3, kind: input, shape index: {}]
  %s4 = inlined_call_operand.vmem [shape: f32[8,128], index: 4, kind: output, shape index: {}]
  %s5 = sld [smem:[#allocation0]]
  $region26: #{forward.47} parent=0
    _
  %s7 = ssub.s32 1, %s5
  %s8 = scalar_select 0, %s7, %s5
  // Predicated region
  $region2: #{forward.47} parent=0 // pred_check
    _
  $region3: #{forward.47} parent=0 // pred_check_branch
    %10 = sbr.rel (0) target = $region5
  $region4: #{forward.47} parent=0 // pred_region
    _
  $region5: #{forward.47} parent=0 // pred_fallthru
    _
  // Predicated region
  $region6: #{forward.47} parent=0 // pred_check
    _
  $region7: #{forward.47} parent=0 // pred_check_branch
    %12 = sbr.rel (0) target = $region9
  $region8: #{forward.47} parent=0 // pred_region
    _
  $region9: #{forward.47} parent=0 // pred_fallthru
    _
  // Predicated region
  $region10: #{forward.47} parent=0 // pred_check
    _
  $region11: #{forward.47} parent=0 // pred_check_branch
    %14 = sbr.rel (0) target = $region13
  $region12: #{forward.47} parent=0 // pred_region
    _
  $region13: #{forward.47} parent=0 // pred_fallthru
    _
  // Predicated region
  $region14: #{forward.47} parent=0 // pred_check
    _
  $region15: #{forward.47} parent=0 // pred_check_branch
    %16 = sbr.rel (0) target = $region17
  $region16: #{forward.47} parent=0 // pred_region
    _
  $region17: #{forward.47} parent=0 // pred_fallthru
    _
  %v17 = vld [vmem:[%s0] sm:$0xff]
  %v18 = vpack.c.bf16 %v17, %v17
  %v19 = vld [vmem:[%s1] sm:$0xf]
  %v20 = vld [vmem:[%s1 + $0x4] sm:$0xf]
  %v21 = vld [vmem:[%s1 + $0x8] sm:$0xf]
  %v22 = vld [vmem:[%s1 + $0xc] sm:$0xf]
  %v23 = vld [vmem:[%s1 + $0x10] sm:$0xf]
  %v24 = vld [vmem:[%s1 + $0x14] sm:$0xf]
  %v25 = vld [vmem:[%s1 + $0x18] sm:$0xf]
  %v26 = vld [vmem:[%s1 + $0x1c] sm:$0xf]
  %v27 = vld [vmem:[%s1 + $0x20] sm:$0xf]
  %v28 = vld [vmem:[%s1 + $0x24] sm:$0xf]
  %v29 = vld [vmem:[%s1 + $0x28] sm:$0xf]
  %v30 = vld [vmem:[%s1 + $0x2c] sm:$0xf]
  %v31 = vld [vmem:[%s1 + $0x30] sm:$0xf]
  %v32 = vld [vmem:[%s1 + $0x34] sm:$0xf]
  %v33 = vld [vmem:[%s1 + $0x38] sm:$0xf]
  %v34 = vld [vmem:[%s1 + $0x3c] sm:$0xf]
  %v51 = vunpack.c.l.b16 %v19
  %v52 = vunpack.c.l.b16 %v20
  %v53 = vunpack.c.l.b16 %v21
  %v54 = vunpack.c.l.b16 %v22
  %v55 = vunpack.c.l.b16 %v23
  %v56 = vunpack.c.l.b16 %v24
  %v57 = vunpack.c.l.b16 %v25
  %v58 = vunpack.c.l.b16 %v26
  %v59 = vunpack.c.l.b16 %v27
  %v60 = vunpack.c.l.b16 %v28
  %v61 = vunpack.c.l.b16 %v29
  %v62 = vunpack.c.l.b16 %v30
  %v63 = vunpack.c.l.b16 %v31
  %v64 = vunpack.c.l.b16 %v32
  %v65 = vunpack.c.l.b16 %v33
  %v66 = vunpack.c.l.b16 %v34
  %v67 = vpack.c.b16 %v52, %v51
  %v68 = vpack.c.b16 %v54, %v53
  %v69 = vpack.c.b16 %v56, %v55
  %v70 = vpack.c.b16 %v58, %v57
  %v71 = vpack.c.b16 %v60, %v59
  %v72 = vpack.c.b16 %v62, %v61
  %v73 = vpack.c.b16 %v64, %v63
  %v74 = vpack.c.b16 %v66, %v65
  %83 = vmatpush.bf16.msra.mxu0 %v74
  %84 = vmatpush.bf16.msra.mxu0 %v73
  %85 = vmatpush.bf16.msra.mxu0 %v72
  %86 = vmatpush.bf16.msra.mxu0 %v71
  %87 = vmatpush.bf16.msra.mxu0 %v70
  %88 = vmatpush.bf16.msra.mxu0 %v69
  %89 = vmatpush.bf16.msra.mxu0 %v68
  %90 = vmatpush.bf16.msra.mxu0 %v67
  %91 = vmatmul.bf16.gmra.mxu0 %v18
  %v92 = vpop.f32.mrf.mxu0
  %v93 = vadd.f32 0.0, %v92
  %v94 = vpop.f32.mrf.mxu0
  %95 = vdwg.mxu0
  %v96 = vpack.c.bf16 %v93, %v93
  %v97 = vld [vmem:[%s2] sm:$0xf]
  %v98 = vld [vmem:[%s2 + $0x4] sm:$0xf]
  %v99 = vld [vmem:[%s2 + $0x8] sm:$0xf]
  %v100 = vld [vmem:[%s2 + $0xc] sm:$0xf]
  %v101 = vld [vmem:[%s2 + $0x10] sm:$0xf]
  %v102 = vld [vmem:[%s2 + $0x14] sm:$0xf]
  %v103 = vld [vmem:[%s2 + $0x18] sm:$0xf]
  %v104 = vld [vmem:[%s2 + $0x1c] sm:$0xf]
  %v105 = vld [vmem:[%s2 + $0x20] sm:$0xf]
  %v106 = vld [vmem:[%s2 + $0x24] sm:$0xf]
  %v107 = vld [vmem:[%s2 + $0x28] sm:$0xf]
  %v108 = vld [vmem:[%s2 + $0x2c] sm:$0xf]
  %v109 = vld [vmem:[%s2 + $0x30] sm:$0xf]
  %v110 = vld [vmem:[%s2 + $0x34] sm:$0xf]
  %v111 = vld [vmem:[%s2 + $0x38] sm:$0xf]
  %v112 = vld [vmem:[%s2 + $0x3c] sm:$0xf]
  %v113 = vld [vmem:[%s3] sm:$0x1]
  %v115 = vperm.slane %v113, 0
  %v133 = vunpack.c.l.b16 %v97
  %v134 = vunpack.c.l.b16 %v98
  %v135 = vunpack.c.l.b16 %v99
  %v136 = vunpack.c.l.b16 %v100
  %v137 = vunpack.c.l.b16 %v101
  %v138 = vunpack.c.l.b16 %v102
  %v139 = vunpack.c.l.b16 %v103
  %v140 = vunpack.c.l.b16 %v104
  %v141 = vunpack.c.l.b16 %v105
  %v142 = vunpack.c.l.b16 %v106
  %v143 = vunpack.c.l.b16 %v107
  %v144 = vunpack.c.l.b16 %v108
  %v145 = vunpack.c.l.b16 %v109
  %v146 = vunpack.c.l.b16 %v110
  %v147 = vunpack.c.l.b16 %v111
  %v148 = vunpack.c.l.b16 %v112
  %v149 = vpack.c.b16 %v134, %v133
  %v150 = vpack.c.b16 %v136, %v135
  %v151 = vpack.c.b16 %v138, %v137
  %v152 = vpack.c.b16 %v140, %v139
  %v153 = vpack.c.b16 %v142, %v141
  %v154 = vpack.c.b16 %v144, %v143
  %v155 = vpack.c.b16 %v146, %v145
  %v156 = vpack.c.b16 %v148, %v147
  %165 = vmatpush.bf16.msra.mxu0 %v156
  %166 = vmatpush.bf16.msra.mxu0 %v155
  %167 = vmatpush.bf16.msra.mxu0 %v154
  %168 = vmatpush.bf16.msra.mxu0 %v153
  %169 = vmatpush.bf16.msra.mxu0 %v152
  %170 = vmatpush.bf16.msra.mxu0 %v151
  %171 = vmatpush.bf16.msra.mxu0 %v150
  %172 = vmatpush.bf16.msra.mxu0 %v149
  %173 = vmatmul.bf16.gmra.mxu0 %v96
  %v174 = vpop.f32.mrf.mxu0
  %v175 = vadd.f32 %v115, %v174
  %v176 = vpop.f32.mrf.mxu0
  %177 = vdwg.mxu0
  %v178 = vxor.u32 %v175, 2147483648
  %v179 = vmul.f32 %v178, 1.442695
  %v180 = vpow.pop %v179
  %v181 = vadd.f32 %v180, 1.0
  %v182 = vrcp.pop %v181
  %v183 = vmul.f32 %v181, %v182
  %v184 = vsub.f32 1.0, %v183
  %v185 = vmul.f32 %v182, %v184
  %v186 = vadd.f32 %v182, %v185
  %vm187 = vweird.f32 %v181
  %vm188 = vweird.f32 %v182
  %vm189 = vmor %vm187, %vm188
  %v190 = vsel %vm189, %v182, %v186
  %v191 = vand.u32 2147483647, %v181
  %vm192 = vcmp.eq.f32.partialorder %v191, 8.507059e+37
  %v193 = vand.u32 %v181, 2147483648
  %v194 = vor.u32 1.1754944e-38, %v193
  %v195 = vsel %vm192, %v194, %v190
  %v196 = vmul.f32 1.0, %v195
  %v197 = vmul.f32 %v175, %v196
  %v198 = vpack.c.bf16 %v197, %v197
  %s199 = scalar_lea.vmem %s2, 64
  %v200 = vld [vmem:[%s199] sm:$0xf]
  %v201 = vld [vmem:[%s199 + $0x4] sm:$0xf]
  %v202 = vld [vmem:[%s199 + $0x8] sm:$0xf]
  %v203 = vld [vmem:[%s199 + $0xc] sm:$0xf]
  %v204 = vld [vmem:[%s199 + $0x10] sm:$0xf]
  %v205 = vld [vmem:[%s199 + $0x14] sm:$0xf]
  %v206 = vld [vmem:[%s199 + $0x18] sm:$0xf]
  %v207 = vld [vmem:[%s199 + $0x1c] sm:$0xf]
  %v208 = vld [vmem:[%s199 + $0x20] sm:$0xf]
  %v209 = vld [vmem:[%s199 + $0x24] sm:$0xf]
  %v210 = vld [vmem:[%s199 + $0x28] sm:$0xf]
  %v211 = vld [vmem:[%s199 + $0x2c] sm:$0xf]
  %v212 = vld [vmem:[%s199 + $0x30] sm:$0xf]
  %v213 = vld [vmem:[%s199 + $0x34] sm:$0xf]
  %v214 = vld [vmem:[%s199 + $0x38] sm:$0xf]
  %v215 = vld [vmem:[%s199 + $0x3c] sm:$0xf]
  %s216 = scalar_lea.vmem %s3, 1
  %v217 = vld [vmem:[%s216] sm:$0x1]
  %v219 = vperm.slane %v217, 0
  %v237 = vunpack.c.l.b16 %v200
  %v238 = vunpack.c.l.b16 %v201
  %v239 = vunpack.c.l.b16 %v202
  %v240 = vunpack.c.l.b16 %v203
  %v241 = vunpack.c.l.b16 %v204
  %v242 = vunpack.c.l.b16 %v205
  %v243 = vunpack.c.l.b16 %v206
  %v244 = vunpack.c.l.b16 %v207
  %v245 = vunpack.c.l.b16 %v208
  %v246 = vunpack.c.l.b16 %v209
  %v247 = vunpack.c.l.b16 %v210
  %v248 = vunpack.c.l.b16 %v211
  %v249 = vunpack.c.l.b16 %v212
  %v250 = vunpack.c.l.b16 %v213
  %v251 = vunpack.c.l.b16 %v214
  %v252 = vunpack.c.l.b16 %v215
  %v253 = vpack.c.b16 %v238, %v237
  %v254 = vpack.c.b16 %v240, %v239
  %v255 = vpack.c.b16 %v242, %v241
  %v256 = vpack.c.b16 %v244, %v243
  %v257 = vpack.c.b16 %v246, %v245
  %v258 = vpack.c.b16 %v248, %v247
  %v259 = vpack.c.b16 %v250, %v249
  %v260 = vpack.c.b16 %v252, %v251
  %269 = vmatpush.bf16.msra.mxu0 %v260
  %270 = vmatpush.bf16.msra.mxu0 %v259
  %271 = vmatpush.bf16.msra.mxu0 %v258
  %272 = vmatpush.bf16.msra.mxu0 %v257
  %273 = vmatpush.bf16.msra.mxu0 %v256
  %274 = vmatpush.bf16.msra.mxu0 %v255
  %275 = vmatpush.bf16.msra.mxu0 %v254
  %276 = vmatpush.bf16.msra.mxu0 %v253
  %277 = vmatmul.bf16.gmra.mxu0 %v198
  %v278 = vpop.f32.mrf.mxu0
  %v279 = vadd.f32 %v219, %v278
  %v280 = vpop.f32.mrf.mxu0
  %281 = vdwg.mxu0
  %v282 = vxor.u32 %v279, 2147483648
  %v283 = vmul.f32 %v282, 1.442695
  %v284 = vpow.pop %v283
  %v285 = vadd.f32 %v284, 1.0
  %v286 = vrcp.pop %v285
  %v287 = vmul.f32 %v285, %v286
  %v288 = vsub.f32 1.0, %v287
  %v289 = vmul.f32 %v286, %v288
  %v290 = vadd.f32 %v286, %v289
  %vm291 = vweird.f32 %v285
  %vm292 = vweird.f32 %v286
  %vm293 = vmor %vm291, %vm292
  %v294 = vsel %vm293, %v286, %v290
  %v295 = vand.u32 2147483647, %v285
  %vm296 = vcmp.eq.f32.partialorder %v295, 8.507059e+37
  %v297 = vand.u32 %v285, 2147483648
  %v298 = vor.u32 1.1754944e-38, %v297
  %v299 = vsel %vm296, %v298, %v294
  %v300 = vmul.f32 1.0, %v299
  %v301 = vmul.f32 %v279, %v300
  %302 = vst [vmem:[%s4] sm:$0xff] %v301
  // Predicated region
  $region18: #{forward.47} parent=0 // pred_check
    _
  $region19: #{forward.47} parent=0 // pred_check_branch
    %304 = sbr.rel (0) target = $region21
  $region20: #{forward.47} parent=0 // pred_region
    _
  $region21: #{forward.47} parent=0 // pred_fallthru
    _
  // Predicated region
  $region22: #{forward.47} parent=0 // pred_check
    _
  $region23: #{forward.47} parent=0 // pred_check_branch
    %306 = sbr.rel (0) target = $region25
  $region24: #{forward.47} parent=0 // pred_region
    _
  $region25: #{forward.47} parent=0 // pred_fallthru
    _

</llo_original>
